<compile_context>
chip_gen: v6e
topology: v6e:2x2x1
jax: 0.10.0
libtpu: 0.0.40
codegen_flags: <defaults>
</compile_context>

<pallas_src>
import math
import functools

import jax
import jax.numpy as jnp
from jax import lax
from jax.experimental import pallas as pl
from jax.experimental.pallas import tpu as pltpu

# ----------------------- configuration (small synthetic) --------------------
ENC_DIM = 16       # enc_dim (E)
FEATURE_DIM = 16   # feature_dim (F)
HIDDEN_DIM = 16    # hidden_dim (H) per LSTM direction
NUM_LAYERS = 2     # layer
SEGMENT_SIZE = 8   # segment_size
NSPK = 2           # nspk
WIN = 2            # win_len
STRIDE = WIN // 2
EPS = 1e-8
PRELU_ALPHA = 0.25  # nn.PReLU() init value; kept static (inference-only weights)


# ============================ Pallas kernels ================================

def encoder_frontend(frames2d, enc_w, ln_g, ln_b, bn_w, nb, rows_per_group):
    """Fused: Conv1d(1,E,WIN,stride,bias=False)+ReLU (VPU broadcast-FMA),
    enc_LN = GroupNorm(1,E) per sample (masked stats, no per-sample loop of
    matmuls/stores), and the bottleneck 1x1 conv (E->F, no bias).
    frames2d: (B*L, WIN) -> (mixture_w (B*L,E), enc_feature (B*L,F))."""
    R, WINk = frames2d.shape
    E = enc_w.shape[1]
    F = bn_w.shape[1]

    def kernel(fr_ref, w_ref, g_ref, b_ref, bn_ref, mix_ref, feat_ref):
        fr = fr_ref[...]                                   # (R, WIN)
        w = w_ref[...]                                     # (WIN, E)
        # K=WIN is tiny -> keep it off the MXU: broadcast FMA on the VPU.
        acc = fr[:, 0:1] * w[0:1, :]
        for k in range(1, WINk):
            acc = acc + fr[:, k:k + 1] * w[k:k + 1, :]
        mix = jnp.maximum(acc, 0.0)                        # ReLU -> (R, E)
        mix_ref[...] = mix

        # GroupNorm(1, E) per original batch sample via masked reductions.
        row = lax.broadcasted_iota(jnp.int32, (R, 1), 0)
        cnt = float(rows_per_group * E)
        mvec = jnp.zeros((R, 1), jnp.float32)
        rvec = jnp.zeros((R, 1), jnp.float32)
        for b in range(nb):                                # nb is tiny, static
            mask = (row >= b * rows_per_group) & (row < (b + 1) * rows_per_group)
            mf = mask.astype(jnp.float32)
            m_b = jnp.sum(mix * mf) / cnt
            v_b = jnp.sum(((mix - m_b) ** 2) * mf) / cnt
            mvec = jnp.where(mask, m_b, mvec)
            rvec = jnp.where(mask, lax.rsqrt(v_b + EPS), rvec)
        normed = (mix - mvec) * rvec * g_ref[...] + b_ref[...]
        # bottleneck conv: ONE (R,E)@(E,F) matmul, one dense store.
        feat_ref[...] = jnp.dot(normed, bn_ref[...],
                                preferred_element_type=jnp.float32)

    return pl.pallas_call(
        kernel,
        out_shape=(jax.ShapeDtypeStruct((R, E), jnp.float32),
                   jax.ShapeDtypeStruct((R, F), jnp.float32)),
    )(frames2d, enc_w, ln_g, ln_b, bn_w)


def bilstm_block_kernel(T, Bf, nb, H, eps, fuse_out,
                        x_ref, grp_ref, wih_ref, bg_ref, whh_ref,
                        pw_ref, pb_ref, gam_ref, bet_ref, *rest):
    """Fused SingleRNN (BiLSTM + Linear) + GroupNorm(1, D) + residual on the
    time-major-flattened view x: (T*Bf, D).

    Gate layout is 8H = 128 lanes, per gate g in {i,f,g,o}: [fwd H | bwd H].
    Input projections for all steps / both directions are ONE hoisted
    (T*Bf, D)@(D, 16H) matmul; the recurrence carries h,c in vregs with a
    single (Bf,2H)@(2H,8H) matmul per step; the output Linear is ONE batched
    (T*Bf, 2H)@(2H, D) matmul; o_ref is written exactly once.
    If fuse_out, the DPRNN output layer (PReLU + 1x1 conv D->D*nspk) is applied
    and written instead of the residual output."""
    if fuse_out:
        ow_ref, ob_ref, o_ref, g_scr, h_scr = rest
    else:
        o_ref, g_scr, h_scr = rest

    R, D = x_ref.shape
    X2 = x_ref[...]                                        # (R, D)

    # (1) hoisted input projections (fwd + bwd lanes) in one MXU op.
    g_scr[...] = jnp.dot(X2, wih_ref[...], preferred_element_type=jnp.float32)

    bg = bg_ref[...]                                       # (1, 8H)
    whh = whh_ref[...]                                     # (2H, 8H) block-diag
    lane = lax.broadcasted_iota(jnp.int32, (Bf, 8 * H), 1)
    g_mask = (lane >= 4 * H) & (lane < 6 * H)              # 'g' gate -> tanh
    g_scale = jnp.where(g_mask, 2.0, 1.0)

    # (2) serial recurrence (static unroll; T is small).
    h = jnp.zeros((Bf, 2 * H), jnp.float32)
    c = jnp.zeros((Bf, 2 * H), jnp.float32)
    for t in range(T):
        rt = T - 1 - t
        gates = (g_scr[t * Bf:(t + 1) * Bf, 0:8 * H]           # fwd in at t
                 + g_scr[rt * Bf:(rt + 1) * Bf, 8 * H:16 * H]  # bwd in at rt
                 + jnp.dot(h, whh, preferred_element_type=jnp.float32)
                 + bg)                                      # (Bf, 8H)
        # single EUP pass: tanh(x) = 2*sigmoid(2x) - 1 via lane select
        s = jax.nn.sigmoid(gates * g_scale)
        act = jnp.where(g_mask, 2.0 * s - 1.0, s)
        ig = act[:, 0:2 * H]
        fg = act[:, 2 * H:4 * H]
        gg = act[:, 4 * H:6 * H]
        og = act[:, 6 * H:8 * H]
        c = fg * c + ig * gg
        h = og * jnp.tanh(c)
        h_scr[t * Bf:(t + 1) * Bf, 0:H] = h[:, 0:H]            # fwd hidden @ t
        h_scr[rt * Bf:(rt + 1) * Bf, H:2 * H] = h[:, H:2 * H]  # bwd hidden @ rt

    # (3) batched output Linear(2H -> D): one matmul over all T*Bf rows.
    Y = (jnp.dot(h_scr[...], pw_ref[...], preferred_element_type=jnp.float32)
         + pb_ref[...])                                    # (R, D)

    # (4) GroupNorm(1, D) per original batch sample (masked stats) + residual.
    grp = grp_ref[...]                                     # (R, 1) int32 ids
    cnt = float(T * (Bf // nb) * D)
    mvec = jnp.zeros((R, 1), jnp.float32)
    rvec = jnp.zeros((R, 1), jnp.float32)
    for b in range(nb):
        mask = grp == b
        mf = mask.astype(jnp.float32)
        m_b = jnp.sum(Y * mf) / cnt
        v_b = jnp.sum(((Y - m_b) ** 2) * mf) / cnt
        mvec = jnp.where(mask, m_b, mvec)
        rvec = jnp.where(mask, lax.rsqrt(v_b + eps), rvec)
    out = X2 + (Y - mvec) * rvec * gam_ref[...] + bet_ref[...]

    if fuse_out:
        # (5) fused DPRNN output layer: PReLU + Conv2d(D, D*NSPK, 1).
        pre = jnp.maximum(out, 0.0) + PRELU_ALPHA * jnp.minimum(out, 0.0)
        o_ref[...] = (jnp.dot(pre, ow_ref[...],
                              preferred_element_type=jnp.float32) + ob_ref[...])
    else:
        o_ref[...] = out


def bilstm_block(x2d, p, T, Bf, nb, gamma, beta, out_w=None, out_b=None):
    """x2d: (T*Bf, D) -> x + GN(Linear(BiLSTM(x))); optionally fuses the DPRNN
    output layer (PReLU + 1x1 conv) when out_w/out_b are provided."""
    R, D = x2d.shape
    gsz = Bf // nb
    # constant per-row group id (original batch sample) -- avoids in-kernel mod.
    grp = jnp.tile(jnp.arange(Bf, dtype=jnp.int32) // gsz, T).reshape(R, 1)
    fuse = out_w is not None
    n_out = out_w.shape[1] if fuse else D
    kernel = functools.partial(bilstm_block_kernel, T, Bf, nb, HIDDEN_DIM, EPS, fuse)
    args = [x2d, grp, p['wih_cat'], p['b_g'], p['whh'],
            p['proj_w'], p['proj_b'], gamma, beta]
    if fuse:
        args += [out_w, out_b]
    return pl.pallas_call(
        kernel,
        out_shape=jax.ShapeDtypeStruct((R, n_out), jnp.float32),
        scratch_shapes=[pltpu.VMEM((R, 16 * HIDDEN_DIM), jnp.float32),   # gates
                        pltpu.VMEM((R, 2 * HIDDEN_DIM), jnp.float32)],   # hidden
    )(*args)


def gated_mask_decode(xT, mixT, og_w, og_b, mask_wT, basis_wT):
    """Fused BF_module gated output (tanh*sigmoid with a single fused (2F,F)
    weight), mask_conv1x1, ReLU mask, encoder-output masking and basis-signal
    projection.  Computed feature-major so every matmul output and the kernel
    output are lane-dense: xT/mixT are (F, M)/(E, M), output is (WIN, M)."""
    Fd, M = xT.shape
    W = basis_wT.shape[0]

    def kernel(x_ref, mix_ref, ow_ref, ob_ref, mw_ref, bw_ref, o_ref):
        xx = x_ref[...]                                    # (F, M)
        z = (jnp.dot(ow_ref[...], xx, preferred_element_type=jnp.float32)
             + ob_ref[...])                                # (2F, M)
        row = lax.broadcasted_iota(jnp.int32, z.shape, 0)
        tmask = row < Fd                                   # rows 0..F-1 -> tanh
        s = jax.nn.sigmoid(z * jnp.where(tmask, 2.0, 1.0))  # tanh(x)=2*sig(2x)-1
        act = jnp.where(tmask, 2.0 * s - 1.0, s)
        bf = act[:Fd, :] * act[Fd:, :]                     # (F, M) gated filter
        sc = jnp.dot(mw_ref[...], bf, preferred_element_type=jnp.float32)  # (E, M)
        src = jnp.maximum(sc, 0.0) * mix_ref[...]          # relu mask * encoder
        o_ref[...] = jnp.dot(bw_ref[...], src,
                             preferred_element_type=jnp.float32)           # (WIN, M)

    return pl.pallas_call(
        kernel,
        out_shape=jax.ShapeDtypeStruct((W, M), jnp.float32),
    )(xT, mixT, og_w, og_b, mask_wT, basis_wT)


# ============================ JAX glue (reshapes) ============================

def split_feature(x, segment_size):
    """x: (B, N, T) -> segments (B, N, segment_size, K), rest (DPRNN_base)."""
    B, N, T = x.shape
    stride = segment_size // 2
    rest = segment_size - (stride + T % segment_size) % segment_size
    if rest > 0:
        x = jnp.pad(x, ((0, 0), (0, 0), (0, rest)))
    x = jnp.pad(x, ((0, 0), (0, 0), (stride, stride)))
    seg1 = x[:, :, :-stride].reshape(B, N, -1, segment_size)
    seg2 = x[:, :, stride:].reshape(B, N, -1, segment_size)
    segments = jnp.concatenate([seg1, seg2], axis=3).reshape(B, N, -1, segment_size)
    return segments.transpose(0, 1, 3, 2), rest


def merge_feature(x, rest):
    """x: (B', N, segment_size, K) -> (B', N, Lout)  (DPRNN_base.merge_feature)."""
    Bp, N, seg, K = x.shape
    stride = seg // 2
    x = x.transpose(0, 1, 3, 2).reshape(Bp, N, -1, seg * 2)
    in1 = x[:, :, :, :seg].reshape(Bp, N, -1)[:, :, stride:]
    in2 = x[:, :, :, seg:].reshape(Bp, N, -1)[:, :, :-stride]
    out = in1 + in2
    if rest > 0:
        out = out[:, :, :-rest]
    return out / 2.0


# ============================== model pieces ================================

def dprnn(params, x):
    """DPRNN: x (B, N, d1, d2) -> (B, N*NSPK, d1, d2).  The final PReLU +
    Conv2d(N, N*NSPK, 1) output layer is fused into the last col-RNN kernel."""
    B, N, d1, d2 = x.shape
    out = x
    nlayers = len(params['dprnn_layers'])
    for li, lp in enumerate(params['dprnn_layers']):
        # intra-segment (row) RNN along d1 — fused RNN+proj+norm+residual kernel
        x_row = out.transpose(2, 0, 3, 1).reshape(d1 * B * d2, N)
        out_row = bilstm_block(x_row, lp['row'], d1, B * d2, B,
                               lp['row_norm_g'], lp['row_norm_b'])
        out = out_row.reshape(d1, B, d2, N).transpose(1, 3, 0, 2)
        # inter-segment (col) RNN along d2
        x_col = out.transpose(3, 0, 2, 1).reshape(d2 * B * d1, N)
        if li < nlayers - 1:
            out_col = bilstm_block(x_col, lp['col'], d2, B * d1, B,
                                   lp['col_norm_g'], lp['col_norm_b'])
            out = out_col.reshape(d2, B, d1, N).transpose(1, 3, 2, 0)
        else:
            y_col = bilstm_block(x_col, lp['col'], d2, B * d1, B,
                                 lp['col_norm_g'], lp['col_norm_b'],
                                 out_w=params['dprnn_out_w'],
                                 out_b=params['dprnn_out_b'])
            out = y_col.reshape(d2, B, d1, N * NSPK).transpose(1, 3, 2, 0)
    return out


def fasnet_forward(params, waveform):
    """FaSNet_base.forward.  waveform: (B, T) -> (B, NSPK, T)."""
    B, T = waveform.shape
    L = (T - WIN) // STRIDE + 1
    idx = jnp.arange(L)[:, None] * STRIDE + jnp.arange(WIN)[None, :]
    frames = waveform[:, idx].reshape(B * L, WIN)                     # (B*L, WIN)

    # encoder conv + enc_LN + bottleneck conv, fused (one kernel, two outputs)
    mix2, feat2 = encoder_frontend(frames, params['enc_w'], params['enc_ln_g'],
                                   params['enc_ln_b'], params['bn_w'], B, L)
    mixture = mix2.reshape(B, L, ENC_DIM)                             # (B, L, E)
    enc_feature = feat2.reshape(B, L, FEATURE_DIM)                    # (B, L, F)

    # separator (DPRNN on split segments)
    segments, rest = split_feature(enc_feature.transpose(0, 2, 1), SEGMENT_SIZE)
    dp = dprnn(params, segments)                                      # (B, F*NSPK, seg, K)
    seg, K = dp.shape[2], dp.shape[3]
    dp = dp.reshape(B * NSPK, FEATURE_DIM, seg, K)
    merged = merge_feature(dp, rest)                                  # (B*NSPK, F, Lout)
    Lout = merged.shape[-1]
    assert Lout == L, (Lout, L)

    # gated output + mask conv + relu-mask*encoder + basis projection (fused,
    # feature-major / lane-dense)
    xT = merged.transpose(1, 0, 2).reshape(FEATURE_DIM, B * NSPK * L)
    mixT = jnp.broadcast_to(mixture.transpose(2, 0, 1)[:, :, None, :],
                            (ENC_DIM, B, NSPK, L)).reshape(ENC_DIM, B * NSPK * L)
    estT = gated_mask_decode(xT, mixT, params['og_w'], params['og_b'],
                             params['mask_wT'], params['basis_wT'])   # (WIN, M)

    # overlap-and-add (STRIDE == 1, WIN == 2): two shifted adds
    est0 = estT[0].reshape(B, NSPK, L)
    est1 = estT[1].reshape(B, NSPK, L)
    return (jnp.pad(est0, ((0, 0), (0, 0), (0, 1)))
            + jnp.pad(est1, ((0, 0), (0, 0), (1, 0))))                # (B, NSPK, T)


# ============================== parameter init ==============================

def init_params(key):
    keys = iter(jax.random.split(key, 512))

    def u(shape, s):
        return jax.random.uniform(next(keys), shape, jnp.float32, -s, s)

    H, F, E = HIDDEN_DIM, FEATURE_DIM, ENC_DIM
    s_h = 1.0 / math.sqrt(H)

    def lstm_dir_raw(in_dim):
        return dict(wih=u((in_dim, 4 * H), s_h),     # W_ih^T (gate order i,f,g,o)
                    whh=u((H, 4 * H), s_h),          # W_hh^T
                    b=u((4 * H,), s_h))              # b_ih + b_hh

    def pack_bilstm(in_dim):
        """Pack fwd/bwd LSTM weights into the 8H-lane interleaved gate layout.
        wih_cat stacks the fwd-lane and bwd-lane input weights along N -> (D,16H)
        so the whole input projection is one matmul."""
        f = lstm_dir_raw(in_dim)
        b = lstm_dir_raw(in_dim)
        zf = jnp.zeros((in_dim, H), jnp.float32)
        zh = jnp.zeros((H, H), jnp.float32)
        wf_cols, wb_cols, b_cols, whh_cols = [], [], [], []
        for g in range(4):
            sl = slice(g * H, (g + 1) * H)
            wf_cols += [f['wih'][:, sl], zf]
            wb_cols += [zf, b['wih'][:, sl]]
            b_cols += [f['b'][sl], b['b'][sl]]
            top = jnp.concatenate([f['whh'][:, sl], zh], axis=1)
            bot = jnp.concatenate([zh, b['whh'][:, sl]], axis=1)
            whh_cols.append(jnp.concatenate([top, bot], axis=0))     # (2H, 2H)
        s_p = 1.0 / math.sqrt(2 * H)
        wih_f = jnp.concatenate(wf_cols, axis=1)                     # (D, 8H)
        wih_b = jnp.concatenate(wb_cols, axis=1)                     # (D, 8H)
        return dict(
            wih_cat=jnp.concatenate([wih_f, wih_b], axis=1),         # (D, 16H)
            b_g=jnp.concatenate(b_cols)[None, :],                    # (1, 8H)
            whh=jnp.concatenate(whh_cols, axis=1),                   # (2H, 8H)
            proj_w=u((2 * H, in_dim), s_p),
            proj_b=u((1, in_dim), s_p))

    layers = []
    for _ in range(NUM_LAYERS):
        layers.append(dict(
            row=pack_bilstm(F), col=pack_bilstm(F),
            row_norm_g=jnp.ones((1, F), jnp.float32),
            row_norm_b=jnp.zeros((1, F), jnp.float32),
            col_norm_g=jnp.ones((1, F), jnp.float32),
            col_norm_b=jnp.zeros((1, F), jnp.float32)))

    return dict(
        enc_w=u((WIN, E), 1.0 / math.sqrt(WIN)),
        enc_ln_g=jnp.ones((1, E), jnp.float32),
        enc_ln_b=jnp.zeros((1, E), jnp.float32),
        bn_w=u((E, F), 1.0 / math.sqrt(E)),
        dprnn_layers=layers,
        dprnn_out_w=u((F, F * NSPK), 1.0 / math.sqrt(F)),
        dprnn_out_b=u((1, F * NSPK), 1.0 / math.sqrt(F)),
        # BF_module output / output_gate 1x1 convs fused into one (2F, F) weight
        # (stored feature-major for the transposed decode kernel)
        og_w=u((2 * F, F), 1.0 / math.sqrt(F)),
        og_b=u((2 * F, 1), 1.0 / math.sqrt(F)),
        mask_wT=u((E, F), 1.0 / math.sqrt(F)),       # mask_conv1x1 (F->E, no bias)
        basis_wT=u((WIN, E), 1.0 / math.sqrt(E)),    # decoder basis_signals (E->WIN)
    )


# ================================== main =====================================

if __name__ == "__main__":
    key = jax.random.PRNGKey(0)
    pkey, xkey = jax.random.split(key)
    params = init_params(pkey)

    B, T = 2, 25                      # L=24 encoder frames, 8x8 DPRNN segments
    waveform = jax.random.normal(xkey, (B, T), jnp.float32)

    fwd = jax.jit(fasnet_forward)
    est_source = jax.block_until_ready(fwd(params, waveform))

    assert est_source.shape == (B, NSPK, T), est_source.shape
    assert bool(jnp.all(jnp.isfinite(est_source)))
    print("KERNEL_OK")
</pallas_src>

<mosaic_0001>
module attributes {stable_mosaic.version = 11 : i64} {
  func.func @kernel(%arg0: memref<48x2xf32, #tpu.memory_space<vmem>>, %arg1: memref<2x16xf32, #tpu.memory_space<vmem>>, %arg2: memref<1x16xf32, #tpu.memory_space<vmem>>, %arg3: memref<1x16xf32, #tpu.memory_space<vmem>>, %arg4: memref<16x16xf32, #tpu.memory_space<vmem>>, %arg5: memref<48x16xf32, #tpu.memory_space<vmem>>, %arg6: memref<48x16xf32, #tpu.memory_space<vmem>>) attributes {dimension_semantics = [], scalar_prefetch = 0 : i64, scratch_operands = 0 : i64, tpu.core_type = #tpu.core_type<tc>} {
    %c0 = arith.constant 0 : index
    %c0_0 = arith.constant 0 : index
    %0 = vector.load %arg0[%c0, %c0_0] : memref<48x2xf32, #tpu.memory_space<vmem>>, vector<48x2xf32>
    %c0_1 = arith.constant 0 : index
    %c0_2 = arith.constant 0 : index
    %1 = vector.load %arg1[%c0_1, %c0_2] : memref<2x16xf32, #tpu.memory_space<vmem>>, vector<2x16xf32>
    %2 = vector.extract_strided_slice %0 {offsets = [0, 0], sizes = [48, 1], strides = [1, 1]} : vector<48x2xf32> to vector<48x1xf32>
    %3 = vector.extract_strided_slice %1 {offsets = [0, 0], sizes = [1, 16], strides = [1, 1]} : vector<2x16xf32> to vector<1x16xf32>
    %4 = vector.broadcast %2 : vector<48x1xf32> to vector<48x16xf32>
    %5 = vector.broadcast %3 : vector<1x16xf32> to vector<48x16xf32>
    %6 = arith.mulf %4, %5 : vector<48x16xf32>
    %7 = vector.extract_strided_slice %0 {offsets = [0, 1], sizes = [48, 1], strides = [1, 1]} : vector<48x2xf32> to vector<48x1xf32>
    %8 = vector.extract_strided_slice %1 {offsets = [1, 0], sizes = [1, 16], strides = [1, 1]} : vector<2x16xf32> to vector<1x16xf32>
    %9 = vector.broadcast %7 : vector<48x1xf32> to vector<48x16xf32>
    %10 = vector.broadcast %8 : vector<1x16xf32> to vector<48x16xf32>
    %11 = arith.mulf %9, %10 : vector<48x16xf32>
    %12 = arith.addf %6, %11 : vector<48x16xf32>
    %cst = arith.constant 0.000000e+00 : f32
    %13 = vector.broadcast %cst : f32 to vector<48x16xf32>
    %14 = arith.maximumf %12, %13 : vector<48x16xf32>
    %c0_3 = arith.constant 0 : index
    %c0_4 = arith.constant 0 : index
    %15 = vector.load %arg5[%c0_3, %c0_4] : memref<48x16xf32, #tpu.memory_space<vmem>>, vector<48x16xf32>
    tpu.vector_store %arg5[%c0_3, %c0_4], %14 {strides = array<i32>} : memref<48x16xf32, #tpu.memory_space<vmem>>, vector<48x16xf32>,
    %16 = tpu.iota {dimensions = array<i32: 0>} : vector<48x1xi32>
    %cst_5 = arith.constant 0.000000e+00 : f32
    %17 = vector.broadcast %cst_5 : f32 to vector<48x1xf32>
    %cst_6 = arith.constant 0.000000e+00 : f32
    %18 = vector.broadcast %cst_6 : f32 to vector<48x1xf32>
    %c0_i32 = arith.constant 0 : i32
    %19 = vector.broadcast %c0_i32 : i32 to vector<48x1xi32>
    %20 = arith.cmpi sge, %16, %19 : vector<48x1xi32>
    %c24_i32 = arith.constant 24 : i32
    %21 = vector.broadcast %c24_i32 : i32 to vector<48x1xi32>
    %22 = arith.cmpi slt, %16, %21 : vector<48x1xi32>
    %23 = arith.andi %20, %22 : vector<48x1xi1>
    %24 = arith.extui %23 : vector<48x1xi1> to vector<48x1xi32>
    %25 = arith.sitofp %24 : vector<48x1xi32> to vector<48x1xf32>
    %26 = vector.broadcast %25 : vector<48x1xf32> to vector<48x16xf32>
    %27 = arith.mulf %14, %26 : vector<48x16xf32>
    %28 = vector.shape_cast %27 : vector<48x16xf32> to vector<1x48x16xf32>
    %cst_7 = arith.constant dense<0.000000e+00> : vector<1xf32>
    %29 = vector.multi_reduction <add>, %28, %cst_7 [1, 2] : vector<1x48x16xf32> to vector<1xf32>
    %30 = vector.shape_cast %29 : vector<1xf32> to vector<1x1x1xf32>
    %31 = vector.extract %30[0, 0, 0] : f32 from vector<1x1x1xf32>
    %cst_8 = arith.constant 3.840000e+02 : f32
    %32 = arith.divf %31, %cst_8 : f32
    %33 = vector.broadcast %32 : f32 to vector<48x16xf32>
    %34 = arith.subf %14, %33 : vector<48x16xf32>
    %35 = arith.mulf %34, %34 : vector<48x16xf32>
    %36 = vector.broadcast %25 : vector<48x1xf32> to vector<48x16xf32>
    %37 = arith.mulf %35, %36 : vector<48x16xf32>
    %38 = vector.shape_cast %37 : vector<48x16xf32> to vector<1x48x16xf32>
    %cst_9 = arith.constant dense<0.000000e+00> : vector<1xf32>
    %39 = vector.multi_reduction <add>, %38, %cst_9 [1, 2] : vector<1x48x16xf32> to vector<1xf32>
    %40 = vector.shape_cast %39 : vector<1xf32> to vector<1x1x1xf32>
    %41 = vector.extract %40[0, 0, 0] : f32 from vector<1x1x1xf32>
    %cst_10 = arith.constant 3.840000e+02 : f32
    %42 = arith.divf %41, %cst_10 : f32
    %43 = vector.broadcast %32 : f32 to vector<48x1xf32>
    %44 = arith.select %23, %43, %17 : vector<48x1xi1>, vector<48x1xf32>
    %cst_11 = arith.constant 9.99999993E-9 : f32
    %45 = arith.addf %42, %cst_11 : f32
    %46 = math.rsqrt %45 : f32
    %47 = vector.broadcast %46 : f32 to vector<48x1xf32>
    %48 = arith.select %23, %47, %18 : vector<48x1xi1>, vector<48x1xf32>
    %c24_i32_12 = arith.constant 24 : i32
    %49 = vector.broadcast %c24_i32_12 : i32 to vector<48x1xi32>
    %50 = arith.cmpi sge, %16, %49 : vector<48x1xi32>
    %c48_i32 = arith.constant 48 : i32
    %51 = vector.broadcast %c48_i32 : i32 to vector<48x1xi32>
    %52 = arith.cmpi slt, %16, %51 : vector<48x1xi32>
    %53 = arith.andi %50, %52 : vector<48x1xi1>
    %54 = arith.extui %53 : vector<48x1xi1> to vector<48x1xi32>
    %55 = arith.sitofp %54 : vector<48x1xi32> to vector<48x1xf32>
    %56 = vector.broadcast %55 : vector<48x1xf32> to vector<48x16xf32>
    %57 = arith.mulf %14, %56 : vector<48x16xf32>
    %58 = vector.shape_cast %57 : vector<48x16xf32> to vector<1x48x16xf32>
    %cst_13 = arith.constant dense<0.000000e+00> : vector<1xf32>
    %59 = vector.multi_reduction <add>, %58, %cst_13 [1, 2] : vector<1x48x16xf32> to vector<1xf32>
    %60 = vector.shape_cast %59 : vector<1xf32> to vector<1x1x1xf32>
    %61 = vector.extract %60[0, 0, 0] : f32 from vector<1x1x1xf32>
    %cst_14 = arith.constant 3.840000e+02 : f32
    %62 = arith.divf %61, %cst_14 : f32
    %63 = vector.broadcast %62 : f32 to vector<48x16xf32>
    %64 = arith.subf %14, %63 : vector<48x16xf32>
    %65 = arith.mulf %64, %64 : vector<48x16xf32>
    %66 = vector.broadcast %55 : vector<48x1xf32> to vector<48x16xf32>
    %67 = arith.mulf %65, %66 : vector<48x16xf32>
    %68 = vector.shape_cast %67 : vector<48x16xf32> to vector<1x48x16xf32>
    %cst_15 = arith.constant dense<0.000000e+00> : vector<1xf32>
    %69 = vector.multi_reduction <add>, %68, %cst_15 [1, 2] : vector<1x48x16xf32> to vector<1xf32>
    %70 = vector.shape_cast %69 : vector<1xf32> to vector<1x1x1xf32>
    %71 = vector.extract %70[0, 0, 0] : f32 from vector<1x1x1xf32>
    %cst_16 = arith.constant 3.840000e+02 : f32
    %72 = arith.divf %71, %cst_16 : f32
    %73 = vector.broadcast %62 : f32 to vector<48x1xf32>
    %74 = arith.select %53, %73, %44 : vector<48x1xi1>, vector<48x1xf32>
    %cst_17 = arith.constant 9.99999993E-9 : f32
    %75 = arith.addf %72, %cst_17 : f32
    %76 = math.rsqrt %75 : f32
    %77 = vector.broadcast %76 : f32 to vector<48x1xf32>
    %78 = arith.select %53, %77, %48 : vector<48x1xi1>, vector<48x1xf32>
    %79 = vector.broadcast %74 : vector<48x1xf32> to vector<48x16xf32>
    %80 = arith.subf %14, %79 : vector<48x16xf32>
    %81 = vector.broadcast %78 : vector<48x1xf32> to vector<48x16xf32>
    %82 = arith.mulf %80, %81 : vector<48x16xf32>
    %c0_18 = arith.constant 0 : index
    %c0_19 = arith.constant 0 : index
    %83 = vector.load %arg2[%c0_18, %c0_19] : memref<1x16xf32, #tpu.memory_space<vmem>>, vector<1x16xf32>
    %84 = vector.broadcast %83 : vector<1x16xf32> to vector<48x16xf32>
    %85 = arith.mulf %82, %84 : vector<48x16xf32>
    %c0_20 = arith.constant 0 : index
    %c0_21 = arith.constant 0 : index
    %86 = vector.load %arg3[%c0_20, %c0_21] : memref<1x16xf32, #tpu.memory_space<vmem>>, vector<1x16xf32>
    %87 = vector.broadcast %86 : vector<1x16xf32> to vector<48x16xf32>
    %88 = arith.addf %85, %87 : vector<48x16xf32>
    %c0_22 = arith.constant 0 : index
    %c0_23 = arith.constant 0 : index
    %89 = vector.load %arg4[%c0_22, %c0_23] : memref<16x16xf32, #tpu.memory_space<vmem>>, vector<16x16xf32>
    %cst_24 = arith.constant dense<0.000000e+00> : vector<48x16xf32>
    %90 = tpu.matmul %88, %89, %cst_24 {dimension_numbers = #tpu.dot_dimension_numbers<[1], [0], [0], [1], [0, 0, 1, 1], [], []>} : vector<48x16xf32>, vector<16x16xf32>, vector<48x16xf32> -> vector<48x16xf32>
    %c0_25 = arith.constant 0 : index
    %c0_26 = arith.constant 0 : index
    %91 = vector.load %arg6[%c0_25, %c0_26] : memref<48x16xf32, #tpu.memory_space<vmem>>, vector<48x16xf32>
    tpu.vector_store %arg6[%c0_25, %c0_26], %90 {strides = array<i32>} : memref<48x16xf32, #tpu.memory_space<vmem>>, vector<48x16xf32>,
    return
  }
}

module attributes {stable_mosaic.version = 11 : i64} {
  func.func @bilstm_block_kernel(%arg0: memref<128x16xf32, #tpu.memory_space<vmem>>, %arg1: memref<128x1xi32, #tpu.memory_space<vmem>>, %arg2: memref<16x256xf32, #tpu.memory_space<vmem>>, %arg3: memref<1x128xf32, #tpu.memory_space<vmem>>, %arg4: memref<32x128xf32, #tpu.memory_space<vmem>>, %arg5: memref<32x16xf32, #tpu.memory_space<vmem>>, %arg6: memref<1x16xf32, #tpu.memory_space<vmem>>, %arg7: memref<1x16xf32, #tpu.memory_space<vmem>>, %arg8: memref<1x16xf32, #tpu.memory_space<vmem>>, %arg9: memref<128x16xf32, #tpu.memory_space<vmem>>, %arg10: memref<128x256xf32, #tpu.memory_space<vmem>>, %arg11: memref<128x32xf32, #tpu.memory_space<vmem>>) attributes {dimension_semantics = [], scalar_prefetch = 0 : i64, scratch_operands = 2 : i64, tpu.core_type = #tpu.core_type<tc>} {
    %c0 = arith.constant 0 : index
    %c0_0 = arith.constant 0 : index
    %0 = vector.load %arg0[%c0, %c0_0] : memref<128x16xf32, #tpu.memory_space<vmem>>, vector<128x16xf32>
    %c0_1 = arith.constant 0 : index
    %c0_2 = arith.constant 0 : index
    %1 = vector.load %arg2[%c0_1, %c0_2] : memref<16x256xf32, #tpu.memory_space<vmem>>, vector<16x256xf32>
    %cst = arith.constant dense<0.000000e+00> : vector<128x256xf32>
    %2 = tpu.matmul %0, %1, %cst {dimension_numbers = #tpu.dot_dimension_numbers<[1], [0], [0], [1], [0, 0, 1, 1], [], []>} : vector<128x16xf32>, vector<16x256xf32>, vector<128x256xf32> -> vector<128x256xf32>
    %c0_3 = arith.constant 0 : index
    %c0_4 = arith.constant 0 : index
    %3 = vector.load %arg10[%c0_3, %c0_4] : memref<128x256xf32, #tpu.memory_space<vmem>>, vector<128x256xf32>
    tpu.vector_store %arg10[%c0_3, %c0_4], %2 {strides = array<i32>} : memref<128x256xf32, #tpu.memory_space<vmem>>, vector<128x256xf32>,
    %c0_5 = arith.constant 0 : index
    %c0_6 = arith.constant 0 : index
    %4 = vector.load %arg3[%c0_5, %c0_6] : memref<1x128xf32, #tpu.memory_space<vmem>>, vector<1x128xf32>
    %c0_7 = arith.constant 0 : index
    %c0_8 = arith.constant 0 : index
    %5 = vector.load %arg4[%c0_7, %c0_8] : memref<32x128xf32, #tpu.memory_space<vmem>>, vector<32x128xf32>
    %6 = tpu.iota {dimensions = array<i32: 1>} : vector<16x128xi32>
    %c64_i32 = arith.constant 64 : i32
    %7 = vector.broadcast %c64_i32 : i32 to vector<16x128xi32>
    %8 = arith.cmpi sge, %6, %7 : vector<16x128xi32>
    %c96_i32 = arith.constant 96 : i32
    %9 = vector.broadcast %c96_i32 : i32 to vector<16x128xi32>
    %10 = arith.cmpi slt, %6, %9 : vector<16x128xi32>
    %11 = arith.andi %8, %10 : vector<16x128xi1>
    %cst_9 = arith.constant 2.000000e+00 : f32
    %cst_10 = arith.constant 1.000000e+00 : f32
    %12 = vector.broadcast %cst_9 : f32 to vector<16x128xf32>
    %13 = vector.broadcast %cst_10 : f32 to vector<16x128xf32>
    %14 = arith.select %11, %12, %13 : vector<16x128xi1>, vector<16x128xf32>
    %cst_11 = arith.constant 0.000000e+00 : f32
    %15 = vector.broadcast %cst_11 : f32 to vector<16x32xf32>
    %cst_12 = arith.constant 0.000000e+00 : f32
    %16 = vector.broadcast %cst_12 : f32 to vector<16x32xf32>
    %c0_13 = arith.constant 0 : index
    %c0_14 = arith.constant 0 : index
    %17 = vector.load %arg10[%c0_13, %c0_14] : memref<128x256xf32, #tpu.memory_space<vmem>>, vector<16x128xf32>
    %c112 = arith.constant 112 : index
    %c128 = arith.constant 128 : index
    %18 = vector.load %arg10[%c112, %c128] : memref<128x256xf32, #tpu.memory_space<vmem>>, vector<16x128xf32>
    %19 = arith.addf %17, %18 : vector<16x128xf32>
    %cst_15 = arith.constant dense<0.000000e+00> : vector<16x128xf32>
    %20 = tpu.matmul %15, %5, %cst_15 {dimension_numbers = #tpu.dot_dimension_numbers<[1], [0], [0], [1], [0, 0, 1, 1], [], []>} : vector<16x32xf32>, vector<32x128xf32>, vector<16x128xf32> -> vector<16x128xf32>
    %21 = arith.addf %19, %20 : vector<16x128xf32>
    %22 = vector.broadcast %4 : vector<1x128xf32> to vector<16x128xf32>
    %23 = arith.addf %21, %22 : vector<16x128xf32>
    %24 = arith.mulf %23, %14 : vector<16x128xf32>
    %25 = arith.negf %24 : vector<16x128xf32>
    %26 = math.exp %25 : vector<16x128xf32>
    %cst_16 = arith.constant 1.000000e+00 : f32
    %27 = vector.broadcast %cst_16 : f32 to vector<16x128xf32>
    %28 = arith.addf %27, %26 : vector<16x128xf32>
    %29 = arith.divf %27, %28 : vector<16x128xf32>
    %cst_17 = arith.constant 2.000000e+00 : f32
    %30 = vector.broadcast %cst_17 : f32 to vector<16x128xf32>
    %31 = arith.mulf %30, %29 : vector<16x128xf32>
    %cst_18 = arith.constant 1.000000e+00 : f32
    %32 = vector.broadcast %cst_18 : f32 to vector<16x128xf32>
    %33 = arith.subf %31, %32 : vector<16x128xf32>
    %34 = arith.select %11, %33, %29 : vector<16x128xi1>, vector<16x128xf32>
    %35 = vector.extract_strided_slice %34 {offsets = [0, 0], sizes = [16, 32], strides = [1, 1]} : vector<16x128xf32> to vector<16x32xf32>
    %36 = vector.extract_strided_slice %34 {offsets = [0, 32], sizes = [16, 32], strides = [1, 1]} : vector<16x128xf32> to vector<16x32xf32>
    %37 = vector.extract_strided_slice %34 {offsets = [0, 64], sizes = [16, 32], strides = [1, 1]} : vector<16x128xf32> to vector<16x32xf32>
    %38 = vector.extract_strided_slice %34 {offsets = [0, 96], sizes = [16, 32], strides = [1, 1]} : vector<16x128xf32> to vector<16x32xf32>
    %39 = arith.mulf %36, %16 : vector<16x32xf32>
    %40 = arith.mulf %35, %37 : vector<16x32xf32>
    %41 = arith.addf %39, %40 : vector<16x32xf32>
    %42 = math.tanh %41 : vector<16x32xf32>
    %43 = arith.mulf %38, %42 : vector<16x32xf32>
    %44 = vector.extract_strided_slice %43 {offsets = [0, 0], sizes = [16, 16], strides = [1, 1]} : vector<16x32xf32> to vector<16x16xf32>
    %c0_19 = arith.constant 0 : index
    %c0_20 = arith.constant 0 : index
    %45 = vector.load %arg11[%c0_19, %c0_20] : memref<128x32xf32, #tpu.memory_space<vmem>>, vector<16x16xf32>
    tpu.vector_store %arg11[%c0_19, %c0_20], %44 {strides = array<i32>} : memref<128x32xf32, #tpu.memory_space<vmem>>, vector<16x16xf32>,
    %46 = vector.extract_strided_slice %43 {offsets = [0, 16], sizes = [16, 16], strides = [1, 1]} : vector<16x32xf32> to vector<16x16xf32>
    %c112_21 = arith.constant 112 : index
    %c16 = arith.constant 16 : index
    %47 = vector.load %arg11[%c112_21, %c16] : memref<128x32xf32, #tpu.memory_space<vmem>>, vector<16x16xf32>
    tpu.vector_store %arg11[%c112_21, %c16], %46 {strides = array<i32>} : memref<128x32xf32, #tpu.memory_space<vmem>>, vector<16x16xf32>,
    %c16_22 = arith.constant 16 : index
    %c0_23 = arith.constant 0 : index
    %48 = vector.load %arg10[%c16_22, %c0_23] : memref<128x256xf32, #tpu.memory_space<vmem>>, vector<16x128xf32>
    %c96 = arith.constant 96 : index
    %c128_24 = arith.constant 128 : index
    %49 = vector.load %arg10[%c96, %c128_24] : memref<128x256xf32, #tpu.memory_space<vmem>>, vector<16x128xf32>
    %50 = arith.addf %48, %49 : vector<16x128xf32>
    %cst_25 = arith.constant dense<0.000000e+00> : vector<16x128xf32>
    %51 = tpu.matmul %43, %5, %cst_25 {dimension_numbers = #tpu.dot_dimension_numbers<[1], [0], [0], [1], [0, 0, 1, 1], [], []>} : vector<16x32xf32>, vector<32x128xf32>, vector<16x128xf32> -> vector<16x128xf32>
    %52 = arith.addf %50, %51 : vector<16x128xf32>
    %53 = vector.broadcast %4 : vector<1x128xf32> to vector<16x128xf32>
    %54 = arith.addf %52, %53 : vector<16x128xf32>
    %55 = arith.mulf %54, %14 : vector<16x128xf32>
    %56 = arith.negf %55 : vector<16x128xf32>
    %57 = math.exp %56 : vector<16x128xf32>
    %cst_26 = arith.constant 1.000000e+00 : f32
    %58 = vector.broadcast %cst_26 : f32 to vector<16x128xf32>
    %59 = arith.addf %58, %57 : vector<16x128xf32>
    %60 = arith.divf %58, %59 : vector<16x128xf32>
    %cst_27 = arith.constant 2.000000e+00 : f32
    %61 = vector.broadcast %cst_27 : f32 to vector<16x128xf32>
    %62 = arith.mulf %61, %60 : vector<16x128xf32>
    %cst_28 = arith.constant 1.000000e+00 : f32
    %63 = vector.broadcast %cst_28 : f32 to vector<16x128xf32>
    %64 = arith.subf %62, %63 : vector<16x128xf32>
    %65 = arith.select %11, %64, %60 : vector<16x128xi1>, vector<16x128xf32>
    %66 = vector.extract_strided_slice %65 {offsets = [0, 0], sizes = [16, 32], strides = [1, 1]} : vector<16x128xf32> to vector<16x32xf32>
    %67 = vector.extract_strided_slice %65 {offsets = [0, 32], sizes = [16, 32], strides = [1, 1]} : vector<16x128xf32> to vector<16x32xf32>
    %68 = vector.extract_strided_slice %65 {offsets = [0, 64], sizes = [16, 32], strides = [1, 1]} : vector<16x128xf32> to vector<16x32xf32>
    %69 = vector.extract_strided_slice %65 {offsets = [0, 96], sizes = [16, 32], strides = [1, 1]} : vector<16x128xf32> to vector<16x32xf32>
    %70 = arith.mulf %67, %41 : vector<16x32xf32>
    %71 = arith.mulf %66, %68 : vector<16x32xf32>
    %72 = arith.addf %70, %71 : vector<16x32xf32>
    %73 = math.tanh %72 : vector<16x32xf32>
    %74 = arith.mulf %69, %73 : vector<16x32xf32>
    %75 = vector.extract_strided_slice %74 {offsets = [0, 0], sizes = [16, 16], strides = [1, 1]} : vector<16x32xf32> to vector<16x16xf32>
    %c16_29 = arith.constant 16 : index
    %c0_30 = arith.constant 0 : index
    %76 = vector.load %arg11[%c16_29, %c0_30] : memref<128x32xf32, #tpu.memory_space<vmem>>, vector<16x16xf32>
    tpu.vector_store %arg11[%c16_29, %c0_30], %75 {strides = array<i32>} : memref<128x32xf32, #tpu.memory_space<vmem>>, vector<16x16xf32>,
    %77 = vector.extract_strided_slice %74 {offsets = [0, 16], sizes = [16, 16], strides = [1, 1]} : vector<16x32xf32> to vector<16x16xf32>
    %c96_31 = arith.constant 96 : index
    %c16_32 = arith.constant 16 : index
    %78 = vector.load %arg11[%c96_31, %c16_32] : memref<128x32xf32, #tpu.memory_space<vmem>>, vector<16x16xf32>
    tpu.vector_store %arg11[%c96_31, %c16_32], %77 {strides = array<i32>} : memref<128x32xf32, #tpu.memory_space<vmem>>, vector<16x16xf32>,
    %c32 = arith.constant 32 : index
    %c0_33 = arith.constant 0 : index
    %79 = vector.load %arg10[%c32, %c0_33] : memref<128x256xf32, #tpu.memory_space<vmem>>, vector<16x128xf32>
    %c80 = arith.constant 80 : index
    %c128_34 = arith.constant 128 : index
    %80 = vector.load %arg10[%c80, %c128_34] : memref<128x256xf32, #tpu.memory_space<vmem>>, vector<16x128xf32>
    %81 = arith.addf %79, %80 : vector<16x128xf32>
    %cst_35 = arith.constant dense<0.000000e+00> : vector<16x128xf32>
    %82 = tpu.matmul %74, %5, %cst_35 {dimension_numbers = #tpu.dot_dimension_numbers<[1], [0], [0], [1], [0, 0, 1, 1], [], []>} : vector<16x32xf32>, vector<32x128xf32>, vector<16x128xf32> -> vector<16x128xf32>
    %83 = arith.addf %81, %82 : vector<16x128xf32>
    %84 = vector.broadcast %4 : vector<1x128xf32> to vector<16x128xf32>
    %85 = arith.addf %83, %84 : vector<16x128xf32>
    %86 = arith.mulf %85, %14 : vector<16x128xf32>
    %87 = arith.negf %86 : vector<16x128xf32>
    %88 = math.exp %87 : vector<16x128xf32>
    %cst_36 = arith.constant 1.000000e+00 : f32
    %89 = vector.broadcast %cst_36 : f32 to vector<16x128xf32>
    %90 = arith.addf %89, %88 : vector<16x128xf32>
    %91 = arith.divf %89, %90 : vector<16x128xf32>
    %cst_37 = arith.constant 2.000000e+00 : f32
    %92 = vector.broadcast %cst_37 : f32 to vector<16x128xf32>
    %93 = arith.mulf %92, %91 : vector<16x128xf32>
    %cst_38 = arith.constant 1.000000e+00 : f32
    %94 = vector.broadcast %cst_38 : f32 to vector<16x128xf32>
    %95 = arith.subf %93, %94 : vector<16x128xf32>
    %96 = arith.select %11, %95, %91 : vector<16x128xi1>, vector<16x128xf32>
    %97 = vector.extract_strided_slice %96 {offsets = [0, 0], sizes = [16, 32], strides = [1, 1]} : vector<16x128xf32> to vector<16x32xf32>
    %98 = vector.extract_strided_slice %96 {offsets = [0, 32], sizes = [16, 32], strides = [1, 1]} : vector<16x128xf32> to vector<16x32xf32>
    %99 = vector.extract_strided_slice %96 {offsets = [0, 64], sizes = [16, 32], strides = [1, 1]} : vector<16x128xf32> to vector<16x32xf32>
    %100 = vector.extract_strided_slice %96 {offsets = [0, 96], sizes = [16, 32], strides = [1, 1]} : vector<16x128xf32> to vector<16x32xf32>
    %101 = arith.mulf %98, %72 : vector<16x32xf32>
    %102 = arith.mulf %97, %99 : vector<16x32xf32>
    %103 = arith.addf %101, %102 : vector<16x32xf32>
    %104 = math.tanh %103 : vector<16x32xf32>
    %105 = arith.mulf %100, %104 : vector<16x32xf32>
    %106 = vector.extract_strided_slice %105 {offsets = [0, 0], sizes = [16, 16], strides = [1, 1]} : vector<16x32xf32> to vector<16x16xf32>
    %c32_39 = arith.constant 32 : index
    %c0_40 = arith.constant 0 : index
    %107 = vector.load %arg11[%c32_39, %c0_40] : memref<128x32xf32, #tpu.memory_space<vmem>>, vector<16x16xf32>
    tpu.vector_store %arg11[%c32_39, %c0_40], %106 {strides = array<i32>} : memref<128x32xf32, #tpu.memory_space<vmem>>, vector<16x16xf32>,
    %108 = vector.extract_strided_slice %105 {offsets = [0, 16], sizes = [16, 16], strides = [1, 1]} : vector<16x32xf32> to vector<16x16xf32>
    %c80_41 = arith.constant 80 : index
    %c16_42 = arith.constant 16 : index
    %109 = vector.load %arg11[%c80_41, %c16_42] : memref<128x32xf32, #tpu.memory_space<vmem>>, vector<16x16xf32>
    tpu.vector_store %arg11[%c80_41, %c16_42], %108 {strides = array<i32>} : memref<128x32xf32, #tpu.memory_space<vmem>>, vector<16x16xf32>,
    %c48 = arith.constant 48 : index
    %c0_43 = arith.constant 0 : index
    %110 = vector.load %arg10[%c48, %c0_43] : memref<128x256xf32, #tpu.memory_space<vmem>>, vector<16x128xf32>
    %c64 = arith.constant 64 : index
    %c128_44 = arith.constant 128 : index
    %111 = vector.load %arg10[%c64, %c128_44] : memref<128x256xf32, #tpu.memory_space<vmem>>, vector<16x128xf32>
    %112 = arith.addf %110, %111 : vector<16x128xf32>
    %cst_45 = arith.constant dense<0.000000e+00> : vector<16x128xf32>
    %113 = tpu.matmul %105, %5, %cst_45 {dimension_numbers = #tpu.dot_dimension_numbers<[1], [0], [0], [1], [0, 0, 1, 1], [], []>} : vector<16x32xf32>, vector<32x128xf32>, vector<16x128xf32> -> vector<16x128xf32>
    %114 = arith.addf %112, %113 : vector<16x128xf32>
    %115 = vector.broadcast %4 : vector<1x128xf32> to vector<16x128xf32>
    %116 = arith.addf %114, %115 : vector<16x128xf32>
    %117 = arith.mulf %116, %14 : vector<16x128xf32>
    %118 = arith.negf %117 : vector<16x128xf32>
    %119 = math.exp %118 : vector<16x128xf32>
    %cst_46 = arith.constant 1.000000e+00 : f32
    %120 = vector.broadcast %cst_46 : f32 to vector<16x128xf32>
    %121 = arith.addf %120, %119 : vector<16x128xf32>
    %122 = arith.divf %120, %121 : vector<16x128xf32>
    %cst_47 = arith.constant 2.000000e+00 : f32
    %123 = vector.broadcast %cst_47 : f32 to vector<16x128xf32>
    %124 = arith.mulf %123, %122 : vector<16x128xf32>
    %cst_48 = arith.constant 1.000000e+00 : f32
    %125 = vector.broadcast %cst_48 : f32 to vector<16x128xf32>
    %126 = arith.subf %124, %125 : vector<16x128xf32>
    %127 = arith.select %11, %126, %122 : vector<16x128xi1>, vector<16x128xf32>
    %128 = vector.extract_strided_slice %127 {offsets = [0, 0], sizes = [16, 32], strides = [1, 1]} : vector<16x128xf32> to vector<16x32xf32>
    %129 = vector.extract_strided_slice %127 {offsets = [0, 32], sizes = [16, 32], strides = [1, 1]} : vector<16x128xf32> to vector<16x32xf32>
    %130 = vector.extract_strided_slice %127 {offsets = [0, 64], sizes = [16, 32], strides = [1, 1]} : vector<16x128xf32> to vector<16x32xf32>
    %131 = vector.extract_strided_slice %127 {offsets = [0, 96], sizes = [16, 32], strides = [1, 1]} : vector<16x128xf32> to vector<16x32xf32>
    %132 = arith.mulf %129, %103 : vector<16x32xf32>
    %133 = arith.mulf %128, %130 : vector<16x32xf32>
    %134 = arith.addf %132, %133 : vector<16x32xf32>
    %135 = math.tanh %134 : vector<16x32xf32>
    %136 = arith.mulf %131, %135 : vector<16x32xf32>
    %137 = vector.extract_strided_slice %136 {offsets = [0, 0], sizes = [16, 16], strides = [1, 1]} : vector<16x32xf32> to vector<16x16xf32>
    %c48_49 = arith.constant 48 : index
    %c0_50 = arith.constant 0 : index
    %138 = vector.load %arg11[%c48_49, %c0_50] : memref<128x32xf32, #tpu.memory_space<vmem>>, vector<16x16xf32>
    tpu.vector_store %arg11[%c48_49, %c0_50], %137 {strides = array<i32>} : memref<128x32xf32, #tpu.memory_space<vmem>>, vector<16x16xf32>,
    %139 = vector.extract_strided_slice %136 {offsets = [0, 16], sizes = [16, 16], strides = [1, 1]} : vector<16x32xf32> to vector<16x16xf32>
    %c64_51 = arith.constant 64 : index
    %c16_52 = arith.constant 16 : index
    %140 = vector.load %arg11[%c64_51, %c16_52] : memref<128x32xf32, #tpu.memory_space<vmem>>, vector<16x16xf32>
    tpu.vector_store %arg11[%c64_51, %c16_52], %139 {strides = array<i32>} : memref<128x32xf32, #tpu.memory_space<vmem>>, vector<16x16xf32>,
    %c64_53 = arith.constant 64 : index
    %c0_54 = arith.constant 0 : index
    %141 = vector.load %arg10[%c64_53, %c0_54] : memref<128x256xf32, #tpu.memory_space<vmem>>, vector<16x128xf32>
    %c48_55 = arith.constant 48 : index
    %c128_56 = arith.constant 128 : index
    %142 = vector.load %arg10[%c48_55, %c128_56] : memref<128x256xf32, #tpu.memory_space<vmem>>, vector<16x128xf32>
    %143 = arith.addf %141, %142 : vector<16x128xf32>
    %cst_57 = arith.constant dense<0.000000e+00> : vector<16x128xf32>
    %144 = tpu.matmul %136, %5, %cst_57 {dimension_numbers = #tpu.dot_dimension_numbers<[1], [0], [0], [1], [0, 0, 1, 1], [], []>} : vector<16x32xf32>, vector<32x128xf32>, vector<16x128xf32> -> vector<16x128xf32>
    %145 = arith.addf %143, %144 : vector<16x128xf32>
    %146 = vector.broadcast %4 : vector<1x128xf32> to vector<16x128xf32>
    %147 = arith.addf %145, %146 : vector<16x128xf32>
    %148 = arith.mulf %147, %14 : vector<16x128xf32>
    %149 = arith.negf %148 : vector<16x128xf32>
    %150 = math.exp %149 : vector<16x128xf32>
    %cst_58 = arith.constant 1.000000e+00 : f32
    %151 = vector.broadcast %cst_58 : f32 to vector<16x128xf32>
    %152 = arith.addf %151, %150 : vector<16x128xf32>
    %153 = arith.divf %151, %152 : vector<16x128xf32>
    %cst_59 = arith.constant 2.000000e+00 : f32
    %154 = vector.broadcast %cst_59 : f32 to vector<16x128xf32>
    %155 = arith.mulf %154, %153 : vector<16x128xf32>
    %cst_60 = arith.constant 1.000000e+00 : f32
    %156 = vector.broadcast %cst_60 : f32 to vector<16x128xf32>
    %157 = arith.subf %155, %156 : vector<16x128xf32>
    %158 = arith.select %11, %157, %153 : vector<16x128xi1>, vector<16x128xf32>
    %159 = vector.extract_strided_slice %158 {offsets = [0, 0], sizes = [16, 32], strides = [1, 1]} : vector<16x128xf32> to vector<16x32xf32>
    %160 = vector.extract_strided_slice %158 {offsets = [0, 32], sizes = [16, 32], strides = [1, 1]} : vector<16x128xf32> to vector<16x32xf32>
    %161 = vector.extract_strided_slice %158 {offsets = [0, 64], sizes = [16, 32], strides = [1, 1]} : vector<16x128xf32> to vector<16x32xf32>
    %162 = vector.extract_strided_slice %158 {offsets = [0, 96], sizes = [16, 32], strides = [1, 1]} : vector<16x128xf32> to vector<16x32xf32>
    %163 = arith.mulf %160, %134 : vector<16x32xf32>
    %164 = arith.mulf %159, %161 : vector<16x32xf32>
    %165 = arith.addf %163, %164 : vector<16x32xf32>
    %166 = math.tanh %165 : vector<16x32xf32>
    %167 = arith.mulf %162, %166 : vector<16x32xf32>
    %168 = vector.extract_strided_slice %167 {offsets = [0, 0], sizes = [16, 16], strides = [1, 1]} : vector<16x32xf32> to vector<16x16xf32>
    %c64_61 = arith.constant 64 : index
    %c0_62 = arith.constant 0 : index
    %169 = vector.load %arg11[%c64_61, %c0_62] : memref<128x32xf32, #tpu.memory_space<vmem>>, vector<16x16xf32>
    tpu.vector_store %arg11[%c64_61, %c0_62], %168 {strides = array<i32>} : memref<128x32xf32, #tpu.memory_space<vmem>>, vector<16x16xf32>,
    %170 = vector.extract_strided_slice %167 {offsets = [0, 16], sizes = [16, 16], strides = [1, 1]} : vector<16x32xf32> to vector<16x16xf32>
    %c48_63 = arith.constant 48 : index
    %c16_64 = arith.constant 16 : index
    %171 = vector.load %arg11[%c48_63, %c16_64] : memref<128x32xf32, #tpu.memory_space<vmem>>, vector<16x16xf32>
    tpu.vector_store %arg11[%c48_63, %c16_64], %170 {strides = array<i32>} : memref<128x32xf32, #tpu.memory_space<vmem>>, vector<16x16xf32>,
    %c80_65 = arith.constant 80 : index
    %c0_66 = arith.constant 0 : index
    %172 = vector.load %arg10[%c80_65, %c0_66] : memref<128x256xf32, #tpu.memory_space<vmem>>, vector<16x128xf32>
    %c32_67 = arith.constant 32 : index
    %c128_68 = arith.constant 128 : index
    %173 = vector.load %arg10[%c32_67, %c128_68] : memref<128x256xf32, #tpu.memory_space<vmem>>, vector<16x128xf32>
    %174 = arith.addf %172, %173 : vector<16x128xf32>
    %cst_69 = arith.constant dense<0.000000e+00> : vector<16x128xf32>
    %175 = tpu.matmul %167, %5, %cst_69 {dimension_numbers = #tpu.dot_dimension_numbers<[1], [0], [0], [1], [0, 0, 1, 1], [], []>} : vector<16x32xf32>, vector<32x128xf32>, vector<16x128xf32> -> vector<16x128xf32>
    %176 = arith.addf %174, %175 : vector<16x128xf32>
    %177 = vector.broadcast %4 : vector<1x128xf32> to vector<16x128xf32>
    %178 = arith.addf %176, %177 : vector<16x128xf32>
    %179 = arith.mulf %178, %14 : vector<16x128xf32>
    %180 = arith.negf %179 : vector<16x128xf32>
    %181 = math.exp %180 : vector<16x128xf32>
    %cst_70 = arith.constant 1.000000e+00 : f32
    %182 = vector.broadcast %cst_70 : f32 to vector<16x128xf32>
    %183 = arith.addf %182, %181 : vector<16x128xf32>
    %184 = arith.divf %182, %183 : vector<16x128xf32>
    %cst_71 = arith.constant 2.000000e+00 : f32
    %185 = vector.broadcast %cst_71 : f32 to vector<16x128xf32>
    %186 = arith.mulf %185, %184 : vector<16x128xf32>
    %cst_72 = arith.constant 1.000000e+00 : f32
    %187 = vector.broadcast %cst_72 : f32 to vector<16x128xf32>
    %188 = arith.subf %186, %187 : vector<16x128xf32>
    %189 = arith.select %11, %188, %184 : vector<16x128xi1>, vector<16x128xf32>
    %190 = vector.extract_strided_slice %189 {offsets = [0, 0], sizes = [16, 32], strides = [1, 1]} : vector<16x128xf32> to vector<16x32xf32>
    %191 = vector.extract_strided_slice %189 {offsets = [0, 32], sizes = [16, 32], strides = [1, 1]} : vector<16x128xf32> to vector<16x32xf32>
    %192 = vector.extract_strided_slice %189 {offsets = [0, 64], sizes = [16, 32], strides = [1, 1]} : vector<16x128xf32> to vector<16x32xf32>
    %193 = vector.extract_strided_slice %189 {offsets = [0, 96], sizes = [16, 32], strides = [1, 1]} : vector<16x128xf32> to vector<16x32xf32>
    %194 = arith.mulf %191, %165 : vector<16x32xf32>
    %195 = arith.mulf %190, %192 : vector<16x32xf32>
    %196 = arith.addf %194, %195 : vector<16x32xf32>
    %197 = math.tanh %196 : vector<16x32xf32>
    %198 = arith.mulf %193, %197 : vector<16x32xf32>
    %199 = vector.extract_strided_slice %198 {offsets = [0, 0], sizes = [16, 16], strides = [1, 1]} : vector<16x32xf32> to vector<16x16xf32>
    %c80_73 = arith.constant 80 : index
    %c0_74 = arith.constant 0 : index
    %200 = vector.load %arg11[%c80_73, %c0_74] : memref<128x32xf32, #tpu.memory_space<vmem>>, vector<16x16xf32>
    tpu.vector_store %arg11[%c80_73, %c0_74], %199 {strides = array<i32>} : memref<128x32xf32, #tpu.memory_space<vmem>>, vector<16x16xf32>,
    %201 = vector.extract_strided_slice %198 {offsets = [0, 16], sizes = [16, 16], strides = [1, 1]} : vector<16x32xf32> to vector<16x16xf32>
    %c32_75 = arith.constant 32 : index
    %c16_76 = arith.constant 16 : index
    %202 = vector.load %arg11[%c32_75, %c16_76] : memref<128x32xf32, #tpu.memory_space<vmem>>, vector<16x16xf32>
    tpu.vector_store %arg11[%c32_75, %c16_76], %201 {strides = array<i32>} : memref<128x32xf32, #tpu.memory_space<vmem>>, vector<16x16xf32>,
    %c96_77 = arith.constant 96 : index
    %c0_78 = arith.constant 0 : index
    %203 = vector.load %arg10[%c96_77, %c0_78] : memref<128x256xf32, #tpu.memory_space<vmem>>, vector<16x128xf32>
    %c16_79 = arith.constant 16 : index
    %c128_80 = arith.constant 128 : index
    %204 = vector.load %arg10[%c16_79, %c128_80] : memref<128x256xf32, #tpu.memory_space<vmem>>, vector<16x128xf32>
    %205 = arith.addf %203, %204 : vector<16x128xf32>
    %cst_81 = arith.constant dense<0.000000e+00> : vector<16x128xf32>
    %206 = tpu.matmul %198, %5, %cst_81 {dimension_numbers = #tpu.dot_dimension_numbers<[1], [0], [0], [1], [0, 0, 1, 1], [], []>} : vector<16x32xf32>, vector<32x128xf32>, vector<16x128xf32> -> vector<16x128xf32>
    %207 = arith.addf %205, %206 : vector<16x128xf32>
    %208 = vector.broadcast %4 : vector<1x128xf32> to vector<16x128xf32>
    %209 = arith.addf %207, %208 : vector<16x128xf32>
    %210 = arith.mulf %209, %14 : vector<16x128xf32>
    %211 = arith.negf %210 : vector<16x128xf32>
    %212 = math.exp %211 : vector<16x128xf32>
    %cst_82 = arith.constant 1.000000e+00 : f32
    %213 = vector.broadcast %cst_82 : f32 to vector<16x128xf32>
    %214 = arith.addf %213, %212 : vector<16x128xf32>
    %215 = arith.divf %213, %214 : vector<16x128xf32>
    %cst_83 = arith.constant 2.000000e+00 : f32
    %216 = vector.broadcast %cst_83 : f32 to vector<16x128xf32>
    %217 = arith.mulf %216, %215 : vector<16x128xf32>
    %cst_84 = arith.constant 1.000000e+00 : f32
    %218 = vector.broadcast %cst_84 : f32 to vector<16x128xf32>
    %219 = arith.subf %217, %218 : vector<16x128xf32>
    %220 = arith.select %11, %219, %215 : vector<16x128xi1>, vector<16x128xf32>
    %221 = vector.extract_strided_slice %220 {offsets = [0, 0], sizes = [16, 32], strides = [1, 1]} : vector<16x128xf32> to vector<16x32xf32>
    %222 = vector.extract_strided_slice %220 {offsets = [0, 32], sizes = [16, 32], strides = [1, 1]} : vector<16x128xf32> to vector<16x32xf32>
    %223 = vector.extract_strided_slice %220 {offsets = [0, 64], sizes = [16, 32], strides = [1, 1]} : vector<16x128xf32> to vector<16x32xf32>
    %224 = vector.extract_strided_slice %220 {offsets = [0, 96], sizes = [16, 32], strides = [1, 1]} : vector<16x128xf32> to vector<16x32xf32>
    %225 = arith.mulf %222, %196 : vector<16x32xf32>
    %226 = arith.mulf %221, %223 : vector<16x32xf32>
    %227 = arith.addf %225, %226 : vector<16x32xf32>
    %228 = math.tanh %227 : vector<16x32xf32>
    %229 = arith.mulf %224, %228 : vector<16x32xf32>
    %230 = vector.extract_strided_slice %229 {offsets = [0, 0], sizes = [16, 16], strides = [1, 1]} : vector<16x32xf32> to vector<16x16xf32>
    %c96_85 = arith.constant 96 : index
    %c0_86 = arith.constant 0 : index
    %231 = vector.load %arg11[%c96_85, %c0_86] : memref<128x32xf32, #tpu.memory_space<vmem>>, vector<16x16xf32>
    tpu.vector_store %arg11[%c96_85, %c0_86], %230 {strides = array<i32>} : memref<128x32xf32, #tpu.memory_space<vmem>>, vector<16x16xf32>,
    %232 = vector.extract_strided_slice %229 {offsets = [0, 16], sizes = [16, 16], strides = [1, 1]} : vector<16x32xf32> to vector<16x16xf32>
    %c16_87 = arith.constant 16 : index
    %c16_88 = arith.constant 16 : index
    %233 = vector.load %arg11[%c16_87, %c16_88] : memref<128x32xf32, #tpu.memory_space<vmem>>, vector<16x16xf32>
    tpu.vector_store %arg11[%c16_87, %c16_88], %232 {strides = array<i32>} : memref<128x32xf32, #tpu.memory_space<vmem>>, vector<16x16xf32>,
    %c112_89 = arith.constant 112 : index
    %c0_90 = arith.constant 0 : index
    %234 = vector.load %arg10[%c112_89, %c0_90] : memref<128x256xf32, #tpu.memory_space<vmem>>, vector<16x128xf32>
    %c0_91 = arith.constant 0 : index
    %c128_92 = arith.constant 128 : index
    %235 = vector.load %arg10[%c0_91, %c128_92] : memref<128x256xf32, #tpu.memory_space<vmem>>, vector<16x128xf32>
    %236 = arith.addf %234, %235 : vector<16x128xf32>
    %cst_93 = arith.constant dense<0.000000e+00> : vector<16x128xf32>
    %237 = tpu.matmul %229, %5, %cst_93 {dimension_numbers = #tpu.dot_dimension_numbers<[1], [0], [0], [1], [0, 0, 1, 1], [], []>} : vector<16x32xf32>, vector<32x128xf32>, vector<16x128xf32> -> vector<16x128xf32>
    %238 = arith.addf %236, %237 : vector<16x128xf32>
    %239 = vector.broadcast %4 : vector<1x128xf32> to vector<16x128xf32>
    %240 = arith.addf %238, %239 : vector<16x128xf32>
    %241 = arith.mulf %240, %14 : vector<16x128xf32>
    %242 = arith.negf %241 : vector<16x128xf32>
    %243 = math.exp %242 : vector<16x128xf32>
    %cst_94 = arith.constant 1.000000e+00 : f32
    %244 = vector.broadcast %cst_94 : f32 to vector<16x128xf32>
    %245 = arith.addf %244, %243 : vector<16x128xf32>
    %246 = arith.divf %244, %245 : vector<16x128xf32>
    %cst_95 = arith.constant 2.000000e+00 : f32
    %247 = vector.broadcast %cst_95 : f32 to vector<16x128xf32>
    %248 = arith.mulf %247, %246 : vector<16x128xf32>
    %cst_96 = arith.constant 1.000000e+00 : f32
    %249 = vector.broadcast %cst_96 : f32 to vector<16x128xf32>
    %250 = arith.subf %248, %249 : vector<16x128xf32>
    %251 = arith.select %11, %250, %246 : vector<16x128xi1>, vector<16x128xf32>
    %252 = vector.extract_strided_slice %251 {offsets = [0, 0], sizes = [16, 32], strides = [1, 1]} : vector<16x128xf32> to vector<16x32xf32>
    %253 = vector.extract_strided_slice %251 {offsets = [0, 32], sizes = [16, 32], strides = [1, 1]} : vector<16x128xf32> to vector<16x32xf32>
    %254 = vector.extract_strided_slice %251 {offsets = [0, 64], sizes = [16, 32], strides = [1, 1]} : vector<16x128xf32> to vector<16x32xf32>
    %255 = vector.extract_strided_slice %251 {offsets = [0, 96], sizes = [16, 32], strides = [1, 1]} : vector<16x128xf32> to vector<16x32xf32>
    %256 = arith.mulf %253, %227 : vector<16x32xf32>
    %257 = arith.mulf %252, %254 : vector<16x32xf32>
    %258 = arith.addf %256, %257 : vector<16x32xf32>
    %259 = math.tanh %258 : vector<16x32xf32>
    %260 = arith.mulf %255, %259 : vector<16x32xf32>
    %261 = vector.extract_strided_slice %260 {offsets = [0, 0], sizes = [16, 16], strides = [1, 1]} : vector<16x32xf32> to vector<16x16xf32>
    %c112_97 = arith.constant 112 : index
    %c0_98 = arith.constant 0 : index
    %262 = vector.load %arg11[%c112_97, %c0_98] : memref<128x32xf32, #tpu.memory_space<vmem>>, vector<16x16xf32>
    tpu.vector_store %arg11[%c112_97, %c0_98], %261 {strides = array<i32>} : memref<128x32xf32, #tpu.memory_space<vmem>>, vector<16x16xf32>,
    %263 = vector.extract_strided_slice %260 {offsets = [0, 16], sizes = [16, 16], strides = [1, 1]} : vector<16x32xf32> to vector<16x16xf32>
    %c0_99 = arith.constant 0 : index
    %c16_100 = arith.constant 16 : index
    %264 = vector.load %arg11[%c0_99, %c16_100] : memref<128x32xf32, #tpu.memory_space<vmem>>, vector<16x16xf32>
    tpu.vector_store %arg11[%c0_99, %c16_100], %263 {strides = array<i32>} : memref<128x32xf32, #tpu.memory_space<vmem>>, vector<16x16xf32>,
    %c0_101 = arith.constant 0 : index
    %c0_102 = arith.constant 0 : index
    %265 = vector.load %arg11[%c0_101, %c0_102] : memref<128x32xf32, #tpu.memory_space<vmem>>, vector<128x32xf32>
    %c0_103 = arith.constant 0 : index
    %c0_104 = arith.constant 0 : index
    %266 = vector.load %arg5[%c0_103, %c0_104] : memref<32x16xf32, #tpu.memory_space<vmem>>, vector<32x16xf32>
    %cst_105 = arith.constant dense<0.000000e+00> : vector<128x16xf32>
    %267 = tpu.matmul %265, %266, %cst_105 {dimension_numbers = #tpu.dot_dimension_numbers<[1], [0], [0], [1], [0, 0, 1, 1], [], []>} : vector<128x32xf32>, vector<32x16xf32>, vector<128x16xf32> -> vector<128x16xf32>
    %c0_106 = arith.constant 0 : index
    %c0_107 = arith.constant 0 : index
    %268 = vector.load %arg6[%c0_106, %c0_107] : memref<1x16xf32, #tpu.memory_space<vmem>>, vector<1x16xf32>
    %269 = vector.broadcast %268 : vector<1x16xf32> to vector<128x16xf32>
    %270 = arith.addf %267, %269 : vector<128x16xf32>
    %c0_108 = arith.constant 0 : index
    %c0_109 = arith.constant 0 : index
    %271 = vector.load %arg1[%c0_108, %c0_109] : memref<128x1xi32, #tpu.memory_space<vmem>>, vector<128x1xi32>
    %cst_110 = arith.constant 0.000000e+00 : f32
    %272 = vector.broadcast %cst_110 : f32 to vector<128x1xf32>
    %cst_111 = arith.constant 0.000000e+00 : f32
    %273 = vector.broadcast %cst_111 : f32 to vector<128x1xf32>
    %c0_i32 = arith.constant 0 : i32
    %274 = vector.broadcast %c0_i32 : i32 to vector<128x1xi32>
    %275 = arith.cmpi eq, %271, %274 : vector<128x1xi32>
    %276 = arith.extui %275 : vector<128x1xi1> to vector<128x1xi32>
    %277 = arith.sitofp %276 : vector<128x1xi32> to vector<128x1xf32>
    %278 = vector.broadcast %277 : vector<128x1xf32> to vector<128x16xf32>
    %279 = arith.mulf %270, %278 : vector<128x16xf32>
    %280 = vector.shape_cast %279 : vector<128x16xf32> to vector<1x128x16xf32>
    %cst_112 = arith.constant dense<0.000000e+00> : vector<1xf32>
    %281 = vector.multi_reduction <add>, %280, %cst_112 [1, 2] : vector<1x128x16xf32> to vector<1xf32>
    %282 = vector.shape_cast %281 : vector<1xf32> to vector<1x1x1xf32>
    %283 = vector.extract %282[0, 0, 0] : f32 from vector<1x1x1xf32>
    %cst_113 = arith.constant 1.024000e+03 : f32
    %284 = arith.divf %283, %cst_113 : f32
    %285 = vector.broadcast %284 : f32 to vector<128x16xf32>
    %286 = arith.subf %270, %285 : vector<128x16xf32>
    %287 = arith.mulf %286, %286 : vector<128x16xf32>
    %288 = vector.broadcast %277 : vector<128x1xf32> to vector<128x16xf32>
    %289 = arith.mulf %287, %288 : vector<128x16xf32>
    %290 = vector.shape_cast %289 : vector<128x16xf32> to vector<1x128x16xf32>
    %cst_114 = arith.constant dense<0.000000e+00> : vector<1xf32>
    %291 = vector.multi_reduction <add>, %290, %cst_114 [1, 2] : vector<1x128x16xf32> to vector<1xf32>
    %292 = vector.shape_cast %291 : vector<1xf32> to vector<1x1x1xf32>
    %293 = vector.extract %292[0, 0, 0] : f32 from vector<1x1x1xf32>
    %cst_115 = arith.constant 1.024000e+03 : f32
    %294 = arith.divf %293, %cst_115 : f32
    %295 = vector.broadcast %284 : f32 to vector<128x1xf32>
    %296 = arith.select %275, %295, %272 : vector<128x1xi1>, vector<128x1xf32>
    %cst_116 = arith.constant 9.99999993E-9 : f32
    %297 = arith.addf %294, %cst_116 : f32
    %298 = math.rsqrt %297 : f32
    %299 = vector.broadcast %298 : f32 to vector<128x1xf32>
    %300 = arith.select %275, %299, %273 : vector<128x1xi1>, vector<128x1xf32>
    %c1_i32 = arith.constant 1 : i32
    %301 = vector.broadcast %c1_i32 : i32 to vector<128x1xi32>
    %302 = arith.cmpi eq, %271, %301 : vector<128x1xi32>
    %303 = arith.extui %302 : vector<128x1xi1> to vector<128x1xi32>
    %304 = arith.sitofp %303 : vector<128x1xi32> to vector<128x1xf32>
    %305 = vector.broadcast %304 : vector<128x1xf32> to vector<128x16xf32>
    %306 = arith.mulf %270, %305 : vector<128x16xf32>
    %307 = vector.shape_cast %306 : vector<128x16xf32> to vector<1x128x16xf32>
    %cst_117 = arith.constant dense<0.000000e+00> : vector<1xf32>
    %308 = vector.multi_reduction <add>, %307, %cst_117 [1, 2] : vector<1x128x16xf32> to vector<1xf32>
    %309 = vector.shape_cast %308 : vector<1xf32> to vector<1x1x1xf32>
    %310 = vector.extract %309[0, 0, 0] : f32 from vector<1x1x1xf32>
    %cst_118 = arith.constant 1.024000e+03 : f32
    %311 = arith.divf %310, %cst_118 : f32
    %312 = vector.broadcast %311 : f32 to vector<128x16xf32>
    %313 = arith.subf %270, %312 : vector<128x16xf32>
    %314 = arith.mulf %313, %313 : vector<128x16xf32>
    %315 = vector.broadcast %304 : vector<128x1xf32> to vector<128x16xf32>
    %316 = arith.mulf %314, %315 : vector<128x16xf32>
    %317 = vector.shape_cast %316 : vector<128x16xf32> to vector<1x128x16xf32>
    %cst_119 = arith.constant dense<0.000000e+00> : vector<1xf32>
    %318 = vector.multi_reduction <add>, %317, %cst_119 [1, 2] : vector<1x128x16xf32> to vector<1xf32>
    %319 = vector.shape_cast %318 : vector<1xf32> to vector<1x1x1xf32>
    %320 = vector.extract %319[0, 0, 0] : f32 from vector<1x1x1xf32>
    %cst_120 = arith.constant 1.024000e+03 : f32
    %321 = arith.divf %320, %cst_120 : f32
    %322 = vector.broadcast %311 : f32 to vector<128x1xf32>
    %323 = arith.select %302, %322, %296 : vector<128x1xi1>, vector<128x1xf32>
    %cst_121 = arith.constant 9.99999993E-9 : f32
    %324 = arith.addf %321, %cst_121 : f32
    %325 = math.rsqrt %324 : f32
    %326 = vector.broadcast %325 : f32 to vector<128x1xf32>
    %327 = arith.select %302, %326, %300 : vector<128x1xi1>, vector<128x1xf32>
    %328 = vector.broadcast %323 : vector<128x1xf32> to vector<128x16xf32>
    %329 = arith.subf %270, %328 : vector<128x16xf32>
    %330 = vector.broadcast %327 : vector<128x1xf32> to vector<128x16xf32>
    %331 = arith.mulf %329, %330 : vector<128x16xf32>
    %c0_122 = arith.constant 0 : index
    %c0_123 = arith.constant 0 : index
    %332 = vector.load %arg7[%c0_122, %c0_123] : memref<1x16xf32, #tpu.memory_space<vmem>>, vector<1x16xf32>
    %333 = vector.broadcast %332 : vector<1x16xf32> to vector<128x16xf32>
    %334 = arith.mulf %331, %333 : vector<128x16xf32>
    %335 = arith.addf %0, %334 : vector<128x16xf32>
    %c0_124 = arith.constant 0 : index
    %c0_125 = arith.constant 0 : index
    %336 = vector.load %arg8[%c0_124, %c0_125] : memref<1x16xf32, #tpu.memory_space<vmem>>, vector<1x16xf32>
    %337 = vector.broadcast %336 : vector<1x16xf32> to vector<128x16xf32>
    %338 = arith.addf %335, %337 : vector<128x16xf32>
    %c0_126 = arith.constant 0 : index
    %c0_127 = arith.constant 0 : index
    %339 = vector.load %arg9[%c0_126, %c0_127] : memref<128x16xf32, #tpu.memory_space<vmem>>, vector<128x16xf32>
    tpu.vector_store %arg9[%c0_126, %c0_127], %338 {strides = array<i32>} : memref<128x16xf32, #tpu.memory_space<vmem>>, vector<128x16xf32>,
    return
  }
}

module attributes {stable_mosaic.version = 11 : i64} {
  func.func @bilstm_block_kernel(%arg0: memref<128x16xf32, #tpu.memory_space<vmem>>, %arg1: memref<128x1xi32, #tpu.memory_space<vmem>>, %arg2: memref<16x256xf32, #tpu.memory_space<vmem>>, %arg3: memref<1x128xf32, #tpu.memory_space<vmem>>, %arg4: memref<32x128xf32, #tpu.memory_space<vmem>>, %arg5: memref<32x16xf32, #tpu.memory_space<vmem>>, %arg6: memref<1x16xf32, #tpu.memory_space<vmem>>, %arg7: memref<1x16xf32, #tpu.memory_space<vmem>>, %arg8: memref<1x16xf32, #tpu.memory_space<vmem>>, %arg9: memref<16x32xf32, #tpu.memory_space<vmem>>, %arg10: memref<1x32xf32, #tpu.memory_space<vmem>>, %arg11: memref<128x32xf32, #tpu.memory_space<vmem>>, %arg12: memref<128x256xf32, #tpu.memory_space<vmem>>, %arg13: memref<128x32xf32, #tpu.memory_space<vmem>>) attributes {dimension_semantics = [], scalar_prefetch = 0 : i64, scratch_operands = 2 : i64, tpu.core_type = #tpu.core_type<tc>} {
    %c0 = arith.constant 0 : index
    %c0_0 = arith.constant 0 : index
    %0 = vector.load %arg0[%c0, %c0_0] : memref<128x16xf32, #tpu.memory_space<vmem>>, vector<128x16xf32>
    %c0_1 = arith.constant 0 : index
    %c0_2 = arith.constant 0 : index
    %1 = vector.load %arg2[%c0_1, %c0_2] : memref<16x256xf32, #tpu.memory_space<vmem>>, vector<16x256xf32>
    %cst = arith.constant dense<0.000000e+00> : vector<128x256xf32>
    %2 = tpu.matmul %0, %1, %cst {dimension_numbers = #tpu.dot_dimension_numbers<[1], [0], [0], [1], [0, 0, 1, 1], [], []>} : vector<128x16xf32>, vector<16x256xf32>, vector<128x256xf32> -> vector<128x256xf32>
    %c0_3 = arith.constant 0 : index
    %c0_4 = arith.constant 0 : index
    %3 = vector.load %arg12[%c0_3, %c0_4] : memref<128x256xf32, #tpu.memory_space<vmem>>, vector<128x256xf32>
    tpu.vector_store %arg12[%c0_3, %c0_4], %2 {strides = array<i32>} : memref<128x256xf32, #tpu.memory_space<vmem>>, vector<128x256xf32>,
    %c0_5 = arith.constant 0 : index
    %c0_6 = arith.constant 0 : index
    %4 = vector.load %arg3[%c0_5, %c0_6] : memref<1x128xf32, #tpu.memory_space<vmem>>, vector<1x128xf32>
    %c0_7 = arith.constant 0 : index
    %c0_8 = arith.constant 0 : index
    %5 = vector.load %arg4[%c0_7, %c0_8] : memref<32x128xf32, #tpu.memory_space<vmem>>, vector<32x128xf32>
    %6 = tpu.iota {dimensions = array<i32: 1>} : vector<16x128xi32>
    %c64_i32 = arith.constant 64 : i32
    %7 = vector.broadcast %c64_i32 : i32 to vector<16x128xi32>
    %8 = arith.cmpi sge, %6, %7 : vector<16x128xi32>
    %c96_i32 = arith.constant 96 : i32
    %9 = vector.broadcast %c96_i32 : i32 to vector<16x128xi32>
    %10 = arith.cmpi slt, %6, %9 : vector<16x128xi32>
    %11 = arith.andi %8, %10 : vector<16x128xi1>
    %cst_9 = arith.constant 2.000000e+00 : f32
    %cst_10 = arith.constant 1.000000e+00 : f32
    %12 = vector.broadcast %cst_9 : f32 to vector<16x128xf32>
    %13 = vector.broadcast %cst_10 : f32 to vector<16x128xf32>
    %14 = arith.select %11, %12, %13 : vector<16x128xi1>, vector<16x128xf32>
    %cst_11 = arith.constant 0.000000e+00 : f32
    %15 = vector.broadcast %cst_11 : f32 to vector<16x32xf32>
    %cst_12 = arith.constant 0.000000e+00 : f32
    %16 = vector.broadcast %cst_12 : f32 to vector<16x32xf32>
    %c0_13 = arith.constant 0 : index
    %c0_14 = arith.constant 0 : index
    %17 = vector.load %arg12[%c0_13, %c0_14] : memref<128x256xf32, #tpu.memory_space<vmem>>, vector<16x128xf32>
    %c112 = arith.constant 112 : index
    %c128 = arith.constant 128 : index
    %18 = vector.load %arg12[%c112, %c128] : memref<128x256xf32, #tpu.memory_space<vmem>>, vector<16x128xf32>
    %19 = arith.addf %17, %18 : vector<16x128xf32>
    %cst_15 = arith.constant dense<0.000000e+00> : vector<16x128xf32>
    %20 = tpu.matmul %15, %5, %cst_15 {dimension_numbers = #tpu.dot_dimension_numbers<[1], [0], [0], [1], [0, 0, 1, 1], [], []>} : vector<16x32xf32>, vector<32x128xf32>, vector<16x128xf32> -> vector<16x128xf32>
    %21 = arith.addf %19, %20 : vector<16x128xf32>
    %22 = vector.broadcast %4 : vector<1x128xf32> to vector<16x128xf32>
    %23 = arith.addf %21, %22 : vector<16x128xf32>
    %24 = arith.mulf %23, %14 : vector<16x128xf32>
    %25 = arith.negf %24 : vector<16x128xf32>
    %26 = math.exp %25 : vector<16x128xf32>
    %cst_16 = arith.constant 1.000000e+00 : f32
    %27 = vector.broadcast %cst_16 : f32 to vector<16x128xf32>
    %28 = arith.addf %27, %26 : vector<16x128xf32>
    %29 = arith.divf %27, %28 : vector<16x128xf32>
    %cst_17 = arith.constant 2.000000e+00 : f32
    %30 = vector.broadcast %cst_17 : f32 to vector<16x128xf32>
    %31 = arith.mulf %30, %29 : vector<16x128xf32>
    %cst_18 = arith.constant 1.000000e+00 : f32
    %32 = vector.broadcast %cst_18 : f32 to vector<16x128xf32>
    %33 = arith.subf %31, %32 : vector<16x128xf32>
    %34 = arith.select %11, %33, %29 : vector<16x128xi1>, vector<16x128xf32>
    %35 = vector.extract_strided_slice %34 {offsets = [0, 0], sizes = [16, 32], strides = [1, 1]} : vector<16x128xf32> to vector<16x32xf32>
    %36 = vector.extract_strided_slice %34 {offsets = [0, 32], sizes = [16, 32], strides = [1, 1]} : vector<16x128xf32> to vector<16x32xf32>
    %37 = vector.extract_strided_slice %34 {offsets = [0, 64], sizes = [16, 32], strides = [1, 1]} : vector<16x128xf32> to vector<16x32xf32>
    %38 = vector.extract_strided_slice %34 {offsets = [0, 96], sizes = [16, 32], strides = [1, 1]} : vector<16x128xf32> to vector<16x32xf32>
    %39 = arith.mulf %36, %16 : vector<16x32xf32>
    %40 = arith.mulf %35, %37 : vector<16x32xf32>
    %41 = arith.addf %39, %40 : vector<16x32xf32>
    %42 = math.tanh %41 : vector<16x32xf32>
    %43 = arith.mulf %38, %42 : vector<16x32xf32>
    %44 = vector.extract_strided_slice %43 {offsets = [0, 0], sizes = [16, 16], strides = [1, 1]} : vector<16x32xf32> to vector<16x16xf32>
    %c0_19 = arith.constant 0 : index
    %c0_20 = arith.constant 0 : index
    %45 = vector.load %arg13[%c0_19, %c0_20] : memref<128x32xf32, #tpu.memory_space<vmem>>, vector<16x16xf32>
    tpu.vector_store %arg13[%c0_19, %c0_20], %44 {strides = array<i32>} : memref<128x32xf32, #tpu.memory_space<vmem>>, vector<16x16xf32>,
    %46 = vector.extract_strided_slice %43 {offsets = [0, 16], sizes = [16, 16], strides = [1, 1]} : vector<16x32xf32> to vector<16x16xf32>
    %c112_21 = arith.constant 112 : index
    %c16 = arith.constant 16 : index
    %47 = vector.load %arg13[%c112_21, %c16] : memref<128x32xf32, #tpu.memory_space<vmem>>, vector<16x16xf32>
    tpu.vector_store %arg13[%c112_21, %c16], %46 {strides = array<i32>} : memref<128x32xf32, #tpu.memory_space<vmem>>, vector<16x16xf32>,
    %c16_22 = arith.constant 16 : index
    %c0_23 = arith.constant 0 : index
    %48 = vector.load %arg12[%c16_22, %c0_23] : memref<128x256xf32, #tpu.memory_space<vmem>>, vector<16x128xf32>
    %c96 = arith.constant 96 : index
    %c128_24 = arith.constant 128 : index
    %49 = vector.load %arg12[%c96, %c128_24] : memref<128x256xf32, #tpu.memory_space<vmem>>, vector<16x128xf32>
    %50 = arith.addf %48, %49 : vector<16x128xf32>
    %cst_25 = arith.constant dense<0.000000e+00> : vector<16x128xf32>
    %51 = tpu.matmul %43, %5, %cst_25 {dimension_numbers = #tpu.dot_dimension_numbers<[1], [0], [0], [1], [0, 0, 1, 1], [], []>} : vector<16x32xf32>, vector<32x128xf32>, vector<16x128xf32> -> vector<16x128xf32>
    %52 = arith.addf %50, %51 : vector<16x128xf32>
    %53 = vector.broadcast %4 : vector<1x128xf32> to vector<16x128xf32>
    %54 = arith.addf %52, %53 : vector<16x128xf32>
    %55 = arith.mulf %54, %14 : vector<16x128xf32>
    %56 = arith.negf %55 : vector<16x128xf32>
    %57 = math.exp %56 : vector<16x128xf32>
    %cst_26 = arith.constant 1.000000e+00 : f32
    %58 = vector.broadcast %cst_26 : f32 to vector<16x128xf32>
    %59 = arith.addf %58, %57 : vector<16x128xf32>
    %60 = arith.divf %58, %59 : vector<16x128xf32>
    %cst_27 = arith.constant 2.000000e+00 : f32
    %61 = vector.broadcast %cst_27 : f32 to vector<16x128xf32>
    %62 = arith.mulf %61, %60 : vector<16x128xf32>
    %cst_28 = arith.constant 1.000000e+00 : f32
    %63 = vector.broadcast %cst_28 : f32 to vector<16x128xf32>
    %64 = arith.subf %62, %63 : vector<16x128xf32>
    %65 = arith.select %11, %64, %60 : vector<16x128xi1>, vector<16x128xf32>
    %66 = vector.extract_strided_slice %65 {offsets = [0, 0], sizes = [16, 32], strides = [1, 1]} : vector<16x128xf32> to vector<16x32xf32>
    %67 = vector.extract_strided_slice %65 {offsets = [0, 32], sizes = [16, 32], strides = [1, 1]} : vector<16x128xf32> to vector<16x32xf32>
    %68 = vector.extract_strided_slice %65 {offsets = [0, 64], sizes = [16, 32], strides = [1, 1]} : vector<16x128xf32> to vector<16x32xf32>
    %69 = vector.extract_strided_slice %65 {offsets = [0, 96], sizes = [16, 32], strides = [1, 1]} : vector<16x128xf32> to vector<16x32xf32>
    %70 = arith.mulf %67, %41 : vector<16x32xf32>
    %71 = arith.mulf %66, %68 : vector<16x32xf32>
    %72 = arith.addf %70, %71 : vector<16x32xf32>
    %73 = math.tanh %72 : vector<16x32xf32>
    %74 = arith.mulf %69, %73 : vector<16x32xf32>
    %75 = vector.extract_strided_slice %74 {offsets = [0, 0], sizes = [16, 16], strides = [1, 1]} : vector<16x32xf32> to vector<16x16xf32>
    %c16_29 = arith.constant 16 : index
    %c0_30 = arith.constant 0 : index
    %76 = vector.load %arg13[%c16_29, %c0_30] : memref<128x32xf32, #tpu.memory_space<vmem>>, vector<16x16xf32>
    tpu.vector_store %arg13[%c16_29, %c0_30], %75 {strides = array<i32>} : memref<128x32xf32, #tpu.memory_space<vmem>>, vector<16x16xf32>,
    %77 = vector.extract_strided_slice %74 {offsets = [0, 16], sizes = [16, 16], strides = [1, 1]} : vector<16x32xf32> to vector<16x16xf32>
    %c96_31 = arith.constant 96 : index
    %c16_32 = arith.constant 16 : index
    %78 = vector.load %arg13[%c96_31, %c16_32] : memref<128x32xf32, #tpu.memory_space<vmem>>, vector<16x16xf32>
    tpu.vector_store %arg13[%c96_31, %c16_32], %77 {strides = array<i32>} : memref<128x32xf32, #tpu.memory_space<vmem>>, vector<16x16xf32>,
    %c32 = arith.constant 32 : index
    %c0_33 = arith.constant 0 : index
    %79 = vector.load %arg12[%c32, %c0_33] : memref<128x256xf32, #tpu.memory_space<vmem>>, vector<16x128xf32>
    %c80 = arith.constant 80 : index
    %c128_34 = arith.constant 128 : index
    %80 = vector.load %arg12[%c80, %c128_34] : memref<128x256xf32, #tpu.memory_space<vmem>>, vector<16x128xf32>
    %81 = arith.addf %79, %80 : vector<16x128xf32>
    %cst_35 = arith.constant dense<0.000000e+00> : vector<16x128xf32>
    %82 = tpu.matmul %74, %5, %cst_35 {dimension_numbers = #tpu.dot_dimension_numbers<[1], [0], [0], [1], [0, 0, 1, 1], [], []>} : vector<16x32xf32>, vector<32x128xf32>, vector<16x128xf32> -> vector<16x128xf32>
    %83 = arith.addf %81, %82 : vector<16x128xf32>
    %84 = vector.broadcast %4 : vector<1x128xf32> to vector<16x128xf32>
    %85 = arith.addf %83, %84 : vector<16x128xf32>
    %86 = arith.mulf %85, %14 : vector<16x128xf32>
    %87 = arith.negf %86 : vector<16x128xf32>
    %88 = math.exp %87 : vector<16x128xf32>
    %cst_36 = arith.constant 1.000000e+00 : f32
    %89 = vector.broadcast %cst_36 : f32 to vector<16x128xf32>
    %90 = arith.addf %89, %88 : vector<16x128xf32>
    %91 = arith.divf %89, %90 : vector<16x128xf32>
    %cst_37 = arith.constant 2.000000e+00 : f32
    %92 = vector.broadcast %cst_37 : f32 to vector<16x128xf32>
    %93 = arith.mulf %92, %91 : vector<16x128xf32>
    %cst_38 = arith.constant 1.000000e+00 : f32
    %94 = vector.broadcast %cst_38 : f32 to vector<16x128xf32>
    %95 = arith.subf %93, %94 : vector<16x128xf32>
    %96 = arith.select %11, %95, %91 : vector<16x128xi1>, vector<16x128xf32>
    %97 = vector.extract_strided_slice %96 {offsets = [0, 0], sizes = [16, 32], strides = [1, 1]} : vector<16x128xf32> to vector<16x32xf32>
    %98 = vector.extract_strided_slice %96 {offsets = [0, 32], sizes = [16, 32], strides = [1, 1]} : vector<16x128xf32> to vector<16x32xf32>
    %99 = vector.extract_strided_slice %96 {offsets = [0, 64], sizes = [16, 32], strides = [1, 1]} : vector<16x128xf32> to vector<16x32xf32>
    %100 = vector.extract_strided_slice %96 {offsets = [0, 96], sizes = [16, 32], strides = [1, 1]} : vector<16x128xf32> to vector<16x32xf32>
    %101 = arith.mulf %98, %72 : vector<16x32xf32>
    %102 = arith.mulf %97, %99 : vector<16x32xf32>
    %103 = arith.addf %101, %102 : vector<16x32xf32>
    %104 = math.tanh %103 : vector<16x32xf32>
    %105 = arith.mulf %100, %104 : vector<16x32xf32>
    %106 = vector.extract_strided_slice %105 {offsets = [0, 0], sizes = [16, 16], strides = [1, 1]} : vector<16x32xf32> to vector<16x16xf32>
    %c32_39 = arith.constant 32 : index
    %c0_40 = arith.constant 0 : index
    %107 = vector.load %arg13[%c32_39, %c0_40] : memref<128x32xf32, #tpu.memory_space<vmem>>, vector<16x16xf32>
    tpu.vector_store %arg13[%c32_39, %c0_40], %106 {strides = array<i32>} : memref<128x32xf32, #tpu.memory_space<vmem>>, vector<16x16xf32>,
    %108 = vector.extract_strided_slice %105 {offsets = [0, 16], sizes = [16, 16], strides = [1, 1]} : vector<16x32xf32> to vector<16x16xf32>
    %c80_41 = arith.constant 80 : index
    %c16_42 = arith.constant 16 : index
    %109 = vector.load %arg13[%c80_41, %c16_42] : memref<128x32xf32, #tpu.memory_space<vmem>>, vector<16x16xf32>
    tpu.vector_store %arg13[%c80_41, %c16_42], %108 {strides = array<i32>} : memref<128x32xf32, #tpu.memory_space<vmem>>, vector<16x16xf32>,
    %c48 = arith.constant 48 : index
    %c0_43 = arith.constant 0 : index
    %110 = vector.load %arg12[%c48, %c0_43] : memref<128x256xf32, #tpu.memory_space<vmem>>, vector<16x128xf32>
    %c64 = arith.constant 64 : index
    %c128_44 = arith.constant 128 : index
    %111 = vector.load %arg12[%c64, %c128_44] : memref<128x256xf32, #tpu.memory_space<vmem>>, vector<16x128xf32>
    %112 = arith.addf %110, %111 : vector<16x128xf32>
    %cst_45 = arith.constant dense<0.000000e+00> : vector<16x128xf32>
    %113 = tpu.matmul %105, %5, %cst_45 {dimension_numbers = #tpu.dot_dimension_numbers<[1], [0], [0], [1], [0, 0, 1, 1], [], []>} : vector<16x32xf32>, vector<32x128xf32>, vector<16x128xf32> -> vector<16x128xf32>
    %114 = arith.addf %112, %113 : vector<16x128xf32>
    %115 = vector.broadcast %4 : vector<1x128xf32> to vector<16x128xf32>
    %116 = arith.addf %114, %115 : vector<16x128xf32>
    %117 = arith.mulf %116, %14 : vector<16x128xf32>
    %118 = arith.negf %117 : vector<16x128xf32>
    %119 = math.exp %118 : vector<16x128xf32>
    %cst_46 = arith.constant 1.000000e+00 : f32
    %120 = vector.broadcast %cst_46 : f32 to vector<16x128xf32>
    %121 = arith.addf %120, %119 : vector<16x128xf32>
    %122 = arith.divf %120, %121 : vector<16x128xf32>
    %cst_47 = arith.constant 2.000000e+00 : f32
    %123 = vector.broadcast %cst_47 : f32 to vector<16x128xf32>
    %124 = arith.mulf %123, %122 : vector<16x128xf32>
    %cst_48 = arith.constant 1.000000e+00 : f32
    %125 = vector.broadcast %cst_48 : f32 to vector<16x128xf32>
    %126 = arith.subf %124, %125 : vector<16x128xf32>
    %127 = arith.select %11, %126, %122 : vector<16x128xi1>, vector<16x128xf32>
    %128 = vector.extract_strided_slice %127 {offsets = [0, 0], sizes = [16, 32], strides = [1, 1]} : vector<16x128xf32> to vector<16x32xf32>
    %129 = vector.extract_strided_slice %127 {offsets = [0, 32], sizes = [16, 32], strides = [1, 1]} : vector<16x128xf32> to vector<16x32xf32>
    %130 = vector.extract_strided_slice %127 {offsets = [0, 64], sizes = [16, 32], strides = [1, 1]} : vector<16x128xf32> to vector<16x32xf32>
    %131 = vector.extract_strided_slice %127 {offsets = [0, 96], sizes = [16, 32], strides = [1, 1]} : vector<16x128xf32> to vector<16x32xf32>
    %132 = arith.mulf %129, %103 : vector<16x32xf32>
    %133 = arith.mulf %128, %130 : vector<16x32xf32>
    %134 = arith.addf %132, %133 : vector<16x32xf32>
    %135 = math.tanh %134 : vector<16x32xf32>
    %136 = arith.mulf %131, %135 : vector<16x32xf32>
    %137 = vector.extract_strided_slice %136 {offsets = [0, 0], sizes = [16, 16], strides = [1, 1]} : vector<16x32xf32> to vector<16x16xf32>
    %c48_49 = arith.constant 48 : index
    %c0_50 = arith.constant 0 : index
    %138 = vector.load %arg13[%c48_49, %c0_50] : memref<128x32xf32, #tpu.memory_space<vmem>>, vector<16x16xf32>
    tpu.vector_store %arg13[%c48_49, %c0_50], %137 {strides = array<i32>} : memref<128x32xf32, #tpu.memory_space<vmem>>, vector<16x16xf32>,
    %139 = vector.extract_strided_slice %136 {offsets = [0, 16], sizes = [16, 16], strides = [1, 1]} : vector<16x32xf32> to vector<16x16xf32>
    %c64_51 = arith.constant 64 : index
    %c16_52 = arith.constant 16 : index
    %140 = vector.load %arg13[%c64_51, %c16_52] : memref<128x32xf32, #tpu.memory_space<vmem>>, vector<16x16xf32>
    tpu.vector_store %arg13[%c64_51, %c16_52], %139 {strides = array<i32>} : memref<128x32xf32, #tpu.memory_space<vmem>>, vector<16x16xf32>,
    %c64_53 = arith.constant 64 : index
    %c0_54 = arith.constant 0 : index
    %141 = vector.load %arg12[%c64_53, %c0_54] : memref<128x256xf32, #tpu.memory_space<vmem>>, vector<16x128xf32>
    %c48_55 = arith.constant 48 : index
    %c128_56 = arith.constant 128 : index
    %142 = vector.load %arg12[%c48_55, %c128_56] : memref<128x256xf32, #tpu.memory_space<vmem>>, vector<16x128xf32>
    %143 = arith.addf %141, %142 : vector<16x128xf32>
    %cst_57 = arith.constant dense<0.000000e+00> : vector<16x128xf32>
    %144 = tpu.matmul %136, %5, %cst_57 {dimension_numbers = #tpu.dot_dimension_numbers<[1], [0], [0], [1], [0, 0, 1, 1], [], []>} : vector<16x32xf32>, vector<32x128xf32>, vector<16x128xf32> -> vector<16x128xf32>
    %145 = arith.addf %143, %144 : vector<16x128xf32>
    %146 = vector.broadcast %4 : vector<1x128xf32> to vector<16x128xf32>
    %147 = arith.addf %145, %146 : vector<16x128xf32>
    %148 = arith.mulf %147, %14 : vector<16x128xf32>
    %149 = arith.negf %148 : vector<16x128xf32>
    %150 = math.exp %149 : vector<16x128xf32>
    %cst_58 = arith.constant 1.000000e+00 : f32
    %151 = vector.broadcast %cst_58 : f32 to vector<16x128xf32>
    %152 = arith.addf %151, %150 : vector<16x128xf32>
    %153 = arith.divf %151, %152 : vector<16x128xf32>
    %cst_59 = arith.constant 2.000000e+00 : f32
    %154 = vector.broadcast %cst_59 : f32 to vector<16x128xf32>
    %155 = arith.mulf %154, %153 : vector<16x128xf32>
    %cst_60 = arith.constant 1.000000e+00 : f32
    %156 = vector.broadcast %cst_60 : f32 to vector<16x128xf32>
    %157 = arith.subf %155, %156 : vector<16x128xf32>
    %158 = arith.select %11, %157, %153 : vector<16x128xi1>, vector<16x128xf32>
    %159 = vector.extract_strided_slice %158 {offsets = [0, 0], sizes = [16, 32], strides = [1, 1]} : vector<16x128xf32> to vector<16x32xf32>
    %160 = vector.extract_strided_slice %158 {offsets = [0, 32], sizes = [16, 32], strides = [1, 1]} : vector<16x128xf32> to vector<16x32xf32>
    %161 = vector.extract_strided_slice %158 {offsets = [0, 64], sizes = [16, 32], strides = [1, 1]} : vector<16x128xf32> to vector<16x32xf32>
    %162 = vector.extract_strided_slice %158 {offsets = [0, 96], sizes = [16, 32], strides = [1, 1]} : vector<16x128xf32> to vector<16x32xf32>
    %163 = arith.mulf %160, %134 : vector<16x32xf32>
    %164 = arith.mulf %159, %161 : vector<16x32xf32>
    %165 = arith.addf %163, %164 : vector<16x32xf32>
    %166 = math.tanh %165 : vector<16x32xf32>
    %167 = arith.mulf %162, %166 : vector<16x32xf32>
    %168 = vector.extract_strided_slice %167 {offsets = [0, 0], sizes = [16, 16], strides = [1, 1]} : vector<16x32xf32> to vector<16x16xf32>
    %c64_61 = arith.constant 64 : index
    %c0_62 = arith.constant 0 : index
    %169 = vector.load %arg13[%c64_61, %c0_62] : memref<128x32xf32, #tpu.memory_space<vmem>>, vector<16x16xf32>
    tpu.vector_store %arg13[%c64_61, %c0_62], %168 {strides = array<i32>} : memref<128x32xf32, #tpu.memory_space<vmem>>, vector<16x16xf32>,
    %170 = vector.extract_strided_slice %167 {offsets = [0, 16], sizes = [16, 16], strides = [1, 1]} : vector<16x32xf32> to vector<16x16xf32>
    %c48_63 = arith.constant 48 : index
    %c16_64 = arith.constant 16 : index
    %171 = vector.load %arg13[%c48_63, %c16_64] : memref<128x32xf32, #tpu.memory_space<vmem>>, vector<16x16xf32>
    tpu.vector_store %arg13[%c48_63, %c16_64], %170 {strides = array<i32>} : memref<128x32xf32, #tpu.memory_space<vmem>>, vector<16x16xf32>,
    %c80_65 = arith.constant 80 : index
    %c0_66 = arith.constant 0 : index
    %172 = vector.load %arg12[%c80_65, %c0_66] : memref<128x256xf32, #tpu.memory_space<vmem>>, vector<16x128xf32>
    %c32_67 = arith.constant 32 : index
    %c128_68 = arith.constant 128 : index
    %173 = vector.load %arg12[%c32_67, %c128_68] : memref<128x256xf32, #tpu.memory_space<vmem>>, vector<16x128xf32>
    %174 = arith.addf %172, %173 : vector<16x128xf32>
    %cst_69 = arith.constant dense<0.000000e+00> : vector<16x128xf32>
    %175 = tpu.matmul %167, %5, %cst_69 {dimension_numbers = #tpu.dot_dimension_numbers<[1], [0], [0], [1], [0, 0, 1, 1], [], []>} : vector<16x32xf32>, vector<32x128xf32>, vector<16x128xf32> -> vector<16x128xf32>
    %176 = arith.addf %174, %175 : vector<16x128xf32>
    %177 = vector.broadcast %4 : vector<1x128xf32> to vector<16x128xf32>
    %178 = arith.addf %176, %177 : vector<16x128xf32>
    %179 = arith.mulf %178, %14 : vector<16x128xf32>
    %180 = arith.negf %179 : vector<16x128xf32>
    %181 = math.exp %180 : vector<16x128xf32>
    %cst_70 = arith.constant 1.000000e+00 : f32
    %182 = vector.broadcast %cst_70 : f32 to vector<16x128xf32>
    %183 = arith.addf %182, %181 : vector<16x128xf32>
    %184 = arith.divf %182, %183 : vector<16x128xf32>
    %cst_71 = arith.constant 2.000000e+00 : f32
    %185 = vector.broadcast %cst_71 : f32 to vector<16x128xf32>
    %186 = arith.mulf %185, %184 : vector<16x128xf32>
    %cst_72 = arith.constant 1.000000e+00 : f32
    %187 = vector.broadcast %cst_72 : f32 to vector<16x128xf32>
    %188 = arith.subf %186, %187 : vector<16x128xf32>
    %189 = arith.select %11, %188, %184 : vector<16x128xi1>, vector<16x128xf32>
    %190 = vector.extract_strided_slice %189 {offsets = [0, 0], sizes = [16, 32], strides = [1, 1]} : vector<16x128xf32> to vector<16x32xf32>
    %191 = vector.extract_strided_slice %189 {offsets = [0, 32], sizes = [16, 32], strides = [1, 1]} : vector<16x128xf32> to vector<16x32xf32>
    %192 = vector.extract_strided_slice %189 {offsets = [0, 64], sizes = [16, 32], strides = [1, 1]} : vector<16x128xf32> to vector<16x32xf32>
    %193 = vector.extract_strided_slice %189 {offsets = [0, 96], sizes = [16, 32], strides = [1, 1]} : vector<16x128xf32> to vector<16x32xf32>
    %194 = arith.mulf %191, %165 : vector<16x32xf32>
    %195 = arith.mulf %190, %192 : vector<16x32xf32>
    %196 = arith.addf %194, %195 : vector<16x32xf32>
    %197 = math.tanh %196 : vector<16x32xf32>
    %198 = arith.mulf %193, %197 : vector<16x32xf32>
    %199 = vector.extract_strided_slice %198 {offsets = [0, 0], sizes = [16, 16], strides = [1, 1]} : vector<16x32xf32> to vector<16x16xf32>
    %c80_73 = arith.constant 80 : index
    %c0_74 = arith.constant 0 : index
    %200 = vector.load %arg13[%c80_73, %c0_74] : memref<128x32xf32, #tpu.memory_space<vmem>>, vector<16x16xf32>
    tpu.vector_store %arg13[%c80_73, %c0_74], %199 {strides = array<i32>} : memref<128x32xf32, #tpu.memory_space<vmem>>, vector<16x16xf32>,
    %201 = vector.extract_strided_slice %198 {offsets = [0, 16], sizes = [16, 16], strides = [1, 1]} : vector<16x32xf32> to vector<16x16xf32>
    %c32_75 = arith.constant 32 : index
    %c16_76 = arith.constant 16 : index
    %202 = vector.load %arg13[%c32_75, %c16_76] : memref<128x32xf32, #tpu.memory_space<vmem>>, vector<16x16xf32>
    tpu.vector_store %arg13[%c32_75, %c16_76], %201 {strides = array<i32>} : memref<128x32xf32, #tpu.memory_space<vmem>>, vector<16x16xf32>,
    %c96_77 = arith.constant 96 : index
    %c0_78 = arith.constant 0 : index
    %203 = vector.load %arg12[%c96_77, %c0_78] : memref<128x256xf32, #tpu.memory_space<vmem>>, vector<16x128xf32>
    %c16_79 = arith.constant 16 : index
    %c128_80 = arith.constant 128 : index
    %204 = vector.load %arg12[%c16_79, %c128_80] : memref<128x256xf32, #tpu.memory_space<vmem>>, vector<16x128xf32>
    %205 = arith.addf %203, %204 : vector<16x128xf32>
    %cst_81 = arith.constant dense<0.000000e+00> : vector<16x128xf32>
    %206 = tpu.matmul %198, %5, %cst_81 {dimension_numbers = #tpu.dot_dimension_numbers<[1], [0], [0], [1], [0, 0, 1, 1], [], []>} : vector<16x32xf32>, vector<32x128xf32>, vector<16x128xf32> -> vector<16x128xf32>
    %207 = arith.addf %205, %206 : vector<16x128xf32>
    %208 = vector.broadcast %4 : vector<1x128xf32> to vector<16x128xf32>
    %209 = arith.addf %207, %208 : vector<16x128xf32>
    %210 = arith.mulf %209, %14 : vector<16x128xf32>
    %211 = arith.negf %210 : vector<16x128xf32>
    %212 = math.exp %211 : vector<16x128xf32>
    %cst_82 = arith.constant 1.000000e+00 : f32
    %213 = vector.broadcast %cst_82 : f32 to vector<16x128xf32>
    %214 = arith.addf %213, %212 : vector<16x128xf32>
    %215 = arith.divf %213, %214 : vector<16x128xf32>
    %cst_83 = arith.constant 2.000000e+00 : f32
    %216 = vector.broadcast %cst_83 : f32 to vector<16x128xf32>
    %217 = arith.mulf %216, %215 : vector<16x128xf32>
    %cst_84 = arith.constant 1.000000e+00 : f32
    %218 = vector.broadcast %cst_84 : f32 to vector<16x128xf32>
    %219 = arith.subf %217, %218 : vector<16x128xf32>
    %220 = arith.select %11, %219, %215 : vector<16x128xi1>, vector<16x128xf32>
    %221 = vector.extract_strided_slice %220 {offsets = [0, 0], sizes = [16, 32], strides = [1, 1]} : vector<16x128xf32> to vector<16x32xf32>
    %222 = vector.extract_strided_slice %220 {offsets = [0, 32], sizes = [16, 32], strides = [1, 1]} : vector<16x128xf32> to vector<16x32xf32>
    %223 = vector.extract_strided_slice %220 {offsets = [0, 64], sizes = [16, 32], strides = [1, 1]} : vector<16x128xf32> to vector<16x32xf32>
    %224 = vector.extract_strided_slice %220 {offsets = [0, 96], sizes = [16, 32], strides = [1, 1]} : vector<16x128xf32> to vector<16x32xf32>
    %225 = arith.mulf %222, %196 : vector<16x32xf32>
    %226 = arith.mulf %221, %223 : vector<16x32xf32>
    %227 = arith.addf %225, %226 : vector<16x32xf32>
    %228 = math.tanh %227 : vector<16x32xf32>
    %229 = arith.mulf %224, %228 : vector<16x32xf32>
    %230 = vector.extract_strided_slice %229 {offsets = [0, 0], sizes = [16, 16], strides = [1, 1]} : vector<16x32xf32> to vector<16x16xf32>
    %c96_85 = arith.constant 96 : index
    %c0_86 = arith.constant 0 : index
    %231 = vector.load %arg13[%c96_85, %c0_86] : memref<128x32xf32, #tpu.memory_space<vmem>>, vector<16x16xf32>
    tpu.vector_store %arg13[%c96_85, %c0_86], %230 {strides = array<i32>} : memref<128x32xf32, #tpu.memory_space<vmem>>, vector<16x16xf32>,
    %232 = vector.extract_strided_slice %229 {offsets = [0, 16], sizes = [16, 16], strides = [1, 1]} : vector<16x32xf32> to vector<16x16xf32>
    %c16_87 = arith.constant 16 : index
    %c16_88 = arith.constant 16 : index
    %233 = vector.load %arg13[%c16_87, %c16_88] : memref<128x32xf32, #tpu.memory_space<vmem>>, vector<16x16xf32>
    tpu.vector_store %arg13[%c16_87, %c16_88], %232 {strides = array<i32>} : memref<128x32xf32, #tpu.memory_space<vmem>>, vector<16x16xf32>,
    %c112_89 = arith.constant 112 : index
    %c0_90 = arith.constant 0 : index
    %234 = vector.load %arg12[%c112_89, %c0_90] : memref<128x256xf32, #tpu.memory_space<vmem>>, vector<16x128xf32>
    %c0_91 = arith.constant 0 : index
    %c128_92 = arith.constant 128 : index
    %235 = vector.load %arg12[%c0_91, %c128_92] : memref<128x256xf32, #tpu.memory_space<vmem>>, vector<16x128xf32>
    %236 = arith.addf %234, %235 : vector<16x128xf32>
    %cst_93 = arith.constant dense<0.000000e+00> : vector<16x128xf32>
    %237 = tpu.matmul %229, %5, %cst_93 {dimension_numbers = #tpu.dot_dimension_numbers<[1], [0], [0], [1], [0, 0, 1, 1], [], []>} : vector<16x32xf32>, vector<32x128xf32>, vector<16x128xf32> -> vector<16x128xf32>
    %238 = arith.addf %236, %237 : vector<16x128xf32>
    %239 = vector.broadcast %4 : vector<1x128xf32> to vector<16x128xf32>
    %240 = arith.addf %238, %239 : vector<16x128xf32>
    %241 = arith.mulf %240, %14 : vector<16x128xf32>
    %242 = arith.negf %241 : vector<16x128xf32>
    %243 = math.exp %242 : vector<16x128xf32>
    %cst_94 = arith.constant 1.000000e+00 : f32
    %244 = vector.broadcast %cst_94 : f32 to vector<16x128xf32>
    %245 = arith.addf %244, %243 : vector<16x128xf32>
    %246 = arith.divf %244, %245 : vector<16x128xf32>
    %cst_95 = arith.constant 2.000000e+00 : f32
    %247 = vector.broadcast %cst_95 : f32 to vector<16x128xf32>
    %248 = arith.mulf %247, %246 : vector<16x128xf32>
    %cst_96 = arith.constant 1.000000e+00 : f32
    %249 = vector.broadcast %cst_96 : f32 to vector<16x128xf32>
    %250 = arith.subf %248, %249 : vector<16x128xf32>
    %251 = arith.select %11, %250, %246 : vector<16x128xi1>, vector<16x128xf32>
    %252 = vector.extract_strided_slice %251 {offsets = [0, 0], sizes = [16, 32], strides = [1, 1]} : vector<16x128xf32> to vector<16x32xf32>
    %253 = vector.extract_strided_slice %251 {offsets = [0, 32], sizes = [16, 32], strides = [1, 1]} : vector<16x128xf32> to vector<16x32xf32>
    %254 = vector.extract_strided_slice %251 {offsets = [0, 64], sizes = [16, 32], strides = [1, 1]} : vector<16x128xf32> to vector<16x32xf32>
    %255 = vector.extract_strided_slice %251 {offsets = [0, 96], sizes = [16, 32], strides = [1, 1]} : vector<16x128xf32> to vector<16x32xf32>
    %256 = arith.mulf %253, %227 : vector<16x32xf32>
    %257 = arith.mulf %252, %254 : vector<16x32xf32>
    %258 = arith.addf %256, %257 : vector<16x32xf32>
    %259 = math.tanh %258 : vector<16x32xf32>
    %260 = arith.mulf %255, %259 : vector<16x32xf32>
    %261 = vector.extract_strided_slice %260 {offsets = [0, 0], sizes = [16, 16], strides = [1, 1]} : vector<16x32xf32> to vector<16x16xf32>
    %c112_97 = arith.constant 112 : index
    %c0_98 = arith.constant 0 : index
    %262 = vector.load %arg13[%c112_97, %c0_98] : memref<128x32xf32, #tpu.memory_space<vmem>>, vector<16x16xf32>
    tpu.vector_store %arg13[%c112_97, %c0_98], %261 {strides = array<i32>} : memref<128x32xf32, #tpu.memory_space<vmem>>, vector<16x16xf32>,
    %263 = vector.extract_strided_slice %260 {offsets = [0, 16], sizes = [16, 16], strides = [1, 1]} : vector<16x32xf32> to vector<16x16xf32>
    %c0_99 = arith.constant 0 : index
    %c16_100 = arith.constant 16 : index
    %264 = vector.load %arg13[%c0_99, %c16_100] : memref<128x32xf32, #tpu.memory_space<vmem>>, vector<16x16xf32>
    tpu.vector_store %arg13[%c0_99, %c16_100], %263 {strides = array<i32>} : memref<128x32xf32, #tpu.memory_space<vmem>>, vector<16x16xf32>,
    %c0_101 = arith.constant 0 : index
    %c0_102 = arith.constant 0 : index
    %265 = vector.load %arg13[%c0_101, %c0_102] : memref<128x32xf32, #tpu.memory_space<vmem>>, vector<128x32xf32>
    %c0_103 = arith.constant 0 : index
    %c0_104 = arith.constant 0 : index
    %266 = vector.load %arg5[%c0_103, %c0_104] : memref<32x16xf32, #tpu.memory_space<vmem>>, vector<32x16xf32>
    %cst_105 = arith.constant dense<0.000000e+00> : vector<128x16xf32>
    %267 = tpu.matmul %265, %266, %cst_105 {dimension_numbers = #tpu.dot_dimension_numbers<[1], [0], [0], [1], [0, 0, 1, 1], [], []>} : vector<128x32xf32>, vector<32x16xf32>, vector<128x16xf32> -> vector<128x16xf32>
    %c0_106 = arith.constant 0 : index
    %c0_107 = arith.constant 0 : index
    %268 = vector.load %arg6[%c0_106, %c0_107] : memref<1x16xf32, #tpu.memory_space<vmem>>, vector<1x16xf32>
    %269 = vector.broadcast %268 : vector<1x16xf32> to vector<128x16xf32>
    %270 = arith.addf %267, %269 : vector<128x16xf32>
    %c0_108 = arith.constant 0 : index
    %c0_109 = arith.constant 0 : index
    %271 = vector.load %arg1[%c0_108, %c0_109] : memref<128x1xi32, #tpu.memory_space<vmem>>, vector<128x1xi32>
    %cst_110 = arith.constant 0.000000e+00 : f32
    %272 = vector.broadcast %cst_110 : f32 to vector<128x1xf32>
    %cst_111 = arith.constant 0.000000e+00 : f32
    %273 = vector.broadcast %cst_111 : f32 to vector<128x1xf32>
    %c0_i32 = arith.constant 0 : i32
    %274 = vector.broadcast %c0_i32 : i32 to vector<128x1xi32>
    %275 = arith.cmpi eq, %271, %274 : vector<128x1xi32>
    %276 = arith.extui %275 : vector<128x1xi1> to vector<128x1xi32>
    %277 = arith.sitofp %276 : vector<128x1xi32> to vector<128x1xf32>
    %278 = vector.broadcast %277 : vector<128x1xf32> to vector<128x16xf32>
    %279 = arith.mulf %270, %278 : vector<128x16xf32>
    %280 = vector.shape_cast %279 : vector<128x16xf32> to vector<1x128x16xf32>
    %cst_112 = arith.constant dense<0.000000e+00> : vector<1xf32>
    %281 = vector.multi_reduction <add>, %280, %cst_112 [1, 2] : vector<1x128x16xf32> to vector<1xf32>
    %282 = vector.shape_cast %281 : vector<1xf32> to vector<1x1x1xf32>
    %283 = vector.extract %282[0, 0, 0] : f32 from vector<1x1x1xf32>
    %cst_113 = arith.constant 1.024000e+03 : f32
    %284 = arith.divf %283, %cst_113 : f32
    %285 = vector.broadcast %284 : f32 to vector<128x16xf32>
    %286 = arith.subf %270, %285 : vector<128x16xf32>
    %287 = arith.mulf %286, %286 : vector<128x16xf32>
    %288 = vector.broadcast %277 : vector<128x1xf32> to vector<128x16xf32>
    %289 = arith.mulf %287, %288 : vector<128x16xf32>
    %290 = vector.shape_cast %289 : vector<128x16xf32> to vector<1x128x16xf32>
    %cst_114 = arith.constant dense<0.000000e+00> : vector<1xf32>
    %291 = vector.multi_reduction <add>, %290, %cst_114 [1, 2] : vector<1x128x16xf32> to vector<1xf32>
    %292 = vector.shape_cast %291 : vector<1xf32> to vector<1x1x1xf32>
    %293 = vector.extract %292[0, 0, 0] : f32 from vector<1x1x1xf32>
    %cst_115 = arith.constant 1.024000e+03 : f32
    %294 = arith.divf %293, %cst_115 : f32
    %295 = vector.broadcast %284 : f32 to vector<128x1xf32>
    %296 = arith.select %275, %295, %272 : vector<128x1xi1>, vector<128x1xf32>
    %cst_116 = arith.constant 9.99999993E-9 : f32
    %297 = arith.addf %294, %cst_116 : f32
    %298 = math.rsqrt %297 : f32
    %299 = vector.broadcast %298 : f32 to vector<128x1xf32>
    %300 = arith.select %275, %299, %273 : vector<128x1xi1>, vector<128x1xf32>
    %c1_i32 = arith.constant 1 : i32
    %301 = vector.broadcast %c1_i32 : i32 to vector<128x1xi32>
    %302 = arith.cmpi eq, %271, %301 : vector<128x1xi32>
    %303 = arith.extui %302 : vector<128x1xi1> to vector<128x1xi32>
    %304 = arith.sitofp %303 : vector<128x1xi32> to vector<128x1xf32>
    %305 = vector.broadcast %304 : vector<128x1xf32> to vector<128x16xf32>
    %306 = arith.mulf %270, %305 : vector<128x16xf32>
    %307 = vector.shape_cast %306 : vector<128x16xf32> to vector<1x128x16xf32>
    %cst_117 = arith.constant dense<0.000000e+00> : vector<1xf32>
    %308 = vector.multi_reduction <add>, %307, %cst_117 [1, 2] : vector<1x128x16xf32> to vector<1xf32>
    %309 = vector.shape_cast %308 : vector<1xf32> to vector<1x1x1xf32>
    %310 = vector.extract %309[0, 0, 0] : f32 from vector<1x1x1xf32>
    %cst_118 = arith.constant 1.024000e+03 : f32
    %311 = arith.divf %310, %cst_118 : f32
    %312 = vector.broadcast %311 : f32 to vector<128x16xf32>
    %313 = arith.subf %270, %312 : vector<128x16xf32>
    %314 = arith.mulf %313, %313 : vector<128x16xf32>
    %315 = vector.broadcast %304 : vector<128x1xf32> to vector<128x16xf32>
    %316 = arith.mulf %314, %315 : vector<128x16xf32>
    %317 = vector.shape_cast %316 : vector<128x16xf32> to vector<1x128x16xf32>
    %cst_119 = arith.constant dense<0.000000e+00> : vector<1xf32>
    %318 = vector.multi_reduction <add>, %317, %cst_119 [1, 2] : vector<1x128x16xf32> to vector<1xf32>
    %319 = vector.shape_cast %318 : vector<1xf32> to vector<1x1x1xf32>
    %320 = vector.extract %319[0, 0, 0] : f32 from vector<1x1x1xf32>
    %cst_120 = arith.constant 1.024000e+03 : f32
    %321 = arith.divf %320, %cst_120 : f32
    %322 = vector.broadcast %311 : f32 to vector<128x1xf32>
    %323 = arith.select %302, %322, %296 : vector<128x1xi1>, vector<128x1xf32>
    %cst_121 = arith.constant 9.99999993E-9 : f32
    %324 = arith.addf %321, %cst_121 : f32
    %325 = math.rsqrt %324 : f32
    %326 = vector.broadcast %325 : f32 to vector<128x1xf32>
    %327 = arith.select %302, %326, %300 : vector<128x1xi1>, vector<128x1xf32>
    %328 = vector.broadcast %323 : vector<128x1xf32> to vector<128x16xf32>
    %329 = arith.subf %270, %328 : vector<128x16xf32>
    %330 = vector.broadcast %327 : vector<128x1xf32> to vector<128x16xf32>
    %331 = arith.mulf %329, %330 : vector<128x16xf32>
    %c0_122 = arith.constant 0 : index
    %c0_123 = arith.constant 0 : index
    %332 = vector.load %arg7[%c0_122, %c0_123] : memref<1x16xf32, #tpu.memory_space<vmem>>, vector<1x16xf32>
    %333 = vector.broadcast %332 : vector<1x16xf32> to vector<128x16xf32>
    %334 = arith.mulf %331, %333 : vector<128x16xf32>
    %335 = arith.addf %0, %334 : vector<128x16xf32>
    %c0_124 = arith.constant 0 : index
    %c0_125 = arith.constant 0 : index
    %336 = vector.load %arg8[%c0_124, %c0_125] : memref<1x16xf32, #tpu.memory_space<vmem>>, vector<1x16xf32>
    %337 = vector.broadcast %336 : vector<1x16xf32> to vector<128x16xf32>
    %338 = arith.addf %335, %337 : vector<128x16xf32>
    %cst_126 = arith.constant 0.000000e+00 : f32
    %339 = vector.broadcast %cst_126 : f32 to vector<128x16xf32>
    %340 = arith.maximumf %338, %339 : vector<128x16xf32>
    %cst_127 = arith.constant 0.000000e+00 : f32
    %341 = vector.broadcast %cst_127 : f32 to vector<128x16xf32>
    %342 = arith.minimumf %338, %341 : vector<128x16xf32>
    %cst_128 = arith.constant 2.500000e-01 : f32
    %343 = vector.broadcast %cst_128 : f32 to vector<128x16xf32>
    %344 = arith.mulf %343, %342 : vector<128x16xf32>
    %345 = arith.addf %340, %344 : vector<128x16xf32>
    %c0_129 = arith.constant 0 : index
    %c0_130 = arith.constant 0 : index
    %346 = vector.load %arg9[%c0_129, %c0_130] : memref<16x32xf32, #tpu.memory_space<vmem>>, vector<16x32xf32>
    %cst_131 = arith.constant dense<0.000000e+00> : vector<128x32xf32>
    %347 = tpu.matmul %345, %346, %cst_131 {dimension_numbers = #tpu.dot_dimension_numbers<[1], [0], [0], [1], [0, 0, 1, 1], [], []>} : vector<128x16xf32>, vector<16x32xf32>, vector<128x32xf32> -> vector<128x32xf32>
    %c0_132 = arith.constant 0 : index
    %c0_133 = arith.constant 0 : index
    %348 = vector.load %arg10[%c0_132, %c0_133] : memref<1x32xf32, #tpu.memory_space<vmem>>, vector<1x32xf32>
    %349 = vector.broadcast %348 : vector<1x32xf32> to vector<128x32xf32>
    %350 = arith.addf %347, %349 : vector<128x32xf32>
    %c0_134 = arith.constant 0 : index
    %c0_135 = arith.constant 0 : index
    %351 = vector.load %arg11[%c0_134, %c0_135] : memref<128x32xf32, #tpu.memory_space<vmem>>, vector<128x32xf32>
    tpu.vector_store %arg11[%c0_134, %c0_135], %350 {strides = array<i32>} : memref<128x32xf32, #tpu.memory_space<vmem>>, vector<128x32xf32>,
    return
  }
}

module attributes {stable_mosaic.version = 11 : i64} {
  func.func @kernel(%arg0: memref<16x96xf32, #tpu.memory_space<vmem>>, %arg1: memref<16x96xf32, #tpu.memory_space<vmem>>, %arg2: memref<32x16xf32, #tpu.memory_space<vmem>>, %arg3: memref<32x1xf32, #tpu.memory_space<vmem>>, %arg4: memref<16x16xf32, #tpu.memory_space<vmem>>, %arg5: memref<2x16xf32, #tpu.memory_space<vmem>>, %arg6: memref<2x96xf32, #tpu.memory_space<vmem>>) attributes {dimension_semantics = [], scalar_prefetch = 0 : i64, scratch_operands = 0 : i64, tpu.core_type = #tpu.core_type<tc>} {
    %c0 = arith.constant 0 : index
    %c0_0 = arith.constant 0 : index
    %0 = vector.load %arg0[%c0, %c0_0] : memref<16x96xf32, #tpu.memory_space<vmem>>, vector<16x96xf32>
    %c0_1 = arith.constant 0 : index
    %c0_2 = arith.constant 0 : index
    %1 = vector.load %arg2[%c0_1, %c0_2] : memref<32x16xf32, #tpu.memory_space<vmem>>, vector<32x16xf32>
    %cst = arith.constant dense<0.000000e+00> : vector<32x96xf32>
    %2 = tpu.matmul %1, %0, %cst {dimension_numbers = #tpu.dot_dimension_numbers<[1], [0], [0], [1], [0, 0, 1, 1], [], []>} : vector<32x16xf32>, vector<16x96xf32>, vector<32x96xf32> -> vector<32x96xf32>
    %c0_3 = arith.constant 0 : index
    %c0_4 = arith.constant 0 : index
    %3 = vector.load %arg3[%c0_3, %c0_4] : memref<32x1xf32, #tpu.memory_space<vmem>>, vector<32x1xf32>
    %4 = vector.broadcast %3 : vector<32x1xf32> to vector<32x96xf32>
    %5 = arith.addf %2, %4 : vector<32x96xf32>
    %6 = tpu.iota {dimensions = array<i32: 0>} : vector<32x96xi32>
    %c16_i32 = arith.constant 16 : i32
    %7 = vector.broadcast %c16_i32 : i32 to vector<32x96xi32>
    %8 = arith.cmpi slt, %6, %7 : vector<32x96xi32>
    %cst_5 = arith.constant 2.000000e+00 : f32
    %cst_6 = arith.constant 1.000000e+00 : f32
    %9 = vector.broadcast %cst_5 : f32 to vector<32x96xf32>
    %10 = vector.broadcast %cst_6 : f32 to vector<32x96xf32>
    %11 = arith.select %8, %9, %10 : vector<32x96xi1>, vector<32x96xf32>
    %12 = arith.mulf %5, %11 : vector<32x96xf32>
    %13 = arith.negf %12 : vector<32x96xf32>
    %14 = math.exp %13 : vector<32x96xf32>
    %cst_7 = arith.constant 1.000000e+00 : f32
    %15 = vector.broadcast %cst_7 : f32 to vector<32x96xf32>
    %16 = arith.addf %15, %14 : vector<32x96xf32>
    %17 = arith.divf %15, %16 : vector<32x96xf32>
    %cst_8 = arith.constant 2.000000e+00 : f32
    %18 = vector.broadcast %cst_8 : f32 to vector<32x96xf32>
    %19 = arith.mulf %18, %17 : vector<32x96xf32>
    %cst_9 = arith.constant 1.000000e+00 : f32
    %20 = vector.broadcast %cst_9 : f32 to vector<32x96xf32>
    %21 = arith.subf %19, %20 : vector<32x96xf32>
    %22 = arith.select %8, %21, %17 : vector<32x96xi1>, vector<32x96xf32>
    %23 = vector.extract_strided_slice %22 {offsets = [0, 0], sizes = [16, 96], strides = [1, 1]} : vector<32x96xf32> to vector<16x96xf32>
    %24 = vector.extract_strided_slice %22 {offsets = [16, 0], sizes = [16, 96], strides = [1, 1]} : vector<32x96xf32> to vector<16x96xf32>
    %25 = arith.mulf %23, %24 : vector<16x96xf32>
    %c0_10 = arith.constant 0 : index
    %c0_11 = arith.constant 0 : index
    %26 = vector.load %arg4[%c0_10, %c0_11] : memref<16x16xf32, #tpu.memory_space<vmem>>, vector<16x16xf32>
    %cst_12 = arith.constant dense<0.000000e+00> : vector<16x96xf32>
    %27 = tpu.matmul %26, %25, %cst_12 {dimension_numbers = #tpu.dot_dimension_numbers<[1], [0], [0], [1], [0, 0, 1, 1], [], []>} : vector<16x16xf32>, vector<16x96xf32>, vector<16x96xf32> -> vector<16x96xf32>
    %cst_13 = arith.constant 0.000000e+00 : f32
    %28 = vector.broadcast %cst_13 : f32 to vector<16x96xf32>
    %29 = arith.maximumf %27, %28 : vector<16x96xf32>
    %c0_14 = arith.constant 0 : index
    %c0_15 = arith.constant 0 : index
    %30 = vector.load %arg1[%c0_14, %c0_15] : memref<16x96xf32, #tpu.memory_space<vmem>>, vector<16x96xf32>
    %31 = arith.mulf %29, %30 : vector<16x96xf32>
    %c0_16 = arith.constant 0 : index
    %c0_17 = arith.constant 0 : index
    %32 = vector.load %arg5[%c0_16, %c0_17] : memref<2x16xf32, #tpu.memory_space<vmem>>, vector<2x16xf32>
    %cst_18 = arith.constant dense<0.000000e+00> : vector<2x96xf32>
    %33 = tpu.matmul %32, %31, %cst_18 {dimension_numbers = #tpu.dot_dimension_numbers<[1], [0], [0], [1], [0, 0, 1, 1], [], []>} : vector<2x16xf32>, vector<16x96xf32>, vector<2x96xf32> -> vector<2x96xf32>
    %c0_19 = arith.constant 0 : index
    %c0_20 = arith.constant 0 : index
    %34 = vector.load %arg6[%c0_19, %c0_20] : memref<2x96xf32, #tpu.memory_space<vmem>>, vector<2x96xf32>
    tpu.vector_store %arg6[%c0_19, %c0_20], %33 {strides = array<i32>} : memref<2x96xf32, #tpu.memory_space<vmem>>, vector<2x96xf32>,
    return
  }
}

</mosaic_0001>

<llo_original>
// kernel: tile.23
$region0: #{tile.23}
  #allocation0 [shape = 's32[1]{0}', space=sflag, size = 0x4, scoped, tag = 'scoped memory for tile.23']
  %s0 = inlined_call_operand.vmem [shape: s32[16], index: 0, kind: input, shape index: {}]
  %s1 = inlined_call_operand.vmem [shape: s32[8,16], index: 1, kind: output, shape index: {}]
  // Predicated region
  $region2: #{tile.23} parent=0 // pred_check
    _
  $region3: #{tile.23} parent=0 // pred_check_branch
    %3 = sbr.rel (0) target = $region5
  $region4: #{tile.23} parent=0 // pred_region
    _
  $region5: #{tile.23} parent=0 // pred_fallthru
    _
  %v4 = vld [vmem:[%s0] ss:$0 sm:$0xff]
  %5 = vst [vmem:[%s1] sm:$0xff] %v4

// kernel: tile.0
$region0: #{tile.0}
  %s0 = inlined_call_operand.vmem [shape: s32[8,16], index: 0, kind: input, shape index: {}]
  %s1 = inlined_call_operand.vmem [shape: s32[128,1], index: 1, kind: output, shape index: {}]
  %v2 = vld [vmem:[%s0] sm:$0xff]
  %vm3 = vcmask 7168
  %4 = vst.msk [vmem:[%s1] ss:$16 sm:$0x3] %vm3, %v2
  %5 = vst.msk [vmem:[%s1] ss:$16 sm:$0xc] %vm3, %v2
  %6 = vst.msk [vmem:[%s1] ss:$16 sm:$0x30] %vm3, %v2
  %7 = vst.msk [vmem:[%s1] ss:$16 sm:$0xc0] %vm3, %v2
  %v8 = vld [vmem:[%s0] sm:$0xff]
  %9 = vrot.lane.b32.xlu0 %v8, 127
  %v10 = vpop.permute.xlu0 %9
  %vm11 = vcmask 7168
  %s12 = scalar_lea.vmem %s1, 1
  %13 = vst.msk [vmem:[%s12] ss:$16 sm:$0x3] %vm11, %v10
  %s14 = scalar_lea.vmem %s1, 1
  %15 = vst.msk [vmem:[%s14] ss:$16 sm:$0xc] %vm11, %v10
  %s16 = scalar_lea.vmem %s1, 1
  %17 = vst.msk [vmem:[%s16] ss:$16 sm:$0x30] %vm11, %v10
  %s18 = scalar_lea.vmem %s1, 1
  %19 = vst.msk [vmem:[%s18] ss:$16 sm:$0xc0] %vm11, %v10
  %v20 = vld [vmem:[%s0] sm:$0xff]
  %21 = vrot.lane.b32.xlu0 %v20, 126
  %v22 = vpop.permute.xlu0 %21
  %vm23 = vcmask 7168
  %s24 = scalar_lea.vmem %s1, 2
  %25 = vst.msk [vmem:[%s24] ss:$16 sm:$0x3] %vm23, %v22
  %s26 = scalar_lea.vmem %s1, 2
  %27 = vst.msk [vmem:[%s26] ss:$16 sm:$0xc] %vm23, %v22
  %s28 = scalar_lea.vmem %s1, 2
  %29 = vst.msk [vmem:[%s28] ss:$16 sm:$0x30] %vm23, %v22
  %s30 = scalar_lea.vmem %s1, 2
  %31 = vst.msk [vmem:[%s30] ss:$16 sm:$0xc0] %vm23, %v22
  %v32 = vld [vmem:[%s0] sm:$0xff]
  %33 = vrot.lane.b32.xlu0 %v32, 125
  %v34 = vpop.permute.xlu0 %33
  %vm35 = vcmask 7168
  %s36 = scalar_lea.vmem %s1, 3
  %37 = vst.msk [vmem:[%s36] ss:$16 sm:$0x3] %vm35, %v34
  %s38 = scalar_lea.vmem %s1, 3
  %39 = vst.msk [vmem:[%s38] ss:$16 sm:$0xc] %vm35, %v34
  %s40 = scalar_lea.vmem %s1, 3
  %41 = vst.msk [vmem:[%s40] ss:$16 sm:$0x30] %vm35, %v34
  %s42 = scalar_lea.vmem %s1, 3
  %43 = vst.msk [vmem:[%s42] ss:$16 sm:$0xc0] %vm35, %v34
  %v44 = vld [vmem:[%s0] sm:$0xff]
  %45 = vrot.lane.b32.xlu0 %v44, 124
  %v46 = vpop.permute.xlu0 %45
  %vm47 = vcmask 7168
  %s48 = scalar_lea.vmem %s1, 4
  %49 = vst.msk [vmem:[%s48] ss:$16 sm:$0x3] %vm47, %v46
  %s50 = scalar_lea.vmem %s1, 4
  %51 = vst.msk [vmem:[%s50] ss:$16 sm:$0xc] %vm47, %v46
  %s52 = scalar_lea.vmem %s1, 4
  %53 = vst.msk [vmem:[%s52] ss:$16 sm:$0x30] %vm47, %v46
  %s54 = scalar_lea.vmem %s1, 4
  %55 = vst.msk [vmem:[%s54] ss:$16 sm:$0xc0] %vm47, %v46
  %v56 = vld [vmem:[%s0] sm:$0xff]
  %57 = vrot.lane.b32.xlu0 %v56, 123
  %v58 = vpop.permute.xlu0 %57
  %vm59 = vcmask 7168
  %s60 = scalar_lea.vmem %s1, 5
  %61 = vst.msk [vmem:[%s60] ss:$16 sm:$0x3] %vm59, %v58
  %s62 = scalar_lea.vmem %s1, 5
  %63 = vst.msk [vmem:[%s62] ss:$16 sm:$0xc] %vm59, %v58
  %s64 = scalar_lea.vmem %s1, 5
  %65 = vst.msk [vmem:[%s64] ss:$16 sm:$0x30] %vm59, %v58
  %s66 = scalar_lea.vmem %s1, 5
  %67 = vst.msk [vmem:[%s66] ss:$16 sm:$0xc0] %vm59, %v58
  %v68 = vld [vmem:[%s0] sm:$0xff]
  %69 = vrot.lane.b32.xlu0 %v68, 122
  %v70 = vpop.permute.xlu0 %69
  %vm71 = vcmask 7168
  %s72 = scalar_lea.vmem %s1, 6
  %73 = vst.msk [vmem:[%s72] ss:$16 sm:$0x3] %vm71, %v70
  %s74 = scalar_lea.vmem %s1, 6
  %75 = vst.msk [vmem:[%s74] ss:$16 sm:$0xc] %vm71, %v70
  %s76 = scalar_lea.vmem %s1, 6
  %77 = vst.msk [vmem:[%s76] ss:$16 sm:$0x30] %vm71, %v70
  %s78 = scalar_lea.vmem %s1, 6
  %79 = vst.msk [vmem:[%s78] ss:$16 sm:$0xc0] %vm71, %v70
  %v80 = vld [vmem:[%s0] sm:$0xff]
  %81 = vrot.lane.b32.xlu0 %v80, 121
  %v82 = vpop.permute.xlu0 %81
  %vm83 = vcmask 7168
  %s84 = scalar_lea.vmem %s1, 7
  %85 = vst.msk [vmem:[%s84] ss:$16 sm:$0x3] %vm83, %v82
  %s86 = scalar_lea.vmem %s1, 7
  %87 = vst.msk [vmem:[%s86] ss:$16 sm:$0xc] %vm83, %v82
  %s88 = scalar_lea.vmem %s1, 7
  %89 = vst.msk [vmem:[%s88] ss:$16 sm:$0x30] %vm83, %v82
  %s90 = scalar_lea.vmem %s1, 7
  %91 = vst.msk [vmem:[%s90] ss:$16 sm:$0xc0] %vm83, %v82
  %v92 = vld [vmem:[%s0] sm:$0xff]
  %93 = vrot.lane.b32.xlu0 %v92, 120
  %v94 = vpop.permute.xlu0 %93
  %vm95 = vcmask 7168
  %s96 = scalar_lea.vmem %s1, 8
  %97 = vst.msk [vmem:[%s96] ss:$16 sm:$0x3] %vm95, %v94
  %s98 = scalar_lea.vmem %s1, 8
  %99 = vst.msk [vmem:[%s98] ss:$16 sm:$0xc] %vm95, %v94
  %s100 = scalar_lea.vmem %s1, 8
  %101 = vst.msk [vmem:[%s100] ss:$16 sm:$0x30] %vm95, %v94
  %s102 = scalar_lea.vmem %s1, 8
  %103 = vst.msk [vmem:[%s102] ss:$16 sm:$0xc0] %vm95, %v94
  %v104 = vld [vmem:[%s0] sm:$0xff]
  %105 = vrot.lane.b32.xlu0 %v104, 119
  %v106 = vpop.permute.xlu0 %105
  %vm107 = vcmask 7168
  %s108 = scalar_lea.vmem %s1, 9
  %109 = vst.msk [vmem:[%s108] ss:$16 sm:$0x3] %vm107, %v106
  %s110 = scalar_lea.vmem %s1, 9
  %111 = vst.msk [vmem:[%s110] ss:$16 sm:$0xc] %vm107, %v106
  %s112 = scalar_lea.vmem %s1, 9
  %113 = vst.msk [vmem:[%s112] ss:$16 sm:$0x30] %vm107, %v106
  %s114 = scalar_lea.vmem %s1, 9
  %115 = vst.msk [vmem:[%s114] ss:$16 sm:$0xc0] %vm107, %v106
  %v116 = vld [vmem:[%s0] sm:$0xff]
  %117 = vrot.lane.b32.xlu0 %v116, 118
  %v118 = vpop.permute.xlu0 %117
  %vm119 = vcmask 7168
  %s120 = scalar_lea.vmem %s1, 10
  %121 = vst.msk [vmem:[%s120] ss:$16 sm:$0x3] %vm119, %v118
  %s122 = scalar_lea.vmem %s1, 10
  %123 = vst.msk [vmem:[%s122] ss:$16 sm:$0xc] %vm119, %v118
  %s124 = scalar_lea.vmem %s1, 10
  %125 = vst.msk [vmem:[%s124] ss:$16 sm:$0x30] %vm119, %v118
  %s126 = scalar_lea.vmem %s1, 10
  %127 = vst.msk [vmem:[%s126] ss:$16 sm:$0xc0] %vm119, %v118
  %v128 = vld [vmem:[%s0] sm:$0xff]
  %129 = vrot.lane.b32.xlu0 %v128, 117
  %v130 = vpop.permute.xlu0 %129
  %vm131 = vcmask 7168
  %s132 = scalar_lea.vmem %s1, 11
  %133 = vst.msk [vmem:[%s132] ss:$16 sm:$0x3] %vm131, %v130
  %s134 = scalar_lea.vmem %s1, 11
  %135 = vst.msk [vmem:[%s134] ss:$16 sm:$0xc] %vm131, %v130
  %s136 = scalar_lea.vmem %s1, 11
  %137 = vst.msk [vmem:[%s136] ss:$16 sm:$0x30] %vm131, %v130
  %s138 = scalar_lea.vmem %s1, 11
  %139 = vst.msk [vmem:[%s138] ss:$16 sm:$0xc0] %vm131, %v130
  %v140 = vld [vmem:[%s0] sm:$0xff]
  %141 = vrot.lane.b32.xlu0 %v140, 116
  %v142 = vpop.permute.xlu0 %141
  %vm143 = vcmask 7168
  %s144 = scalar_lea.vmem %s1, 12
  %145 = vst.msk [vmem:[%s144] ss:$16 sm:$0x3] %vm143, %v142
  %s146 = scalar_lea.vmem %s1, 12
  %147 = vst.msk [vmem:[%s146] ss:$16 sm:$0xc] %vm143, %v142
  %s148 = scalar_lea.vmem %s1, 12
  %149 = vst.msk [vmem:[%s148] ss:$16 sm:$0x30] %vm143, %v142
  %s150 = scalar_lea.vmem %s1, 12
  %151 = vst.msk [vmem:[%s150] ss:$16 sm:$0xc0] %vm143, %v142
  %v152 = vld [vmem:[%s0] sm:$0xff]
  %153 = vrot.lane.b32.xlu0 %v152, 115
  %v154 = vpop.permute.xlu0 %153
  %vm155 = vcmask 7168
  %s156 = scalar_lea.vmem %s1, 13
  %157 = vst.msk [vmem:[%s156] ss:$16 sm:$0x3] %vm155, %v154
  %s158 = scalar_lea.vmem %s1, 13
  %159 = vst.msk [vmem:[%s158] ss:$16 sm:$0xc] %vm155, %v154
  %s160 = scalar_lea.vmem %s1, 13
  %161 = vst.msk [vmem:[%s160] ss:$16 sm:$0x30] %vm155, %v154
  %s162 = scalar_lea.vmem %s1, 13
  %163 = vst.msk [vmem:[%s162] ss:$16 sm:$0xc0] %vm155, %v154
  %v164 = vld [vmem:[%s0] sm:$0xff]
  %165 = vrot.lane.b32.xlu0 %v164, 114
  %v166 = vpop.permute.xlu0 %165
  %vm167 = vcmask 7168
  %s168 = scalar_lea.vmem %s1, 14
  %169 = vst.msk [vmem:[%s168] ss:$16 sm:$0x3] %vm167, %v166
  %s170 = scalar_lea.vmem %s1, 14
  %171 = vst.msk [vmem:[%s170] ss:$16 sm:$0xc] %vm167, %v166
  %s172 = scalar_lea.vmem %s1, 14
  %173 = vst.msk [vmem:[%s172] ss:$16 sm:$0x30] %vm167, %v166
  %s174 = scalar_lea.vmem %s1, 14
  %175 = vst.msk [vmem:[%s174] ss:$16 sm:$0xc0] %vm167, %v166
  %v176 = vld [vmem:[%s0] sm:$0xff]
  %177 = vrot.lane.b32.xlu0 %v176, 113
  %v178 = vpop.permute.xlu0 %177
  %vm179 = vcmask 7168
  %s180 = scalar_lea.vmem %s1, 15
  %181 = vst.msk [vmem:[%s180] ss:$16 sm:$0x3] %vm179, %v178
  %s182 = scalar_lea.vmem %s1, 15
  %183 = vst.msk [vmem:[%s182] ss:$16 sm:$0xc] %vm179, %v178
  %s184 = scalar_lea.vmem %s1, 15
  %185 = vst.msk [vmem:[%s184] ss:$16 sm:$0x30] %vm179, %v178
  %s186 = scalar_lea.vmem %s1, 15
  %187 = vst.msk [vmem:[%s186] ss:$16 sm:$0xc0] %vm179, %v178

// kernel: fasnet_forward.6
$region0: #{fasnet_forward.6}
  #allocation0 [shape = 'u32[]', space=smem, size = 0x4, offset = 0x4, fixed_abs, tag = 'smem constant byte address 0x4 - core index']
  #allocation1 [shape = 'u32[144,128]{1,0:T(1,128)}', space=vmem, size = 0x12000, scoped, tag = 'internal scratch']
  %s0 = inlined_call_operand.vmem [shape: f32[48,2], index: 0, kind: input, shape index: {}]
  %s1 = inlined_call_operand.vmem [shape: f32[2,16], index: 1, kind: input, shape index: {}]
  %s2 = inlined_call_operand.vmem [shape: f32[1,16], index: 2, kind: input, shape index: {}]
  %s3 = inlined_call_operand.vmem [shape: f32[1,16], index: 3, kind: input, shape index: {}]
  %s4 = inlined_call_operand.vmem [shape: f32[16,16], index: 4, kind: input, shape index: {}]
  %s5 = inlined_call_operand.vmem [shape: f32[48,16], index: 5, kind: output, shape index: {0}]
  %s6 = inlined_call_operand.vmem [shape: f32[48,16], index: 6, kind: output, shape index: {1}]
  %7 = xla_tuple %s5, %s6
  %s8 = sld [smem:[#allocation0]]
  $region38: #{fasnet_forward.6} parent=0
    _
  %s10 = ssub.s32 1, %s8
  %s11 = scalar_select 0, %s10, %s8
  // Predicated region
  $region2: #{fasnet_forward.6} parent=0 // pred_check
    _
  $region3: #{fasnet_forward.6} parent=0 // pred_check_branch
    %13 = sbr.rel (0) target = $region5
  $region4: #{fasnet_forward.6} parent=0 // pred_region
    _
  $region5: #{fasnet_forward.6} parent=0 // pred_fallthru
    _
  // Predicated region
  $region6: #{fasnet_forward.6} parent=0 // pred_check
    _
  $region7: #{fasnet_forward.6} parent=0 // pred_check_branch
    %15 = sbr.rel (0) target = $region9
  $region8: #{fasnet_forward.6} parent=0 // pred_region
    _
  $region9: #{fasnet_forward.6} parent=0 // pred_fallthru
    _
  // Predicated region
  $region10: #{fasnet_forward.6} parent=0 // pred_check
    _
  $region11: #{fasnet_forward.6} parent=0 // pred_check_branch
    %17 = sbr.rel (0) target = $region13
  $region12: #{fasnet_forward.6} parent=0 // pred_region
    _
  $region13: #{fasnet_forward.6} parent=0 // pred_fallthru
    _
  // Predicated region
  $region14: #{fasnet_forward.6} parent=0 // pred_check
    _
  $region15: #{fasnet_forward.6} parent=0 // pred_check_branch
    %19 = sbr.rel (0) target = $region17
  $region16: #{fasnet_forward.6} parent=0 // pred_region
    _
  $region17: #{fasnet_forward.6} parent=0 // pred_fallthru
    _
  // Predicated region
  $region18: #{fasnet_forward.6} parent=0 // pred_check
    _
  $region19: #{fasnet_forward.6} parent=0 // pred_check_branch
    %21 = sbr.rel (0) target = $region21
  $region20: #{fasnet_forward.6} parent=0 // pred_region
    _
  $region21: #{fasnet_forward.6} parent=0 // pred_fallthru
    _
  %v22 = vld [vmem:[%s0] sm:$0xff]
  %v23 = vld [vmem:[%s0 + $0x8] sm:$0xff]
  %v24 = vld [vmem:[%s0 + $0x10] sm:$0xff]
  %v25 = vld [vmem:[%s0 + $0x18] sm:$0xff]
  %v26 = vld [vmem:[%s0 + $0x20] sm:$0xff]
  %v27 = vld [vmem:[%s0 + $0x28] sm:$0xff]
  %v28 = vld [vmem:[%s1] sm:$0x3]
  %30 = vset.pattern.permute.xlu0 0
  %31 = vperm.xlu0 %30, %v22
  %v32 = vpop.permute.xlu0 %31
  %35 = vset.pattern.permute.xlu0 0
  %36 = vperm.xlu0 %35, %v23
  %v37 = vpop.permute.xlu0 %36
  %40 = vset.pattern.permute.xlu0 0
  %41 = vperm.xlu0 %40, %v24
  %v42 = vpop.permute.xlu0 %41
  %45 = vset.pattern.permute.xlu0 0
  %46 = vperm.xlu0 %45, %v25
  %v47 = vpop.permute.xlu0 %46
  %50 = vset.pattern.permute.xlu0 0
  %51 = vperm.xlu0 %50, %v26
  %v52 = vpop.permute.xlu0 %51
  %55 = vset.pattern.permute.xlu0 0
  %56 = vperm.xlu0 %55, %v27
  %v57 = vpop.permute.xlu0 %56
  %v59 = vlaneseq
  %v60 = vshrl.u32 %v59, 7
  %v61 = vsub.s32 0, %v60
  %v62 = vrot.slane %v28, %v61
  %v63 = vmul.f32 %v32, %v62
  %v64 = vmul.f32 %v37, %v62
  %v65 = vmul.f32 %v42, %v62
  %v66 = vmul.f32 %v47, %v62
  %v67 = vmul.f32 %v52, %v62
  %v68 = vmul.f32 %v57, %v62
  %69 = vset.pattern.permute.xlu0 1
  %70 = vperm.xlu0 %69, %v22
  %v71 = vpop.permute.xlu0 %70
  %73 = vset.pattern.permute.xlu0 1
  %74 = vperm.xlu0 %73, %v23
  %v75 = vpop.permute.xlu0 %74
  %77 = vset.pattern.permute.xlu0 1
  %78 = vperm.xlu0 %77, %v24
  %v79 = vpop.permute.xlu0 %78
  %81 = vset.pattern.permute.xlu0 1
  %82 = vperm.xlu0 %81, %v25
  %v83 = vpop.permute.xlu0 %82
  %85 = vset.pattern.permute.xlu0 1
  %86 = vperm.xlu0 %85, %v26
  %v87 = vpop.permute.xlu0 %86
  %89 = vset.pattern.permute.xlu0 1
  %90 = vperm.xlu0 %89, %v27
  %v91 = vpop.permute.xlu0 %90
  %v93 = vlaneseq
  %v94 = vshrl.u32 %v93, 7
  %v95 = vsub.s32 1, %v94
  %v96 = vrot.slane %v28, %v95
  %v97 = vmul.f32 %v71, %v96
  %v98 = vmul.f32 %v75, %v96
  %v99 = vmul.f32 %v79, %v96
  %v100 = vmul.f32 %v83, %v96
  %v101 = vmul.f32 %v87, %v96
  %v102 = vmul.f32 %v91, %v96
  %v103 = vadd.f32 %v63, %v97
  %v104 = vadd.f32 %v64, %v98
  %v105 = vadd.f32 %v65, %v99
  %v106 = vadd.f32 %v66, %v100
  %v107 = vadd.f32 %v67, %v101
  %v108 = vadd.f32 %v68, %v102
  %v109 = vmax.f32 %v103, 0.0
  %v110 = vmax.f32 %v104, 0.0
  %v111 = vmax.f32 %v105, 0.0
  %v112 = vmax.f32 %v106, 0.0
  %v113 = vmax.f32 %v107, 0.0
  %v114 = vmax.f32 %v108, 0.0
  %vm115 = vcmask 130048
  %116 = vst.msk [vmem:[%s5] sm:$0xff] %vm115, %v109
  %117 = vst.msk [vmem:[%s5 + $0x8] sm:$0xff] %vm115, %v110
  %118 = vst.msk [vmem:[%s5 + $0x10] sm:$0xff] %vm115, %v111
  %119 = vst.msk [vmem:[%s5 + $0x18] sm:$0xff] %vm115, %v112
  %120 = vst.msk [vmem:[%s5 + $0x20] sm:$0xff] %vm115, %v113
  %121 = vst.msk [vmem:[%s5 + $0x28] sm:$0xff] %vm115, %v114
  %v122 = vlaneseq
  %v123 = vshrl.u32 %v122, 7
  %v124 = vadd.s32 %v123, 8
  %v125 = vadd.s32 %v123, 16
  %v126 = vadd.s32 %v123, 24
  %v127 = vadd.s32 %v123, 32
  %v128 = vadd.s32 %v123, 40
  %vm129 = vcmp.ge.s32.totalorder %v123, 0
  %vm130 = vcmp.ge.s32.totalorder %v124, 0
  %vm131 = vcmp.ge.s32.totalorder %v125, 0
  %vm132 = vcmp.ge.s32.totalorder %v126, 0
  %vm133 = vcmp.ge.s32.totalorder %v127, 0
  %vm134 = vcmp.ge.s32.totalorder %v128, 0
  %vm135 = vcmp.lt.s32.totalorder %v123, 24
  %vm136 = vcmp.lt.s32.totalorder %v124, 24
  %vm137 = vcmp.lt.s32.totalorder %v125, 24
  %vm138 = vcmp.lt.s32.totalorder %v126, 24
  %vm139 = vcmp.lt.s32.totalorder %v127, 24
  %vm140 = vcmp.lt.s32.totalorder %v128, 24
  %vm141 = vmand %vm129, %vm135
  %vm142 = vmand %vm130, %vm136
  %vm143 = vmand %vm131, %vm137
  %vm144 = vmand %vm132, %vm138
  %vm145 = vmand %vm133, %vm139
  %vm146 = vmand %vm134, %vm140
  %v147 = vsel %vm141, 1, 0
  %v148 = vsel %vm142, 1, 0
  %v149 = vsel %vm143, 1, 0
  %v150 = vsel %vm144, 1, 0
  %v151 = vsel %vm145, 1, 0
  %v152 = vsel %vm146, 1, 0
  %v153 = vcvt.s32.f32 %v147
  %v154 = vcvt.s32.f32 %v148
  %v155 = vcvt.s32.f32 %v149
  %v156 = vcvt.s32.f32 %v150
  %v157 = vcvt.s32.f32 %v151
  %v158 = vcvt.s32.f32 %v152
  %v159 = vmul.f32 %v109, %v153
  %v160 = vmul.f32 %v110, %v154
  %v161 = vmul.f32 %v111, %v155
  %v162 = vmul.f32 %v112, %v156
  %v163 = vmul.f32 %v113, %v157
  %v164 = vmul.f32 %v114, %v158
  %v165 = vsel %vm115, %v159, 0.0
  %v166 = vsel %vm115, %v160, 0.0
  %v167 = vadd.f32 %v165, %v166
  %v168 = vsel %vm115, %v161, 0.0
  %v169 = vadd.f32 %v167, %v168
  %v170 = vsel %vm115, %v162, 0.0
  %v171 = vadd.f32 %v169, %v170
  %v172 = vsel %vm115, %v163, 0.0
  %v173 = vadd.f32 %v171, %v172
  %v174 = vsel %vm115, %v164, 0.0
  %v175 = vadd.f32 %v173, %v174
  %176 = vadd.xlane.f32.xlu0 %v175
  %v177 = vpop.xlane.xlu0 %176
  %v178 = vrot.slane %v177, 4
  %v179 = vadd.f32 %v177, %v178
  %v180 = vrot.slane %v179, 2
  %v181 = vadd.f32 %v179, %v180
  %v182 = vrot.slane %v181, 1
  %v183 = vadd.f32 %v181, %v182
  %s184 = vtos %v183
  %v185 = vrcp.pop 384.0
  %s186 = vtos %v185
  %s187 = smul.f32 %s184, %s186
  %v188 = vstv %s187
  %v189 = vsub.f32 %v109, %v188
  %v190 = vsub.f32 %v110, %v188
  %v191 = vsub.f32 %v111, %v188
  %v192 = vsub.f32 %v112, %v188
  %v193 = vsub.f32 %v113, %v188
  %v194 = vsub.f32 %v114, %v188
  %v195 = vmul.f32 %v189, %v189
  %v196 = vmul.f32 %v190, %v190
  %v197 = vmul.f32 %v191, %v191
  %v198 = vmul.f32 %v192, %v192
  %v199 = vmul.f32 %v193, %v193
  %v200 = vmul.f32 %v194, %v194
  %v201 = vmul.f32 %v195, %v153
  %v202 = vmul.f32 %v196, %v154
  %v203 = vmul.f32 %v197, %v155
  %v204 = vmul.f32 %v198, %v156
  %v205 = vmul.f32 %v199, %v157
  %v206 = vmul.f32 %v200, %v158
  %v207 = vsel %vm115, %v201, 0.0
  %v208 = vsel %vm115, %v202, 0.0
  %v209 = vadd.f32 %v207, %v208
  %v210 = vsel %vm115, %v203, 0.0
  %v211 = vadd.f32 %v209, %v210
  %v212 = vsel %vm115, %v204, 0.0
  %v213 = vadd.f32 %v211, %v212
  %v214 = vsel %vm115, %v205, 0.0
  %v215 = vadd.f32 %v213, %v214
  %v216 = vsel %vm115, %v206, 0.0
  %v217 = vadd.f32 %v215, %v216
  %218 = vadd.xlane.f32.xlu0 %v217
  %v219 = vpop.xlane.xlu0 %218
  %v220 = vrot.slane %v219, 4
  %v221 = vadd.f32 %v219, %v220
  %v222 = vrot.slane %v221, 2
  %v223 = vadd.f32 %v221, %v222
  %v224 = vrot.slane %v223, 1
  %v225 = vadd.f32 %v223, %v224
  %s226 = vtos %v225
  %v227 = vrcp.pop 384.0
  %s228 = vtos %v227
  %s229 = smul.f32 %s226, %s228
  %v230 = vsel %vm141, %v188, 0.0
  %v231 = vsel %vm142, %v188, 0.0
  %v232 = vsel %vm143, %v188, 0.0
  %v233 = vsel %vm144, %v188, 0.0
  %v234 = vsel %vm145, %v188, 0.0
  %v235 = vsel %vm146, %v188, 0.0
  %s236 = sadd.f32 %s229, 1e-08
  %v237 = vstv %s236
  %v238 = vrsqrt.pop %v237
  %s239 = vtos %v238
  %v240 = vstv %s239
  %v241 = vsel %vm141, %v240, 0.0
  %v242 = vsel %vm142, %v240, 0.0
  %v243 = vsel %vm143, %v240, 0.0
  %v244 = vsel %vm144, %v240, 0.0
  %v245 = vsel %vm145, %v240, 0.0
  %v246 = vsel %vm146, %v240, 0.0
  %vm247 = vcmp.ge.s32.totalorder %v123, 24
  %vm248 = vcmp.ge.s32.totalorder %v124, 24
  %vm249 = vcmp.ge.s32.totalorder %v125, 24
  %vm250 = vcmp.ge.s32.totalorder %v126, 24
  %vm251 = vcmp.ge.s32.totalorder %v127, 24
  %vm252 = vcmp.ge.s32.totalorder %v128, 24
  %vm253 = vcmp.lt.s32.totalorder %v123, 48
  %vm254 = vcmp.lt.s32.totalorder %v124, 48
  %vm255 = vcmp.lt.s32.totalorder %v125, 48
  %vm256 = vcmp.lt.s32.totalorder %v126, 48
  %vm257 = vcmp.lt.s32.totalorder %v127, 48
  %vm258 = vcmp.lt.s32.totalorder %v128, 48
  %vm259 = vmand %vm247, %vm253
  %vm260 = vmand %vm248, %vm254
  %vm261 = vmand %vm249, %vm255
  %vm262 = vmand %vm250, %vm256
  %vm263 = vmand %vm251, %vm257
  %vm264 = vmand %vm252, %vm258
  %v265 = vsel %vm259, 1, 0
  %v266 = vsel %vm260, 1, 0
  %v267 = vsel %vm261, 1, 0
  %v268 = vsel %vm262, 1, 0
  %v269 = vsel %vm263, 1, 0
  %v270 = vsel %vm264, 1, 0
  %v271 = vcvt.s32.f32 %v265
  %v272 = vcvt.s32.f32 %v266
  %v273 = vcvt.s32.f32 %v267
  %v274 = vcvt.s32.f32 %v268
  %v275 = vcvt.s32.f32 %v269
  %v276 = vcvt.s32.f32 %v270
  %v277 = vmul.f32 %v109, %v271
  %v278 = vmul.f32 %v110, %v272
  %v279 = vmul.f32 %v111, %v273
  %v280 = vmul.f32 %v112, %v274
  %v281 = vmul.f32 %v113, %v275
  %v282 = vmul.f32 %v114, %v276
  %v283 = vsel %vm115, %v277, 0.0
  %v284 = vsel %vm115, %v278, 0.0
  %v285 = vadd.f32 %v283, %v284
  %v286 = vsel %vm115, %v279, 0.0
  %v287 = vadd.f32 %v285, %v286
  %v288 = vsel %vm115, %v280, 0.0
  %v289 = vadd.f32 %v287, %v288
  %v290 = vsel %vm115, %v281, 0.0
  %v291 = vadd.f32 %v289, %v290
  %v292 = vsel %vm115, %v282, 0.0
  %v293 = vadd.f32 %v291, %v292
  %294 = vadd.xlane.f32.xlu0 %v293
  %v295 = vpop.xlane.xlu0 %294
  %v296 = vrot.slane %v295, 4
  %v297 = vadd.f32 %v295, %v296
  %v298 = vrot.slane %v297, 2
  %v299 = vadd.f32 %v297, %v298
  %v300 = vrot.slane %v299, 1
  %v301 = vadd.f32 %v299, %v300
  %s302 = vtos %v301
  %v303 = vrcp.pop 384.0
  %s304 = vtos %v303
  %s305 = smul.f32 %s302, %s304
  %v306 = vstv %s305
  %v307 = vsub.f32 %v109, %v306
  %v308 = vsub.f32 %v110, %v306
  %v309 = vsub.f32 %v111, %v306
  %v310 = vsub.f32 %v112, %v306
  %v311 = vsub.f32 %v113, %v306
  %v312 = vsub.f32 %v114, %v306
  %v313 = vmul.f32 %v307, %v307
  %v314 = vmul.f32 %v308, %v308
  %v315 = vmul.f32 %v309, %v309
  %v316 = vmul.f32 %v310, %v310
  %v317 = vmul.f32 %v311, %v311
  %v318 = vmul.f32 %v312, %v312
  %v319 = vmul.f32 %v313, %v271
  %v320 = vmul.f32 %v314, %v272
  %v321 = vmul.f32 %v315, %v273
  %v322 = vmul.f32 %v316, %v274
  %v323 = vmul.f32 %v317, %v275
  %v324 = vmul.f32 %v318, %v276
  %v325 = vsel %vm115, %v319, 0.0
  %v326 = vsel %vm115, %v320, 0.0
  %v327 = vadd.f32 %v325, %v326
  %v328 = vsel %vm115, %v321, 0.0
  %v329 = vadd.f32 %v327, %v328
  %v330 = vsel %vm115, %v322, 0.0
  %v331 = vadd.f32 %v329, %v330
  %v332 = vsel %vm115, %v323, 0.0
  %v333 = vadd.f32 %v331, %v332
  %v334 = vsel %vm115, %v324, 0.0
  %v335 = vadd.f32 %v333, %v334
  %336 = vadd.xlane.f32.xlu0 %v335
  %v337 = vpop.xlane.xlu0 %336
  %v338 = vrot.slane %v337, 4
  %v339 = vadd.f32 %v337, %v338
  %v340 = vrot.slane %v339, 2
  %v341 = vadd.f32 %v339, %v340
  %v342 = vrot.slane %v341, 1
  %v343 = vadd.f32 %v341, %v342
  %s344 = vtos %v343
  %v345 = vrcp.pop 384.0
  %s346 = vtos %v345
  %s347 = smul.f32 %s344, %s346
  %v348 = vsel %vm259, %v306, %v230
  %v349 = vsel %vm260, %v306, %v231
  %v350 = vsel %vm261, %v306, %v232
  %v351 = vsel %vm262, %v306, %v233
  %v352 = vsel %vm263, %v306, %v234
  %v353 = vsel %vm264, %v306, %v235
  %s354 = sadd.f32 %s347, 1e-08
  %v355 = vstv %s354
  %v356 = vrsqrt.pop %v355
  %s357 = vtos %v356
  %v358 = vstv %s357
  %v359 = vsel %vm259, %v358, %v241
  %v360 = vsel %vm260, %v358, %v242
  %v361 = vsel %vm261, %v358, %v243
  %v362 = vsel %vm262, %v358, %v244
  %v363 = vsel %vm263, %v358, %v245
  %v364 = vsel %vm264, %v358, %v246
  %v365 = vsub.f32 %v109, %v348
  %v366 = vsub.f32 %v110, %v349
  %v367 = vsub.f32 %v111, %v350
  %v368 = vsub.f32 %v112, %v351
  %v369 = vsub.f32 %v113, %v352
  %v370 = vsub.f32 %v114, %v353
  %v371 = vmul.f32 %v365, %v359
  %v372 = vmul.f32 %v366, %v360
  %v373 = vmul.f32 %v367, %v361
  %v374 = vmul.f32 %v368, %v362
  %v375 = vmul.f32 %v369, %v363
  %v376 = vmul.f32 %v370, %v364
  %v377 = vld [vmem:[%s2] sm:$0x1]
  %v379 = vlaneseq
  %v380 = vshrl.u32 %v379, 7
  %v381 = vsub.s32 0, %v380
  %v382 = vrot.slane %v377, %v381
  %v384 = vmul.f32 %v371, %v382
  %v385 = vmul.f32 %v372, %v382
  %v386 = vmul.f32 %v373, %v382
  %v387 = vmul.f32 %v374, %v382
  %v388 = vmul.f32 %v375, %v382
  %v389 = vmul.f32 %v376, %v382
  %v390 = vld [vmem:[%s3] sm:$0x1]
  %v392 = vlaneseq
  %v393 = vshrl.u32 %v392, 7
  %v394 = vsub.s32 0, %v393
  %v395 = vrot.slane %v390, %v394
  %v397 = vadd.f32 %v384, %v395
  %v398 = vadd.f32 %v385, %v395
  %v399 = vadd.f32 %v386, %v395
  %v400 = vadd.f32 %v387, %v395
  %v401 = vadd.f32 %v388, %v395
  %v402 = vadd.f32 %v389, %v395
  %v403 = vld [vmem:[%s4] sm:$0xff]
  %v404 = vld [vmem:[%s4 + $0x8] sm:$0xff]
  %v406 = vsel %vm115, %v397, 0
  %v409 = vsel %vm115, %v398, 0
  %v412 = vsel %vm115, %v399, 0
  %v415 = vsel %vm115, %v400, 0
  %v418 = vsel %vm115, %v401, 0
  %v421 = vsel %vm115, %v402, 0
  %423 = vmatprep.subr.mxu0 0.0
  %424 = vmatpush1.msra.mxu0 0.0
  %425 = vmatprep.subr.mxu0 0.0
  %426 = vmatpush1.msra.mxu0 0.0
  %427 = vmatprep.subr.mxu0 0.0
  %428 = vmatpush1.msra.mxu0 0.0
  %429 = vmatprep.subr.mxu0 0.0
  %430 = vmatpush1.msra.mxu0 0.0
  %431 = vmatprep.subr.mxu0 0.0
  %432 = vmatpush1.msra.mxu0 0.0
  %433 = vmatprep.subr.mxu0 0.0
  %434 = vmatpush1.msra.mxu0 0.0
  %435 = vmatprep.subr.mxu0 0.0
  %436 = vmatpush1.msra.mxu0 0.0
  %437 = vmatprep.subr.mxu0 0.0
  %438 = vmatpush1.msra.mxu0 0.0
  %439 = vmatprep.subr.mxu0 0.0
  %440 = vmatpush1.msra.mxu0 0.0
  %441 = vmatprep.subr.mxu0 0.0
  %442 = vmatpush1.msra.mxu0 0.0
  %443 = vmatprep.subr.mxu0 0.0
  %444 = vmatpush1.msra.mxu0 0.0
  %445 = vmatprep.subr.mxu0 0.0
  %446 = vmatpush1.msra.mxu0 0.0
  %447 = vmatprep.subr.mxu0 0.0
  %448 = vmatpush1.msra.mxu0 0.0
  %449 = vmatprep.subr.mxu0 0.0
  %450 = vmatpush1.msra.mxu0 0.0
  %451 = vmatprep.subr.mxu0 0.0
  %452 = vmatpush1.msra.mxu0 %v404
  %453 = vmatprep.subr.mxu0 0.0
  %454 = vmatpush1.msra.mxu0 %v403
  %455 = vmatprep.subr.mxu0 0.0
  %456 = vmatpush2.msra.mxu0 0.0
  %457 = vmatprep.subr.mxu0 0.0
  %458 = vmatpush2.msra.mxu0 0.0
  %459 = vmatprep.subr.mxu0 0.0
  %460 = vmatpush2.msra.mxu0 0.0
  %461 = vmatprep.subr.mxu0 0.0
  %462 = vmatpush2.msra.mxu0 0.0
  %463 = vmatprep.subr.mxu0 0.0
  %464 = vmatpush2.msra.mxu0 0.0
  %465 = vmatprep.subr.mxu0 0.0
  %466 = vmatpush2.msra.mxu0 0.0
  %467 = vmatprep.subr.mxu0 0.0
  %468 = vmatpush2.msra.mxu0 0.0
  %469 = vmatprep.subr.mxu0 0.0
  %470 = vmatpush2.msra.mxu0 0.0
  %471 = vmatprep.subr.mxu0 0.0
  %472 = vmatpush2.msra.mxu0 0.0
  %473 = vmatprep.subr.mxu0 0.0
  %474 = vmatpush2.msra.mxu0 0.0
  %475 = vmatprep.subr.mxu0 0.0
  %476 = vmatpush2.msra.mxu0 0.0
  %477 = vmatprep.subr.mxu0 0.0
  %478 = vmatpush2.msra.mxu0 0.0
  %479 = vmatprep.subr.mxu0 0.0
  %480 = vmatpush2.msra.mxu0 0.0
  %481 = vmatprep.subr.mxu0 0.0
  %482 = vmatpush2.msra.mxu0 0.0
  %483 = vmatprep.subr.mxu0 0.0
  %484 = vmatpush2.msra.mxu0 0.0
  %485 = vmatprep.subr.mxu0 0.0
  %486 = vmatpush2.msra.mxu0 0.0
  %487 = vmatprep.mubr.f32.mxu0 0.0
  %488 = vmatmul.mubr.f32.gmra.mxu0 %v406
  %v489 = vpop.f32.mrf.mxu0
  %v490 = vadd.f32 0.0, %v489
  %v491 = vpop.f32.mrf.mxu0
  %492 = vmatprep.mubr.f32.mxu0 0.0
  %493 = vmatmul.mubr.f32.gmra.mxu0 %v409
  %v494 = vpop.f32.mrf.mxu0
  %v495 = vadd.f32 0.0, %v494
  %v496 = vpop.f32.mrf.mxu0
  %497 = vmatprep.mubr.f32.mxu0 0.0
  %498 = vmatmul.mubr.f32.gmra.mxu0 %v412
  %v499 = vpop.f32.mrf.mxu0
  %v500 = vadd.f32 0.0, %v499
  %v501 = vpop.f32.mrf.mxu0
  %502 = vmatprep.mubr.f32.mxu0 0.0
  %503 = vmatmul.mubr.f32.gmra.mxu0 %v415
  %v504 = vpop.f32.mrf.mxu0
  %v505 = vadd.f32 0.0, %v504
  %v506 = vpop.f32.mrf.mxu0
  %507 = vmatprep.mubr.f32.mxu0 0.0
  %508 = vmatmul.mubr.f32.gmra.mxu0 %v418
  %v509 = vpop.f32.mrf.mxu0
  %v510 = vadd.f32 0.0, %v509
  %v511 = vpop.f32.mrf.mxu0
  %512 = vmatprep.mubr.f32.mxu0 0.0
  %513 = vmatmul.mubr.f32.gmra.mxu0 %v421
  %v514 = vpop.f32.mrf.mxu0
  %v515 = vadd.f32 0.0, %v514
  %v516 = vpop.f32.mrf.mxu0
  %517 = vdwg.mxu0
  %518 = vst.msk [vmem:[%s6] sm:$0xff] %vm115, %v490
  %519 = vst.msk [vmem:[%s6 + $0x8] sm:$0xff] %vm115, %v495
  %520 = vst.msk [vmem:[%s6 + $0x10] sm:$0xff] %vm115, %v500
  %521 = vst.msk [vmem:[%s6 + $0x18] sm:$0xff] %vm115, %v505
  %522 = vst.msk [vmem:[%s6 + $0x20] sm:$0xff] %vm115, %v510
  %523 = vst.msk [vmem:[%s6 + $0x28] sm:$0xff] %vm115, %v515
  // Predicated region
  $region22: #{fasnet_forward.6} parent=0 // pred_check
    _
  $region23: #{fasnet_forward.6} parent=0 // pred_check_branch
    %525 = sbr.rel (0) target = $region25
  $region24: #{fasnet_forward.6} parent=0 // pred_region
    _
  $region25: #{fasnet_forward.6} parent=0 // pred_fallthru
    _
  // Predicated region
  $region26: #{fasnet_forward.6} parent=0 // pred_check
    _
  $region27: #{fasnet_forward.6} parent=0 // pred_check_branch
    %527 = sbr.rel (0) target = $region29
  $region28: #{fasnet_forward.6} parent=0 // pred_region
    _
  $region29: #{fasnet_forward.6} parent=0 // pred_fallthru
    _
  // Predicated region
  $region30: #{fasnet_forward.6} parent=0 // pred_check
    _
  $region31: #{fasnet_forward.6} parent=0 // pred_check_branch
    %529 = sbr.rel (0) target = $region33
  $region32: #{fasnet_forward.6} parent=0 // pred_region
    _
  $region33: #{fasnet_forward.6} parent=0 // pred_fallthru
    _
  // Predicated region
  $region34: #{fasnet_forward.6} parent=0 // pred_check
    _
  $region35: #{fasnet_forward.6} parent=0 // pred_check_branch
    %531 = sbr.rel (0) target = $region37
  $region36: #{fasnet_forward.6} parent=0 // pred_region
    _
  $region37: #{fasnet_forward.6} parent=0 // pred_fallthru
    _

// kernel: squeeze.2
$region0: #{squeeze.2}
  %s0 = inlined_call_operand.vmem [shape: f32[96], index: 0, kind: input, shape index: {}]
  %s1 = inlined_call_operand.vmem [shape: f32[2,2,24], index: 1, kind: output, shape index: {}]
  $region1: #{squeeze.2} parent=0
    #allocation0 [shape = 'u8[8192]{0}', space=vmem, size = 0x2000, scoped, tag = 'scoped mem for output reshape']
    #allocation1 [shape = 'u8[4096]{0}', space=vmem, size = 0x1000, scoped, tag = 'scoped mem for input reshape']
    %s3 = sshll.u32 1, 1
    %s4 = ssub.s32 %s3, 1
    %v5 = vld [vmem:[%s0] sm:%s4]
    %6 = vst [vmem:[#allocation1] sm:%s4] %v5
    %v7 = vld [vmem:[#allocation1] sm:$0x1]
    %vm8 = vcmask 195584
    %9 = vst.msk [vmem:[#allocation0] sm:$0x1] %vm8, %v7
    %v10 = vld [vmem:[#allocation1] sm:$0x1]
    %11 = vrot.lane.b32.xlu0 %v10, 104
    %v12 = vpop.permute.xlu0 %11
    %vm13 = vcmask 195584
    %s14 = scalar_lea.vmem [#allocation0], 1
    %15 = vst.msk [vmem:[%s14] sm:$0x1] %vm13, %v12
    %v16 = vld [vmem:[#allocation1] sm:$0x1]
    %17 = vrot.lane.b32.xlu0 %v16, 80
    %v18 = vpop.permute.xlu0 %17
    %vm19 = vcmask 195584
    %s20 = scalar_lea.vmem [#allocation0], 8
    %21 = vst.msk [vmem:[%s20] sm:$0x1] %vm19, %v18
    %v22 = vld [vmem:[#allocation1] sm:$0x1]
    %23 = vrot.lane.b32.xlu0 %v22, 56
    %v24 = vpop.permute.xlu0 %23
    %vm25 = vcmask 195584
    %s26 = scalar_lea.vmem [#allocation0], 9
    %27 = vst.msk [vmem:[%s26] sm:$0x1] %vm25, %v24
    %s29 = sshll.u32 1, 2
    %s30 = ssub.s32 %s29, 1
    %v32 = vld [vmem:[#allocation0] sm:%s30]
    %s33 = sshll.u32 1, 2
    %s34 = ssub.s32 %s33, 1
    %35 = vst [vmem:[%s1] sm:%s34] %v32
    %s36 = scalar_lea.vmem [#allocation0], 8
    %v37 = vld [vmem:[%s36] sm:%s30]
    %s38 = sshll.u32 1, 2
    %s39 = ssub.s32 %s38, 1
    %s40 = scalar_lea.vmem %s1, 2
    %41 = vst [vmem:[%s40] sm:%s39] %v37

// kernel: fasnet_forward.7
$region0: #{fasnet_forward.7}
  #allocation0 [shape = 'u32[]', space=smem, size = 0x4, offset = 0x4, fixed_abs, tag = 'smem constant byte address 0x4 - core index']
  #allocation1 [shape = 'u32[144,128]{1,0:T(1,128)}', space=vmem, size = 0x12000, scoped, tag = 'internal scratch']
  #allocation2 [shape = 'f32[128,256]{1,0:T(8,128)}', space=vmem, size = 0x20000, scoped, tag = 'scratch operand']
  #allocation3 [shape = 'f32[128,32]{1,0:T(8,128)}', space=vmem, size = 0x10000, scoped, tag = 'scratch operand']
  %s0 = inlined_call_operand.vmem [shape: f32[128,16], index: 0, kind: input, shape index: {}]
  %s1 = inlined_call_operand.vmem [shape: s32[128,1], index: 1, kind: input, shape index: {}]
  %s2 = inlined_call_operand.vmem [shape: f32[16,256], index: 2, kind: input, shape index: {}]
  %s3 = inlined_call_operand.vmem [shape: f32[1,128], index: 3, kind: input, shape index: {}]
  %s4 = inlined_call_operand.vmem [shape: f32[32,128], index: 4, kind: input, shape index: {}]
  %s5 = inlined_call_operand.vmem [shape: f32[32,16], index: 5, kind: input, shape index: {}]
  %s6 = inlined_call_operand.vmem [shape: f32[1,16], index: 6, kind: input, shape index: {}]
  %s7 = inlined_call_operand.vmem [shape: f32[1,16], index: 7, kind: input, shape index: {}]
  %s8 = inlined_call_operand.vmem [shape: f32[1,16], index: 8, kind: input, shape index: {}]
  %s9 = inlined_call_operand.vmem [shape: f32[128,16], index: 9, kind: output, shape index: {}]
  %s10 = sld [smem:[#allocation0]]
  $region46: #{fasnet_forward.7} parent=0
    _
  %s12 = ssub.s32 1, %s10
  %s13 = scalar_select 0, %s12, %s10
  // Predicated region
  $region2: #{fasnet_forward.7} parent=0 // pred_check
    _
  $region3: #{fasnet_forward.7} parent=0 // pred_check_branch
    %15 = sbr.rel (0) target = $region5
  $region4: #{fasnet_forward.7} parent=0 // pred_region
    _
  $region5: #{fasnet_forward.7} parent=0 // pred_fallthru
    _
  // Predicated region
  $region6: #{fasnet_forward.7} parent=0 // pred_check
    _
  $region7: #{fasnet_forward.7} parent=0 // pred_check_branch
    %17 = sbr.rel (0) target = $region9
  $region8: #{fasnet_forward.7} parent=0 // pred_region
    _
  $region9: #{fasnet_forward.7} parent=0 // pred_fallthru
    _
  // Predicated region
  $region10: #{fasnet_forward.7} parent=0 // pred_check
    _
  $region11: #{fasnet_forward.7} parent=0 // pred_check_branch
    %19 = sbr.rel (0) target = $region13
  $region12: #{fasnet_forward.7} parent=0 // pred_region
    _
  $region13: #{fasnet_forward.7} parent=0 // pred_fallthru
    _
  // Predicated region
  $region14: #{fasnet_forward.7} parent=0 // pred_check
    _
  $region15: #{fasnet_forward.7} parent=0 // pred_check_branch
    %21 = sbr.rel (0) target = $region17
  $region16: #{fasnet_forward.7} parent=0 // pred_region
    _
  $region17: #{fasnet_forward.7} parent=0 // pred_fallthru
    _
  // Predicated region
  $region18: #{fasnet_forward.7} parent=0 // pred_check
    _
  $region19: #{fasnet_forward.7} parent=0 // pred_check_branch
    %23 = sbr.rel (0) target = $region21
  $region20: #{fasnet_forward.7} parent=0 // pred_region
    _
  $region21: #{fasnet_forward.7} parent=0 // pred_fallthru
    _
  // Predicated region
  $region22: #{fasnet_forward.7} parent=0 // pred_check
    _
  $region23: #{fasnet_forward.7} parent=0 // pred_check_branch
    %25 = sbr.rel (0) target = $region25
  $region24: #{fasnet_forward.7} parent=0 // pred_region
    _
  $region25: #{fasnet_forward.7} parent=0 // pred_fallthru
    _
  // Predicated region
  $region26: #{fasnet_forward.7} parent=0 // pred_check
    _
  $region27: #{fasnet_forward.7} parent=0 // pred_check_branch
    %27 = sbr.rel (0) target = $region29
  $region28: #{fasnet_forward.7} parent=0 // pred_region
    _
  $region29: #{fasnet_forward.7} parent=0 // pred_fallthru
    _
  // Predicated region
  $region30: #{fasnet_forward.7} parent=0 // pred_check
    _
  $region31: #{fasnet_forward.7} parent=0 // pred_check_branch
    %29 = sbr.rel (0) target = $region33
  $region32: #{fasnet_forward.7} parent=0 // pred_region
    _
  $region33: #{fasnet_forward.7} parent=0 // pred_fallthru
    _
  // Predicated region
  $region34: #{fasnet_forward.7} parent=0 // pred_check
    _
  $region35: #{fasnet_forward.7} parent=0 // pred_check_branch
    %31 = sbr.rel (0) target = $region37
  $region36: #{fasnet_forward.7} parent=0 // pred_region
    _
  $region37: #{fasnet_forward.7} parent=0 // pred_fallthru
    _
  %v32 = vld [vmem:[%s0] sm:$0xff]
  %v33 = vld [vmem:[%s0 + $0x8] sm:$0xff]
  %v34 = vld [vmem:[%s0 + $0x10] sm:$0xff]
  %v35 = vld [vmem:[%s0 + $0x18] sm:$0xff]
  %v36 = vld [vmem:[%s0 + $0x20] sm:$0xff]
  %v37 = vld [vmem:[%s0 + $0x28] sm:$0xff]
  %v38 = vld [vmem:[%s0 + $0x30] sm:$0xff]
  %v39 = vld [vmem:[%s0 + $0x38] sm:$0xff]
  %v40 = vld [vmem:[%s0 + $0x40] sm:$0xff]
  %v41 = vld [vmem:[%s0 + $0x48] sm:$0xff]
  %v42 = vld [vmem:[%s0 + $0x50] sm:$0xff]
  %v43 = vld [vmem:[%s0 + $0x58] sm:$0xff]
  %v44 = vld [vmem:[%s0 + $0x60] sm:$0xff]
  %v45 = vld [vmem:[%s0 + $0x68] sm:$0xff]
  %v46 = vld [vmem:[%s0 + $0x70] sm:$0xff]
  %v47 = vld [vmem:[%s0 + $0x78] sm:$0xff]
  %v48 = vld [vmem:[%s2] sm:$0xff]
  %v49 = vld [vmem:[%s2 + $0x8] sm:$0xff]
  %v50 = vld [vmem:[%s2 + $0x10] sm:$0xff]
  %v51 = vld [vmem:[%s2 + $0x18] sm:$0xff]
  %vm52 = vcmask 130048
  %v54 = vsel %vm52, %v32, 0
  %v57 = vsel %vm52, %v33, 0
  %v60 = vsel %vm52, %v34, 0
  %v63 = vsel %vm52, %v35, 0
  %v66 = vsel %vm52, %v36, 0
  %v69 = vsel %vm52, %v37, 0
  %v72 = vsel %vm52, %v38, 0
  %v75 = vsel %vm52, %v39, 0
  %v78 = vsel %vm52, %v40, 0
  %v81 = vsel %vm52, %v41, 0
  %v84 = vsel %vm52, %v42, 0
  %v87 = vsel %vm52, %v43, 0
  %v90 = vsel %vm52, %v44, 0
  %v93 = vsel %vm52, %v45, 0
  %v96 = vsel %vm52, %v46, 0
  %v99 = vsel %vm52, %v47, 0
  %101 = vmatprep.subr.mxu0 0.0
  %102 = vmatpush1.msra.mxu0 0.0
  %103 = vmatprep.subr.mxu0 0.0
  %104 = vmatpush1.msra.mxu0 0.0
  %105 = vmatprep.subr.mxu0 0.0
  %106 = vmatpush1.msra.mxu0 0.0
  %107 = vmatprep.subr.mxu0 0.0
  %108 = vmatpush1.msra.mxu0 0.0
  %109 = vmatprep.subr.mxu0 0.0
  %110 = vmatpush1.msra.mxu0 0.0
  %111 = vmatprep.subr.mxu0 0.0
  %112 = vmatpush1.msra.mxu0 0.0
  %113 = vmatprep.subr.mxu0 0.0
  %114 = vmatpush1.msra.mxu0 0.0
  %115 = vmatprep.subr.mxu0 0.0
  %116 = vmatpush1.msra.mxu0 0.0
  %117 = vmatprep.subr.mxu0 0.0
  %118 = vmatpush1.msra.mxu0 0.0
  %119 = vmatprep.subr.mxu0 0.0
  %120 = vmatpush1.msra.mxu0 0.0
  %121 = vmatprep.subr.mxu0 0.0
  %122 = vmatpush1.msra.mxu0 0.0
  %123 = vmatprep.subr.mxu0 0.0
  %124 = vmatpush1.msra.mxu0 0.0
  %125 = vmatprep.subr.mxu0 0.0
  %126 = vmatpush1.msra.mxu0 0.0
  %127 = vmatprep.subr.mxu0 0.0
  %128 = vmatpush1.msra.mxu0 0.0
  %129 = vmatprep.subr.mxu0 %v51
  %130 = vmatpush1.msra.mxu0 %v50
  %131 = vmatprep.subr.mxu0 %v49
  %132 = vmatpush1.msra.mxu0 %v48
  %133 = vmatprep.subr.mxu0 0.0
  %134 = vmatpush2.msra.mxu0 0.0
  %135 = vmatprep.subr.mxu0 0.0
  %136 = vmatpush2.msra.mxu0 0.0
  %137 = vmatprep.subr.mxu0 0.0
  %138 = vmatpush2.msra.mxu0 0.0
  %139 = vmatprep.subr.mxu0 0.0
  %140 = vmatpush2.msra.mxu0 0.0
  %141 = vmatprep.subr.mxu0 0.0
  %142 = vmatpush2.msra.mxu0 0.0
  %143 = vmatprep.subr.mxu0 0.0
  %144 = vmatpush2.msra.mxu0 0.0
  %145 = vmatprep.subr.mxu0 0.0
  %146 = vmatpush2.msra.mxu0 0.0
  %147 = vmatprep.subr.mxu0 0.0
  %148 = vmatpush2.msra.mxu0 0.0
  %149 = vmatprep.subr.mxu0 0.0
  %150 = vmatpush2.msra.mxu0 0.0
  %151 = vmatprep.subr.mxu0 0.0
  %152 = vmatpush2.msra.mxu0 0.0
  %153 = vmatprep.subr.mxu0 0.0
  %154 = vmatpush2.msra.mxu0 0.0
  %155 = vmatprep.subr.mxu0 0.0
  %156 = vmatpush2.msra.mxu0 0.0
  %157 = vmatprep.subr.mxu0 0.0
  %158 = vmatpush2.msra.mxu0 0.0
  %159 = vmatprep.subr.mxu0 0.0
  %160 = vmatpush2.msra.mxu0 0.0
  %161 = vmatprep.subr.mxu0 0.0
  %162 = vmatpush2.msra.mxu0 0.0
  %163 = vmatprep.subr.mxu0 0.0
  %164 = vmatpush2.msra.mxu0 0.0
  %165 = vmatprep.mubr.f32.mxu0 0.0
  %166 = vmatmul.mubr.f32.gmra.mxu0 %v54
  %v167 = vpop.f32.mrf.mxu0
  %v168 = vadd.f32 0.0, %v167
  %v169 = vpop.f32.mrf.mxu0
  %v170 = vadd.f32 0.0, %v169
  %171 = vmatprep.mubr.f32.mxu0 0.0
  %172 = vmatmul.mubr.f32.gmra.mxu0 %v57
  %v173 = vpop.f32.mrf.mxu0
  %v174 = vadd.f32 0.0, %v173
  %v175 = vpop.f32.mrf.mxu0
  %v176 = vadd.f32 0.0, %v175
  %177 = vmatprep.mubr.f32.mxu0 0.0
  %178 = vmatmul.mubr.f32.gmra.mxu0 %v60
  %v179 = vpop.f32.mrf.mxu0
  %v180 = vadd.f32 0.0, %v179
  %v181 = vpop.f32.mrf.mxu0
  %v182 = vadd.f32 0.0, %v181
  %183 = vmatprep.mubr.f32.mxu0 0.0
  %184 = vmatmul.mubr.f32.gmra.mxu0 %v63
  %v185 = vpop.f32.mrf.mxu0
  %v186 = vadd.f32 0.0, %v185
  %v187 = vpop.f32.mrf.mxu0
  %v188 = vadd.f32 0.0, %v187
  %189 = vmatprep.mubr.f32.mxu0 0.0
  %190 = vmatmul.mubr.f32.gmra.mxu0 %v66
  %v191 = vpop.f32.mrf.mxu0
  %v192 = vadd.f32 0.0, %v191
  %v193 = vpop.f32.mrf.mxu0
  %v194 = vadd.f32 0.0, %v193
  %195 = vmatprep.mubr.f32.mxu0 0.0
  %196 = vmatmul.mubr.f32.gmra.mxu0 %v69
  %v197 = vpop.f32.mrf.mxu0
  %v198 = vadd.f32 0.0, %v197
  %v199 = vpop.f32.mrf.mxu0
  %v200 = vadd.f32 0.0, %v199
  %201 = vmatprep.mubr.f32.mxu0 0.0
  %202 = vmatmul.mubr.f32.gmra.mxu0 %v72
  %v203 = vpop.f32.mrf.mxu0
  %v204 = vadd.f32 0.0, %v203
  %v205 = vpop.f32.mrf.mxu0
  %v206 = vadd.f32 0.0, %v205
  %207 = vmatprep.mubr.f32.mxu0 0.0
  %208 = vmatmul.mubr.f32.gmra.mxu0 %v75
  %v209 = vpop.f32.mrf.mxu0
  %v210 = vadd.f32 0.0, %v209
  %v211 = vpop.f32.mrf.mxu0
  %v212 = vadd.f32 0.0, %v211
  %213 = vmatprep.mubr.f32.mxu0 0.0
  %214 = vmatmul.mubr.f32.gmra.mxu0 %v78
  %v215 = vpop.f32.mrf.mxu0
  %v216 = vadd.f32 0.0, %v215
  %v217 = vpop.f32.mrf.mxu0
  %v218 = vadd.f32 0.0, %v217
  %219 = vmatprep.mubr.f32.mxu0 0.0
  %220 = vmatmul.mubr.f32.gmra.mxu0 %v81
  %v221 = vpop.f32.mrf.mxu0
  %v222 = vadd.f32 0.0, %v221
  %v223 = vpop.f32.mrf.mxu0
  %v224 = vadd.f32 0.0, %v223
  %225 = vmatprep.mubr.f32.mxu0 0.0
  %226 = vmatmul.mubr.f32.gmra.mxu0 %v84
  %v227 = vpop.f32.mrf.mxu0
  %v228 = vadd.f32 0.0, %v227
  %v229 = vpop.f32.mrf.mxu0
  %v230 = vadd.f32 0.0, %v229
  %231 = vmatprep.mubr.f32.mxu0 0.0
  %232 = vmatmul.mubr.f32.gmra.mxu0 %v87
  %v233 = vpop.f32.mrf.mxu0
  %v234 = vadd.f32 0.0, %v233
  %v235 = vpop.f32.mrf.mxu0
  %v236 = vadd.f32 0.0, %v235
  %237 = vmatprep.mubr.f32.mxu0 0.0
  %238 = vmatmul.mubr.f32.gmra.mxu0 %v90
  %v239 = vpop.f32.mrf.mxu0
  %v240 = vadd.f32 0.0, %v239
  %v241 = vpop.f32.mrf.mxu0
  %v242 = vadd.f32 0.0, %v241
  %243 = vmatprep.mubr.f32.mxu0 0.0
  %244 = vmatmul.mubr.f32.gmra.mxu0 %v93
  %v245 = vpop.f32.mrf.mxu0
  %v246 = vadd.f32 0.0, %v245
  %v247 = vpop.f32.mrf.mxu0
  %v248 = vadd.f32 0.0, %v247
  %249 = vmatprep.mubr.f32.mxu0 0.0
  %250 = vmatmul.mubr.f32.gmra.mxu0 %v96
  %v251 = vpop.f32.mrf.mxu0
  %v252 = vadd.f32 0.0, %v251
  %v253 = vpop.f32.mrf.mxu0
  %v254 = vadd.f32 0.0, %v253
  %255 = vmatprep.mubr.f32.mxu0 0.0
  %256 = vmatmul.mubr.f32.gmra.mxu0 %v99
  %v257 = vpop.f32.mrf.mxu0
  %v258 = vadd.f32 0.0, %v257
  %v259 = vpop.f32.mrf.mxu0
  %v260 = vadd.f32 0.0, %v259
  %261 = vdwg.mxu0
  %262 = vst [vmem:[#allocation2] sm:$0xff] %v168
  %263 = vst [vmem:[#allocation2 + $0x8] sm:$0xff] %v170
  %264 = vst [vmem:[#allocation2 + $0x10] sm:$0xff] %v174
  %265 = vst [vmem:[#allocation2 + $0x18] sm:$0xff] %v176
  %266 = vst [vmem:[#allocation2 + $0x20] sm:$0xff] %v180
  %267 = vst [vmem:[#allocation2 + $0x28] sm:$0xff] %v182
  %268 = vst [vmem:[#allocation2 + $0x30] sm:$0xff] %v186
  %269 = vst [vmem:[#allocation2 + $0x38] sm:$0xff] %v188
  %270 = vst [vmem:[#allocation2 + $0x40] sm:$0xff] %v192
  %271 = vst [vmem:[#allocation2 + $0x48] sm:$0xff] %v194
  %272 = vst [vmem:[#allocation2 + $0x50] sm:$0xff] %v198
  %273 = vst [vmem:[#allocation2 + $0x58] sm:$0xff] %v200
  %274 = vst [vmem:[#allocation2 + $0x60] sm:$0xff] %v204
  %275 = vst [vmem:[#allocation2 + $0x68] sm:$0xff] %v206
  %276 = vst [vmem:[#allocation2 + $0x70] sm:$0xff] %v210
  %277 = vst [vmem:[#allocation2 + $0x78] sm:$0xff] %v212
  %278 = vst [vmem:[#allocation2 + $0x80] sm:$0xff] %v216
  %279 = vst [vmem:[#allocation2 + $0x88] sm:$0xff] %v218
  %280 = vst [vmem:[#allocation2 + $0x90] sm:$0xff] %v222
  %281 = vst [vmem:[#allocation2 + $0x98] sm:$0xff] %v224
  %282 = vst [vmem:[#allocation2 + $0xa0] sm:$0xff] %v228
  %283 = vst [vmem:[#allocation2 + $0xa8] sm:$0xff] %v230
  %284 = vst [vmem:[#allocation2 + $0xb0] sm:$0xff] %v234
  %285 = vst [vmem:[#allocation2 + $0xb8] sm:$0xff] %v236
  %286 = vst [vmem:[#allocation2 + $0xc0] sm:$0xff] %v240
  %287 = vst [vmem:[#allocation2 + $0xc8] sm:$0xff] %v242
  %288 = vst [vmem:[#allocation2 + $0xd0] sm:$0xff] %v246
  %289 = vst [vmem:[#allocation2 + $0xd8] sm:$0xff] %v248
  %290 = vst [vmem:[#allocation2 + $0xe0] sm:$0xff] %v252
  %291 = vst [vmem:[#allocation2 + $0xe8] sm:$0xff] %v254
  %292 = vst [vmem:[#allocation2 + $0xf0] sm:$0xff] %v258
  %293 = vst [vmem:[#allocation2 + $0xf8] sm:$0xff] %v260
  %v294 = vld [vmem:[%s3] sm:$0x1]
  %v295 = vld [vmem:[%s4] sm:$0xff]
  %v296 = vld [vmem:[%s4 + $0x8] sm:$0xff]
  %v297 = vld [vmem:[%s4 + $0x10] sm:$0xff]
  %v298 = vld [vmem:[%s4 + $0x18] sm:$0xff]
  %v299 = vlaneseq
  %v300 = vand.u32 %v299, 127
  %vm301 = vcmp.ge.s32.totalorder %v300, 64
  %vm302 = vcmp.lt.s32.totalorder %v300, 96
  %vm303 = vmand %vm301, %vm302
  %v304 = vsel %vm303, 2.0, 1.0
  %v305 = vld [vmem:[#allocation2] sm:$0xff]
  %v306 = vld [vmem:[#allocation2 + $0x10] sm:$0xff]
  %v307 = vld [vmem:[#allocation2 + $0xe8] sm:$0xff]
  %v308 = vld [vmem:[#allocation2 + $0xf8] sm:$0xff]
  %v309 = vadd.f32 %v305, %v307
  %v310 = vadd.f32 %v306, %v308
  %vm311 = vcmask 261120
  %v313 = vsel %vm311, 0.0, 0
  %315 = vmatprep.subr.mxu0 0.0
  %316 = vmatpush1.msra.mxu0 0.0
  %317 = vmatprep.subr.mxu0 0.0
  %318 = vmatpush1.msra.mxu0 0.0
  %319 = vmatprep.subr.mxu0 0.0
  %320 = vmatpush1.msra.mxu0 0.0
  %321 = vmatprep.subr.mxu0 0.0
  %322 = vmatpush1.msra.mxu0 0.0
  %323 = vmatprep.subr.mxu0 0.0
  %324 = vmatpush1.msra.mxu0 0.0
  %325 = vmatprep.subr.mxu0 0.0
  %326 = vmatpush1.msra.mxu0 0.0
  %327 = vmatprep.subr.mxu0 0.0
  %328 = vmatpush1.msra.mxu0 0.0
  %329 = vmatprep.subr.mxu0 0.0
  %330 = vmatpush1.msra.mxu0 0.0
  %331 = vmatprep.subr.mxu0 0.0
  %332 = vmatpush1.msra.mxu0 0.0
  %333 = vmatprep.subr.mxu0 0.0
  %334 = vmatpush1.msra.mxu0 0.0
  %335 = vmatprep.subr.mxu0 0.0
  %336 = vmatpush1.msra.mxu0 0.0
  %337 = vmatprep.subr.mxu0 0.0
  %338 = vmatpush1.msra.mxu0 0.0
  %339 = vmatprep.subr.mxu0 0.0
  %340 = vmatpush1.msra.mxu0 %v298
  %341 = vmatprep.subr.mxu0 0.0
  %342 = vmatpush1.msra.mxu0 %v297
  %343 = vmatprep.subr.mxu0 0.0
  %344 = vmatpush1.msra.mxu0 %v296
  %345 = vmatprep.subr.mxu0 0.0
  %346 = vmatpush1.msra.mxu0 %v295
  %347 = vmatprep.subr.mxu0 0.0
  %348 = vmatpush2.msra.mxu0 0.0
  %349 = vmatprep.subr.mxu0 0.0
  %350 = vmatpush2.msra.mxu0 0.0
  %351 = vmatprep.subr.mxu0 0.0
  %352 = vmatpush2.msra.mxu0 0.0
  %353 = vmatprep.subr.mxu0 0.0
  %354 = vmatpush2.msra.mxu0 0.0
  %355 = vmatprep.subr.mxu0 0.0
  %356 = vmatpush2.msra.mxu0 0.0
  %357 = vmatprep.subr.mxu0 0.0
  %358 = vmatpush2.msra.mxu0 0.0
  %359 = vmatprep.subr.mxu0 0.0
  %360 = vmatpush2.msra.mxu0 0.0
  %361 = vmatprep.subr.mxu0 0.0
  %362 = vmatpush2.msra.mxu0 0.0
  %363 = vmatprep.subr.mxu0 0.0
  %364 = vmatpush2.msra.mxu0 0.0
  %365 = vmatprep.subr.mxu0 0.0
  %366 = vmatpush2.msra.mxu0 0.0
  %367 = vmatprep.subr.mxu0 0.0
  %368 = vmatpush2.msra.mxu0 0.0
  %369 = vmatprep.subr.mxu0 0.0
  %370 = vmatpush2.msra.mxu0 0.0
  %371 = vmatprep.subr.mxu0 0.0
  %372 = vmatpush2.msra.mxu0 0.0
  %373 = vmatprep.subr.mxu0 0.0
  %374 = vmatpush2.msra.mxu0 0.0
  %375 = vmatprep.subr.mxu0 0.0
  %376 = vmatpush2.msra.mxu0 0.0
  %377 = vmatprep.subr.mxu0 0.0
  %378 = vmatpush2.msra.mxu0 0.0
  %379 = vmatprep.mubr.f32.mxu0 0.0
  %380 = vmatmul.mubr.f32.gmra.mxu0 %v313
  %v381 = vpop.f32.mrf.mxu0
  %v382 = vadd.f32 0.0, %v381
  %v383 = vpop.f32.mrf.mxu0
  %384 = vmatprep.mubr.f32.mxu0 0.0
  %385 = vmatmul.mubr.f32.gmra.mxu0 %v313
  %v386 = vpop.f32.mrf.mxu0
  %v387 = vadd.f32 0.0, %v386
  %v388 = vpop.f32.mrf.mxu0
  %389 = vdwg.mxu0
  %v390 = vadd.f32 %v309, %v382
  %v391 = vadd.f32 %v310, %v387
  %v393 = vlaneseq
  %v394 = vshrl.u32 %v393, 7
  %v395 = vsub.s32 0, %v394
  %v396 = vrot.slane %v294, %v395
  %v398 = vadd.f32 %v390, %v396
  %v399 = vadd.f32 %v391, %v396
  %v400 = vmul.f32 %v398, %v304
  %v401 = vmul.f32 %v399, %v304
  %v402 = vxor.u32 %v400, 2147483648
  %v403 = vxor.u32 %v401, 2147483648
  %v404 = vmul.f32 %v402, 1.442695
  %v405 = vpow.pop %v404
  %v406 = vmul.f32 %v403, 1.442695
  %v407 = vpow.pop %v406
  %v408 = vadd.f32 %v405, 1.0
  %v409 = vadd.f32 %v407, 1.0
  %v410 = vrcp.pop %v408
  %v411 = vmul.f32 1.0, %v410
  %v412 = vrcp.pop %v409
  %v413 = vmul.f32 1.0, %v412
  %v414 = vmul.f32 %v411, 2.0
  %v415 = vmul.f32 %v413, 2.0
  %v416 = vsub.f32 %v414, 1.0
  %v417 = vsub.f32 %v415, 1.0
  %v418 = vsel %vm303, %v416, %v411
  %v419 = vsel %vm303, %v417, %v413
  %v420 = vmul.f32 %v418, 0.0
  %v421 = vmul.f32 %v419, 0.0
  %424 = vrot.lane.b32.xlu0 %v418, 64
  %v425 = vpop.permute.xlu0 %424
  %426 = vrot.lane.b32.xlu0 %v419, 64
  %v427 = vpop.permute.xlu0 %426
  %v430 = vmul.f32 %v418, %v425
  %v431 = vmul.f32 %v419, %v427
  %434 = vrot.lane.b32.xlu0 %v430, 32
  %v435 = vpop.permute.xlu0 %434
  %436 = vrot.lane.b32.xlu0 %v431, 32
  %v437 = vpop.permute.xlu0 %436
  %v440 = vadd.f32 %v420, %v435
  %v441 = vadd.f32 %v421, %v437
  %v442 = vtanh.pop %v440
  %v443 = vtanh.pop %v441
  %446 = vrot.lane.b32.xlu0 %v442, 64
  %v447 = vpop.permute.xlu0 %446
  %448 = vrot.lane.b32.xlu0 %v443, 64
  %v449 = vpop.permute.xlu0 %448
  %v452 = vmul.f32 %v418, %v447
  %v453 = vmul.f32 %v419, %v449
  %456 = vrot.lane.b32.xlu0 %v452, 32
  %v457 = vpop.permute.xlu0 %456
  %458 = vrot.lane.b32.xlu0 %v453, 32
  %v459 = vpop.permute.xlu0 %458
  %462 = vst.msk [vmem:[#allocation3] sm:$0xff] %vm52, %v457
  %463 = vst.msk [vmem:[#allocation3 + $0x8] sm:$0xff] %vm52, %v459
  %vm464 = vcmask 261248
  %465 = vst.msk [vmem:[#allocation3 + $0x70] sm:$0xff] %vm464, %v457
  %466 = vst.msk [vmem:[#allocation3 + $0x78] sm:$0xff] %vm464, %v459
  %v467 = vld [vmem:[#allocation2 + $0x20] sm:$0xff]
  %v468 = vld [vmem:[#allocation2 + $0x30] sm:$0xff]
  %v469 = vld [vmem:[#allocation2 + $0xc8] sm:$0xff]
  %v470 = vld [vmem:[#allocation2 + $0xd8] sm:$0xff]
  %v471 = vadd.f32 %v467, %v469
  %v472 = vadd.f32 %v468, %v470
  %v473 = vsel %vm311, %v457, 0
  %v475 = vsel %vm311, %v459, 0
  %477 = vmatprep.subr.mxu0 0.0
  %478 = vmatpush1.msra.mxu0 0.0
  %479 = vmatprep.subr.mxu0 0.0
  %480 = vmatpush1.msra.mxu0 0.0
  %481 = vmatprep.subr.mxu0 0.0
  %482 = vmatpush1.msra.mxu0 0.0
  %483 = vmatprep.subr.mxu0 0.0
  %484 = vmatpush1.msra.mxu0 0.0
  %485 = vmatprep.subr.mxu0 0.0
  %486 = vmatpush1.msra.mxu0 0.0
  %487 = vmatprep.subr.mxu0 0.0
  %488 = vmatpush1.msra.mxu0 0.0
  %489 = vmatprep.subr.mxu0 0.0
  %490 = vmatpush1.msra.mxu0 0.0
  %491 = vmatprep.subr.mxu0 0.0
  %492 = vmatpush1.msra.mxu0 0.0
  %493 = vmatprep.subr.mxu0 0.0
  %494 = vmatpush1.msra.mxu0 0.0
  %495 = vmatprep.subr.mxu0 0.0
  %496 = vmatpush1.msra.mxu0 0.0
  %497 = vmatprep.subr.mxu0 0.0
  %498 = vmatpush1.msra.mxu0 0.0
  %499 = vmatprep.subr.mxu0 0.0
  %500 = vmatpush1.msra.mxu0 0.0
  %501 = vmatprep.subr.mxu0 0.0
  %502 = vmatpush1.msra.mxu0 %v298
  %503 = vmatprep.subr.mxu0 0.0
  %504 = vmatpush1.msra.mxu0 %v297
  %505 = vmatprep.subr.mxu0 0.0
  %506 = vmatpush1.msra.mxu0 %v296
  %507 = vmatprep.subr.mxu0 0.0
  %508 = vmatpush1.msra.mxu0 %v295
  %509 = vmatprep.subr.mxu0 0.0
  %510 = vmatpush2.msra.mxu0 0.0
  %511 = vmatprep.subr.mxu0 0.0
  %512 = vmatpush2.msra.mxu0 0.0
  %513 = vmatprep.subr.mxu0 0.0
  %514 = vmatpush2.msra.mxu0 0.0
  %515 = vmatprep.subr.mxu0 0.0
  %516 = vmatpush2.msra.mxu0 0.0
  %517 = vmatprep.subr.mxu0 0.0
  %518 = vmatpush2.msra.mxu0 0.0
  %519 = vmatprep.subr.mxu0 0.0
  %520 = vmatpush2.msra.mxu0 0.0
  %521 = vmatprep.subr.mxu0 0.0
  %522 = vmatpush2.msra.mxu0 0.0
  %523 = vmatprep.subr.mxu0 0.0
  %524 = vmatpush2.msra.mxu0 0.0
  %525 = vmatprep.subr.mxu0 0.0
  %526 = vmatpush2.msra.mxu0 0.0
  %527 = vmatprep.subr.mxu0 0.0
  %528 = vmatpush2.msra.mxu0 0.0
  %529 = vmatprep.subr.mxu0 0.0
  %530 = vmatpush2.msra.mxu0 0.0
  %531 = vmatprep.subr.mxu0 0.0
  %532 = vmatpush2.msra.mxu0 0.0
  %533 = vmatprep.subr.mxu0 0.0
  %534 = vmatpush2.msra.mxu0 0.0
  %535 = vmatprep.subr.mxu0 0.0
  %536 = vmatpush2.msra.mxu0 0.0
  %537 = vmatprep.subr.mxu0 0.0
  %538 = vmatpush2.msra.mxu0 0.0
  %539 = vmatprep.subr.mxu0 0.0
  %540 = vmatpush2.msra.mxu0 0.0
  %541 = vmatprep.mubr.f32.mxu0 0.0
  %542 = vmatmul.mubr.f32.gmra.mxu0 %v473
  %v543 = vpop.f32.mrf.mxu0
  %v544 = vadd.f32 0.0, %v543
  %v545 = vpop.f32.mrf.mxu0
  %546 = vmatprep.mubr.f32.mxu0 0.0
  %547 = vmatmul.mubr.f32.gmra.mxu0 %v475
  %v548 = vpop.f32.mrf.mxu0
  %v549 = vadd.f32 0.0, %v548
  %v550 = vpop.f32.mrf.mxu0
  %551 = vdwg.mxu0
  %v552 = vadd.f32 %v471, %v544
  %v553 = vadd.f32 %v472, %v549
  %v554 = vadd.f32 %v552, %v396
  %v555 = vadd.f32 %v553, %v396
  %v556 = vmul.f32 %v554, %v304
  %v557 = vmul.f32 %v555, %v304
  %v558 = vxor.u32 %v556, 2147483648
  %v559 = vxor.u32 %v557, 2147483648
  %v560 = vmul.f32 %v558, 1.442695
  %v561 = vpow.pop %v560
  %v562 = vmul.f32 %v559, 1.442695
  %v563 = vpow.pop %v562
  %v564 = vadd.f32 %v561, 1.0
  %v565 = vadd.f32 %v563, 1.0
  %v566 = vrcp.pop %v564
  %v567 = vmul.f32 1.0, %v566
  %v568 = vrcp.pop %v565
  %v569 = vmul.f32 1.0, %v568
  %v570 = vmul.f32 %v567, 2.0
  %v571 = vmul.f32 %v569, 2.0
  %v572 = vsub.f32 %v570, 1.0
  %v573 = vsub.f32 %v571, 1.0
  %v574 = vsel %vm303, %v572, %v567
  %v575 = vsel %vm303, %v573, %v569
  %v576 = vmul.f32 %v574, %v440
  %v577 = vmul.f32 %v575, %v441
  %580 = vrot.lane.b32.xlu0 %v574, 64
  %v581 = vpop.permute.xlu0 %580
  %582 = vrot.lane.b32.xlu0 %v575, 64
  %v583 = vpop.permute.xlu0 %582
  %v586 = vmul.f32 %v574, %v581
  %v587 = vmul.f32 %v575, %v583
  %590 = vrot.lane.b32.xlu0 %v586, 32
  %v591 = vpop.permute.xlu0 %590
  %592 = vrot.lane.b32.xlu0 %v587, 32
  %v593 = vpop.permute.xlu0 %592
  %v596 = vadd.f32 %v576, %v591
  %v597 = vadd.f32 %v577, %v593
  %v598 = vtanh.pop %v596
  %v599 = vtanh.pop %v597
  %602 = vrot.lane.b32.xlu0 %v598, 64
  %v603 = vpop.permute.xlu0 %602
  %604 = vrot.lane.b32.xlu0 %v599, 64
  %v605 = vpop.permute.xlu0 %604
  %v608 = vmul.f32 %v574, %v603
  %v609 = vmul.f32 %v575, %v605
  %612 = vrot.lane.b32.xlu0 %v608, 32
  %v613 = vpop.permute.xlu0 %612
  %614 = vrot.lane.b32.xlu0 %v609, 32
  %v615 = vpop.permute.xlu0 %614
  %618 = vst.msk [vmem:[#allocation3 + $0x10] sm:$0xff] %vm52, %v613
  %619 = vst.msk [vmem:[#allocation3 + $0x18] sm:$0xff] %vm52, %v615
  %620 = vst.msk [vmem:[#allocation3 + $0x60] sm:$0xff] %vm464, %v613
  %621 = vst.msk [vmem:[#allocation3 + $0x68] sm:$0xff] %vm464, %v615
  %v622 = vld [vmem:[#allocation2 + $0x40] sm:$0xff]
  %v623 = vld [vmem:[#allocation2 + $0x50] sm:$0xff]
  %v624 = vld [vmem:[#allocation2 + $0xa8] sm:$0xff]
  %v625 = vld [vmem:[#allocation2 + $0xb8] sm:$0xff]
  %v626 = vadd.f32 %v622, %v624
  %v627 = vadd.f32 %v623, %v625
  %v628 = vsel %vm311, %v613, 0
  %v630 = vsel %vm311, %v615, 0
  %632 = vmatprep.subr.mxu0 0.0
  %633 = vmatpush1.msra.mxu0 0.0
  %634 = vmatprep.subr.mxu0 0.0
  %635 = vmatpush1.msra.mxu0 0.0
  %636 = vmatprep.subr.mxu0 0.0
  %637 = vmatpush1.msra.mxu0 0.0
  %638 = vmatprep.subr.mxu0 0.0
  %639 = vmatpush1.msra.mxu0 0.0
  %640 = vmatprep.subr.mxu0 0.0
  %641 = vmatpush1.msra.mxu0 0.0
  %642 = vmatprep.subr.mxu0 0.0
  %643 = vmatpush1.msra.mxu0 0.0
  %644 = vmatprep.subr.mxu0 0.0
  %645 = vmatpush1.msra.mxu0 0.0
  %646 = vmatprep.subr.mxu0 0.0
  %647 = vmatpush1.msra.mxu0 0.0
  %648 = vmatprep.subr.mxu0 0.0
  %649 = vmatpush1.msra.mxu0 0.0
  %650 = vmatprep.subr.mxu0 0.0
  %651 = vmatpush1.msra.mxu0 0.0
  %652 = vmatprep.subr.mxu0 0.0
  %653 = vmatpush1.msra.mxu0 0.0
  %654 = vmatprep.subr.mxu0 0.0
  %655 = vmatpush1.msra.mxu0 0.0
  %656 = vmatprep.subr.mxu0 0.0
  %657 = vmatpush1.msra.mxu0 %v298
  %658 = vmatprep.subr.mxu0 0.0
  %659 = vmatpush1.msra.mxu0 %v297
  %660 = vmatprep.subr.mxu0 0.0
  %661 = vmatpush1.msra.mxu0 %v296
  %662 = vmatprep.subr.mxu0 0.0
  %663 = vmatpush1.msra.mxu0 %v295
  %664 = vmatprep.subr.mxu0 0.0
  %665 = vmatpush2.msra.mxu0 0.0
  %666 = vmatprep.subr.mxu0 0.0
  %667 = vmatpush2.msra.mxu0 0.0
  %668 = vmatprep.subr.mxu0 0.0
  %669 = vmatpush2.msra.mxu0 0.0
  %670 = vmatprep.subr.mxu0 0.0
  %671 = vmatpush2.msra.mxu0 0.0
  %672 = vmatprep.subr.mxu0 0.0
  %673 = vmatpush2.msra.mxu0 0.0
  %674 = vmatprep.subr.mxu0 0.0
  %675 = vmatpush2.msra.mxu0 0.0
  %676 = vmatprep.subr.mxu0 0.0
  %677 = vmatpush2.msra.mxu0 0.0
  %678 = vmatprep.subr.mxu0 0.0
  %679 = vmatpush2.msra.mxu0 0.0
  %680 = vmatprep.subr.mxu0 0.0
  %681 = vmatpush2.msra.mxu0 0.0
  %682 = vmatprep.subr.mxu0 0.0
  %683 = vmatpush2.msra.mxu0 0.0
  %684 = vmatprep.subr.mxu0 0.0
  %685 = vmatpush2.msra.mxu0 0.0
  %686 = vmatprep.subr.mxu0 0.0
  %687 = vmatpush2.msra.mxu0 0.0
  %688 = vmatprep.subr.mxu0 0.0
  %689 = vmatpush2.msra.mxu0 0.0
  %690 = vmatprep.subr.mxu0 0.0
  %691 = vmatpush2.msra.mxu0 0.0
  %692 = vmatprep.subr.mxu0 0.0
  %693 = vmatpush2.msra.mxu0 0.0
  %694 = vmatprep.subr.mxu0 0.0
  %695 = vmatpush2.msra.mxu0 0.0
  %696 = vmatprep.mubr.f32.mxu0 0.0
  %697 = vmatmul.mubr.f32.gmra.mxu0 %v628
  %v698 = vpop.f32.mrf.mxu0
  %v699 = vadd.f32 0.0, %v698
  %v700 = vpop.f32.mrf.mxu0
  %701 = vmatprep.mubr.f32.mxu0 0.0
  %702 = vmatmul.mubr.f32.gmra.mxu0 %v630
  %v703 = vpop.f32.mrf.mxu0
  %v704 = vadd.f32 0.0, %v703
  %v705 = vpop.f32.mrf.mxu0
  %706 = vdwg.mxu0
  %v707 = vadd.f32 %v626, %v699
  %v708 = vadd.f32 %v627, %v704
  %v709 = vadd.f32 %v707, %v396
  %v710 = vadd.f32 %v708, %v396
  %v711 = vmul.f32 %v709, %v304
  %v712 = vmul.f32 %v710, %v304
  %v713 = vxor.u32 %v711, 2147483648
  %v714 = vxor.u32 %v712, 2147483648
  %v715 = vmul.f32 %v713, 1.442695
  %v716 = vpow.pop %v715
  %v717 = vmul.f32 %v714, 1.442695
  %v718 = vpow.pop %v717
  %v719 = vadd.f32 %v716, 1.0
  %v720 = vadd.f32 %v718, 1.0
  %v721 = vrcp.pop %v719
  %v722 = vmul.f32 1.0, %v721
  %v723 = vrcp.pop %v720
  %v724 = vmul.f32 1.0, %v723
  %v725 = vmul.f32 %v722, 2.0
  %v726 = vmul.f32 %v724, 2.0
  %v727 = vsub.f32 %v725, 1.0
  %v728 = vsub.f32 %v726, 1.0
  %v729 = vsel %vm303, %v727, %v722
  %v730 = vsel %vm303, %v728, %v724
  %v731 = vmul.f32 %v729, %v596
  %v732 = vmul.f32 %v730, %v597
  %735 = vrot.lane.b32.xlu0 %v729, 64
  %v736 = vpop.permute.xlu0 %735
  %737 = vrot.lane.b32.xlu0 %v730, 64
  %v738 = vpop.permute.xlu0 %737
  %v741 = vmul.f32 %v729, %v736
  %v742 = vmul.f32 %v730, %v738
  %745 = vrot.lane.b32.xlu0 %v741, 32
  %v746 = vpop.permute.xlu0 %745
  %747 = vrot.lane.b32.xlu0 %v742, 32
  %v748 = vpop.permute.xlu0 %747
  %v751 = vadd.f32 %v731, %v746
  %v752 = vadd.f32 %v732, %v748
  %v753 = vtanh.pop %v751
  %v754 = vtanh.pop %v752
  %757 = vrot.lane.b32.xlu0 %v753, 64
  %v758 = vpop.permute.xlu0 %757
  %759 = vrot.lane.b32.xlu0 %v754, 64
  %v760 = vpop.permute.xlu0 %759
  %v763 = vmul.f32 %v729, %v758
  %v764 = vmul.f32 %v730, %v760
  %767 = vrot.lane.b32.xlu0 %v763, 32
  %v768 = vpop.permute.xlu0 %767
  %769 = vrot.lane.b32.xlu0 %v764, 32
  %v770 = vpop.permute.xlu0 %769
  %773 = vst.msk [vmem:[#allocation3 + $0x20] sm:$0xff] %vm52, %v768
  %774 = vst.msk [vmem:[#allocation3 + $0x28] sm:$0xff] %vm52, %v770
  %775 = vst.msk [vmem:[#allocation3 + $0x50] sm:$0xff] %vm464, %v768
  %776 = vst.msk [vmem:[#allocation3 + $0x58] sm:$0xff] %vm464, %v770
  %v777 = vld [vmem:[#allocation2 + $0x60] sm:$0xff]
  %v778 = vld [vmem:[#allocation2 + $0x70] sm:$0xff]
  %v779 = vld [vmem:[#allocation2 + $0x88] sm:$0xff]
  %v780 = vld [vmem:[#allocation2 + $0x98] sm:$0xff]
  %v781 = vadd.f32 %v777, %v779
  %v782 = vadd.f32 %v778, %v780
  %v783 = vsel %vm311, %v768, 0
  %v785 = vsel %vm311, %v770, 0
  %787 = vmatprep.subr.mxu0 0.0
  %788 = vmatpush1.msra.mxu0 0.0
  %789 = vmatprep.subr.mxu0 0.0
  %790 = vmatpush1.msra.mxu0 0.0
  %791 = vmatprep.subr.mxu0 0.0
  %792 = vmatpush1.msra.mxu0 0.0
  %793 = vmatprep.subr.mxu0 0.0
  %794 = vmatpush1.msra.mxu0 0.0
  %795 = vmatprep.subr.mxu0 0.0
  %796 = vmatpush1.msra.mxu0 0.0
  %797 = vmatprep.subr.mxu0 0.0
  %798 = vmatpush1.msra.mxu0 0.0
  %799 = vmatprep.subr.mxu0 0.0
  %800 = vmatpush1.msra.mxu0 0.0
  %801 = vmatprep.subr.mxu0 0.0
  %802 = vmatpush1.msra.mxu0 0.0
  %803 = vmatprep.subr.mxu0 0.0
  %804 = vmatpush1.msra.mxu0 0.0
  %805 = vmatprep.subr.mxu0 0.0
  %806 = vmatpush1.msra.mxu0 0.0
  %807 = vmatprep.subr.mxu0 0.0
  %808 = vmatpush1.msra.mxu0 0.0
  %809 = vmatprep.subr.mxu0 0.0
  %810 = vmatpush1.msra.mxu0 0.0
  %811 = vmatprep.subr.mxu0 0.0
  %812 = vmatpush1.msra.mxu0 %v298
  %813 = vmatprep.subr.mxu0 0.0
  %814 = vmatpush1.msra.mxu0 %v297
  %815 = vmatprep.subr.mxu0 0.0
  %816 = vmatpush1.msra.mxu0 %v296
  %817 = vmatprep.subr.mxu0 0.0
  %818 = vmatpush1.msra.mxu0 %v295
  %819 = vmatprep.subr.mxu0 0.0
  %820 = vmatpush2.msra.mxu0 0.0
  %821 = vmatprep.subr.mxu0 0.0
  %822 = vmatpush2.msra.mxu0 0.0
  %823 = vmatprep.subr.mxu0 0.0
  %824 = vmatpush2.msra.mxu0 0.0
  %825 = vmatprep.subr.mxu0 0.0
  %826 = vmatpush2.msra.mxu0 0.0
  %827 = vmatprep.subr.mxu0 0.0
  %828 = vmatpush2.msra.mxu0 0.0
  %829 = vmatprep.subr.mxu0 0.0
  %830 = vmatpush2.msra.mxu0 0.0
  %831 = vmatprep.subr.mxu0 0.0
  %832 = vmatpush2.msra.mxu0 0.0
  %833 = vmatprep.subr.mxu0 0.0
  %834 = vmatpush2.msra.mxu0 0.0
  %835 = vmatprep.subr.mxu0 0.0
  %836 = vmatpush2.msra.mxu0 0.0
  %837 = vmatprep.subr.mxu0 0.0
  %838 = vmatpush2.msra.mxu0 0.0
  %839 = vmatprep.subr.mxu0 0.0
  %840 = vmatpush2.msra.mxu0 0.0
  %841 = vmatprep.subr.mxu0 0.0
  %842 = vmatpush2.msra.mxu0 0.0
  %843 = vmatprep.subr.mxu0 0.0
  %844 = vmatpush2.msra.mxu0 0.0
  %845 = vmatprep.subr.mxu0 0.0
  %846 = vmatpush2.msra.mxu0 0.0
  %847 = vmatprep.subr.mxu0 0.0
  %848 = vmatpush2.msra.mxu0 0.0
  %849 = vmatprep.subr.mxu0 0.0
  %850 = vmatpush2.msra.mxu0 0.0
  %851 = vmatprep.mubr.f32.mxu0 0.0
  %852 = vmatmul.mubr.f32.gmra.mxu0 %v783
  %v853 = vpop.f32.mrf.mxu0
  %v854 = vadd.f32 0.0, %v853
  %v855 = vpop.f32.mrf.mxu0
  %856 = vmatprep.mubr.f32.mxu0 0.0
  %857 = vmatmul.mubr.f32.gmra.mxu0 %v785
  %v858 = vpop.f32.mrf.mxu0
  %v859 = vadd.f32 0.0, %v858
  %v860 = vpop.f32.mrf.mxu0
  %861 = vdwg.mxu0
  %v862 = vadd.f32 %v781, %v854
  %v863 = vadd.f32 %v782, %v859
  %v864 = vadd.f32 %v862, %v396
  %v865 = vadd.f32 %v863, %v396
  %v866 = vmul.f32 %v864, %v304
  %v867 = vmul.f32 %v865, %v304
  %v868 = vxor.u32 %v866, 2147483648
  %v869 = vxor.u32 %v867, 2147483648
  %v870 = vmul.f32 %v868, 1.442695
  %v871 = vpow.pop %v870
  %v872 = vmul.f32 %v869, 1.442695
  %v873 = vpow.pop %v872
  %v874 = vadd.f32 %v871, 1.0
  %v875 = vadd.f32 %v873, 1.0
  %v876 = vrcp.pop %v874
  %v877 = vmul.f32 1.0, %v876
  %v878 = vrcp.pop %v875
  %v879 = vmul.f32 1.0, %v878
  %v880 = vmul.f32 %v877, 2.0
  %v881 = vmul.f32 %v879, 2.0
  %v882 = vsub.f32 %v880, 1.0
  %v883 = vsub.f32 %v881, 1.0
  %v884 = vsel %vm303, %v882, %v877
  %v885 = vsel %vm303, %v883, %v879
  %v886 = vmul.f32 %v884, %v751
  %v887 = vmul.f32 %v885, %v752
  %890 = vrot.lane.b32.xlu0 %v884, 64
  %v891 = vpop.permute.xlu0 %890
  %892 = vrot.lane.b32.xlu0 %v885, 64
  %v893 = vpop.permute.xlu0 %892
  %v896 = vmul.f32 %v884, %v891
  %v897 = vmul.f32 %v885, %v893
  %900 = vrot.lane.b32.xlu0 %v896, 32
  %v901 = vpop.permute.xlu0 %900
  %902 = vrot.lane.b32.xlu0 %v897, 32
  %v903 = vpop.permute.xlu0 %902
  %v906 = vadd.f32 %v886, %v901
  %v907 = vadd.f32 %v887, %v903
  %v908 = vtanh.pop %v906
  %v909 = vtanh.pop %v907
  %912 = vrot.lane.b32.xlu0 %v908, 64
  %v913 = vpop.permute.xlu0 %912
  %914 = vrot.lane.b32.xlu0 %v909, 64
  %v915 = vpop.permute.xlu0 %914
  %v918 = vmul.f32 %v884, %v913
  %v919 = vmul.f32 %v885, %v915
  %922 = vrot.lane.b32.xlu0 %v918, 32
  %v923 = vpop.permute.xlu0 %922
  %924 = vrot.lane.b32.xlu0 %v919, 32
  %v925 = vpop.permute.xlu0 %924
  %928 = vst.msk [vmem:[#allocation3 + $0x30] sm:$0xff] %vm52, %v923
  %929 = vst.msk [vmem:[#allocation3 + $0x38] sm:$0xff] %vm52, %v925
  %930 = vst.msk [vmem:[#allocation3 + $0x40] sm:$0xff] %vm464, %v923
  %931 = vst.msk [vmem:[#allocation3 + $0x48] sm:$0xff] %vm464, %v925
  %v932 = vld [vmem:[#allocation2 + $0x80] sm:$0xff]
  %v933 = vld [vmem:[#allocation2 + $0x90] sm:$0xff]
  %v934 = vld [vmem:[#allocation2 + $0x68] sm:$0xff]
  %v935 = vld [vmem:[#allocation2 + $0x78] sm:$0xff]
  %v936 = vadd.f32 %v932, %v934
  %v937 = vadd.f32 %v933, %v935
  %v938 = vsel %vm311, %v923, 0
  %v940 = vsel %vm311, %v925, 0
  %942 = vmatprep.subr.mxu0 0.0
  %943 = vmatpush1.msra.mxu0 0.0
  %944 = vmatprep.subr.mxu0 0.0
  %945 = vmatpush1.msra.mxu0 0.0
  %946 = vmatprep.subr.mxu0 0.0
  %947 = vmatpush1.msra.mxu0 0.0
  %948 = vmatprep.subr.mxu0 0.0
  %949 = vmatpush1.msra.mxu0 0.0
  %950 = vmatprep.subr.mxu0 0.0
  %951 = vmatpush1.msra.mxu0 0.0
  %952 = vmatprep.subr.mxu0 0.0
  %953 = vmatpush1.msra.mxu0 0.0
  %954 = vmatprep.subr.mxu0 0.0
  %955 = vmatpush1.msra.mxu0 0.0
  %956 = vmatprep.subr.mxu0 0.0
  %957 = vmatpush1.msra.mxu0 0.0
  %958 = vmatprep.subr.mxu0 0.0
  %959 = vmatpush1.msra.mxu0 0.0
  %960 = vmatprep.subr.mxu0 0.0
  %961 = vmatpush1.msra.mxu0 0.0
  %962 = vmatprep.subr.mxu0 0.0
  %963 = vmatpush1.msra.mxu0 0.0
  %964 = vmatprep.subr.mxu0 0.0
  %965 = vmatpush1.msra.mxu0 0.0
  %966 = vmatprep.subr.mxu0 0.0
  %967 = vmatpush1.msra.mxu0 %v298
  %968 = vmatprep.subr.mxu0 0.0
  %969 = vmatpush1.msra.mxu0 %v297
  %970 = vmatprep.subr.mxu0 0.0
  %971 = vmatpush1.msra.mxu0 %v296
  %972 = vmatprep.subr.mxu0 0.0
  %973 = vmatpush1.msra.mxu0 %v295
  %974 = vmatprep.subr.mxu0 0.0
  %975 = vmatpush2.msra.mxu0 0.0
  %976 = vmatprep.subr.mxu0 0.0
  %977 = vmatpush2.msra.mxu0 0.0
  %978 = vmatprep.subr.mxu0 0.0
  %979 = vmatpush2.msra.mxu0 0.0
  %980 = vmatprep.subr.mxu0 0.0
  %981 = vmatpush2.msra.mxu0 0.0
  %982 = vmatprep.subr.mxu0 0.0
  %983 = vmatpush2.msra.mxu0 0.0
  %984 = vmatprep.subr.mxu0 0.0
  %985 = vmatpush2.msra.mxu0 0.0
  %986 = vmatprep.subr.mxu0 0.0
  %987 = vmatpush2.msra.mxu0 0.0
  %988 = vmatprep.subr.mxu0 0.0
  %989 = vmatpush2.msra.mxu0 0.0
  %990 = vmatprep.subr.mxu0 0.0
  %991 = vmatpush2.msra.mxu0 0.0
  %992 = vmatprep.subr.mxu0 0.0
  %993 = vmatpush2.msra.mxu0 0.0
  %994 = vmatprep.subr.mxu0 0.0
  %995 = vmatpush2.msra.mxu0 0.0
  %996 = vmatprep.subr.mxu0 0.0
  %997 = vmatpush2.msra.mxu0 0.0
  %998 = vmatprep.subr.mxu0 0.0
  %999 = vmatpush2.msra.mxu0 0.0
  %1000 = vmatprep.subr.mxu0 0.0
  %1001 = vmatpush2.msra.mxu0 0.0
  %1002 = vmatprep.subr.mxu0 0.0
  %1003 = vmatpush2.msra.mxu0 0.0
  %1004 = vmatprep.subr.mxu0 0.0
  %1005 = vmatpush2.msra.mxu0 0.0
  %1006 = vmatprep.mubr.f32.mxu0 0.0
  %1007 = vmatmul.mubr.f32.gmra.mxu0 %v938
  %v1008 = vpop.f32.mrf.mxu0
  %v1009 = vadd.f32 0.0, %v1008
  %v1010 = vpop.f32.mrf.mxu0
  %1011 = vmatprep.mubr.f32.mxu0 0.0
  %1012 = vmatmul.mubr.f32.gmra.mxu0 %v940
  %v1013 = vpop.f32.mrf.mxu0
  %v1014 = vadd.f32 0.0, %v1013
  %v1015 = vpop.f32.mrf.mxu0
  %1016 = vdwg.mxu0
  %v1017 = vadd.f32 %v936, %v1009
  %v1018 = vadd.f32 %v937, %v1014
  %v1019 = vadd.f32 %v1017, %v396
  %v1020 = vadd.f32 %v1018, %v396
  %v1021 = vmul.f32 %v1019, %v304
  %v1022 = vmul.f32 %v1020, %v304
  %v1023 = vxor.u32 %v1021, 2147483648
  %v1024 = vxor.u32 %v1022, 2147483648
  %v1025 = vmul.f32 %v1023, 1.442695
  %v1026 = vpow.pop %v1025
  %v1027 = vmul.f32 %v1024, 1.442695
  %v1028 = vpow.pop %v1027
  %v1029 = vadd.f32 %v1026, 1.0
  %v1030 = vadd.f32 %v1028, 1.0
  %v1031 = vrcp.pop %v1029
  %v1032 = vmul.f32 1.0, %v1031
  %v1033 = vrcp.pop %v1030
  %v1034 = vmul.f32 1.0, %v1033
  %v1035 = vmul.f32 %v1032, 2.0
  %v1036 = vmul.f32 %v1034, 2.0
  %v1037 = vsub.f32 %v1035, 1.0
  %v1038 = vsub.f32 %v1036, 1.0
  %v1039 = vsel %vm303, %v1037, %v1032
  %v1040 = vsel %vm303, %v1038, %v1034
  %v1041 = vmul.f32 %v1039, %v906
  %v1042 = vmul.f32 %v1040, %v907
  %1045 = vrot.lane.b32.xlu0 %v1039, 64
  %v1046 = vpop.permute.xlu0 %1045
  %1047 = vrot.lane.b32.xlu0 %v1040, 64
  %v1048 = vpop.permute.xlu0 %1047
  %v1051 = vmul.f32 %v1039, %v1046
  %v1052 = vmul.f32 %v1040, %v1048
  %1055 = vrot.lane.b32.xlu0 %v1051, 32
  %v1056 = vpop.permute.xlu0 %1055
  %1057 = vrot.lane.b32.xlu0 %v1052, 32
  %v1058 = vpop.permute.xlu0 %1057
  %v1061 = vadd.f32 %v1041, %v1056
  %v1062 = vadd.f32 %v1042, %v1058
  %v1063 = vtanh.pop %v1061
  %v1064 = vtanh.pop %v1062
  %1067 = vrot.lane.b32.xlu0 %v1063, 64
  %v1068 = vpop.permute.xlu0 %1067
  %1069 = vrot.lane.b32.xlu0 %v1064, 64
  %v1070 = vpop.permute.xlu0 %1069
  %v1073 = vmul.f32 %v1039, %v1068
  %v1074 = vmul.f32 %v1040, %v1070
  %1077 = vrot.lane.b32.xlu0 %v1073, 32
  %v1078 = vpop.permute.xlu0 %1077
  %1079 = vrot.lane.b32.xlu0 %v1074, 32
  %v1080 = vpop.permute.xlu0 %1079
  %1083 = vst.msk [vmem:[#allocation3 + $0x40] sm:$0xff] %vm52, %v1078
  %1084 = vst.msk [vmem:[#allocation3 + $0x48] sm:$0xff] %vm52, %v1080
  %1085 = vst.msk [vmem:[#allocation3 + $0x30] sm:$0xff] %vm464, %v1078
  %1086 = vst.msk [vmem:[#allocation3 + $0x38] sm:$0xff] %vm464, %v1080
  %v1087 = vld [vmem:[#allocation2 + $0xa0] sm:$0xff]
  %v1088 = vld [vmem:[#allocation2 + $0xb0] sm:$0xff]
  %v1089 = vld [vmem:[#allocation2 + $0x48] sm:$0xff]
  %v1090 = vld [vmem:[#allocation2 + $0x58] sm:$0xff]
  %v1091 = vadd.f32 %v1087, %v1089
  %v1092 = vadd.f32 %v1088, %v1090
  %v1093 = vsel %vm311, %v1078, 0
  %v1095 = vsel %vm311, %v1080, 0
  %1097 = vmatprep.subr.mxu0 0.0
  %1098 = vmatpush1.msra.mxu0 0.0
  %1099 = vmatprep.subr.mxu0 0.0
  %1100 = vmatpush1.msra.mxu0 0.0
  %1101 = vmatprep.subr.mxu0 0.0
  %1102 = vmatpush1.msra.mxu0 0.0
  %1103 = vmatprep.subr.mxu0 0.0
  %1104 = vmatpush1.msra.mxu0 0.0
  %1105 = vmatprep.subr.mxu0 0.0
  %1106 = vmatpush1.msra.mxu0 0.0
  %1107 = vmatprep.subr.mxu0 0.0
  %1108 = vmatpush1.msra.mxu0 0.0
  %1109 = vmatprep.subr.mxu0 0.0
  %1110 = vmatpush1.msra.mxu0 0.0
  %1111 = vmatprep.subr.mxu0 0.0
  %1112 = vmatpush1.msra.mxu0 0.0
  %1113 = vmatprep.subr.mxu0 0.0
  %1114 = vmatpush1.msra.mxu0 0.0
  %1115 = vmatprep.subr.mxu0 0.0
  %1116 = vmatpush1.msra.mxu0 0.0
  %1117 = vmatprep.subr.mxu0 0.0
  %1118 = vmatpush1.msra.mxu0 0.0
  %1119 = vmatprep.subr.mxu0 0.0
  %1120 = vmatpush1.msra.mxu0 0.0
  %1121 = vmatprep.subr.mxu0 0.0
  %1122 = vmatpush1.msra.mxu0 %v298
  %1123 = vmatprep.subr.mxu0 0.0
  %1124 = vmatpush1.msra.mxu0 %v297
  %1125 = vmatprep.subr.mxu0 0.0
  %1126 = vmatpush1.msra.mxu0 %v296
  %1127 = vmatprep.subr.mxu0 0.0
  %1128 = vmatpush1.msra.mxu0 %v295
  %1129 = vmatprep.subr.mxu0 0.0
  %1130 = vmatpush2.msra.mxu0 0.0
  %1131 = vmatprep.subr.mxu0 0.0
  %1132 = vmatpush2.msra.mxu0 0.0
  %1133 = vmatprep.subr.mxu0 0.0
  %1134 = vmatpush2.msra.mxu0 0.0
  %1135 = vmatprep.subr.mxu0 0.0
  %1136 = vmatpush2.msra.mxu0 0.0
  %1137 = vmatprep.subr.mxu0 0.0
  %1138 = vmatpush2.msra.mxu0 0.0
  %1139 = vmatprep.subr.mxu0 0.0
  %1140 = vmatpush2.msra.mxu0 0.0
  %1141 = vmatprep.subr.mxu0 0.0
  %1142 = vmatpush2.msra.mxu0 0.0
  %1143 = vmatprep.subr.mxu0 0.0
  %1144 = vmatpush2.msra.mxu0 0.0
  %1145 = vmatprep.subr.mxu0 0.0
  %1146 = vmatpush2.msra.mxu0 0.0
  %1147 = vmatprep.subr.mxu0 0.0
  %1148 = vmatpush2.msra.mxu0 0.0
  %1149 = vmatprep.subr.mxu0 0.0
  %1150 = vmatpush2.msra.mxu0 0.0
  %1151 = vmatprep.subr.mxu0 0.0
  %1152 = vmatpush2.msra.mxu0 0.0
  %1153 = vmatprep.subr.mxu0 0.0
  %1154 = vmatpush2.msra.mxu0 0.0
  %1155 = vmatprep.subr.mxu0 0.0
  %1156 = vmatpush2.msra.mxu0 0.0
  %1157 = vmatprep.subr.mxu0 0.0
  %1158 = vmatpush2.msra.mxu0 0.0
  %1159 = vmatprep.subr.mxu0 0.0
  %1160 = vmatpush2.msra.mxu0 0.0
  %1161 = vmatprep.mubr.f32.mxu0 0.0
  %1162 = vmatmul.mubr.f32.gmra.mxu0 %v1093
  %v1163 = vpop.f32.mrf.mxu0
  %v1164 = vadd.f32 0.0, %v1163
  %v1165 = vpop.f32.mrf.mxu0
  %1166 = vmatprep.mubr.f32.mxu0 0.0
  %1167 = vmatmul.mubr.f32.gmra.mxu0 %v1095
  %v1168 = vpop.f32.mrf.mxu0
  %v1169 = vadd.f32 0.0, %v1168
  %v1170 = vpop.f32.mrf.mxu0
  %1171 = vdwg.mxu0
  %v1172 = vadd.f32 %v1091, %v1164
  %v1173 = vadd.f32 %v1092, %v1169
  %v1174 = vadd.f32 %v1172, %v396
  %v1175 = vadd.f32 %v1173, %v396
  %v1176 = vmul.f32 %v1174, %v304
  %v1177 = vmul.f32 %v1175, %v304
  %v1178 = vxor.u32 %v1176, 2147483648
  %v1179 = vxor.u32 %v1177, 2147483648
  %v1180 = vmul.f32 %v1178, 1.442695
  %v1181 = vpow.pop %v1180
  %v1182 = vmul.f32 %v1179, 1.442695
  %v1183 = vpow.pop %v1182
  %v1184 = vadd.f32 %v1181, 1.0
  %v1185 = vadd.f32 %v1183, 1.0
  %v1186 = vrcp.pop %v1184
  %v1187 = vmul.f32 1.0, %v1186
  %v1188 = vrcp.pop %v1185
  %v1189 = vmul.f32 1.0, %v1188
  %v1190 = vmul.f32 %v1187, 2.0
  %v1191 = vmul.f32 %v1189, 2.0
  %v1192 = vsub.f32 %v1190, 1.0
  %v1193 = vsub.f32 %v1191, 1.0
  %v1194 = vsel %vm303, %v1192, %v1187
  %v1195 = vsel %vm303, %v1193, %v1189
  %v1196 = vmul.f32 %v1194, %v1061
  %v1197 = vmul.f32 %v1195, %v1062
  %1200 = vrot.lane.b32.xlu0 %v1194, 64
  %v1201 = vpop.permute.xlu0 %1200
  %1202 = vrot.lane.b32.xlu0 %v1195, 64
  %v1203 = vpop.permute.xlu0 %1202
  %v1206 = vmul.f32 %v1194, %v1201
  %v1207 = vmul.f32 %v1195, %v1203
  %1210 = vrot.lane.b32.xlu0 %v1206, 32
  %v1211 = vpop.permute.xlu0 %1210
  %1212 = vrot.lane.b32.xlu0 %v1207, 32
  %v1213 = vpop.permute.xlu0 %1212
  %v1216 = vadd.f32 %v1196, %v1211
  %v1217 = vadd.f32 %v1197, %v1213
  %v1218 = vtanh.pop %v1216
  %v1219 = vtanh.pop %v1217
  %1222 = vrot.lane.b32.xlu0 %v1218, 64
  %v1223 = vpop.permute.xlu0 %1222
  %1224 = vrot.lane.b32.xlu0 %v1219, 64
  %v1225 = vpop.permute.xlu0 %1224
  %v1228 = vmul.f32 %v1194, %v1223
  %v1229 = vmul.f32 %v1195, %v1225
  %1232 = vrot.lane.b32.xlu0 %v1228, 32
  %v1233 = vpop.permute.xlu0 %1232
  %1234 = vrot.lane.b32.xlu0 %v1229, 32
  %v1235 = vpop.permute.xlu0 %1234
  %1238 = vst.msk [vmem:[#allocation3 + $0x50] sm:$0xff] %vm52, %v1233
  %1239 = vst.msk [vmem:[#allocation3 + $0x58] sm:$0xff] %vm52, %v1235
  %1240 = vst.msk [vmem:[#allocation3 + $0x20] sm:$0xff] %vm464, %v1233
  %1241 = vst.msk [vmem:[#allocation3 + $0x28] sm:$0xff] %vm464, %v1235
  %v1242 = vld [vmem:[#allocation2 + $0xc0] sm:$0xff]
  %v1243 = vld [vmem:[#allocation2 + $0xd0] sm:$0xff]
  %v1244 = vld [vmem:[#allocation2 + $0x28] sm:$0xff]
  %v1245 = vld [vmem:[#allocation2 + $0x38] sm:$0xff]
  %v1246 = vadd.f32 %v1242, %v1244
  %v1247 = vadd.f32 %v1243, %v1245
  %v1248 = vsel %vm311, %v1233, 0
  %v1250 = vsel %vm311, %v1235, 0
  %1252 = vmatprep.subr.mxu0 0.0
  %1253 = vmatpush1.msra.mxu0 0.0
  %1254 = vmatprep.subr.mxu0 0.0
  %1255 = vmatpush1.msra.mxu0 0.0
  %1256 = vmatprep.subr.mxu0 0.0
  %1257 = vmatpush1.msra.mxu0 0.0
  %1258 = vmatprep.subr.mxu0 0.0
  %1259 = vmatpush1.msra.mxu0 0.0
  %1260 = vmatprep.subr.mxu0 0.0
  %1261 = vmatpush1.msra.mxu0 0.0
  %1262 = vmatprep.subr.mxu0 0.0
  %1263 = vmatpush1.msra.mxu0 0.0
  %1264 = vmatprep.subr.mxu0 0.0
  %1265 = vmatpush1.msra.mxu0 0.0
  %1266 = vmatprep.subr.mxu0 0.0
  %1267 = vmatpush1.msra.mxu0 0.0
  %1268 = vmatprep.subr.mxu0 0.0
  %1269 = vmatpush1.msra.mxu0 0.0
  %1270 = vmatprep.subr.mxu0 0.0
  %1271 = vmatpush1.msra.mxu0 0.0
  %1272 = vmatprep.subr.mxu0 0.0
  %1273 = vmatpush1.msra.mxu0 0.0
  %1274 = vmatprep.subr.mxu0 0.0
  %1275 = vmatpush1.msra.mxu0 0.0
  %1276 = vmatprep.subr.mxu0 0.0
  %1277 = vmatpush1.msra.mxu0 %v298
  %1278 = vmatprep.subr.mxu0 0.0
  %1279 = vmatpush1.msra.mxu0 %v297
  %1280 = vmatprep.subr.mxu0 0.0
  %1281 = vmatpush1.msra.mxu0 %v296
  %1282 = vmatprep.subr.mxu0 0.0
  %1283 = vmatpush1.msra.mxu0 %v295
  %1284 = vmatprep.subr.mxu0 0.0
  %1285 = vmatpush2.msra.mxu0 0.0
  %1286 = vmatprep.subr.mxu0 0.0
  %1287 = vmatpush2.msra.mxu0 0.0
  %1288 = vmatprep.subr.mxu0 0.0
  %1289 = vmatpush2.msra.mxu0 0.0
  %1290 = vmatprep.subr.mxu0 0.0
  %1291 = vmatpush2.msra.mxu0 0.0
  %1292 = vmatprep.subr.mxu0 0.0
  %1293 = vmatpush2.msra.mxu0 0.0
  %1294 = vmatprep.subr.mxu0 0.0
  %1295 = vmatpush2.msra.mxu0 0.0
  %1296 = vmatprep.subr.mxu0 0.0
  %1297 = vmatpush2.msra.mxu0 0.0
  %1298 = vmatprep.subr.mxu0 0.0
  %1299 = vmatpush2.msra.mxu0 0.0
  %1300 = vmatprep.subr.mxu0 0.0
  %1301 = vmatpush2.msra.mxu0 0.0
  %1302 = vmatprep.subr.mxu0 0.0
  %1303 = vmatpush2.msra.mxu0 0.0
  %1304 = vmatprep.subr.mxu0 0.0
  %1305 = vmatpush2.msra.mxu0 0.0
  %1306 = vmatprep.subr.mxu0 0.0
  %1307 = vmatpush2.msra.mxu0 0.0
  %1308 = vmatprep.subr.mxu0 0.0
  %1309 = vmatpush2.msra.mxu0 0.0
  %1310 = vmatprep.subr.mxu0 0.0
  %1311 = vmatpush2.msra.mxu0 0.0
  %1312 = vmatprep.subr.mxu0 0.0
  %1313 = vmatpush2.msra.mxu0 0.0
  %1314 = vmatprep.subr.mxu0 0.0
  %1315 = vmatpush2.msra.mxu0 0.0
  %1316 = vmatprep.mubr.f32.mxu0 0.0
  %1317 = vmatmul.mubr.f32.gmra.mxu0 %v1248
  %v1318 = vpop.f32.mrf.mxu0
  %v1319 = vadd.f32 0.0, %v1318
  %v1320 = vpop.f32.mrf.mxu0
  %1321 = vmatprep.mubr.f32.mxu0 0.0
  %1322 = vmatmul.mubr.f32.gmra.mxu0 %v1250
  %v1323 = vpop.f32.mrf.mxu0
  %v1324 = vadd.f32 0.0, %v1323
  %v1325 = vpop.f32.mrf.mxu0
  %1326 = vdwg.mxu0
  %v1327 = vadd.f32 %v1246, %v1319
  %v1328 = vadd.f32 %v1247, %v1324
  %v1329 = vadd.f32 %v1327, %v396
  %v1330 = vadd.f32 %v1328, %v396
  %v1331 = vmul.f32 %v1329, %v304
  %v1332 = vmul.f32 %v1330, %v304
  %v1333 = vxor.u32 %v1331, 2147483648
  %v1334 = vxor.u32 %v1332, 2147483648
  %v1335 = vmul.f32 %v1333, 1.442695
  %v1336 = vpow.pop %v1335
  %v1337 = vmul.f32 %v1334, 1.442695
  %v1338 = vpow.pop %v1337
  %v1339 = vadd.f32 %v1336, 1.0
  %v1340 = vadd.f32 %v1338, 1.0
  %v1341 = vrcp.pop %v1339
  %v1342 = vmul.f32 1.0, %v1341
  %v1343 = vrcp.pop %v1340
  %v1344 = vmul.f32 1.0, %v1343
  %v1345 = vmul.f32 %v1342, 2.0
  %v1346 = vmul.f32 %v1344, 2.0
  %v1347 = vsub.f32 %v1345, 1.0
  %v1348 = vsub.f32 %v1346, 1.0
  %v1349 = vsel %vm303, %v1347, %v1342
  %v1350 = vsel %vm303, %v1348, %v1344
  %v1351 = vmul.f32 %v1349, %v1216
  %v1352 = vmul.f32 %v1350, %v1217
  %1355 = vrot.lane.b32.xlu0 %v1349, 64
  %v1356 = vpop.permute.xlu0 %1355
  %1357 = vrot.lane.b32.xlu0 %v1350, 64
  %v1358 = vpop.permute.xlu0 %1357
  %v1361 = vmul.f32 %v1349, %v1356
  %v1362 = vmul.f32 %v1350, %v1358
  %1365 = vrot.lane.b32.xlu0 %v1361, 32
  %v1366 = vpop.permute.xlu0 %1365
  %1367 = vrot.lane.b32.xlu0 %v1362, 32
  %v1368 = vpop.permute.xlu0 %1367
  %v1371 = vadd.f32 %v1351, %v1366
  %v1372 = vadd.f32 %v1352, %v1368
  %v1373 = vtanh.pop %v1371
  %v1374 = vtanh.pop %v1372
  %1377 = vrot.lane.b32.xlu0 %v1373, 64
  %v1378 = vpop.permute.xlu0 %1377
  %1379 = vrot.lane.b32.xlu0 %v1374, 64
  %v1380 = vpop.permute.xlu0 %1379
  %v1383 = vmul.f32 %v1349, %v1378
  %v1384 = vmul.f32 %v1350, %v1380
  %1387 = vrot.lane.b32.xlu0 %v1383, 32
  %v1388 = vpop.permute.xlu0 %1387
  %1389 = vrot.lane.b32.xlu0 %v1384, 32
  %v1390 = vpop.permute.xlu0 %1389
  %1393 = vst.msk [vmem:[#allocation3 + $0x60] sm:$0xff] %vm52, %v1388
  %1394 = vst.msk [vmem:[#allocation3 + $0x68] sm:$0xff] %vm52, %v1390
  %1395 = vst.msk [vmem:[#allocation3 + $0x10] sm:$0xff] %vm464, %v1388
  %1396 = vst.msk [vmem:[#allocation3 + $0x18] sm:$0xff] %vm464, %v1390
  %v1397 = vld [vmem:[#allocation2 + $0xe0] sm:$0xff]
  %v1398 = vld [vmem:[#allocation2 + $0xf0] sm:$0xff]
  %v1399 = vld [vmem:[#allocation2 + $0x8] sm:$0xff]
  %v1400 = vld [vmem:[#allocation2 + $0x18] sm:$0xff]
  %v1401 = vadd.f32 %v1397, %v1399
  %v1402 = vadd.f32 %v1398, %v1400
  %v1403 = vsel %vm311, %v1388, 0
  %v1405 = vsel %vm311, %v1390, 0
  %1407 = vmatprep.subr.mxu0 0.0
  %1408 = vmatpush1.msra.mxu0 0.0
  %1409 = vmatprep.subr.mxu0 0.0
  %1410 = vmatpush1.msra.mxu0 0.0
  %1411 = vmatprep.subr.mxu0 0.0
  %1412 = vmatpush1.msra.mxu0 0.0
  %1413 = vmatprep.subr.mxu0 0.0
  %1414 = vmatpush1.msra.mxu0 0.0
  %1415 = vmatprep.subr.mxu0 0.0
  %1416 = vmatpush1.msra.mxu0 0.0
  %1417 = vmatprep.subr.mxu0 0.0
  %1418 = vmatpush1.msra.mxu0 0.0
  %1419 = vmatprep.subr.mxu0 0.0
  %1420 = vmatpush1.msra.mxu0 0.0
  %1421 = vmatprep.subr.mxu0 0.0
  %1422 = vmatpush1.msra.mxu0 0.0
  %1423 = vmatprep.subr.mxu0 0.0
  %1424 = vmatpush1.msra.mxu0 0.0
  %1425 = vmatprep.subr.mxu0 0.0
  %1426 = vmatpush1.msra.mxu0 0.0
  %1427 = vmatprep.subr.mxu0 0.0
  %1428 = vmatpush1.msra.mxu0 0.0
  %1429 = vmatprep.subr.mxu0 0.0
  %1430 = vmatpush1.msra.mxu0 0.0
  %1431 = vmatprep.subr.mxu0 0.0
  %1432 = vmatpush1.msra.mxu0 %v298
  %1433 = vmatprep.subr.mxu0 0.0
  %1434 = vmatpush1.msra.mxu0 %v297
  %1435 = vmatprep.subr.mxu0 0.0
  %1436 = vmatpush1.msra.mxu0 %v296
  %1437 = vmatprep.subr.mxu0 0.0
  %1438 = vmatpush1.msra.mxu0 %v295
  %1439 = vmatprep.subr.mxu0 0.0
  %1440 = vmatpush2.msra.mxu0 0.0
  %1441 = vmatprep.subr.mxu0 0.0
  %1442 = vmatpush2.msra.mxu0 0.0
  %1443 = vmatprep.subr.mxu0 0.0
  %1444 = vmatpush2.msra.mxu0 0.0
  %1445 = vmatprep.subr.mxu0 0.0
  %1446 = vmatpush2.msra.mxu0 0.0
  %1447 = vmatprep.subr.mxu0 0.0
  %1448 = vmatpush2.msra.mxu0 0.0
  %1449 = vmatprep.subr.mxu0 0.0
  %1450 = vmatpush2.msra.mxu0 0.0
  %1451 = vmatprep.subr.mxu0 0.0
  %1452 = vmatpush2.msra.mxu0 0.0
  %1453 = vmatprep.subr.mxu0 0.0
  %1454 = vmatpush2.msra.mxu0 0.0
  %1455 = vmatprep.subr.mxu0 0.0
  %1456 = vmatpush2.msra.mxu0 0.0
  %1457 = vmatprep.subr.mxu0 0.0
  %1458 = vmatpush2.msra.mxu0 0.0
  %1459 = vmatprep.subr.mxu0 0.0
  %1460 = vmatpush2.msra.mxu0 0.0
  %1461 = vmatprep.subr.mxu0 0.0
  %1462 = vmatpush2.msra.mxu0 0.0
  %1463 = vmatprep.subr.mxu0 0.0
  %1464 = vmatpush2.msra.mxu0 0.0
  %1465 = vmatprep.subr.mxu0 0.0
  %1466 = vmatpush2.msra.mxu0 0.0
  %1467 = vmatprep.subr.mxu0 0.0
  %1468 = vmatpush2.msra.mxu0 0.0
  %1469 = vmatprep.subr.mxu0 0.0
  %1470 = vmatpush2.msra.mxu0 0.0
  %1471 = vmatprep.mubr.f32.mxu0 0.0
  %1472 = vmatmul.mubr.f32.gmra.mxu0 %v1403
  %v1473 = vpop.f32.mrf.mxu0
  %v1474 = vadd.f32 0.0, %v1473
  %v1475 = vpop.f32.mrf.mxu0
  %1476 = vmatprep.mubr.f32.mxu0 0.0
  %1477 = vmatmul.mubr.f32.gmra.mxu0 %v1405
  %v1478 = vpop.f32.mrf.mxu0
  %v1479 = vadd.f32 0.0, %v1478
  %v1480 = vpop.f32.mrf.mxu0
  %1481 = vdwg.mxu0
  %v1482 = vadd.f32 %v1401, %v1474
  %v1483 = vadd.f32 %v1402, %v1479
  %v1484 = vadd.f32 %v1482, %v396
  %v1485 = vadd.f32 %v1483, %v396
  %v1486 = vmul.f32 %v1484, %v304
  %v1487 = vmul.f32 %v1485, %v304
  %v1488 = vxor.u32 %v1486, 2147483648
  %v1489 = vxor.u32 %v1487, 2147483648
  %v1490 = vmul.f32 %v1488, 1.442695
  %v1491 = vpow.pop %v1490
  %v1492 = vmul.f32 %v1489, 1.442695
  %v1493 = vpow.pop %v1492
  %v1494 = vadd.f32 %v1491, 1.0
  %v1495 = vadd.f32 %v1493, 1.0
  %v1496 = vrcp.pop %v1494
  %v1497 = vmul.f32 1.0, %v1496
  %v1498 = vrcp.pop %v1495
  %v1499 = vmul.f32 1.0, %v1498
  %v1500 = vmul.f32 %v1497, 2.0
  %v1501 = vmul.f32 %v1499, 2.0
  %v1502 = vsub.f32 %v1500, 1.0
  %v1503 = vsub.f32 %v1501, 1.0
  %v1504 = vsel %vm303, %v1502, %v1497
  %v1505 = vsel %vm303, %v1503, %v1499
  %v1506 = vmul.f32 %v1504, %v1371
  %v1507 = vmul.f32 %v1505, %v1372
  %1510 = vrot.lane.b32.xlu0 %v1504, 64
  %v1511 = vpop.permute.xlu0 %1510
  %1512 = vrot.lane.b32.xlu0 %v1505, 64
  %v1513 = vpop.permute.xlu0 %1512
  %v1516 = vmul.f32 %v1504, %v1511
  %v1517 = vmul.f32 %v1505, %v1513
  %1520 = vrot.lane.b32.xlu0 %v1516, 32
  %v1521 = vpop.permute.xlu0 %1520
  %1522 = vrot.lane.b32.xlu0 %v1517, 32
  %v1523 = vpop.permute.xlu0 %1522
  %v1526 = vadd.f32 %v1506, %v1521
  %v1527 = vadd.f32 %v1507, %v1523
  %v1528 = vtanh.pop %v1526
  %v1529 = vtanh.pop %v1527
  %1532 = vrot.lane.b32.xlu0 %v1528, 64
  %v1533 = vpop.permute.xlu0 %1532
  %1534 = vrot.lane.b32.xlu0 %v1529, 64
  %v1535 = vpop.permute.xlu0 %1534
  %v1538 = vmul.f32 %v1504, %v1533
  %v1539 = vmul.f32 %v1505, %v1535
  %1542 = vrot.lane.b32.xlu0 %v1538, 32
  %v1543 = vpop.permute.xlu0 %1542
  %1544 = vrot.lane.b32.xlu0 %v1539, 32
  %v1545 = vpop.permute.xlu0 %1544
  %1548 = vst.msk [vmem:[#allocation3 + $0x70] sm:$0xff] %vm52, %v1543
  %1549 = vst.msk [vmem:[#allocation3 + $0x78] sm:$0xff] %vm52, %v1545
  %1550 = vst.msk [vmem:[#allocation3] sm:$0xff] %vm464, %v1543
  %1551 = vst.msk [vmem:[#allocation3 + $0x8] sm:$0xff] %vm464, %v1545
  %v1552 = vld [vmem:[#allocation3] sm:$0xff]
  %v1553 = vld [vmem:[#allocation3 + $0x8] sm:$0xff]
  %v1554 = vld [vmem:[#allocation3 + $0x10] sm:$0xff]
  %v1555 = vld [vmem:[#allocation3 + $0x18] sm:$0xff]
  %v1556 = vld [vmem:[#allocation3 + $0x20] sm:$0xff]
  %v1557 = vld [vmem:[#allocation3 + $0x28] sm:$0xff]
  %v1558 = vld [vmem:[#allocation3 + $0x30] sm:$0xff]
  %v1559 = vld [vmem:[#allocation3 + $0x38] sm:$0xff]
  %v1560 = vld [vmem:[#allocation3 + $0x40] sm:$0xff]
  %v1561 = vld [vmem:[#allocation3 + $0x48] sm:$0xff]
  %v1562 = vld [vmem:[#allocation3 + $0x50] sm:$0xff]
  %v1563 = vld [vmem:[#allocation3 + $0x58] sm:$0xff]
  %v1564 = vld [vmem:[#allocation3 + $0x60] sm:$0xff]
  %v1565 = vld [vmem:[#allocation3 + $0x68] sm:$0xff]
  %v1566 = vld [vmem:[#allocation3 + $0x70] sm:$0xff]
  %v1567 = vld [vmem:[#allocation3 + $0x78] sm:$0xff]
  %v1568 = vld [vmem:[%s5] sm:$0xff]
  %v1569 = vld [vmem:[%s5 + $0x8] sm:$0xff]
  %v1570 = vld [vmem:[%s5 + $0x10] sm:$0xff]
  %v1571 = vld [vmem:[%s5 + $0x18] sm:$0xff]
  %v1572 = vld [vmem:[%s6] sm:$0x1]
  %v1574 = vlaneseq
  %v1575 = vshrl.u32 %v1574, 7
  %v1576 = vsub.s32 0, %v1575
  %v1577 = vrot.slane %v1572, %v1576
  %v1580 = vsel %vm311, %v1552, 0
  %v1583 = vsel %vm311, %v1553, 0
  %v1586 = vsel %vm311, %v1554, 0
  %v1589 = vsel %vm311, %v1555, 0
  %v1592 = vsel %vm311, %v1556, 0
  %v1595 = vsel %vm311, %v1557, 0
  %v1598 = vsel %vm311, %v1558, 0
  %v1601 = vsel %vm311, %v1559, 0
  %v1604 = vsel %vm311, %v1560, 0
  %v1607 = vsel %vm311, %v1561, 0
  %v1610 = vsel %vm311, %v1562, 0
  %v1613 = vsel %vm311, %v1563, 0
  %v1616 = vsel %vm311, %v1564, 0
  %v1619 = vsel %vm311, %v1565, 0
  %v1622 = vsel %vm311, %v1566, 0
  %v1625 = vsel %vm311, %v1567, 0
  %1627 = vmatprep.subr.mxu0 0.0
  %1628 = vmatpush1.msra.mxu0 0.0
  %1629 = vmatprep.subr.mxu0 0.0
  %1630 = vmatpush1.msra.mxu0 0.0
  %1631 = vmatprep.subr.mxu0 0.0
  %1632 = vmatpush1.msra.mxu0 0.0
  %1633 = vmatprep.subr.mxu0 0.0
  %1634 = vmatpush1.msra.mxu0 0.0
  %1635 = vmatprep.subr.mxu0 0.0
  %1636 = vmatpush1.msra.mxu0 0.0
  %1637 = vmatprep.subr.mxu0 0.0
  %1638 = vmatpush1.msra.mxu0 0.0
  %1639 = vmatprep.subr.mxu0 0.0
  %1640 = vmatpush1.msra.mxu0 0.0
  %1641 = vmatprep.subr.mxu0 0.0
  %1642 = vmatpush1.msra.mxu0 0.0
  %1643 = vmatprep.subr.mxu0 0.0
  %1644 = vmatpush1.msra.mxu0 0.0
  %1645 = vmatprep.subr.mxu0 0.0
  %1646 = vmatpush1.msra.mxu0 0.0
  %1647 = vmatprep.subr.mxu0 0.0
  %1648 = vmatpush1.msra.mxu0 0.0
  %1649 = vmatprep.subr.mxu0 0.0
  %1650 = vmatpush1.msra.mxu0 0.0
  %1651 = vmatprep.subr.mxu0 0.0
  %1652 = vmatpush1.msra.mxu0 %v1571
  %1653 = vmatprep.subr.mxu0 0.0
  %1654 = vmatpush1.msra.mxu0 %v1570
  %1655 = vmatprep.subr.mxu0 0.0
  %1656 = vmatpush1.msra.mxu0 %v1569
  %1657 = vmatprep.subr.mxu0 0.0
  %1658 = vmatpush1.msra.mxu0 %v1568
  %1659 = vmatprep.subr.mxu0 0.0
  %1660 = vmatpush2.msra.mxu0 0.0
  %1661 = vmatprep.subr.mxu0 0.0
  %1662 = vmatpush2.msra.mxu0 0.0
  %1663 = vmatprep.subr.mxu0 0.0
  %1664 = vmatpush2.msra.mxu0 0.0
  %1665 = vmatprep.subr.mxu0 0.0
  %1666 = vmatpush2.msra.mxu0 0.0
  %1667 = vmatprep.subr.mxu0 0.0
  %1668 = vmatpush2.msra.mxu0 0.0
  %1669 = vmatprep.subr.mxu0 0.0
  %1670 = vmatpush2.msra.mxu0 0.0
  %1671 = vmatprep.subr.mxu0 0.0
  %1672 = vmatpush2.msra.mxu0 0.0
  %1673 = vmatprep.subr.mxu0 0.0
  %1674 = vmatpush2.msra.mxu0 0.0
  %1675 = vmatprep.subr.mxu0 0.0
  %1676 = vmatpush2.msra.mxu0 0.0
  %1677 = vmatprep.subr.mxu0 0.0
  %1678 = vmatpush2.msra.mxu0 0.0
  %1679 = vmatprep.subr.mxu0 0.0
  %1680 = vmatpush2.msra.mxu0 0.0
  %1681 = vmatprep.subr.mxu0 0.0
  %1682 = vmatpush2.msra.mxu0 0.0
  %1683 = vmatprep.subr.mxu0 0.0
  %1684 = vmatpush2.msra.mxu0 0.0
  %1685 = vmatprep.subr.mxu0 0.0
  %1686 = vmatpush2.msra.mxu0 0.0
  %1687 = vmatprep.subr.mxu0 0.0
  %1688 = vmatpush2.msra.mxu0 0.0
  %1689 = vmatprep.subr.mxu0 0.0
  %1690 = vmatpush2.msra.mxu0 0.0
  %1691 = vmatprep.mubr.f32.mxu0 0.0
  %1692 = vmatmul.mubr.f32.gmra.mxu0 %v1580
  %v1693 = vpop.f32.mrf.mxu0
  %v1694 = vadd.f32 %v1577, %v1693
  %v1695 = vpop.f32.mrf.mxu0
  %1696 = vmatprep.mubr.f32.mxu0 0.0
  %1697 = vmatmul.mubr.f32.gmra.mxu0 %v1583
  %v1698 = vpop.f32.mrf.mxu0
  %v1699 = vadd.f32 %v1577, %v1698
  %v1700 = vpop.f32.mrf.mxu0
  %1701 = vmatprep.mubr.f32.mxu0 0.0
  %1702 = vmatmul.mubr.f32.gmra.mxu0 %v1586
  %v1703 = vpop.f32.mrf.mxu0
  %v1704 = vadd.f32 %v1577, %v1703
  %v1705 = vpop.f32.mrf.mxu0
  %1706 = vmatprep.mubr.f32.mxu0 0.0
  %1707 = vmatmul.mubr.f32.gmra.mxu0 %v1589
  %v1708 = vpop.f32.mrf.mxu0
  %v1709 = vadd.f32 %v1577, %v1708
  %v1710 = vpop.f32.mrf.mxu0
  %1711 = vmatprep.mubr.f32.mxu0 0.0
  %1712 = vmatmul.mubr.f32.gmra.mxu0 %v1592
  %v1713 = vpop.f32.mrf.mxu0
  %v1714 = vadd.f32 %v1577, %v1713
  %v1715 = vpop.f32.mrf.mxu0
  %1716 = vmatprep.mubr.f32.mxu0 0.0
  %1717 = vmatmul.mubr.f32.gmra.mxu0 %v1595
  %v1718 = vpop.f32.mrf.mxu0
  %v1719 = vadd.f32 %v1577, %v1718
  %v1720 = vpop.f32.mrf.mxu0
  %1721 = vmatprep.mubr.f32.mxu0 0.0
  %1722 = vmatmul.mubr.f32.gmra.mxu0 %v1598
  %v1723 = vpop.f32.mrf.mxu0
  %v1724 = vadd.f32 %v1577, %v1723
  %v1725 = vpop.f32.mrf.mxu0
  %1726 = vmatprep.mubr.f32.mxu0 0.0
  %1727 = vmatmul.mubr.f32.gmra.mxu0 %v1601
  %v1728 = vpop.f32.mrf.mxu0
  %v1729 = vadd.f32 %v1577, %v1728
  %v1730 = vpop.f32.mrf.mxu0
  %1731 = vmatprep.mubr.f32.mxu0 0.0
  %1732 = vmatmul.mubr.f32.gmra.mxu0 %v1604
  %v1733 = vpop.f32.mrf.mxu0
  %v1734 = vadd.f32 %v1577, %v1733
  %v1735 = vpop.f32.mrf.mxu0
  %1736 = vmatprep.mubr.f32.mxu0 0.0
  %1737 = vmatmul.mubr.f32.gmra.mxu0 %v1607
  %v1738 = vpop.f32.mrf.mxu0
  %v1739 = vadd.f32 %v1577, %v1738
  %v1740 = vpop.f32.mrf.mxu0
  %1741 = vmatprep.mubr.f32.mxu0 0.0
  %1742 = vmatmul.mubr.f32.gmra.mxu0 %v1610
  %v1743 = vpop.f32.mrf.mxu0
  %v1744 = vadd.f32 %v1577, %v1743
  %v1745 = vpop.f32.mrf.mxu0
  %1746 = vmatprep.mubr.f32.mxu0 0.0
  %1747 = vmatmul.mubr.f32.gmra.mxu0 %v1613
  %v1748 = vpop.f32.mrf.mxu0
  %v1749 = vadd.f32 %v1577, %v1748
  %v1750 = vpop.f32.mrf.mxu0
  %1751 = vmatprep.mubr.f32.mxu0 0.0
  %1752 = vmatmul.mubr.f32.gmra.mxu0 %v1616
  %v1753 = vpop.f32.mrf.mxu0
  %v1754 = vadd.f32 %v1577, %v1753
  %v1755 = vpop.f32.mrf.mxu0
  %1756 = vmatprep.mubr.f32.mxu0 0.0
  %1757 = vmatmul.mubr.f32.gmra.mxu0 %v1619
  %v1758 = vpop.f32.mrf.mxu0
  %v1759 = vadd.f32 %v1577, %v1758
  %v1760 = vpop.f32.mrf.mxu0
  %1761 = vmatprep.mubr.f32.mxu0 0.0
  %1762 = vmatmul.mubr.f32.gmra.mxu0 %v1622
  %v1763 = vpop.f32.mrf.mxu0
  %v1764 = vadd.f32 %v1577, %v1763
  %v1765 = vpop.f32.mrf.mxu0
  %1766 = vmatprep.mubr.f32.mxu0 0.0
  %1767 = vmatmul.mubr.f32.gmra.mxu0 %v1625
  %v1768 = vpop.f32.mrf.mxu0
  %v1769 = vadd.f32 %v1577, %v1768
  %v1770 = vpop.f32.mrf.mxu0
  %1771 = vdwg.mxu0
  %v1772 = vld [vmem:[%s1] sm:$0xff]
  %v1773 = vld [vmem:[%s1 + $0x8] sm:$0xff]
  %v1774 = vld [vmem:[%s1 + $0x10] sm:$0xff]
  %v1775 = vld [vmem:[%s1 + $0x18] sm:$0xff]
  %v1776 = vld [vmem:[%s1 + $0x20] sm:$0xff]
  %v1777 = vld [vmem:[%s1 + $0x28] sm:$0xff]
  %v1778 = vld [vmem:[%s1 + $0x30] sm:$0xff]
  %v1779 = vld [vmem:[%s1 + $0x38] sm:$0xff]
  %v1780 = vld [vmem:[%s1 + $0x40] sm:$0xff]
  %v1781 = vld [vmem:[%s1 + $0x48] sm:$0xff]
  %v1782 = vld [vmem:[%s1 + $0x50] sm:$0xff]
  %v1783 = vld [vmem:[%s1 + $0x58] sm:$0xff]
  %v1784 = vld [vmem:[%s1 + $0x60] sm:$0xff]
  %v1785 = vld [vmem:[%s1 + $0x68] sm:$0xff]
  %v1786 = vld [vmem:[%s1 + $0x70] sm:$0xff]
  %v1787 = vld [vmem:[%s1 + $0x78] sm:$0xff]
  %vm1788 = vcmp.eq.s32.totalorder %v1772, 0
  %vm1789 = vcmp.eq.s32.totalorder %v1773, 0
  %vm1790 = vcmp.eq.s32.totalorder %v1774, 0
  %vm1791 = vcmp.eq.s32.totalorder %v1775, 0
  %vm1792 = vcmp.eq.s32.totalorder %v1776, 0
  %vm1793 = vcmp.eq.s32.totalorder %v1777, 0
  %vm1794 = vcmp.eq.s32.totalorder %v1778, 0
  %vm1795 = vcmp.eq.s32.totalorder %v1779, 0
  %vm1796 = vcmp.eq.s32.totalorder %v1780, 0
  %vm1797 = vcmp.eq.s32.totalorder %v1781, 0
  %vm1798 = vcmp.eq.s32.totalorder %v1782, 0
  %vm1799 = vcmp.eq.s32.totalorder %v1783, 0
  %vm1800 = vcmp.eq.s32.totalorder %v1784, 0
  %vm1801 = vcmp.eq.s32.totalorder %v1785, 0
  %vm1802 = vcmp.eq.s32.totalorder %v1786, 0
  %vm1803 = vcmp.eq.s32.totalorder %v1787, 0
  %v1804 = vsel %vm1788, 1, 0
  %v1805 = vsel %vm1789, 1, 0
  %v1806 = vsel %vm1790, 1, 0
  %v1807 = vsel %vm1791, 1, 0
  %v1808 = vsel %vm1792, 1, 0
  %v1809 = vsel %vm1793, 1, 0
  %v1810 = vsel %vm1794, 1, 0
  %v1811 = vsel %vm1795, 1, 0
  %v1812 = vsel %vm1796, 1, 0
  %v1813 = vsel %vm1797, 1, 0
  %v1814 = vsel %vm1798, 1, 0
  %v1815 = vsel %vm1799, 1, 0
  %v1816 = vsel %vm1800, 1, 0
  %v1817 = vsel %vm1801, 1, 0
  %v1818 = vsel %vm1802, 1, 0
  %v1819 = vsel %vm1803, 1, 0
  %v1820 = vcvt.s32.f32 %v1804
  %v1821 = vcvt.s32.f32 %v1805
  %v1822 = vcvt.s32.f32 %v1806
  %v1823 = vcvt.s32.f32 %v1807
  %v1824 = vcvt.s32.f32 %v1808
  %v1825 = vcvt.s32.f32 %v1809
  %v1826 = vcvt.s32.f32 %v1810
  %v1827 = vcvt.s32.f32 %v1811
  %v1828 = vcvt.s32.f32 %v1812
  %v1829 = vcvt.s32.f32 %v1813
  %v1830 = vcvt.s32.f32 %v1814
  %v1831 = vcvt.s32.f32 %v1815
  %v1832 = vcvt.s32.f32 %v1816
  %v1833 = vcvt.s32.f32 %v1817
  %v1834 = vcvt.s32.f32 %v1818
  %v1835 = vcvt.s32.f32 %v1819
  %1837 = vset.pattern.permute.xlu0 0
  %1838 = vperm.xlu0 %1837, %v1820
  %v1839 = vpop.permute.xlu0 %1838
  %1842 = vset.pattern.permute.xlu0 0
  %1843 = vperm.xlu0 %1842, %v1821
  %v1844 = vpop.permute.xlu0 %1843
  %1847 = vset.pattern.permute.xlu0 0
  %1848 = vperm.xlu0 %1847, %v1822
  %v1849 = vpop.permute.xlu0 %1848
  %1852 = vset.pattern.permute.xlu0 0
  %1853 = vperm.xlu0 %1852, %v1823
  %v1854 = vpop.permute.xlu0 %1853
  %1857 = vset.pattern.permute.xlu0 0
  %1858 = vperm.xlu0 %1857, %v1824
  %v1859 = vpop.permute.xlu0 %1858
  %1862 = vset.pattern.permute.xlu0 0
  %1863 = vperm.xlu0 %1862, %v1825
  %v1864 = vpop.permute.xlu0 %1863
  %1867 = vset.pattern.permute.xlu0 0
  %1868 = vperm.xlu0 %1867, %v1826
  %v1869 = vpop.permute.xlu0 %1868
  %1872 = vset.pattern.permute.xlu0 0
  %1873 = vperm.xlu0 %1872, %v1827
  %v1874 = vpop.permute.xlu0 %1873
  %1877 = vset.pattern.permute.xlu0 0
  %1878 = vperm.xlu0 %1877, %v1828
  %v1879 = vpop.permute.xlu0 %1878
  %1882 = vset.pattern.permute.xlu0 0
  %1883 = vperm.xlu0 %1882, %v1829
  %v1884 = vpop.permute.xlu0 %1883
  %1887 = vset.pattern.permute.xlu0 0
  %1888 = vperm.xlu0 %1887, %v1830
  %v1889 = vpop.permute.xlu0 %1888
  %1892 = vset.pattern.permute.xlu0 0
  %1893 = vperm.xlu0 %1892, %v1831
  %v1894 = vpop.permute.xlu0 %1893
  %1897 = vset.pattern.permute.xlu0 0
  %1898 = vperm.xlu0 %1897, %v1832
  %v1899 = vpop.permute.xlu0 %1898
  %1902 = vset.pattern.permute.xlu0 0
  %1903 = vperm.xlu0 %1902, %v1833
  %v1904 = vpop.permute.xlu0 %1903
  %1907 = vset.pattern.permute.xlu0 0
  %1908 = vperm.xlu0 %1907, %v1834
  %v1909 = vpop.permute.xlu0 %1908
  %1912 = vset.pattern.permute.xlu0 0
  %1913 = vperm.xlu0 %1912, %v1835
  %v1914 = vpop.permute.xlu0 %1913
  %v1916 = vmul.f32 %v1694, %v1839
  %v1917 = vmul.f32 %v1699, %v1844
  %v1918 = vmul.f32 %v1704, %v1849
  %v1919 = vmul.f32 %v1709, %v1854
  %v1920 = vmul.f32 %v1714, %v1859
  %v1921 = vmul.f32 %v1719, %v1864
  %v1922 = vmul.f32 %v1724, %v1869
  %v1923 = vmul.f32 %v1729, %v1874
  %v1924 = vmul.f32 %v1734, %v1879
  %v1925 = vmul.f32 %v1739, %v1884
  %v1926 = vmul.f32 %v1744, %v1889
  %v1927 = vmul.f32 %v1749, %v1894
  %v1928 = vmul.f32 %v1754, %v1899
  %v1929 = vmul.f32 %v1759, %v1904
  %v1930 = vmul.f32 %v1764, %v1909
  %v1931 = vmul.f32 %v1769, %v1914
  %v1932 = vsel %vm52, %v1916, 0.0
  %v1933 = vsel %vm52, %v1917, 0.0
  %v1934 = vadd.f32 %v1932, %v1933
  %v1935 = vsel %vm52, %v1918, 0.0
  %v1936 = vadd.f32 %v1934, %v1935
  %v1937 = vsel %vm52, %v1919, 0.0
  %v1938 = vadd.f32 %v1936, %v1937
  %v1939 = vsel %vm52, %v1920, 0.0
  %v1940 = vadd.f32 %v1938, %v1939
  %v1941 = vsel %vm52, %v1921, 0.0
  %v1942 = vadd.f32 %v1940, %v1941
  %v1943 = vsel %vm52, %v1922, 0.0
  %v1944 = vadd.f32 %v1942, %v1943
  %v1945 = vsel %vm52, %v1923, 0.0
  %v1946 = vadd.f32 %v1944, %v1945
  %v1947 = vsel %vm52, %v1924, 0.0
  %v1948 = vadd.f32 %v1946, %v1947
  %v1949 = vsel %vm52, %v1925, 0.0
  %v1950 = vadd.f32 %v1948, %v1949
  %v1951 = vsel %vm52, %v1926, 0.0
  %v1952 = vadd.f32 %v1950, %v1951
  %v1953 = vsel %vm52, %v1927, 0.0
  %v1954 = vadd.f32 %v1952, %v1953
  %v1955 = vsel %vm52, %v1928, 0.0
  %v1956 = vadd.f32 %v1954, %v1955
  %v1957 = vsel %vm52, %v1929, 0.0
  %v1958 = vadd.f32 %v1956, %v1957
  %v1959 = vsel %vm52, %v1930, 0.0
  %v1960 = vadd.f32 %v1958, %v1959
  %v1961 = vsel %vm52, %v1931, 0.0
  %v1962 = vadd.f32 %v1960, %v1961
  %1963 = vadd.xlane.f32.xlu0 %v1962
  %v1964 = vpop.xlane.xlu0 %1963
  %v1965 = vrot.slane %v1964, 4
  %v1966 = vadd.f32 %v1964, %v1965
  %v1967 = vrot.slane %v1966, 2
  %v1968 = vadd.f32 %v1966, %v1967
  %v1969 = vrot.slane %v1968, 1
  %v1970 = vadd.f32 %v1968, %v1969
  %s1971 = vtos %v1970
  %v1972 = vrcp.pop 1024.0
  %s1973 = vtos %v1972
  %s1974 = smul.f32 %s1971, %s1973
  %v1975 = vstv %s1974
  %v1976 = vsub.f32 %v1694, %v1975
  %v1977 = vsub.f32 %v1699, %v1975
  %v1978 = vsub.f32 %v1704, %v1975
  %v1979 = vsub.f32 %v1709, %v1975
  %v1980 = vsub.f32 %v1714, %v1975
  %v1981 = vsub.f32 %v1719, %v1975
  %v1982 = vsub.f32 %v1724, %v1975
  %v1983 = vsub.f32 %v1729, %v1975
  %v1984 = vsub.f32 %v1734, %v1975
  %v1985 = vsub.f32 %v1739, %v1975
  %v1986 = vsub.f32 %v1744, %v1975
  %v1987 = vsub.f32 %v1749, %v1975
  %v1988 = vsub.f32 %v1754, %v1975
  %v1989 = vsub.f32 %v1759, %v1975
  %v1990 = vsub.f32 %v1764, %v1975
  %v1991 = vsub.f32 %v1769, %v1975
  %v1992 = vmul.f32 %v1976, %v1976
  %v1993 = vmul.f32 %v1977, %v1977
  %v1994 = vmul.f32 %v1978, %v1978
  %v1995 = vmul.f32 %v1979, %v1979
  %v1996 = vmul.f32 %v1980, %v1980
  %v1997 = vmul.f32 %v1981, %v1981
  %v1998 = vmul.f32 %v1982, %v1982
  %v1999 = vmul.f32 %v1983, %v1983
  %v2000 = vmul.f32 %v1984, %v1984
  %v2001 = vmul.f32 %v1985, %v1985
  %v2002 = vmul.f32 %v1986, %v1986
  %v2003 = vmul.f32 %v1987, %v1987
  %v2004 = vmul.f32 %v1988, %v1988
  %v2005 = vmul.f32 %v1989, %v1989
  %v2006 = vmul.f32 %v1990, %v1990
  %v2007 = vmul.f32 %v1991, %v1991
  %v2008 = vmul.f32 %v1992, %v1839
  %v2009 = vmul.f32 %v1993, %v1844
  %v2010 = vmul.f32 %v1994, %v1849
  %v2011 = vmul.f32 %v1995, %v1854
  %v2012 = vmul.f32 %v1996, %v1859
  %v2013 = vmul.f32 %v1997, %v1864
  %v2014 = vmul.f32 %v1998, %v1869
  %v2015 = vmul.f32 %v1999, %v1874
  %v2016 = vmul.f32 %v2000, %v1879
  %v2017 = vmul.f32 %v2001, %v1884
  %v2018 = vmul.f32 %v2002, %v1889
  %v2019 = vmul.f32 %v2003, %v1894
  %v2020 = vmul.f32 %v2004, %v1899
  %v2021 = vmul.f32 %v2005, %v1904
  %v2022 = vmul.f32 %v2006, %v1909
  %v2023 = vmul.f32 %v2007, %v1914
  %v2024 = vsel %vm52, %v2008, 0.0
  %v2025 = vsel %vm52, %v2009, 0.0
  %v2026 = vadd.f32 %v2024, %v2025
  %v2027 = vsel %vm52, %v2010, 0.0
  %v2028 = vadd.f32 %v2026, %v2027
  %v2029 = vsel %vm52, %v2011, 0.0
  %v2030 = vadd.f32 %v2028, %v2029
  %v2031 = vsel %vm52, %v2012, 0.0
  %v2032 = vadd.f32 %v2030, %v2031
  %v2033 = vsel %vm52, %v2013, 0.0
  %v2034 = vadd.f32 %v2032, %v2033
  %v2035 = vsel %vm52, %v2014, 0.0
  %v2036 = vadd.f32 %v2034, %v2035
  %v2037 = vsel %vm52, %v2015, 0.0
  %v2038 = vadd.f32 %v2036, %v2037
  %v2039 = vsel %vm52, %v2016, 0.0
  %v2040 = vadd.f32 %v2038, %v2039
  %v2041 = vsel %vm52, %v2017, 0.0
  %v2042 = vadd.f32 %v2040, %v2041
  %v2043 = vsel %vm52, %v2018, 0.0
  %v2044 = vadd.f32 %v2042, %v2043
  %v2045 = vsel %vm52, %v2019, 0.0
  %v2046 = vadd.f32 %v2044, %v2045
  %v2047 = vsel %vm52, %v2020, 0.0
  %v2048 = vadd.f32 %v2046, %v2047
  %v2049 = vsel %vm52, %v2021, 0.0
  %v2050 = vadd.f32 %v2048, %v2049
  %v2051 = vsel %vm52, %v2022, 0.0
  %v2052 = vadd.f32 %v2050, %v2051
  %v2053 = vsel %vm52, %v2023, 0.0
  %v2054 = vadd.f32 %v2052, %v2053
  %2055 = vadd.xlane.f32.xlu0 %v2054
  %v2056 = vpop.xlane.xlu0 %2055
  %v2057 = vrot.slane %v2056, 4
  %v2058 = vadd.f32 %v2056, %v2057
  %v2059 = vrot.slane %v2058, 2
  %v2060 = vadd.f32 %v2058, %v2059
  %v2061 = vrot.slane %v2060, 1
  %v2062 = vadd.f32 %v2060, %v2061
  %s2063 = vtos %v2062
  %v2064 = vrcp.pop 1024.0
  %s2065 = vtos %v2064
  %s2066 = smul.f32 %s2063, %s2065
  %v2067 = vsel %vm1788, %v1975, 0.0
  %v2068 = vsel %vm1789, %v1975, 0.0
  %v2069 = vsel %vm1790, %v1975, 0.0
  %v2070 = vsel %vm1791, %v1975, 0.0
  %v2071 = vsel %vm1792, %v1975, 0.0
  %v2072 = vsel %vm1793, %v1975, 0.0
  %v2073 = vsel %vm1794, %v1975, 0.0
  %v2074 = vsel %vm1795, %v1975, 0.0
  %v2075 = vsel %vm1796, %v1975, 0.0
  %v2076 = vsel %vm1797, %v1975, 0.0
  %v2077 = vsel %vm1798, %v1975, 0.0
  %v2078 = vsel %vm1799, %v1975, 0.0
  %v2079 = vsel %vm1800, %v1975, 0.0
  %v2080 = vsel %vm1801, %v1975, 0.0
  %v2081 = vsel %vm1802, %v1975, 0.0
  %v2082 = vsel %vm1803, %v1975, 0.0
  %s2083 = sadd.f32 %s2066, 1e-08
  %v2084 = vstv %s2083
  %v2085 = vrsqrt.pop %v2084
  %s2086 = vtos %v2085
  %v2087 = vstv %s2086
  %v2088 = vsel %vm1788, %v2087, 0.0
  %v2089 = vsel %vm1789, %v2087, 0.0
  %v2090 = vsel %vm1790, %v2087, 0.0
  %v2091 = vsel %vm1791, %v2087, 0.0
  %v2092 = vsel %vm1792, %v2087, 0.0
  %v2093 = vsel %vm1793, %v2087, 0.0
  %v2094 = vsel %vm1794, %v2087, 0.0
  %v2095 = vsel %vm1795, %v2087, 0.0
  %v2096 = vsel %vm1796, %v2087, 0.0
  %v2097 = vsel %vm1797, %v2087, 0.0
  %v2098 = vsel %vm1798, %v2087, 0.0
  %v2099 = vsel %vm1799, %v2087, 0.0
  %v2100 = vsel %vm1800, %v2087, 0.0
  %v2101 = vsel %vm1801, %v2087, 0.0
  %v2102 = vsel %vm1802, %v2087, 0.0
  %v2103 = vsel %vm1803, %v2087, 0.0
  %vm2104 = vcmp.eq.s32.totalorder %v1772, 1
  %vm2105 = vcmp.eq.s32.totalorder %v1773, 1
  %vm2106 = vcmp.eq.s32.totalorder %v1774, 1
  %vm2107 = vcmp.eq.s32.totalorder %v1775, 1
  %vm2108 = vcmp.eq.s32.totalorder %v1776, 1
  %vm2109 = vcmp.eq.s32.totalorder %v1777, 1
  %vm2110 = vcmp.eq.s32.totalorder %v1778, 1
  %vm2111 = vcmp.eq.s32.totalorder %v1779, 1
  %vm2112 = vcmp.eq.s32.totalorder %v1780, 1
  %vm2113 = vcmp.eq.s32.totalorder %v1781, 1
  %vm2114 = vcmp.eq.s32.totalorder %v1782, 1
  %vm2115 = vcmp.eq.s32.totalorder %v1783, 1
  %vm2116 = vcmp.eq.s32.totalorder %v1784, 1
  %vm2117 = vcmp.eq.s32.totalorder %v1785, 1
  %vm2118 = vcmp.eq.s32.totalorder %v1786, 1
  %vm2119 = vcmp.eq.s32.totalorder %v1787, 1
  %v2120 = vsel %vm2104, 1, 0
  %v2121 = vsel %vm2105, 1, 0
  %v2122 = vsel %vm2106, 1, 0
  %v2123 = vsel %vm2107, 1, 0
  %v2124 = vsel %vm2108, 1, 0
  %v2125 = vsel %vm2109, 1, 0
  %v2126 = vsel %vm2110, 1, 0
  %v2127 = vsel %vm2111, 1, 0
  %v2128 = vsel %vm2112, 1, 0
  %v2129 = vsel %vm2113, 1, 0
  %v2130 = vsel %vm2114, 1, 0
  %v2131 = vsel %vm2115, 1, 0
  %v2132 = vsel %vm2116, 1, 0
  %v2133 = vsel %vm2117, 1, 0
  %v2134 = vsel %vm2118, 1, 0
  %v2135 = vsel %vm2119, 1, 0
  %v2136 = vcvt.s32.f32 %v2120
  %v2137 = vcvt.s32.f32 %v2121
  %v2138 = vcvt.s32.f32 %v2122
  %v2139 = vcvt.s32.f32 %v2123
  %v2140 = vcvt.s32.f32 %v2124
  %v2141 = vcvt.s32.f32 %v2125
  %v2142 = vcvt.s32.f32 %v2126
  %v2143 = vcvt.s32.f32 %v2127
  %v2144 = vcvt.s32.f32 %v2128
  %v2145 = vcvt.s32.f32 %v2129
  %v2146 = vcvt.s32.f32 %v2130
  %v2147 = vcvt.s32.f32 %v2131
  %v2148 = vcvt.s32.f32 %v2132
  %v2149 = vcvt.s32.f32 %v2133
  %v2150 = vcvt.s32.f32 %v2134
  %v2151 = vcvt.s32.f32 %v2135
  %2153 = vset.pattern.permute.xlu0 0
  %2154 = vperm.xlu0 %2153, %v2136
  %v2155 = vpop.permute.xlu0 %2154
  %2158 = vset.pattern.permute.xlu0 0
  %2159 = vperm.xlu0 %2158, %v2137
  %v2160 = vpop.permute.xlu0 %2159
  %2163 = vset.pattern.permute.xlu0 0
  %2164 = vperm.xlu0 %2163, %v2138
  %v2165 = vpop.permute.xlu0 %2164
  %2168 = vset.pattern.permute.xlu0 0
  %2169 = vperm.xlu0 %2168, %v2139
  %v2170 = vpop.permute.xlu0 %2169
  %2173 = vset.pattern.permute.xlu0 0
  %2174 = vperm.xlu0 %2173, %v2140
  %v2175 = vpop.permute.xlu0 %2174
  %2178 = vset.pattern.permute.xlu0 0
  %2179 = vperm.xlu0 %2178, %v2141
  %v2180 = vpop.permute.xlu0 %2179
  %2183 = vset.pattern.permute.xlu0 0
  %2184 = vperm.xlu0 %2183, %v2142
  %v2185 = vpop.permute.xlu0 %2184
  %2188 = vset.pattern.permute.xlu0 0
  %2189 = vperm.xlu0 %2188, %v2143
  %v2190 = vpop.permute.xlu0 %2189
  %2193 = vset.pattern.permute.xlu0 0
  %2194 = vperm.xlu0 %2193, %v2144
  %v2195 = vpop.permute.xlu0 %2194
  %2198 = vset.pattern.permute.xlu0 0
  %2199 = vperm.xlu0 %2198, %v2145
  %v2200 = vpop.permute.xlu0 %2199
  %2203 = vset.pattern.permute.xlu0 0
  %2204 = vperm.xlu0 %2203, %v2146
  %v2205 = vpop.permute.xlu0 %2204
  %2208 = vset.pattern.permute.xlu0 0
  %2209 = vperm.xlu0 %2208, %v2147
  %v2210 = vpop.permute.xlu0 %2209
  %2213 = vset.pattern.permute.xlu0 0
  %2214 = vperm.xlu0 %2213, %v2148
  %v2215 = vpop.permute.xlu0 %2214
  %2218 = vset.pattern.permute.xlu0 0
  %2219 = vperm.xlu0 %2218, %v2149
  %v2220 = vpop.permute.xlu0 %2219
  %2223 = vset.pattern.permute.xlu0 0
  %2224 = vperm.xlu0 %2223, %v2150
  %v2225 = vpop.permute.xlu0 %2224
  %2228 = vset.pattern.permute.xlu0 0
  %2229 = vperm.xlu0 %2228, %v2151
  %v2230 = vpop.permute.xlu0 %2229
  %v2232 = vmul.f32 %v1694, %v2155
  %v2233 = vmul.f32 %v1699, %v2160
  %v2234 = vmul.f32 %v1704, %v2165
  %v2235 = vmul.f32 %v1709, %v2170
  %v2236 = vmul.f32 %v1714, %v2175
  %v2237 = vmul.f32 %v1719, %v2180
  %v2238 = vmul.f32 %v1724, %v2185
  %v2239 = vmul.f32 %v1729, %v2190
  %v2240 = vmul.f32 %v1734, %v2195
  %v2241 = vmul.f32 %v1739, %v2200
  %v2242 = vmul.f32 %v1744, %v2205
  %v2243 = vmul.f32 %v1749, %v2210
  %v2244 = vmul.f32 %v1754, %v2215
  %v2245 = vmul.f32 %v1759, %v2220
  %v2246 = vmul.f32 %v1764, %v2225
  %v2247 = vmul.f32 %v1769, %v2230
  %v2248 = vsel %vm52, %v2232, 0.0
  %v2249 = vsel %vm52, %v2233, 0.0
  %v2250 = vadd.f32 %v2248, %v2249
  %v2251 = vsel %vm52, %v2234, 0.0
  %v2252 = vadd.f32 %v2250, %v2251
  %v2253 = vsel %vm52, %v2235, 0.0
  %v2254 = vadd.f32 %v2252, %v2253
  %v2255 = vsel %vm52, %v2236, 0.0
  %v2256 = vadd.f32 %v2254, %v2255
  %v2257 = vsel %vm52, %v2237, 0.0
  %v2258 = vadd.f32 %v2256, %v2257
  %v2259 = vsel %vm52, %v2238, 0.0
  %v2260 = vadd.f32 %v2258, %v2259
  %v2261 = vsel %vm52, %v2239, 0.0
  %v2262 = vadd.f32 %v2260, %v2261
  %v2263 = vsel %vm52, %v2240, 0.0
  %v2264 = vadd.f32 %v2262, %v2263
  %v2265 = vsel %vm52, %v2241, 0.0
  %v2266 = vadd.f32 %v2264, %v2265
  %v2267 = vsel %vm52, %v2242, 0.0
  %v2268 = vadd.f32 %v2266, %v2267
  %v2269 = vsel %vm52, %v2243, 0.0
  %v2270 = vadd.f32 %v2268, %v2269
  %v2271 = vsel %vm52, %v2244, 0.0
  %v2272 = vadd.f32 %v2270, %v2271
  %v2273 = vsel %vm52, %v2245, 0.0
  %v2274 = vadd.f32 %v2272, %v2273
  %v2275 = vsel %vm52, %v2246, 0.0
  %v2276 = vadd.f32 %v2274, %v2275
  %v2277 = vsel %vm52, %v2247, 0.0
  %v2278 = vadd.f32 %v2276, %v2277
  %2279 = vadd.xlane.f32.xlu0 %v2278
  %v2280 = vpop.xlane.xlu0 %2279
  %v2281 = vrot.slane %v2280, 4
  %v2282 = vadd.f32 %v2280, %v2281
  %v2283 = vrot.slane %v2282, 2
  %v2284 = vadd.f32 %v2282, %v2283
  %v2285 = vrot.slane %v2284, 1
  %v2286 = vadd.f32 %v2284, %v2285
  %s2287 = vtos %v2286
  %v2288 = vrcp.pop 1024.0
  %s2289 = vtos %v2288
  %s2290 = smul.f32 %s2287, %s2289
  %v2291 = vstv %s2290
  %v2292 = vsub.f32 %v1694, %v2291
  %v2293 = vsub.f32 %v1699, %v2291
  %v2294 = vsub.f32 %v1704, %v2291
  %v2295 = vsub.f32 %v1709, %v2291
  %v2296 = vsub.f32 %v1714, %v2291
  %v2297 = vsub.f32 %v1719, %v2291
  %v2298 = vsub.f32 %v1724, %v2291
  %v2299 = vsub.f32 %v1729, %v2291
  %v2300 = vsub.f32 %v1734, %v2291
  %v2301 = vsub.f32 %v1739, %v2291
  %v2302 = vsub.f32 %v1744, %v2291
  %v2303 = vsub.f32 %v1749, %v2291
  %v2304 = vsub.f32 %v1754, %v2291
  %v2305 = vsub.f32 %v1759, %v2291
  %v2306 = vsub.f32 %v1764, %v2291
  %v2307 = vsub.f32 %v1769, %v2291
  %v2308 = vmul.f32 %v2292, %v2292
  %v2309 = vmul.f32 %v2293, %v2293
  %v2310 = vmul.f32 %v2294, %v2294
  %v2311 = vmul.f32 %v2295, %v2295
  %v2312 = vmul.f32 %v2296, %v2296
  %v2313 = vmul.f32 %v2297, %v2297
  %v2314 = vmul.f32 %v2298, %v2298
  %v2315 = vmul.f32 %v2299, %v2299
  %v2316 = vmul.f32 %v2300, %v2300
  %v2317 = vmul.f32 %v2301, %v2301
  %v2318 = vmul.f32 %v2302, %v2302
  %v2319 = vmul.f32 %v2303, %v2303
  %v2320 = vmul.f32 %v2304, %v2304
  %v2321 = vmul.f32 %v2305, %v2305
  %v2322 = vmul.f32 %v2306, %v2306
  %v2323 = vmul.f32 %v2307, %v2307
  %v2324 = vmul.f32 %v2308, %v2155
  %v2325 = vmul.f32 %v2309, %v2160
  %v2326 = vmul.f32 %v2310, %v2165
  %v2327 = vmul.f32 %v2311, %v2170
  %v2328 = vmul.f32 %v2312, %v2175
  %v2329 = vmul.f32 %v2313, %v2180
  %v2330 = vmul.f32 %v2314, %v2185
  %v2331 = vmul.f32 %v2315, %v2190
  %v2332 = vmul.f32 %v2316, %v2195
  %v2333 = vmul.f32 %v2317, %v2200
  %v2334 = vmul.f32 %v2318, %v2205
  %v2335 = vmul.f32 %v2319, %v2210
  %v2336 = vmul.f32 %v2320, %v2215
  %v2337 = vmul.f32 %v2321, %v2220
  %v2338 = vmul.f32 %v2322, %v2225
  %v2339 = vmul.f32 %v2323, %v2230
  %v2340 = vsel %vm52, %v2324, 0.0
  %v2341 = vsel %vm52, %v2325, 0.0
  %v2342 = vadd.f32 %v2340, %v2341
  %v2343 = vsel %vm52, %v2326, 0.0
  %v2344 = vadd.f32 %v2342, %v2343
  %v2345 = vsel %vm52, %v2327, 0.0
  %v2346 = vadd.f32 %v2344, %v2345
  %v2347 = vsel %vm52, %v2328, 0.0
  %v2348 = vadd.f32 %v2346, %v2347
  %v2349 = vsel %vm52, %v2329, 0.0
  %v2350 = vadd.f32 %v2348, %v2349
  %v2351 = vsel %vm52, %v2330, 0.0
  %v2352 = vadd.f32 %v2350, %v2351
  %v2353 = vsel %vm52, %v2331, 0.0
  %v2354 = vadd.f32 %v2352, %v2353
  %v2355 = vsel %vm52, %v2332, 0.0
  %v2356 = vadd.f32 %v2354, %v2355
  %v2357 = vsel %vm52, %v2333, 0.0
  %v2358 = vadd.f32 %v2356, %v2357
  %v2359 = vsel %vm52, %v2334, 0.0
  %v2360 = vadd.f32 %v2358, %v2359
  %v2361 = vsel %vm52, %v2335, 0.0
  %v2362 = vadd.f32 %v2360, %v2361
  %v2363 = vsel %vm52, %v2336, 0.0
  %v2364 = vadd.f32 %v2362, %v2363
  %v2365 = vsel %vm52, %v2337, 0.0
  %v2366 = vadd.f32 %v2364, %v2365
  %v2367 = vsel %vm52, %v2338, 0.0
  %v2368 = vadd.f32 %v2366, %v2367
  %v2369 = vsel %vm52, %v2339, 0.0
  %v2370 = vadd.f32 %v2368, %v2369
  %2371 = vadd.xlane.f32.xlu0 %v2370
  %v2372 = vpop.xlane.xlu0 %2371
  %v2373 = vrot.slane %v2372, 4
  %v2374 = vadd.f32 %v2372, %v2373
  %v2375 = vrot.slane %v2374, 2
  %v2376 = vadd.f32 %v2374, %v2375
  %v2377 = vrot.slane %v2376, 1
  %v2378 = vadd.f32 %v2376, %v2377
  %s2379 = vtos %v2378
  %v2380 = vrcp.pop 1024.0
  %s2381 = vtos %v2380
  %s2382 = smul.f32 %s2379, %s2381
  %v2383 = vsel %vm2104, %v2291, %v2067
  %v2384 = vsel %vm2105, %v2291, %v2068
  %v2385 = vsel %vm2106, %v2291, %v2069
  %v2386 = vsel %vm2107, %v2291, %v2070
  %v2387 = vsel %vm2108, %v2291, %v2071
  %v2388 = vsel %vm2109, %v2291, %v2072
  %v2389 = vsel %vm2110, %v2291, %v2073
  %v2390 = vsel %vm2111, %v2291, %v2074
  %v2391 = vsel %vm2112, %v2291, %v2075
  %v2392 = vsel %vm2113, %v2291, %v2076
  %v2393 = vsel %vm2114, %v2291, %v2077
  %v2394 = vsel %vm2115, %v2291, %v2078
  %v2395 = vsel %vm2116, %v2291, %v2079
  %v2396 = vsel %vm2117, %v2291, %v2080
  %v2397 = vsel %vm2118, %v2291, %v2081
  %v2398 = vsel %vm2119, %v2291, %v2082
  %s2399 = sadd.f32 %s2382, 1e-08
  %v2400 = vstv %s2399
  %v2401 = vrsqrt.pop %v2400
  %s2402 = vtos %v2401
  %v2403 = vstv %s2402
  %v2404 = vsel %vm2104, %v2403, %v2088
  %v2405 = vsel %vm2105, %v2403, %v2089
  %v2406 = vsel %vm2106, %v2403, %v2090
  %v2407 = vsel %vm2107, %v2403, %v2091
  %v2408 = vsel %vm2108, %v2403, %v2092
  %v2409 = vsel %vm2109, %v2403, %v2093
  %v2410 = vsel %vm2110, %v2403, %v2094
  %v2411 = vsel %vm2111, %v2403, %v2095
  %v2412 = vsel %vm2112, %v2403, %v2096
  %v2413 = vsel %vm2113, %v2403, %v2097
  %v2414 = vsel %vm2114, %v2403, %v2098
  %v2415 = vsel %vm2115, %v2403, %v2099
  %v2416 = vsel %vm2116, %v2403, %v2100
  %v2417 = vsel %vm2117, %v2403, %v2101
  %v2418 = vsel %vm2118, %v2403, %v2102
  %v2419 = vsel %vm2119, %v2403, %v2103
  %2421 = vset.pattern.permute.xlu0 0
  %2422 = vperm.xlu0 %2421, %v2383
  %v2423 = vpop.permute.xlu0 %2422
  %2426 = vset.pattern.permute.xlu0 0
  %2427 = vperm.xlu0 %2426, %v2384
  %v2428 = vpop.permute.xlu0 %2427
  %2431 = vset.pattern.permute.xlu0 0
  %2432 = vperm.xlu0 %2431, %v2385
  %v2433 = vpop.permute.xlu0 %2432
  %2436 = vset.pattern.permute.xlu0 0
  %2437 = vperm.xlu0 %2436, %v2386
  %v2438 = vpop.permute.xlu0 %2437
  %2441 = vset.pattern.permute.xlu0 0
  %2442 = vperm.xlu0 %2441, %v2387
  %v2443 = vpop.permute.xlu0 %2442
  %2446 = vset.pattern.permute.xlu0 0
  %2447 = vperm.xlu0 %2446, %v2388
  %v2448 = vpop.permute.xlu0 %2447
  %2451 = vset.pattern.permute.xlu0 0
  %2452 = vperm.xlu0 %2451, %v2389
  %v2453 = vpop.permute.xlu0 %2452
  %2456 = vset.pattern.permute.xlu0 0
  %2457 = vperm.xlu0 %2456, %v2390
  %v2458 = vpop.permute.xlu0 %2457
  %2461 = vset.pattern.permute.xlu0 0
  %2462 = vperm.xlu0 %2461, %v2391
  %v2463 = vpop.permute.xlu0 %2462
  %2466 = vset.pattern.permute.xlu0 0
  %2467 = vperm.xlu0 %2466, %v2392
  %v2468 = vpop.permute.xlu0 %2467
  %2471 = vset.pattern.permute.xlu0 0
  %2472 = vperm.xlu0 %2471, %v2393
  %v2473 = vpop.permute.xlu0 %2472
  %2476 = vset.pattern.permute.xlu0 0
  %2477 = vperm.xlu0 %2476, %v2394
  %v2478 = vpop.permute.xlu0 %2477
  %2481 = vset.pattern.permute.xlu0 0
  %2482 = vperm.xlu0 %2481, %v2395
  %v2483 = vpop.permute.xlu0 %2482
  %2486 = vset.pattern.permute.xlu0 0
  %2487 = vperm.xlu0 %2486, %v2396
  %v2488 = vpop.permute.xlu0 %2487
  %2491 = vset.pattern.permute.xlu0 0
  %2492 = vperm.xlu0 %2491, %v2397
  %v2493 = vpop.permute.xlu0 %2492
  %2496 = vset.pattern.permute.xlu0 0
  %2497 = vperm.xlu0 %2496, %v2398
  %v2498 = vpop.permute.xlu0 %2497
  %v2500 = vsub.f32 %v1694, %v2423
  %v2501 = vsub.f32 %v1699, %v2428
  %v2502 = vsub.f32 %v1704, %v2433
  %v2503 = vsub.f32 %v1709, %v2438
  %v2504 = vsub.f32 %v1714, %v2443
  %v2505 = vsub.f32 %v1719, %v2448
  %v2506 = vsub.f32 %v1724, %v2453
  %v2507 = vsub.f32 %v1729, %v2458
  %v2508 = vsub.f32 %v1734, %v2463
  %v2509 = vsub.f32 %v1739, %v2468
  %v2510 = vsub.f32 %v1744, %v2473
  %v2511 = vsub.f32 %v1749, %v2478
  %v2512 = vsub.f32 %v1754, %v2483
  %v2513 = vsub.f32 %v1759, %v2488
  %v2514 = vsub.f32 %v1764, %v2493
  %v2515 = vsub.f32 %v1769, %v2498
  %2517 = vset.pattern.permute.xlu0 0
  %2518 = vperm.xlu0 %2517, %v2404
  %v2519 = vpop.permute.xlu0 %2518
  %2522 = vset.pattern.permute.xlu0 0
  %2523 = vperm.xlu0 %2522, %v2405
  %v2524 = vpop.permute.xlu0 %2523
  %2527 = vset.pattern.permute.xlu0 0
  %2528 = vperm.xlu0 %2527, %v2406
  %v2529 = vpop.permute.xlu0 %2528
  %2532 = vset.pattern.permute.xlu0 0
  %2533 = vperm.xlu0 %2532, %v2407
  %v2534 = vpop.permute.xlu0 %2533
  %2537 = vset.pattern.permute.xlu0 0
  %2538 = vperm.xlu0 %2537, %v2408
  %v2539 = vpop.permute.xlu0 %2538
  %2542 = vset.pattern.permute.xlu0 0
  %2543 = vperm.xlu0 %2542, %v2409
  %v2544 = vpop.permute.xlu0 %2543
  %2547 = vset.pattern.permute.xlu0 0
  %2548 = vperm.xlu0 %2547, %v2410
  %v2549 = vpop.permute.xlu0 %2548
  %2552 = vset.pattern.permute.xlu0 0
  %2553 = vperm.xlu0 %2552, %v2411
  %v2554 = vpop.permute.xlu0 %2553
  %2557 = vset.pattern.permute.xlu0 0
  %2558 = vperm.xlu0 %2557, %v2412
  %v2559 = vpop.permute.xlu0 %2558
  %2562 = vset.pattern.permute.xlu0 0
  %2563 = vperm.xlu0 %2562, %v2413
  %v2564 = vpop.permute.xlu0 %2563
  %2567 = vset.pattern.permute.xlu0 0
  %2568 = vperm.xlu0 %2567, %v2414
  %v2569 = vpop.permute.xlu0 %2568
  %2572 = vset.pattern.permute.xlu0 0
  %2573 = vperm.xlu0 %2572, %v2415
  %v2574 = vpop.permute.xlu0 %2573
  %2577 = vset.pattern.permute.xlu0 0
  %2578 = vperm.xlu0 %2577, %v2416
  %v2579 = vpop.permute.xlu0 %2578
  %2582 = vset.pattern.permute.xlu0 0
  %2583 = vperm.xlu0 %2582, %v2417
  %v2584 = vpop.permute.xlu0 %2583
  %2587 = vset.pattern.permute.xlu0 0
  %2588 = vperm.xlu0 %2587, %v2418
  %v2589 = vpop.permute.xlu0 %2588
  %2592 = vset.pattern.permute.xlu0 0
  %2593 = vperm.xlu0 %2592, %v2419
  %v2594 = vpop.permute.xlu0 %2593
  %v2596 = vmul.f32 %v2500, %v2519
  %v2597 = vmul.f32 %v2501, %v2524
  %v2598 = vmul.f32 %v2502, %v2529
  %v2599 = vmul.f32 %v2503, %v2534
  %v2600 = vmul.f32 %v2504, %v2539
  %v2601 = vmul.f32 %v2505, %v2544
  %v2602 = vmul.f32 %v2506, %v2549
  %v2603 = vmul.f32 %v2507, %v2554
  %v2604 = vmul.f32 %v2508, %v2559
  %v2605 = vmul.f32 %v2509, %v2564
  %v2606 = vmul.f32 %v2510, %v2569
  %v2607 = vmul.f32 %v2511, %v2574
  %v2608 = vmul.f32 %v2512, %v2579
  %v2609 = vmul.f32 %v2513, %v2584
  %v2610 = vmul.f32 %v2514, %v2589
  %v2611 = vmul.f32 %v2515, %v2594
  %v2612 = vld [vmem:[%s7] sm:$0x1]
  %v2614 = vlaneseq
  %v2615 = vshrl.u32 %v2614, 7
  %v2616 = vsub.s32 0, %v2615
  %v2617 = vrot.slane %v2612, %v2616
  %v2619 = vmul.f32 %v2596, %v2617
  %v2620 = vmul.f32 %v2597, %v2617
  %v2621 = vmul.f32 %v2598, %v2617
  %v2622 = vmul.f32 %v2599, %v2617
  %v2623 = vmul.f32 %v2600, %v2617
  %v2624 = vmul.f32 %v2601, %v2617
  %v2625 = vmul.f32 %v2602, %v2617
  %v2626 = vmul.f32 %v2603, %v2617
  %v2627 = vmul.f32 %v2604, %v2617
  %v2628 = vmul.f32 %v2605, %v2617
  %v2629 = vmul.f32 %v2606, %v2617
  %v2630 = vmul.f32 %v2607, %v2617
  %v2631 = vmul.f32 %v2608, %v2617
  %v2632 = vmul.f32 %v2609, %v2617
  %v2633 = vmul.f32 %v2610, %v2617
  %v2634 = vmul.f32 %v2611, %v2617
  %v2635 = vadd.f32 %v32, %v2619
  %v2636 = vadd.f32 %v33, %v2620
  %v2637 = vadd.f32 %v34, %v2621
  %v2638 = vadd.f32 %v35, %v2622
  %v2639 = vadd.f32 %v36, %v2623
  %v2640 = vadd.f32 %v37, %v2624
  %v2641 = vadd.f32 %v38, %v2625
  %v2642 = vadd.f32 %v39, %v2626
  %v2643 = vadd.f32 %v40, %v2627
  %v2644 = vadd.f32 %v41, %v2628
  %v2645 = vadd.f32 %v42, %v2629
  %v2646 = vadd.f32 %v43, %v2630
  %v2647 = vadd.f32 %v44, %v2631
  %v2648 = vadd.f32 %v45, %v2632
  %v2649 = vadd.f32 %v46, %v2633
  %v2650 = vadd.f32 %v47, %v2634
  %v2651 = vld [vmem:[%s8] sm:$0x1]
  %v2653 = vlaneseq
  %v2654 = vshrl.u32 %v2653, 7
  %v2655 = vsub.s32 0, %v2654
  %v2656 = vrot.slane %v2651, %v2655
  %v2658 = vadd.f32 %v2635, %v2656
  %v2659 = vadd.f32 %v2636, %v2656
  %v2660 = vadd.f32 %v2637, %v2656
  %v2661 = vadd.f32 %v2638, %v2656
  %v2662 = vadd.f32 %v2639, %v2656
  %v2663 = vadd.f32 %v2640, %v2656
  %v2664 = vadd.f32 %v2641, %v2656
  %v2665 = vadd.f32 %v2642, %v2656
  %v2666 = vadd.f32 %v2643, %v2656
  %v2667 = vadd.f32 %v2644, %v2656
  %v2668 = vadd.f32 %v2645, %v2656
  %v2669 = vadd.f32 %v2646, %v2656
  %v2670 = vadd.f32 %v2647, %v2656
  %v2671 = vadd.f32 %v2648, %v2656
  %v2672 = vadd.f32 %v2649, %v2656
  %v2673 = vadd.f32 %v2650, %v2656
  %2674 = vst.msk [vmem:[%s9] sm:$0xff] %vm52, %v2658
  %2675 = vst.msk [vmem:[%s9 + $0x8] sm:$0xff] %vm52, %v2659
  %2676 = vst.msk [vmem:[%s9 + $0x10] sm:$0xff] %vm52, %v2660
  %2677 = vst.msk [vmem:[%s9 + $0x18] sm:$0xff] %vm52, %v2661
  %2678 = vst.msk [vmem:[%s9 + $0x20] sm:$0xff] %vm52, %v2662
  %2679 = vst.msk [vmem:[%s9 + $0x28] sm:$0xff] %vm52, %v2663
  %2680 = vst.msk [vmem:[%s9 + $0x30] sm:$0xff] %vm52, %v2664
  %2681 = vst.msk [vmem:[%s9 + $0x38] sm:$0xff] %vm52, %v2665
  %2682 = vst.msk [vmem:[%s9 + $0x40] sm:$0xff] %vm52, %v2666
  %2683 = vst.msk [vmem:[%s9 + $0x48] sm:$0xff] %vm52, %v2667
  %2684 = vst.msk [vmem:[%s9 + $0x50] sm:$0xff] %vm52, %v2668
  %2685 = vst.msk [vmem:[%s9 + $0x58] sm:$0xff] %vm52, %v2669
  %2686 = vst.msk [vmem:[%s9 + $0x60] sm:$0xff] %vm52, %v2670
  %2687 = vst.msk [vmem:[%s9 + $0x68] sm:$0xff] %vm52, %v2671
  %2688 = vst.msk [vmem:[%s9 + $0x70] sm:$0xff] %vm52, %v2672
  %2689 = vst.msk [vmem:[%s9 + $0x78] sm:$0xff] %vm52, %v2673
  // Predicated region
  $region38: #{fasnet_forward.7} parent=0 // pred_check
    _
  $region39: #{fasnet_forward.7} parent=0 // pred_check_branch
    %2691 = sbr.rel (0) target = $region41
  $region40: #{fasnet_forward.7} parent=0 // pred_region
    _
  $region41: #{fasnet_forward.7} parent=0 // pred_fallthru
    _
  // Predicated region
  $region42: #{fasnet_forward.7} parent=0 // pred_check
    _
  $region43: #{fasnet_forward.7} parent=0 // pred_check_branch
    %2693 = sbr.rel (0) target = $region45
  $region44: #{fasnet_forward.7} parent=0 // pred_region
    _
  $region45: #{fasnet_forward.7} parent=0 // pred_fallthru
    _

// kernel: fasnet_forward.11
$region0: #{fasnet_forward.11}
  #allocation0 [shape = 'u32[]', space=smem, size = 0x4, offset = 0x4, fixed_abs, tag = 'smem constant byte address 0x4 - core index']
  #allocation1 [shape = 'u32[144,128]{1,0:T(1,128)}', space=vmem, size = 0x12000, scoped, tag = 'internal scratch']
  %s0 = inlined_call_operand.vmem [shape: f32[16,96], index: 0, kind: input, shape index: {}]
  %s1 = inlined_call_operand.vmem [shape: f32[16,96], index: 1, kind: input, shape index: {}]
  %s2 = inlined_call_operand.vmem [shape: f32[32,16], index: 2, kind: input, shape index: {}]
  %s3 = inlined_call_operand.vmem [shape: f32[32,1], index: 3, kind: input, shape index: {}]
  %s4 = inlined_call_operand.vmem [shape: f32[16,16], index: 4, kind: input, shape index: {}]
  %s5 = inlined_call_operand.vmem [shape: f32[2,16], index: 5, kind: input, shape index: {}]
  %s6 = inlined_call_operand.vmem [shape: f32[2,96], index: 6, kind: output, shape index: {}]
  %s7 = sld [smem:[#allocation0]]
  $region34: #{fasnet_forward.11} parent=0
    _
  %s9 = ssub.s32 1, %s7
  %s10 = scalar_select 0, %s9, %s7
  // Predicated region
  $region2: #{fasnet_forward.11} parent=0 // pred_check
    _
  $region3: #{fasnet_forward.11} parent=0 // pred_check_branch
    %12 = sbr.rel (0) target = $region5
  $region4: #{fasnet_forward.11} parent=0 // pred_region
    _
  $region5: #{fasnet_forward.11} parent=0 // pred_fallthru
    _
  // Predicated region
  $region6: #{fasnet_forward.11} parent=0 // pred_check
    _
  $region7: #{fasnet_forward.11} parent=0 // pred_check_branch
    %14 = sbr.rel (0) target = $region9
  $region8: #{fasnet_forward.11} parent=0 // pred_region
    _
  $region9: #{fasnet_forward.11} parent=0 // pred_fallthru
    _
  // Predicated region
  $region10: #{fasnet_forward.11} parent=0 // pred_check
    _
  $region11: #{fasnet_forward.11} parent=0 // pred_check_branch
    %16 = sbr.rel (0) target = $region13
  $region12: #{fasnet_forward.11} parent=0 // pred_region
    _
  $region13: #{fasnet_forward.11} parent=0 // pred_fallthru
    _
  // Predicated region
  $region14: #{fasnet_forward.11} parent=0 // pred_check
    _
  $region15: #{fasnet_forward.11} parent=0 // pred_check_branch
    %18 = sbr.rel (0) target = $region17
  $region16: #{fasnet_forward.11} parent=0 // pred_region
    _
  $region17: #{fasnet_forward.11} parent=0 // pred_fallthru
    _
  // Predicated region
  $region18: #{fasnet_forward.11} parent=0 // pred_check
    _
  $region19: #{fasnet_forward.11} parent=0 // pred_check_branch
    %20 = sbr.rel (0) target = $region21
  $region20: #{fasnet_forward.11} parent=0 // pred_region
    _
  $region21: #{fasnet_forward.11} parent=0 // pred_fallthru
    _
  // Predicated region
  $region22: #{fasnet_forward.11} parent=0 // pred_check
    _
  $region23: #{fasnet_forward.11} parent=0 // pred_check_branch
    %22 = sbr.rel (0) target = $region25
  $region24: #{fasnet_forward.11} parent=0 // pred_region
    _
  $region25: #{fasnet_forward.11} parent=0 // pred_fallthru
    _
  %v23 = vld [vmem:[%s0] sm:$0xff]
  %v24 = vld [vmem:[%s0 + $0x8] sm:$0xff]
  %v25 = vld [vmem:[%s2] sm:$0xff]
  %v26 = vld [vmem:[%s2 + $0x8] sm:$0xff]
  %v27 = vld [vmem:[%s2 + $0x10] sm:$0xff]
  %v28 = vld [vmem:[%s2 + $0x18] sm:$0xff]
  %v29 = vld [vmem:[%s3] sm:$0xff]
  %v30 = vld [vmem:[%s3 + $0x8] sm:$0xff]
  %v31 = vld [vmem:[%s3 + $0x10] sm:$0xff]
  %v32 = vld [vmem:[%s3 + $0x18] sm:$0xff]
  %34 = vset.pattern.permute.xlu0 0
  %35 = vperm.xlu0 %34, %v29
  %v36 = vpop.permute.xlu0 %35
  %39 = vset.pattern.permute.xlu0 0
  %40 = vperm.xlu0 %39, %v30
  %v41 = vpop.permute.xlu0 %40
  %44 = vset.pattern.permute.xlu0 0
  %45 = vperm.xlu0 %44, %v31
  %v46 = vpop.permute.xlu0 %45
  %49 = vset.pattern.permute.xlu0 0
  %50 = vperm.xlu0 %49, %v32
  %v51 = vpop.permute.xlu0 %50
  %vm53 = vcmask 130048
  %v55 = vsel %vm53, %v25, 0
  %v58 = vsel %vm53, %v26, 0
  %v61 = vsel %vm53, %v27, 0
  %v64 = vsel %vm53, %v28, 0
  %66 = vmatprep.subr.mxu0 0.0
  %67 = vmatpush1.msra.mxu0 0.0
  %68 = vmatprep.subr.mxu0 0.0
  %69 = vmatpush1.msra.mxu0 0.0
  %70 = vmatprep.subr.mxu0 0.0
  %71 = vmatpush1.msra.mxu0 0.0
  %72 = vmatprep.subr.mxu0 0.0
  %73 = vmatpush1.msra.mxu0 0.0
  %74 = vmatprep.subr.mxu0 0.0
  %75 = vmatpush1.msra.mxu0 0.0
  %76 = vmatprep.subr.mxu0 0.0
  %77 = vmatpush1.msra.mxu0 0.0
  %78 = vmatprep.subr.mxu0 0.0
  %79 = vmatpush1.msra.mxu0 0.0
  %80 = vmatprep.subr.mxu0 0.0
  %81 = vmatpush1.msra.mxu0 0.0
  %82 = vmatprep.subr.mxu0 0.0
  %83 = vmatpush1.msra.mxu0 0.0
  %84 = vmatprep.subr.mxu0 0.0
  %85 = vmatpush1.msra.mxu0 0.0
  %86 = vmatprep.subr.mxu0 0.0
  %87 = vmatpush1.msra.mxu0 0.0
  %88 = vmatprep.subr.mxu0 0.0
  %89 = vmatpush1.msra.mxu0 0.0
  %90 = vmatprep.subr.mxu0 0.0
  %91 = vmatpush1.msra.mxu0 0.0
  %92 = vmatprep.subr.mxu0 0.0
  %93 = vmatpush1.msra.mxu0 0.0
  %94 = vmatprep.subr.mxu0 0.0
  %95 = vmatpush1.msra.mxu0 %v24
  %96 = vmatprep.subr.mxu0 0.0
  %97 = vmatpush1.msra.mxu0 %v23
  %98 = vmatprep.subr.mxu0 0.0
  %99 = vmatpush2.msra.mxu0 0.0
  %100 = vmatprep.subr.mxu0 0.0
  %101 = vmatpush2.msra.mxu0 0.0
  %102 = vmatprep.subr.mxu0 0.0
  %103 = vmatpush2.msra.mxu0 0.0
  %104 = vmatprep.subr.mxu0 0.0
  %105 = vmatpush2.msra.mxu0 0.0
  %106 = vmatprep.subr.mxu0 0.0
  %107 = vmatpush2.msra.mxu0 0.0
  %108 = vmatprep.subr.mxu0 0.0
  %109 = vmatpush2.msra.mxu0 0.0
  %110 = vmatprep.subr.mxu0 0.0
  %111 = vmatpush2.msra.mxu0 0.0
  %112 = vmatprep.subr.mxu0 0.0
  %113 = vmatpush2.msra.mxu0 0.0
  %114 = vmatprep.subr.mxu0 0.0
  %115 = vmatpush2.msra.mxu0 0.0
  %116 = vmatprep.subr.mxu0 0.0
  %117 = vmatpush2.msra.mxu0 0.0
  %118 = vmatprep.subr.mxu0 0.0
  %119 = vmatpush2.msra.mxu0 0.0
  %120 = vmatprep.subr.mxu0 0.0
  %121 = vmatpush2.msra.mxu0 0.0
  %122 = vmatprep.subr.mxu0 0.0
  %123 = vmatpush2.msra.mxu0 0.0
  %124 = vmatprep.subr.mxu0 0.0
  %125 = vmatpush2.msra.mxu0 0.0
  %126 = vmatprep.subr.mxu0 0.0
  %127 = vmatpush2.msra.mxu0 0.0
  %128 = vmatprep.subr.mxu0 0.0
  %129 = vmatpush2.msra.mxu0 0.0
  %130 = vmatprep.mubr.f32.mxu0 0.0
  %131 = vmatmul.mubr.f32.gmra.mxu0 %v55
  %v132 = vpop.f32.mrf.mxu0
  %v133 = vadd.f32 %v36, %v132
  %v134 = vpop.f32.mrf.mxu0
  %135 = vmatprep.mubr.f32.mxu0 0.0
  %136 = vmatmul.mubr.f32.gmra.mxu0 %v58
  %v137 = vpop.f32.mrf.mxu0
  %v138 = vadd.f32 %v41, %v137
  %v139 = vpop.f32.mrf.mxu0
  %140 = vmatprep.mubr.f32.mxu0 0.0
  %141 = vmatmul.mubr.f32.gmra.mxu0 %v61
  %v142 = vpop.f32.mrf.mxu0
  %v143 = vadd.f32 %v46, %v142
  %v144 = vpop.f32.mrf.mxu0
  %145 = vmatprep.mubr.f32.mxu0 0.0
  %146 = vmatmul.mubr.f32.gmra.mxu0 %v64
  %v147 = vpop.f32.mrf.mxu0
  %v148 = vadd.f32 %v51, %v147
  %v149 = vpop.f32.mrf.mxu0
  %150 = vdwg.mxu0
  %v151 = vlaneseq
  %v152 = vshrl.u32 %v151, 7
  %v153 = vadd.s32 %v152, 8
  %v154 = vadd.s32 %v152, 16
  %v155 = vadd.s32 %v152, 24
  %vm156 = vcmp.lt.s32.totalorder %v152, 16
  %vm157 = vcmp.lt.s32.totalorder %v153, 16
  %vm158 = vcmp.lt.s32.totalorder %v154, 16
  %vm159 = vcmp.lt.s32.totalorder %v155, 16
  %v160 = vsel %vm156, 2.0, 1.0
  %v161 = vsel %vm157, 2.0, 1.0
  %v162 = vsel %vm158, 2.0, 1.0
  %v163 = vsel %vm159, 2.0, 1.0
  %v164 = vmul.f32 %v133, %v160
  %v165 = vmul.f32 %v138, %v161
  %v166 = vmul.f32 %v143, %v162
  %v167 = vmul.f32 %v148, %v163
  %v168 = vxor.u32 %v164, 2147483648
  %v169 = vxor.u32 %v165, 2147483648
  %v170 = vxor.u32 %v166, 2147483648
  %v171 = vxor.u32 %v167, 2147483648
  %v172 = vmul.f32 %v168, 1.442695
  %v173 = vpow.pop %v172
  %v174 = vmul.f32 %v169, 1.442695
  %v175 = vpow.pop %v174
  %v176 = vmul.f32 %v170, 1.442695
  %v177 = vpow.pop %v176
  %v178 = vmul.f32 %v171, 1.442695
  %v179 = vpow.pop %v178
  %v180 = vadd.f32 %v173, 1.0
  %v181 = vadd.f32 %v175, 1.0
  %v182 = vadd.f32 %v177, 1.0
  %v183 = vadd.f32 %v179, 1.0
  %v184 = vrcp.pop %v180
  %v185 = vmul.f32 1.0, %v184
  %v186 = vrcp.pop %v181
  %v187 = vmul.f32 1.0, %v186
  %v188 = vrcp.pop %v182
  %v189 = vmul.f32 1.0, %v188
  %v190 = vrcp.pop %v183
  %v191 = vmul.f32 1.0, %v190
  %v192 = vmul.f32 %v185, 2.0
  %v193 = vmul.f32 %v187, 2.0
  %v194 = vmul.f32 %v189, 2.0
  %v195 = vmul.f32 %v191, 2.0
  %v196 = vsub.f32 %v192, 1.0
  %v197 = vsub.f32 %v193, 1.0
  %v198 = vsub.f32 %v194, 1.0
  %v199 = vsub.f32 %v195, 1.0
  %v200 = vsel %vm156, %v196, %v185
  %v201 = vsel %vm157, %v197, %v187
  %v202 = vsel %vm158, %v198, %v189
  %v203 = vsel %vm159, %v199, %v191
  %v204 = vmul.f32 %v200, %v202
  %v205 = vmul.f32 %v201, %v203
  %v206 = vld [vmem:[%s4] sm:$0xff]
  %v207 = vld [vmem:[%s4 + $0x8] sm:$0xff]
  %v209 = vsel %vm53, %v206, 0
  %v212 = vsel %vm53, %v207, 0
  %214 = vmatprep.subr.mxu0 0.0
  %215 = vmatpush1.msra.mxu0 0.0
  %216 = vmatprep.subr.mxu0 0.0
  %217 = vmatpush1.msra.mxu0 0.0
  %218 = vmatprep.subr.mxu0 0.0
  %219 = vmatpush1.msra.mxu0 0.0
  %220 = vmatprep.subr.mxu0 0.0
  %221 = vmatpush1.msra.mxu0 0.0
  %222 = vmatprep.subr.mxu0 0.0
  %223 = vmatpush1.msra.mxu0 0.0
  %224 = vmatprep.subr.mxu0 0.0
  %225 = vmatpush1.msra.mxu0 0.0
  %226 = vmatprep.subr.mxu0 0.0
  %227 = vmatpush1.msra.mxu0 0.0
  %228 = vmatprep.subr.mxu0 0.0
  %229 = vmatpush1.msra.mxu0 0.0
  %230 = vmatprep.subr.mxu0 0.0
  %231 = vmatpush1.msra.mxu0 0.0
  %232 = vmatprep.subr.mxu0 0.0
  %233 = vmatpush1.msra.mxu0 0.0
  %234 = vmatprep.subr.mxu0 0.0
  %235 = vmatpush1.msra.mxu0 0.0
  %236 = vmatprep.subr.mxu0 0.0
  %237 = vmatpush1.msra.mxu0 0.0
  %238 = vmatprep.subr.mxu0 0.0
  %239 = vmatpush1.msra.mxu0 0.0
  %240 = vmatprep.subr.mxu0 0.0
  %241 = vmatpush1.msra.mxu0 0.0
  %242 = vmatprep.subr.mxu0 0.0
  %243 = vmatpush1.msra.mxu0 %v205
  %244 = vmatprep.subr.mxu0 0.0
  %245 = vmatpush1.msra.mxu0 %v204
  %246 = vmatprep.subr.mxu0 0.0
  %247 = vmatpush2.msra.mxu0 0.0
  %248 = vmatprep.subr.mxu0 0.0
  %249 = vmatpush2.msra.mxu0 0.0
  %250 = vmatprep.subr.mxu0 0.0
  %251 = vmatpush2.msra.mxu0 0.0
  %252 = vmatprep.subr.mxu0 0.0
  %253 = vmatpush2.msra.mxu0 0.0
  %254 = vmatprep.subr.mxu0 0.0
  %255 = vmatpush2.msra.mxu0 0.0
  %256 = vmatprep.subr.mxu0 0.0
  %257 = vmatpush2.msra.mxu0 0.0
  %258 = vmatprep.subr.mxu0 0.0
  %259 = vmatpush2.msra.mxu0 0.0
  %260 = vmatprep.subr.mxu0 0.0
  %261 = vmatpush2.msra.mxu0 0.0
  %262 = vmatprep.subr.mxu0 0.0
  %263 = vmatpush2.msra.mxu0 0.0
  %264 = vmatprep.subr.mxu0 0.0
  %265 = vmatpush2.msra.mxu0 0.0
  %266 = vmatprep.subr.mxu0 0.0
  %267 = vmatpush2.msra.mxu0 0.0
  %268 = vmatprep.subr.mxu0 0.0
  %269 = vmatpush2.msra.mxu0 0.0
  %270 = vmatprep.subr.mxu0 0.0
  %271 = vmatpush2.msra.mxu0 0.0
  %272 = vmatprep.subr.mxu0 0.0
  %273 = vmatpush2.msra.mxu0 0.0
  %274 = vmatprep.subr.mxu0 0.0
  %275 = vmatpush2.msra.mxu0 0.0
  %276 = vmatprep.subr.mxu0 0.0
  %277 = vmatpush2.msra.mxu0 0.0
  %278 = vmatprep.mubr.f32.mxu0 0.0
  %279 = vmatmul.mubr.f32.gmra.mxu0 %v209
  %v280 = vpop.f32.mrf.mxu0
  %v281 = vadd.f32 0.0, %v280
  %v282 = vpop.f32.mrf.mxu0
  %283 = vmatprep.mubr.f32.mxu0 0.0
  %284 = vmatmul.mubr.f32.gmra.mxu0 %v212
  %v285 = vpop.f32.mrf.mxu0
  %v286 = vadd.f32 0.0, %v285
  %v287 = vpop.f32.mrf.mxu0
  %288 = vdwg.mxu0
  %v289 = vmax.f32 %v281, 0.0
  %v290 = vmax.f32 %v286, 0.0
  %v291 = vld [vmem:[%s1] sm:$0xff]
  %v292 = vld [vmem:[%s1 + $0x8] sm:$0xff]
  %v293 = vmul.f32 %v289, %v291
  %v294 = vmul.f32 %v290, %v292
  %v295 = vld [vmem:[%s5] sm:$0x3]
  %v297 = vsel %vm53, %v295, 0
  %299 = vmatprep.subr.mxu0 0.0
  %300 = vmatpush1.msra.mxu0 0.0
  %301 = vmatprep.subr.mxu0 0.0
  %302 = vmatpush1.msra.mxu0 0.0
  %303 = vmatprep.subr.mxu0 0.0
  %304 = vmatpush1.msra.mxu0 0.0
  %305 = vmatprep.subr.mxu0 0.0
  %306 = vmatpush1.msra.mxu0 0.0
  %307 = vmatprep.subr.mxu0 0.0
  %308 = vmatpush1.msra.mxu0 0.0
  %309 = vmatprep.subr.mxu0 0.0
  %310 = vmatpush1.msra.mxu0 0.0
  %311 = vmatprep.subr.mxu0 0.0
  %312 = vmatpush1.msra.mxu0 0.0
  %313 = vmatprep.subr.mxu0 0.0
  %314 = vmatpush1.msra.mxu0 0.0
  %315 = vmatprep.subr.mxu0 0.0
  %316 = vmatpush1.msra.mxu0 0.0
  %317 = vmatprep.subr.mxu0 0.0
  %318 = vmatpush1.msra.mxu0 0.0
  %319 = vmatprep.subr.mxu0 0.0
  %320 = vmatpush1.msra.mxu0 0.0
  %321 = vmatprep.subr.mxu0 0.0
  %322 = vmatpush1.msra.mxu0 0.0
  %323 = vmatprep.subr.mxu0 0.0
  %324 = vmatpush1.msra.mxu0 0.0
  %325 = vmatprep.subr.mxu0 0.0
  %326 = vmatpush1.msra.mxu0 0.0
  %327 = vmatprep.subr.mxu0 0.0
  %328 = vmatpush1.msra.mxu0 %v294
  %329 = vmatprep.subr.mxu0 0.0
  %330 = vmatpush1.msra.mxu0 %v293
  %331 = vmatprep.subr.mxu0 0.0
  %332 = vmatpush2.msra.mxu0 0.0
  %333 = vmatprep.subr.mxu0 0.0
  %334 = vmatpush2.msra.mxu0 0.0
  %335 = vmatprep.subr.mxu0 0.0
  %336 = vmatpush2.msra.mxu0 0.0
  %337 = vmatprep.subr.mxu0 0.0
  %338 = vmatpush2.msra.mxu0 0.0
  %339 = vmatprep.subr.mxu0 0.0
  %340 = vmatpush2.msra.mxu0 0.0
  %341 = vmatprep.subr.mxu0 0.0
  %342 = vmatpush2.msra.mxu0 0.0
  %343 = vmatprep.subr.mxu0 0.0
  %344 = vmatpush2.msra.mxu0 0.0
  %345 = vmatprep.subr.mxu0 0.0
  %346 = vmatpush2.msra.mxu0 0.0
  %347 = vmatprep.subr.mxu0 0.0
  %348 = vmatpush2.msra.mxu0 0.0
  %349 = vmatprep.subr.mxu0 0.0
  %350 = vmatpush2.msra.mxu0 0.0
  %351 = vmatprep.subr.mxu0 0.0
  %352 = vmatpush2.msra.mxu0 0.0
  %353 = vmatprep.subr.mxu0 0.0
  %354 = vmatpush2.msra.mxu0 0.0
  %355 = vmatprep.subr.mxu0 0.0
  %356 = vmatpush2.msra.mxu0 0.0
  %357 = vmatprep.subr.mxu0 0.0
  %358 = vmatpush2.msra.mxu0 0.0
  %359 = vmatprep.subr.mxu0 0.0
  %360 = vmatpush2.msra.mxu0 0.0
  %361 = vmatprep.subr.mxu0 0.0
  %362 = vmatpush2.msra.mxu0 0.0
  %363 = vmatprep.mubr.f32.mxu0 0.0
  %364 = vmatmul.mubr.f32.gmra.mxu0 %v297
  %v365 = vpop.f32.mrf.mxu0
  %v366 = vadd.f32 0.0, %v365
  %v367 = vpop.f32.mrf.mxu0
  %368 = vdwg.mxu0
  %vm369 = vcmask 779264
  %370 = vst.msk [vmem:[%s6] sm:$0x3] %vm369, %v366
  // Predicated region
  $region26: #{fasnet_forward.11} parent=0 // pred_check
    _
  $region27: #{fasnet_forward.11} parent=0 // pred_check_branch
    %372 = sbr.rel (0) target = $region29
  $region28: #{fasnet_forward.11} parent=0 // pred_region
    _
  $region29: #{fasnet_forward.11} parent=0 // pred_fallthru
    _
  // Predicated region
  $region30: #{fasnet_forward.11} parent=0 // pred_check
    _
  $region31: #{fasnet_forward.11} parent=0 // pred_check_branch
    %374 = sbr.rel (0) target = $region33
  $region32: #{fasnet_forward.11} parent=0 // pred_region
    _
  $region33: #{fasnet_forward.11} parent=0 // pred_fallthru
    _

// kernel: fasnet_forward.10
$region0: #{fasnet_forward.10}
  #allocation0 [shape = 'u32[]', space=smem, size = 0x4, offset = 0x4, fixed_abs, tag = 'smem constant byte address 0x4 - core index']
  #allocation1 [shape = 'u32[144,128]{1,0:T(1,128)}', space=vmem, size = 0x12000, scoped, tag = 'internal scratch']
  #allocation2 [shape = 'f32[128,256]{1,0:T(8,128)}', space=vmem, size = 0x20000, scoped, tag = 'scratch operand']
  #allocation3 [shape = 'f32[128,32]{1,0:T(8,128)}', space=vmem, size = 0x10000, scoped, tag = 'scratch operand']
  %s0 = inlined_call_operand.vmem [shape: f32[128,16], index: 0, kind: input, shape index: {}]
  %s1 = inlined_call_operand.vmem [shape: s32[128,1], index: 1, kind: input, shape index: {}]
  %s2 = inlined_call_operand.vmem [shape: f32[16,256], index: 2, kind: input, shape index: {}]
  %s3 = inlined_call_operand.vmem [shape: f32[1,128], index: 3, kind: input, shape index: {}]
  %s4 = inlined_call_operand.vmem [shape: f32[32,128], index: 4, kind: input, shape index: {}]
  %s5 = inlined_call_operand.vmem [shape: f32[32,16], index: 5, kind: input, shape index: {}]
  %s6 = inlined_call_operand.vmem [shape: f32[1,16], index: 6, kind: input, shape index: {}]
  %s7 = inlined_call_operand.vmem [shape: f32[1,16], index: 7, kind: input, shape index: {}]
  %s8 = inlined_call_operand.vmem [shape: f32[1,16], index: 8, kind: input, shape index: {}]
  %s9 = inlined_call_operand.vmem [shape: f32[16,32], index: 9, kind: input, shape index: {}]
  %s10 = inlined_call_operand.vmem [shape: f32[1,32], index: 10, kind: input, shape index: {}]
  %s11 = inlined_call_operand.vmem [shape: f32[128,32], index: 11, kind: output, shape index: {}]
  %s12 = sld [smem:[#allocation0]]
  $region54: #{fasnet_forward.10} parent=0
    _
  %s14 = ssub.s32 1, %s12
  %s15 = scalar_select 0, %s14, %s12
  // Predicated region
  $region2: #{fasnet_forward.10} parent=0 // pred_check
    _
  $region3: #{fasnet_forward.10} parent=0 // pred_check_branch
    %17 = sbr.rel (0) target = $region5
  $region4: #{fasnet_forward.10} parent=0 // pred_region
    _
  $region5: #{fasnet_forward.10} parent=0 // pred_fallthru
    _
  // Predicated region
  $region6: #{fasnet_forward.10} parent=0 // pred_check
    _
  $region7: #{fasnet_forward.10} parent=0 // pred_check_branch
    %19 = sbr.rel (0) target = $region9
  $region8: #{fasnet_forward.10} parent=0 // pred_region
    _
  $region9: #{fasnet_forward.10} parent=0 // pred_fallthru
    _
  // Predicated region
  $region10: #{fasnet_forward.10} parent=0 // pred_check
    _
  $region11: #{fasnet_forward.10} parent=0 // pred_check_branch
    %21 = sbr.rel (0) target = $region13
  $region12: #{fasnet_forward.10} parent=0 // pred_region
    _
  $region13: #{fasnet_forward.10} parent=0 // pred_fallthru
    _
  // Predicated region
  $region14: #{fasnet_forward.10} parent=0 // pred_check
    _
  $region15: #{fasnet_forward.10} parent=0 // pred_check_branch
    %23 = sbr.rel (0) target = $region17
  $region16: #{fasnet_forward.10} parent=0 // pred_region
    _
  $region17: #{fasnet_forward.10} parent=0 // pred_fallthru
    _
  // Predicated region
  $region18: #{fasnet_forward.10} parent=0 // pred_check
    _
  $region19: #{fasnet_forward.10} parent=0 // pred_check_branch
    %25 = sbr.rel (0) target = $region21
  $region20: #{fasnet_forward.10} parent=0 // pred_region
    _
  $region21: #{fasnet_forward.10} parent=0 // pred_fallthru
    _
  // Predicated region
  $region22: #{fasnet_forward.10} parent=0 // pred_check
    _
  $region23: #{fasnet_forward.10} parent=0 // pred_check_branch
    %27 = sbr.rel (0) target = $region25
  $region24: #{fasnet_forward.10} parent=0 // pred_region
    _
  $region25: #{fasnet_forward.10} parent=0 // pred_fallthru
    _
  // Predicated region
  $region26: #{fasnet_forward.10} parent=0 // pred_check
    _
  $region27: #{fasnet_forward.10} parent=0 // pred_check_branch
    %29 = sbr.rel (0) target = $region29
  $region28: #{fasnet_forward.10} parent=0 // pred_region
    _
  $region29: #{fasnet_forward.10} parent=0 // pred_fallthru
    _
  // Predicated region
  $region30: #{fasnet_forward.10} parent=0 // pred_check
    _
  $region31: #{fasnet_forward.10} parent=0 // pred_check_branch
    %31 = sbr.rel (0) target = $region33
  $region32: #{fasnet_forward.10} parent=0 // pred_region
    _
  $region33: #{fasnet_forward.10} parent=0 // pred_fallthru
    _
  // Predicated region
  $region34: #{fasnet_forward.10} parent=0 // pred_check
    _
  $region35: #{fasnet_forward.10} parent=0 // pred_check_branch
    %33 = sbr.rel (0) target = $region37
  $region36: #{fasnet_forward.10} parent=0 // pred_region
    _
  $region37: #{fasnet_forward.10} parent=0 // pred_fallthru
    _
  // Predicated region
  $region38: #{fasnet_forward.10} parent=0 // pred_check
    _
  $region39: #{fasnet_forward.10} parent=0 // pred_check_branch
    %35 = sbr.rel (0) target = $region41
  $region40: #{fasnet_forward.10} parent=0 // pred_region
    _
  $region41: #{fasnet_forward.10} parent=0 // pred_fallthru
    _
  // Predicated region
  $region42: #{fasnet_forward.10} parent=0 // pred_check
    _
  $region43: #{fasnet_forward.10} parent=0 // pred_check_branch
    %37 = sbr.rel (0) target = $region45
  $region44: #{fasnet_forward.10} parent=0 // pred_region
    _
  $region45: #{fasnet_forward.10} parent=0 // pred_fallthru
    _
  %v38 = vld [vmem:[%s0] sm:$0xff]
  %v39 = vld [vmem:[%s0 + $0x8] sm:$0xff]
  %v40 = vld [vmem:[%s0 + $0x10] sm:$0xff]
  %v41 = vld [vmem:[%s0 + $0x18] sm:$0xff]
  %v42 = vld [vmem:[%s0 + $0x20] sm:$0xff]
  %v43 = vld [vmem:[%s0 + $0x28] sm:$0xff]
  %v44 = vld [vmem:[%s0 + $0x30] sm:$0xff]
  %v45 = vld [vmem:[%s0 + $0x38] sm:$0xff]
  %v46 = vld [vmem:[%s0 + $0x40] sm:$0xff]
  %v47 = vld [vmem:[%s0 + $0x48] sm:$0xff]
  %v48 = vld [vmem:[%s0 + $0x50] sm:$0xff]
  %v49 = vld [vmem:[%s0 + $0x58] sm:$0xff]
  %v50 = vld [vmem:[%s0 + $0x60] sm:$0xff]
  %v51 = vld [vmem:[%s0 + $0x68] sm:$0xff]
  %v52 = vld [vmem:[%s0 + $0x70] sm:$0xff]
  %v53 = vld [vmem:[%s0 + $0x78] sm:$0xff]
  %v54 = vld [vmem:[%s2] sm:$0xff]
  %v55 = vld [vmem:[%s2 + $0x8] sm:$0xff]
  %v56 = vld [vmem:[%s2 + $0x10] sm:$0xff]
  %v57 = vld [vmem:[%s2 + $0x18] sm:$0xff]
  %vm58 = vcmask 130048
  %v60 = vsel %vm58, %v38, 0
  %v63 = vsel %vm58, %v39, 0
  %v66 = vsel %vm58, %v40, 0
  %v69 = vsel %vm58, %v41, 0
  %v72 = vsel %vm58, %v42, 0
  %v75 = vsel %vm58, %v43, 0
  %v78 = vsel %vm58, %v44, 0
  %v81 = vsel %vm58, %v45, 0
  %v84 = vsel %vm58, %v46, 0
  %v87 = vsel %vm58, %v47, 0
  %v90 = vsel %vm58, %v48, 0
  %v93 = vsel %vm58, %v49, 0
  %v96 = vsel %vm58, %v50, 0
  %v99 = vsel %vm58, %v51, 0
  %v102 = vsel %vm58, %v52, 0
  %v105 = vsel %vm58, %v53, 0
  %107 = vmatprep.subr.mxu0 0.0
  %108 = vmatpush1.msra.mxu0 0.0
  %109 = vmatprep.subr.mxu0 0.0
  %110 = vmatpush1.msra.mxu0 0.0
  %111 = vmatprep.subr.mxu0 0.0
  %112 = vmatpush1.msra.mxu0 0.0
  %113 = vmatprep.subr.mxu0 0.0
  %114 = vmatpush1.msra.mxu0 0.0
  %115 = vmatprep.subr.mxu0 0.0
  %116 = vmatpush1.msra.mxu0 0.0
  %117 = vmatprep.subr.mxu0 0.0
  %118 = vmatpush1.msra.mxu0 0.0
  %119 = vmatprep.subr.mxu0 0.0
  %120 = vmatpush1.msra.mxu0 0.0
  %121 = vmatprep.subr.mxu0 0.0
  %122 = vmatpush1.msra.mxu0 0.0
  %123 = vmatprep.subr.mxu0 0.0
  %124 = vmatpush1.msra.mxu0 0.0
  %125 = vmatprep.subr.mxu0 0.0
  %126 = vmatpush1.msra.mxu0 0.0
  %127 = vmatprep.subr.mxu0 0.0
  %128 = vmatpush1.msra.mxu0 0.0
  %129 = vmatprep.subr.mxu0 0.0
  %130 = vmatpush1.msra.mxu0 0.0
  %131 = vmatprep.subr.mxu0 0.0
  %132 = vmatpush1.msra.mxu0 0.0
  %133 = vmatprep.subr.mxu0 0.0
  %134 = vmatpush1.msra.mxu0 0.0
  %135 = vmatprep.subr.mxu0 %v57
  %136 = vmatpush1.msra.mxu0 %v56
  %137 = vmatprep.subr.mxu0 %v55
  %138 = vmatpush1.msra.mxu0 %v54
  %139 = vmatprep.subr.mxu0 0.0
  %140 = vmatpush2.msra.mxu0 0.0
  %141 = vmatprep.subr.mxu0 0.0
  %142 = vmatpush2.msra.mxu0 0.0
  %143 = vmatprep.subr.mxu0 0.0
  %144 = vmatpush2.msra.mxu0 0.0
  %145 = vmatprep.subr.mxu0 0.0
  %146 = vmatpush2.msra.mxu0 0.0
  %147 = vmatprep.subr.mxu0 0.0
  %148 = vmatpush2.msra.mxu0 0.0
  %149 = vmatprep.subr.mxu0 0.0
  %150 = vmatpush2.msra.mxu0 0.0
  %151 = vmatprep.subr.mxu0 0.0
  %152 = vmatpush2.msra.mxu0 0.0
  %153 = vmatprep.subr.mxu0 0.0
  %154 = vmatpush2.msra.mxu0 0.0
  %155 = vmatprep.subr.mxu0 0.0
  %156 = vmatpush2.msra.mxu0 0.0
  %157 = vmatprep.subr.mxu0 0.0
  %158 = vmatpush2.msra.mxu0 0.0
  %159 = vmatprep.subr.mxu0 0.0
  %160 = vmatpush2.msra.mxu0 0.0
  %161 = vmatprep.subr.mxu0 0.0
  %162 = vmatpush2.msra.mxu0 0.0
  %163 = vmatprep.subr.mxu0 0.0
  %164 = vmatpush2.msra.mxu0 0.0
  %165 = vmatprep.subr.mxu0 0.0
  %166 = vmatpush2.msra.mxu0 0.0
  %167 = vmatprep.subr.mxu0 0.0
  %168 = vmatpush2.msra.mxu0 0.0
  %169 = vmatprep.subr.mxu0 0.0
  %170 = vmatpush2.msra.mxu0 0.0
  %171 = vmatprep.mubr.f32.mxu0 0.0
  %172 = vmatmul.mubr.f32.gmra.mxu0 %v60
  %v173 = vpop.f32.mrf.mxu0
  %v174 = vadd.f32 0.0, %v173
  %v175 = vpop.f32.mrf.mxu0
  %v176 = vadd.f32 0.0, %v175
  %177 = vmatprep.mubr.f32.mxu0 0.0
  %178 = vmatmul.mubr.f32.gmra.mxu0 %v63
  %v179 = vpop.f32.mrf.mxu0
  %v180 = vadd.f32 0.0, %v179
  %v181 = vpop.f32.mrf.mxu0
  %v182 = vadd.f32 0.0, %v181
  %183 = vmatprep.mubr.f32.mxu0 0.0
  %184 = vmatmul.mubr.f32.gmra.mxu0 %v66
  %v185 = vpop.f32.mrf.mxu0
  %v186 = vadd.f32 0.0, %v185
  %v187 = vpop.f32.mrf.mxu0
  %v188 = vadd.f32 0.0, %v187
  %189 = vmatprep.mubr.f32.mxu0 0.0
  %190 = vmatmul.mubr.f32.gmra.mxu0 %v69
  %v191 = vpop.f32.mrf.mxu0
  %v192 = vadd.f32 0.0, %v191
  %v193 = vpop.f32.mrf.mxu0
  %v194 = vadd.f32 0.0, %v193
  %195 = vmatprep.mubr.f32.mxu0 0.0
  %196 = vmatmul.mubr.f32.gmra.mxu0 %v72
  %v197 = vpop.f32.mrf.mxu0
  %v198 = vadd.f32 0.0, %v197
  %v199 = vpop.f32.mrf.mxu0
  %v200 = vadd.f32 0.0, %v199
  %201 = vmatprep.mubr.f32.mxu0 0.0
  %202 = vmatmul.mubr.f32.gmra.mxu0 %v75
  %v203 = vpop.f32.mrf.mxu0
  %v204 = vadd.f32 0.0, %v203
  %v205 = vpop.f32.mrf.mxu0
  %v206 = vadd.f32 0.0, %v205
  %207 = vmatprep.mubr.f32.mxu0 0.0
  %208 = vmatmul.mubr.f32.gmra.mxu0 %v78
  %v209 = vpop.f32.mrf.mxu0
  %v210 = vadd.f32 0.0, %v209
  %v211 = vpop.f32.mrf.mxu0
  %v212 = vadd.f32 0.0, %v211
  %213 = vmatprep.mubr.f32.mxu0 0.0
  %214 = vmatmul.mubr.f32.gmra.mxu0 %v81
  %v215 = vpop.f32.mrf.mxu0
  %v216 = vadd.f32 0.0, %v215
  %v217 = vpop.f32.mrf.mxu0
  %v218 = vadd.f32 0.0, %v217
  %219 = vmatprep.mubr.f32.mxu0 0.0
  %220 = vmatmul.mubr.f32.gmra.mxu0 %v84
  %v221 = vpop.f32.mrf.mxu0
  %v222 = vadd.f32 0.0, %v221
  %v223 = vpop.f32.mrf.mxu0
  %v224 = vadd.f32 0.0, %v223
  %225 = vmatprep.mubr.f32.mxu0 0.0
  %226 = vmatmul.mubr.f32.gmra.mxu0 %v87
  %v227 = vpop.f32.mrf.mxu0
  %v228 = vadd.f32 0.0, %v227
  %v229 = vpop.f32.mrf.mxu0
  %v230 = vadd.f32 0.0, %v229
  %231 = vmatprep.mubr.f32.mxu0 0.0
  %232 = vmatmul.mubr.f32.gmra.mxu0 %v90
  %v233 = vpop.f32.mrf.mxu0
  %v234 = vadd.f32 0.0, %v233
  %v235 = vpop.f32.mrf.mxu0
  %v236 = vadd.f32 0.0, %v235
  %237 = vmatprep.mubr.f32.mxu0 0.0
  %238 = vmatmul.mubr.f32.gmra.mxu0 %v93
  %v239 = vpop.f32.mrf.mxu0
  %v240 = vadd.f32 0.0, %v239
  %v241 = vpop.f32.mrf.mxu0
  %v242 = vadd.f32 0.0, %v241
  %243 = vmatprep.mubr.f32.mxu0 0.0
  %244 = vmatmul.mubr.f32.gmra.mxu0 %v96
  %v245 = vpop.f32.mrf.mxu0
  %v246 = vadd.f32 0.0, %v245
  %v247 = vpop.f32.mrf.mxu0
  %v248 = vadd.f32 0.0, %v247
  %249 = vmatprep.mubr.f32.mxu0 0.0
  %250 = vmatmul.mubr.f32.gmra.mxu0 %v99
  %v251 = vpop.f32.mrf.mxu0
  %v252 = vadd.f32 0.0, %v251
  %v253 = vpop.f32.mrf.mxu0
  %v254 = vadd.f32 0.0, %v253
  %255 = vmatprep.mubr.f32.mxu0 0.0
  %256 = vmatmul.mubr.f32.gmra.mxu0 %v102
  %v257 = vpop.f32.mrf.mxu0
  %v258 = vadd.f32 0.0, %v257
  %v259 = vpop.f32.mrf.mxu0
  %v260 = vadd.f32 0.0, %v259
  %261 = vmatprep.mubr.f32.mxu0 0.0
  %262 = vmatmul.mubr.f32.gmra.mxu0 %v105
  %v263 = vpop.f32.mrf.mxu0
  %v264 = vadd.f32 0.0, %v263
  %v265 = vpop.f32.mrf.mxu0
  %v266 = vadd.f32 0.0, %v265
  %267 = vdwg.mxu0
  %268 = vst [vmem:[#allocation2] sm:$0xff] %v174
  %269 = vst [vmem:[#allocation2 + $0x8] sm:$0xff] %v176
  %270 = vst [vmem:[#allocation2 + $0x10] sm:$0xff] %v180
  %271 = vst [vmem:[#allocation2 + $0x18] sm:$0xff] %v182
  %272 = vst [vmem:[#allocation2 + $0x20] sm:$0xff] %v186
  %273 = vst [vmem:[#allocation2 + $0x28] sm:$0xff] %v188
  %274 = vst [vmem:[#allocation2 + $0x30] sm:$0xff] %v192
  %275 = vst [vmem:[#allocation2 + $0x38] sm:$0xff] %v194
  %276 = vst [vmem:[#allocation2 + $0x40] sm:$0xff] %v198
  %277 = vst [vmem:[#allocation2 + $0x48] sm:$0xff] %v200
  %278 = vst [vmem:[#allocation2 + $0x50] sm:$0xff] %v204
  %279 = vst [vmem:[#allocation2 + $0x58] sm:$0xff] %v206
  %280 = vst [vmem:[#allocation2 + $0x60] sm:$0xff] %v210
  %281 = vst [vmem:[#allocation2 + $0x68] sm:$0xff] %v212
  %282 = vst [vmem:[#allocation2 + $0x70] sm:$0xff] %v216
  %283 = vst [vmem:[#allocation2 + $0x78] sm:$0xff] %v218
  %284 = vst [vmem:[#allocation2 + $0x80] sm:$0xff] %v222
  %285 = vst [vmem:[#allocation2 + $0x88] sm:$0xff] %v224
  %286 = vst [vmem:[#allocation2 + $0x90] sm:$0xff] %v228
  %287 = vst [vmem:[#allocation2 + $0x98] sm:$0xff] %v230
  %288 = vst [vmem:[#allocation2 + $0xa0] sm:$0xff] %v234
  %289 = vst [vmem:[#allocation2 + $0xa8] sm:$0xff] %v236
  %290 = vst [vmem:[#allocation2 + $0xb0] sm:$0xff] %v240
  %291 = vst [vmem:[#allocation2 + $0xb8] sm:$0xff] %v242
  %292 = vst [vmem:[#allocation2 + $0xc0] sm:$0xff] %v246
  %293 = vst [vmem:[#allocation2 + $0xc8] sm:$0xff] %v248
  %294 = vst [vmem:[#allocation2 + $0xd0] sm:$0xff] %v252
  %295 = vst [vmem:[#allocation2 + $0xd8] sm:$0xff] %v254
  %296 = vst [vmem:[#allocation2 + $0xe0] sm:$0xff] %v258
  %297 = vst [vmem:[#allocation2 + $0xe8] sm:$0xff] %v260
  %298 = vst [vmem:[#allocation2 + $0xf0] sm:$0xff] %v264
  %299 = vst [vmem:[#allocation2 + $0xf8] sm:$0xff] %v266
  %v300 = vld [vmem:[%s3] sm:$0x1]
  %v301 = vld [vmem:[%s4] sm:$0xff]
  %v302 = vld [vmem:[%s4 + $0x8] sm:$0xff]
  %v303 = vld [vmem:[%s4 + $0x10] sm:$0xff]
  %v304 = vld [vmem:[%s4 + $0x18] sm:$0xff]
  %v305 = vlaneseq
  %v306 = vand.u32 %v305, 127
  %vm307 = vcmp.ge.s32.totalorder %v306, 64
  %vm308 = vcmp.lt.s32.totalorder %v306, 96
  %vm309 = vmand %vm307, %vm308
  %v310 = vsel %vm309, 2.0, 1.0
  %v311 = vld [vmem:[#allocation2] sm:$0xff]
  %v312 = vld [vmem:[#allocation2 + $0x10] sm:$0xff]
  %v313 = vld [vmem:[#allocation2 + $0xe8] sm:$0xff]
  %v314 = vld [vmem:[#allocation2 + $0xf8] sm:$0xff]
  %v315 = vadd.f32 %v311, %v313
  %v316 = vadd.f32 %v312, %v314
  %vm317 = vcmask 261120
  %v319 = vsel %vm317, 0.0, 0
  %321 = vmatprep.subr.mxu0 0.0
  %322 = vmatpush1.msra.mxu0 0.0
  %323 = vmatprep.subr.mxu0 0.0
  %324 = vmatpush1.msra.mxu0 0.0
  %325 = vmatprep.subr.mxu0 0.0
  %326 = vmatpush1.msra.mxu0 0.0
  %327 = vmatprep.subr.mxu0 0.0
  %328 = vmatpush1.msra.mxu0 0.0
  %329 = vmatprep.subr.mxu0 0.0
  %330 = vmatpush1.msra.mxu0 0.0
  %331 = vmatprep.subr.mxu0 0.0
  %332 = vmatpush1.msra.mxu0 0.0
  %333 = vmatprep.subr.mxu0 0.0
  %334 = vmatpush1.msra.mxu0 0.0
  %335 = vmatprep.subr.mxu0 0.0
  %336 = vmatpush1.msra.mxu0 0.0
  %337 = vmatprep.subr.mxu0 0.0
  %338 = vmatpush1.msra.mxu0 0.0
  %339 = vmatprep.subr.mxu0 0.0
  %340 = vmatpush1.msra.mxu0 0.0
  %341 = vmatprep.subr.mxu0 0.0
  %342 = vmatpush1.msra.mxu0 0.0
  %343 = vmatprep.subr.mxu0 0.0
  %344 = vmatpush1.msra.mxu0 0.0
  %345 = vmatprep.subr.mxu0 0.0
  %346 = vmatpush1.msra.mxu0 %v304
  %347 = vmatprep.subr.mxu0 0.0
  %348 = vmatpush1.msra.mxu0 %v303
  %349 = vmatprep.subr.mxu0 0.0
  %350 = vmatpush1.msra.mxu0 %v302
  %351 = vmatprep.subr.mxu0 0.0
  %352 = vmatpush1.msra.mxu0 %v301
  %353 = vmatprep.subr.mxu0 0.0
  %354 = vmatpush2.msra.mxu0 0.0
  %355 = vmatprep.subr.mxu0 0.0
  %356 = vmatpush2.msra.mxu0 0.0
  %357 = vmatprep.subr.mxu0 0.0
  %358 = vmatpush2.msra.mxu0 0.0
  %359 = vmatprep.subr.mxu0 0.0
  %360 = vmatpush2.msra.mxu0 0.0
  %361 = vmatprep.subr.mxu0 0.0
  %362 = vmatpush2.msra.mxu0 0.0
  %363 = vmatprep.subr.mxu0 0.0
  %364 = vmatpush2.msra.mxu0 0.0
  %365 = vmatprep.subr.mxu0 0.0
  %366 = vmatpush2.msra.mxu0 0.0
  %367 = vmatprep.subr.mxu0 0.0
  %368 = vmatpush2.msra.mxu0 0.0
  %369 = vmatprep.subr.mxu0 0.0
  %370 = vmatpush2.msra.mxu0 0.0
  %371 = vmatprep.subr.mxu0 0.0
  %372 = vmatpush2.msra.mxu0 0.0
  %373 = vmatprep.subr.mxu0 0.0
  %374 = vmatpush2.msra.mxu0 0.0
  %375 = vmatprep.subr.mxu0 0.0
  %376 = vmatpush2.msra.mxu0 0.0
  %377 = vmatprep.subr.mxu0 0.0
  %378 = vmatpush2.msra.mxu0 0.0
  %379 = vmatprep.subr.mxu0 0.0
  %380 = vmatpush2.msra.mxu0 0.0
  %381 = vmatprep.subr.mxu0 0.0
  %382 = vmatpush2.msra.mxu0 0.0
  %383 = vmatprep.subr.mxu0 0.0
  %384 = vmatpush2.msra.mxu0 0.0
  %385 = vmatprep.mubr.f32.mxu0 0.0
  %386 = vmatmul.mubr.f32.gmra.mxu0 %v319
  %v387 = vpop.f32.mrf.mxu0
  %v388 = vadd.f32 0.0, %v387
  %v389 = vpop.f32.mrf.mxu0
  %390 = vmatprep.mubr.f32.mxu0 0.0
  %391 = vmatmul.mubr.f32.gmra.mxu0 %v319
  %v392 = vpop.f32.mrf.mxu0
  %v393 = vadd.f32 0.0, %v392
  %v394 = vpop.f32.mrf.mxu0
  %395 = vdwg.mxu0
  %v396 = vadd.f32 %v315, %v388
  %v397 = vadd.f32 %v316, %v393
  %v399 = vlaneseq
  %v400 = vshrl.u32 %v399, 7
  %v401 = vsub.s32 0, %v400
  %v402 = vrot.slane %v300, %v401
  %v404 = vadd.f32 %v396, %v402
  %v405 = vadd.f32 %v397, %v402
  %v406 = vmul.f32 %v404, %v310
  %v407 = vmul.f32 %v405, %v310
  %v408 = vxor.u32 %v406, 2147483648
  %v409 = vxor.u32 %v407, 2147483648
  %v410 = vmul.f32 %v408, 1.442695
  %v411 = vpow.pop %v410
  %v412 = vmul.f32 %v409, 1.442695
  %v413 = vpow.pop %v412
  %v414 = vadd.f32 %v411, 1.0
  %v415 = vadd.f32 %v413, 1.0
  %v416 = vrcp.pop %v414
  %v417 = vmul.f32 1.0, %v416
  %v418 = vrcp.pop %v415
  %v419 = vmul.f32 1.0, %v418
  %v420 = vmul.f32 %v417, 2.0
  %v421 = vmul.f32 %v419, 2.0
  %v422 = vsub.f32 %v420, 1.0
  %v423 = vsub.f32 %v421, 1.0
  %v424 = vsel %vm309, %v422, %v417
  %v425 = vsel %vm309, %v423, %v419
  %v426 = vmul.f32 %v424, 0.0
  %v427 = vmul.f32 %v425, 0.0
  %430 = vrot.lane.b32.xlu0 %v424, 64
  %v431 = vpop.permute.xlu0 %430
  %432 = vrot.lane.b32.xlu0 %v425, 64
  %v433 = vpop.permute.xlu0 %432
  %v436 = vmul.f32 %v424, %v431
  %v437 = vmul.f32 %v425, %v433
  %440 = vrot.lane.b32.xlu0 %v436, 32
  %v441 = vpop.permute.xlu0 %440
  %442 = vrot.lane.b32.xlu0 %v437, 32
  %v443 = vpop.permute.xlu0 %442
  %v446 = vadd.f32 %v426, %v441
  %v447 = vadd.f32 %v427, %v443
  %v448 = vtanh.pop %v446
  %v449 = vtanh.pop %v447
  %452 = vrot.lane.b32.xlu0 %v448, 64
  %v453 = vpop.permute.xlu0 %452
  %454 = vrot.lane.b32.xlu0 %v449, 64
  %v455 = vpop.permute.xlu0 %454
  %v458 = vmul.f32 %v424, %v453
  %v459 = vmul.f32 %v425, %v455
  %462 = vrot.lane.b32.xlu0 %v458, 32
  %v463 = vpop.permute.xlu0 %462
  %464 = vrot.lane.b32.xlu0 %v459, 32
  %v465 = vpop.permute.xlu0 %464
  %468 = vst.msk [vmem:[#allocation3] sm:$0xff] %vm58, %v463
  %469 = vst.msk [vmem:[#allocation3 + $0x8] sm:$0xff] %vm58, %v465
  %vm470 = vcmask 261248
  %471 = vst.msk [vmem:[#allocation3 + $0x70] sm:$0xff] %vm470, %v463
  %472 = vst.msk [vmem:[#allocation3 + $0x78] sm:$0xff] %vm470, %v465
  %v473 = vld [vmem:[#allocation2 + $0x20] sm:$0xff]
  %v474 = vld [vmem:[#allocation2 + $0x30] sm:$0xff]
  %v475 = vld [vmem:[#allocation2 + $0xc8] sm:$0xff]
  %v476 = vld [vmem:[#allocation2 + $0xd8] sm:$0xff]
  %v477 = vadd.f32 %v473, %v475
  %v478 = vadd.f32 %v474, %v476
  %v479 = vsel %vm317, %v463, 0
  %v481 = vsel %vm317, %v465, 0
  %483 = vmatprep.subr.mxu0 0.0
  %484 = vmatpush1.msra.mxu0 0.0
  %485 = vmatprep.subr.mxu0 0.0
  %486 = vmatpush1.msra.mxu0 0.0
  %487 = vmatprep.subr.mxu0 0.0
  %488 = vmatpush1.msra.mxu0 0.0
  %489 = vmatprep.subr.mxu0 0.0
  %490 = vmatpush1.msra.mxu0 0.0
  %491 = vmatprep.subr.mxu0 0.0
  %492 = vmatpush1.msra.mxu0 0.0
  %493 = vmatprep.subr.mxu0 0.0
  %494 = vmatpush1.msra.mxu0 0.0
  %495 = vmatprep.subr.mxu0 0.0
  %496 = vmatpush1.msra.mxu0 0.0
  %497 = vmatprep.subr.mxu0 0.0
  %498 = vmatpush1.msra.mxu0 0.0
  %499 = vmatprep.subr.mxu0 0.0
  %500 = vmatpush1.msra.mxu0 0.0
  %501 = vmatprep.subr.mxu0 0.0
  %502 = vmatpush1.msra.mxu0 0.0
  %503 = vmatprep.subr.mxu0 0.0
  %504 = vmatpush1.msra.mxu0 0.0
  %505 = vmatprep.subr.mxu0 0.0
  %506 = vmatpush1.msra.mxu0 0.0
  %507 = vmatprep.subr.mxu0 0.0
  %508 = vmatpush1.msra.mxu0 %v304
  %509 = vmatprep.subr.mxu0 0.0
  %510 = vmatpush1.msra.mxu0 %v303
  %511 = vmatprep.subr.mxu0 0.0
  %512 = vmatpush1.msra.mxu0 %v302
  %513 = vmatprep.subr.mxu0 0.0
  %514 = vmatpush1.msra.mxu0 %v301
  %515 = vmatprep.subr.mxu0 0.0
  %516 = vmatpush2.msra.mxu0 0.0
  %517 = vmatprep.subr.mxu0 0.0
  %518 = vmatpush2.msra.mxu0 0.0
  %519 = vmatprep.subr.mxu0 0.0
  %520 = vmatpush2.msra.mxu0 0.0
  %521 = vmatprep.subr.mxu0 0.0
  %522 = vmatpush2.msra.mxu0 0.0
  %523 = vmatprep.subr.mxu0 0.0
  %524 = vmatpush2.msra.mxu0 0.0
  %525 = vmatprep.subr.mxu0 0.0
  %526 = vmatpush2.msra.mxu0 0.0
  %527 = vmatprep.subr.mxu0 0.0
  %528 = vmatpush2.msra.mxu0 0.0
  %529 = vmatprep.subr.mxu0 0.0
  %530 = vmatpush2.msra.mxu0 0.0
  %531 = vmatprep.subr.mxu0 0.0
  %532 = vmatpush2.msra.mxu0 0.0
  %533 = vmatprep.subr.mxu0 0.0
  %534 = vmatpush2.msra.mxu0 0.0
  %535 = vmatprep.subr.mxu0 0.0
  %536 = vmatpush2.msra.mxu0 0.0
  %537 = vmatprep.subr.mxu0 0.0
  %538 = vmatpush2.msra.mxu0 0.0
  %539 = vmatprep.subr.mxu0 0.0
  %540 = vmatpush2.msra.mxu0 0.0
  %541 = vmatprep.subr.mxu0 0.0
  %542 = vmatpush2.msra.mxu0 0.0
  %543 = vmatprep.subr.mxu0 0.0
  %544 = vmatpush2.msra.mxu0 0.0
  %545 = vmatprep.subr.mxu0 0.0
  %546 = vmatpush2.msra.mxu0 0.0
  %547 = vmatprep.mubr.f32.mxu0 0.0
  %548 = vmatmul.mubr.f32.gmra.mxu0 %v479
  %v549 = vpop.f32.mrf.mxu0
  %v550 = vadd.f32 0.0, %v549
  %v551 = vpop.f32.mrf.mxu0
  %552 = vmatprep.mubr.f32.mxu0 0.0
  %553 = vmatmul.mubr.f32.gmra.mxu0 %v481
  %v554 = vpop.f32.mrf.mxu0
  %v555 = vadd.f32 0.0, %v554
  %v556 = vpop.f32.mrf.mxu0
  %557 = vdwg.mxu0
  %v558 = vadd.f32 %v477, %v550
  %v559 = vadd.f32 %v478, %v555
  %v560 = vadd.f32 %v558, %v402
  %v561 = vadd.f32 %v559, %v402
  %v562 = vmul.f32 %v560, %v310
  %v563 = vmul.f32 %v561, %v310
  %v564 = vxor.u32 %v562, 2147483648
  %v565 = vxor.u32 %v563, 2147483648
  %v566 = vmul.f32 %v564, 1.442695
  %v567 = vpow.pop %v566
  %v568 = vmul.f32 %v565, 1.442695
  %v569 = vpow.pop %v568
  %v570 = vadd.f32 %v567, 1.0
  %v571 = vadd.f32 %v569, 1.0
  %v572 = vrcp.pop %v570
  %v573 = vmul.f32 1.0, %v572
  %v574 = vrcp.pop %v571
  %v575 = vmul.f32 1.0, %v574
  %v576 = vmul.f32 %v573, 2.0
  %v577 = vmul.f32 %v575, 2.0
  %v578 = vsub.f32 %v576, 1.0
  %v579 = vsub.f32 %v577, 1.0
  %v580 = vsel %vm309, %v578, %v573
  %v581 = vsel %vm309, %v579, %v575
  %v582 = vmul.f32 %v580, %v446
  %v583 = vmul.f32 %v581, %v447
  %586 = vrot.lane.b32.xlu0 %v580, 64
  %v587 = vpop.permute.xlu0 %586
  %588 = vrot.lane.b32.xlu0 %v581, 64
  %v589 = vpop.permute.xlu0 %588
  %v592 = vmul.f32 %v580, %v587
  %v593 = vmul.f32 %v581, %v589
  %596 = vrot.lane.b32.xlu0 %v592, 32
  %v597 = vpop.permute.xlu0 %596
  %598 = vrot.lane.b32.xlu0 %v593, 32
  %v599 = vpop.permute.xlu0 %598
  %v602 = vadd.f32 %v582, %v597
  %v603 = vadd.f32 %v583, %v599
  %v604 = vtanh.pop %v602
  %v605 = vtanh.pop %v603
  %608 = vrot.lane.b32.xlu0 %v604, 64
  %v609 = vpop.permute.xlu0 %608
  %610 = vrot.lane.b32.xlu0 %v605, 64
  %v611 = vpop.permute.xlu0 %610
  %v614 = vmul.f32 %v580, %v609
  %v615 = vmul.f32 %v581, %v611
  %618 = vrot.lane.b32.xlu0 %v614, 32
  %v619 = vpop.permute.xlu0 %618
  %620 = vrot.lane.b32.xlu0 %v615, 32
  %v621 = vpop.permute.xlu0 %620
  %624 = vst.msk [vmem:[#allocation3 + $0x10] sm:$0xff] %vm58, %v619
  %625 = vst.msk [vmem:[#allocation3 + $0x18] sm:$0xff] %vm58, %v621
  %626 = vst.msk [vmem:[#allocation3 + $0x60] sm:$0xff] %vm470, %v619
  %627 = vst.msk [vmem:[#allocation3 + $0x68] sm:$0xff] %vm470, %v621
  %v628 = vld [vmem:[#allocation2 + $0x40] sm:$0xff]
  %v629 = vld [vmem:[#allocation2 + $0x50] sm:$0xff]
  %v630 = vld [vmem:[#allocation2 + $0xa8] sm:$0xff]
  %v631 = vld [vmem:[#allocation2 + $0xb8] sm:$0xff]
  %v632 = vadd.f32 %v628, %v630
  %v633 = vadd.f32 %v629, %v631
  %v634 = vsel %vm317, %v619, 0
  %v636 = vsel %vm317, %v621, 0
  %638 = vmatprep.subr.mxu0 0.0
  %639 = vmatpush1.msra.mxu0 0.0
  %640 = vmatprep.subr.mxu0 0.0
  %641 = vmatpush1.msra.mxu0 0.0
  %642 = vmatprep.subr.mxu0 0.0
  %643 = vmatpush1.msra.mxu0 0.0
  %644 = vmatprep.subr.mxu0 0.0
  %645 = vmatpush1.msra.mxu0 0.0
  %646 = vmatprep.subr.mxu0 0.0
  %647 = vmatpush1.msra.mxu0 0.0
  %648 = vmatprep.subr.mxu0 0.0
  %649 = vmatpush1.msra.mxu0 0.0
  %650 = vmatprep.subr.mxu0 0.0
  %651 = vmatpush1.msra.mxu0 0.0
  %652 = vmatprep.subr.mxu0 0.0
  %653 = vmatpush1.msra.mxu0 0.0
  %654 = vmatprep.subr.mxu0 0.0
  %655 = vmatpush1.msra.mxu0 0.0
  %656 = vmatprep.subr.mxu0 0.0
  %657 = vmatpush1.msra.mxu0 0.0
  %658 = vmatprep.subr.mxu0 0.0
  %659 = vmatpush1.msra.mxu0 0.0
  %660 = vmatprep.subr.mxu0 0.0
  %661 = vmatpush1.msra.mxu0 0.0
  %662 = vmatprep.subr.mxu0 0.0
  %663 = vmatpush1.msra.mxu0 %v304
  %664 = vmatprep.subr.mxu0 0.0
  %665 = vmatpush1.msra.mxu0 %v303
  %666 = vmatprep.subr.mxu0 0.0
  %667 = vmatpush1.msra.mxu0 %v302
  %668 = vmatprep.subr.mxu0 0.0
  %669 = vmatpush1.msra.mxu0 %v301
  %670 = vmatprep.subr.mxu0 0.0
  %671 = vmatpush2.msra.mxu0 0.0
  %672 = vmatprep.subr.mxu0 0.0
  %673 = vmatpush2.msra.mxu0 0.0
  %674 = vmatprep.subr.mxu0 0.0
  %675 = vmatpush2.msra.mxu0 0.0
  %676 = vmatprep.subr.mxu0 0.0
  %677 = vmatpush2.msra.mxu0 0.0
  %678 = vmatprep.subr.mxu0 0.0
  %679 = vmatpush2.msra.mxu0 0.0
  %680 = vmatprep.subr.mxu0 0.0
  %681 = vmatpush2.msra.mxu0 0.0
  %682 = vmatprep.subr.mxu0 0.0
  %683 = vmatpush2.msra.mxu0 0.0
  %684 = vmatprep.subr.mxu0 0.0
  %685 = vmatpush2.msra.mxu0 0.0
  %686 = vmatprep.subr.mxu0 0.0
  %687 = vmatpush2.msra.mxu0 0.0
  %688 = vmatprep.subr.mxu0 0.0
  %689 = vmatpush2.msra.mxu0 0.0
  %690 = vmatprep.subr.mxu0 0.0
  %691 = vmatpush2.msra.mxu0 0.0
  %692 = vmatprep.subr.mxu0 0.0
  %693 = vmatpush2.msra.mxu0 0.0
  %694 = vmatprep.subr.mxu0 0.0
  %695 = vmatpush2.msra.mxu0 0.0
  %696 = vmatprep.subr.mxu0 0.0
  %697 = vmatpush2.msra.mxu0 0.0
  %698 = vmatprep.subr.mxu0 0.0
  %699 = vmatpush2.msra.mxu0 0.0
  %700 = vmatprep.subr.mxu0 0.0
  %701 = vmatpush2.msra.mxu0 0.0
  %702 = vmatprep.mubr.f32.mxu0 0.0
  %703 = vmatmul.mubr.f32.gmra.mxu0 %v634
  %v704 = vpop.f32.mrf.mxu0
  %v705 = vadd.f32 0.0, %v704
  %v706 = vpop.f32.mrf.mxu0
  %707 = vmatprep.mubr.f32.mxu0 0.0
  %708 = vmatmul.mubr.f32.gmra.mxu0 %v636
  %v709 = vpop.f32.mrf.mxu0
  %v710 = vadd.f32 0.0, %v709
  %v711 = vpop.f32.mrf.mxu0
  %712 = vdwg.mxu0
  %v713 = vadd.f32 %v632, %v705
  %v714 = vadd.f32 %v633, %v710
  %v715 = vadd.f32 %v713, %v402
  %v716 = vadd.f32 %v714, %v402
  %v717 = vmul.f32 %v715, %v310
  %v718 = vmul.f32 %v716, %v310
  %v719 = vxor.u32 %v717, 2147483648
  %v720 = vxor.u32 %v718, 2147483648
  %v721 = vmul.f32 %v719, 1.442695
  %v722 = vpow.pop %v721
  %v723 = vmul.f32 %v720, 1.442695
  %v724 = vpow.pop %v723
  %v725 = vadd.f32 %v722, 1.0
  %v726 = vadd.f32 %v724, 1.0
  %v727 = vrcp.pop %v725
  %v728 = vmul.f32 1.0, %v727
  %v729 = vrcp.pop %v726
  %v730 = vmul.f32 1.0, %v729
  %v731 = vmul.f32 %v728, 2.0
  %v732 = vmul.f32 %v730, 2.0
  %v733 = vsub.f32 %v731, 1.0
  %v734 = vsub.f32 %v732, 1.0
  %v735 = vsel %vm309, %v733, %v728
  %v736 = vsel %vm309, %v734, %v730
  %v737 = vmul.f32 %v735, %v602
  %v738 = vmul.f32 %v736, %v603
  %741 = vrot.lane.b32.xlu0 %v735, 64
  %v742 = vpop.permute.xlu0 %741
  %743 = vrot.lane.b32.xlu0 %v736, 64
  %v744 = vpop.permute.xlu0 %743
  %v747 = vmul.f32 %v735, %v742
  %v748 = vmul.f32 %v736, %v744
  %751 = vrot.lane.b32.xlu0 %v747, 32
  %v752 = vpop.permute.xlu0 %751
  %753 = vrot.lane.b32.xlu0 %v748, 32
  %v754 = vpop.permute.xlu0 %753
  %v757 = vadd.f32 %v737, %v752
  %v758 = vadd.f32 %v738, %v754
  %v759 = vtanh.pop %v757
  %v760 = vtanh.pop %v758
  %763 = vrot.lane.b32.xlu0 %v759, 64
  %v764 = vpop.permute.xlu0 %763
  %765 = vrot.lane.b32.xlu0 %v760, 64
  %v766 = vpop.permute.xlu0 %765
  %v769 = vmul.f32 %v735, %v764
  %v770 = vmul.f32 %v736, %v766
  %773 = vrot.lane.b32.xlu0 %v769, 32
  %v774 = vpop.permute.xlu0 %773
  %775 = vrot.lane.b32.xlu0 %v770, 32
  %v776 = vpop.permute.xlu0 %775
  %779 = vst.msk [vmem:[#allocation3 + $0x20] sm:$0xff] %vm58, %v774
  %780 = vst.msk [vmem:[#allocation3 + $0x28] sm:$0xff] %vm58, %v776
  %781 = vst.msk [vmem:[#allocation3 + $0x50] sm:$0xff] %vm470, %v774
  %782 = vst.msk [vmem:[#allocation3 + $0x58] sm:$0xff] %vm470, %v776
  %v783 = vld [vmem:[#allocation2 + $0x60] sm:$0xff]
  %v784 = vld [vmem:[#allocation2 + $0x70] sm:$0xff]
  %v785 = vld [vmem:[#allocation2 + $0x88] sm:$0xff]
  %v786 = vld [vmem:[#allocation2 + $0x98] sm:$0xff]
  %v787 = vadd.f32 %v783, %v785
  %v788 = vadd.f32 %v784, %v786
  %v789 = vsel %vm317, %v774, 0
  %v791 = vsel %vm317, %v776, 0
  %793 = vmatprep.subr.mxu0 0.0
  %794 = vmatpush1.msra.mxu0 0.0
  %795 = vmatprep.subr.mxu0 0.0
  %796 = vmatpush1.msra.mxu0 0.0
  %797 = vmatprep.subr.mxu0 0.0
  %798 = vmatpush1.msra.mxu0 0.0
  %799 = vmatprep.subr.mxu0 0.0
  %800 = vmatpush1.msra.mxu0 0.0
  %801 = vmatprep.subr.mxu0 0.0
  %802 = vmatpush1.msra.mxu0 0.0
  %803 = vmatprep.subr.mxu0 0.0
  %804 = vmatpush1.msra.mxu0 0.0
  %805 = vmatprep.subr.mxu0 0.0
  %806 = vmatpush1.msra.mxu0 0.0
  %807 = vmatprep.subr.mxu0 0.0
  %808 = vmatpush1.msra.mxu0 0.0
  %809 = vmatprep.subr.mxu0 0.0
  %810 = vmatpush1.msra.mxu0 0.0
  %811 = vmatprep.subr.mxu0 0.0
  %812 = vmatpush1.msra.mxu0 0.0
  %813 = vmatprep.subr.mxu0 0.0
  %814 = vmatpush1.msra.mxu0 0.0
  %815 = vmatprep.subr.mxu0 0.0
  %816 = vmatpush1.msra.mxu0 0.0
  %817 = vmatprep.subr.mxu0 0.0
  %818 = vmatpush1.msra.mxu0 %v304
  %819 = vmatprep.subr.mxu0 0.0
  %820 = vmatpush1.msra.mxu0 %v303
  %821 = vmatprep.subr.mxu0 0.0
  %822 = vmatpush1.msra.mxu0 %v302
  %823 = vmatprep.subr.mxu0 0.0
  %824 = vmatpush1.msra.mxu0 %v301
  %825 = vmatprep.subr.mxu0 0.0
  %826 = vmatpush2.msra.mxu0 0.0
  %827 = vmatprep.subr.mxu0 0.0
  %828 = vmatpush2.msra.mxu0 0.0
  %829 = vmatprep.subr.mxu0 0.0
  %830 = vmatpush2.msra.mxu0 0.0
  %831 = vmatprep.subr.mxu0 0.0
  %832 = vmatpush2.msra.mxu0 0.0
  %833 = vmatprep.subr.mxu0 0.0
  %834 = vmatpush2.msra.mxu0 0.0
  %835 = vmatprep.subr.mxu0 0.0
  %836 = vmatpush2.msra.mxu0 0.0
  %837 = vmatprep.subr.mxu0 0.0
  %838 = vmatpush2.msra.mxu0 0.0
  %839 = vmatprep.subr.mxu0 0.0
  %840 = vmatpush2.msra.mxu0 0.0
  %841 = vmatprep.subr.mxu0 0.0
  %842 = vmatpush2.msra.mxu0 0.0
  %843 = vmatprep.subr.mxu0 0.0
  %844 = vmatpush2.msra.mxu0 0.0
  %845 = vmatprep.subr.mxu0 0.0
  %846 = vmatpush2.msra.mxu0 0.0
  %847 = vmatprep.subr.mxu0 0.0
  %848 = vmatpush2.msra.mxu0 0.0
  %849 = vmatprep.subr.mxu0 0.0
  %850 = vmatpush2.msra.mxu0 0.0
  %851 = vmatprep.subr.mxu0 0.0
  %852 = vmatpush2.msra.mxu0 0.0
  %853 = vmatprep.subr.mxu0 0.0
  %854 = vmatpush2.msra.mxu0 0.0
  %855 = vmatprep.subr.mxu0 0.0
  %856 = vmatpush2.msra.mxu0 0.0
  %857 = vmatprep.mubr.f32.mxu0 0.0
  %858 = vmatmul.mubr.f32.gmra.mxu0 %v789
  %v859 = vpop.f32.mrf.mxu0
  %v860 = vadd.f32 0.0, %v859
  %v861 = vpop.f32.mrf.mxu0
  %862 = vmatprep.mubr.f32.mxu0 0.0
  %863 = vmatmul.mubr.f32.gmra.mxu0 %v791
  %v864 = vpop.f32.mrf.mxu0
  %v865 = vadd.f32 0.0, %v864
  %v866 = vpop.f32.mrf.mxu0
  %867 = vdwg.mxu0
  %v868 = vadd.f32 %v787, %v860
  %v869 = vadd.f32 %v788, %v865
  %v870 = vadd.f32 %v868, %v402
  %v871 = vadd.f32 %v869, %v402
  %v872 = vmul.f32 %v870, %v310
  %v873 = vmul.f32 %v871, %v310
  %v874 = vxor.u32 %v872, 2147483648
  %v875 = vxor.u32 %v873, 2147483648
  %v876 = vmul.f32 %v874, 1.442695
  %v877 = vpow.pop %v876
  %v878 = vmul.f32 %v875, 1.442695
  %v879 = vpow.pop %v878
  %v880 = vadd.f32 %v877, 1.0
  %v881 = vadd.f32 %v879, 1.0
  %v882 = vrcp.pop %v880
  %v883 = vmul.f32 1.0, %v882
  %v884 = vrcp.pop %v881
  %v885 = vmul.f32 1.0, %v884
  %v886 = vmul.f32 %v883, 2.0
  %v887 = vmul.f32 %v885, 2.0
  %v888 = vsub.f32 %v886, 1.0
  %v889 = vsub.f32 %v887, 1.0
  %v890 = vsel %vm309, %v888, %v883
  %v891 = vsel %vm309, %v889, %v885
  %v892 = vmul.f32 %v890, %v757
  %v893 = vmul.f32 %v891, %v758
  %896 = vrot.lane.b32.xlu0 %v890, 64
  %v897 = vpop.permute.xlu0 %896
  %898 = vrot.lane.b32.xlu0 %v891, 64
  %v899 = vpop.permute.xlu0 %898
  %v902 = vmul.f32 %v890, %v897
  %v903 = vmul.f32 %v891, %v899
  %906 = vrot.lane.b32.xlu0 %v902, 32
  %v907 = vpop.permute.xlu0 %906
  %908 = vrot.lane.b32.xlu0 %v903, 32
  %v909 = vpop.permute.xlu0 %908
  %v912 = vadd.f32 %v892, %v907
  %v913 = vadd.f32 %v893, %v909
  %v914 = vtanh.pop %v912
  %v915 = vtanh.pop %v913
  %918 = vrot.lane.b32.xlu0 %v914, 64
  %v919 = vpop.permute.xlu0 %918
  %920 = vrot.lane.b32.xlu0 %v915, 64
  %v921 = vpop.permute.xlu0 %920
  %v924 = vmul.f32 %v890, %v919
  %v925 = vmul.f32 %v891, %v921
  %928 = vrot.lane.b32.xlu0 %v924, 32
  %v929 = vpop.permute.xlu0 %928
  %930 = vrot.lane.b32.xlu0 %v925, 32
  %v931 = vpop.permute.xlu0 %930
  %934 = vst.msk [vmem:[#allocation3 + $0x30] sm:$0xff] %vm58, %v929
  %935 = vst.msk [vmem:[#allocation3 + $0x38] sm:$0xff] %vm58, %v931
  %936 = vst.msk [vmem:[#allocation3 + $0x40] sm:$0xff] %vm470, %v929
  %937 = vst.msk [vmem:[#allocation3 + $0x48] sm:$0xff] %vm470, %v931
  %v938 = vld [vmem:[#allocation2 + $0x80] sm:$0xff]
  %v939 = vld [vmem:[#allocation2 + $0x90] sm:$0xff]
  %v940 = vld [vmem:[#allocation2 + $0x68] sm:$0xff]
  %v941 = vld [vmem:[#allocation2 + $0x78] sm:$0xff]
  %v942 = vadd.f32 %v938, %v940
  %v943 = vadd.f32 %v939, %v941
  %v944 = vsel %vm317, %v929, 0
  %v946 = vsel %vm317, %v931, 0
  %948 = vmatprep.subr.mxu0 0.0
  %949 = vmatpush1.msra.mxu0 0.0
  %950 = vmatprep.subr.mxu0 0.0
  %951 = vmatpush1.msra.mxu0 0.0
  %952 = vmatprep.subr.mxu0 0.0
  %953 = vmatpush1.msra.mxu0 0.0
  %954 = vmatprep.subr.mxu0 0.0
  %955 = vmatpush1.msra.mxu0 0.0
  %956 = vmatprep.subr.mxu0 0.0
  %957 = vmatpush1.msra.mxu0 0.0
  %958 = vmatprep.subr.mxu0 0.0
  %959 = vmatpush1.msra.mxu0 0.0
  %960 = vmatprep.subr.mxu0 0.0
  %961 = vmatpush1.msra.mxu0 0.0
  %962 = vmatprep.subr.mxu0 0.0
  %963 = vmatpush1.msra.mxu0 0.0
  %964 = vmatprep.subr.mxu0 0.0
  %965 = vmatpush1.msra.mxu0 0.0
  %966 = vmatprep.subr.mxu0 0.0
  %967 = vmatpush1.msra.mxu0 0.0
  %968 = vmatprep.subr.mxu0 0.0
  %969 = vmatpush1.msra.mxu0 0.0
  %970 = vmatprep.subr.mxu0 0.0
  %971 = vmatpush1.msra.mxu0 0.0
  %972 = vmatprep.subr.mxu0 0.0
  %973 = vmatpush1.msra.mxu0 %v304
  %974 = vmatprep.subr.mxu0 0.0
  %975 = vmatpush1.msra.mxu0 %v303
  %976 = vmatprep.subr.mxu0 0.0
  %977 = vmatpush1.msra.mxu0 %v302
  %978 = vmatprep.subr.mxu0 0.0
  %979 = vmatpush1.msra.mxu0 %v301
  %980 = vmatprep.subr.mxu0 0.0
  %981 = vmatpush2.msra.mxu0 0.0
  %982 = vmatprep.subr.mxu0 0.0
  %983 = vmatpush2.msra.mxu0 0.0
  %984 = vmatprep.subr.mxu0 0.0
  %985 = vmatpush2.msra.mxu0 0.0
  %986 = vmatprep.subr.mxu0 0.0
  %987 = vmatpush2.msra.mxu0 0.0
  %988 = vmatprep.subr.mxu0 0.0
  %989 = vmatpush2.msra.mxu0 0.0
  %990 = vmatprep.subr.mxu0 0.0
  %991 = vmatpush2.msra.mxu0 0.0
  %992 = vmatprep.subr.mxu0 0.0
  %993 = vmatpush2.msra.mxu0 0.0
  %994 = vmatprep.subr.mxu0 0.0
  %995 = vmatpush2.msra.mxu0 0.0
  %996 = vmatprep.subr.mxu0 0.0
  %997 = vmatpush2.msra.mxu0 0.0
  %998 = vmatprep.subr.mxu0 0.0
  %999 = vmatpush2.msra.mxu0 0.0
  %1000 = vmatprep.subr.mxu0 0.0
  %1001 = vmatpush2.msra.mxu0 0.0
  %1002 = vmatprep.subr.mxu0 0.0
  %1003 = vmatpush2.msra.mxu0 0.0
  %1004 = vmatprep.subr.mxu0 0.0
  %1005 = vmatpush2.msra.mxu0 0.0
  %1006 = vmatprep.subr.mxu0 0.0
  %1007 = vmatpush2.msra.mxu0 0.0
  %1008 = vmatprep.subr.mxu0 0.0
  %1009 = vmatpush2.msra.mxu0 0.0
  %1010 = vmatprep.subr.mxu0 0.0
  %1011 = vmatpush2.msra.mxu0 0.0
  %1012 = vmatprep.mubr.f32.mxu0 0.0
  %1013 = vmatmul.mubr.f32.gmra.mxu0 %v944
  %v1014 = vpop.f32.mrf.mxu0
  %v1015 = vadd.f32 0.0, %v1014
  %v1016 = vpop.f32.mrf.mxu0
  %1017 = vmatprep.mubr.f32.mxu0 0.0
  %1018 = vmatmul.mubr.f32.gmra.mxu0 %v946
  %v1019 = vpop.f32.mrf.mxu0
  %v1020 = vadd.f32 0.0, %v1019
  %v1021 = vpop.f32.mrf.mxu0
  %1022 = vdwg.mxu0
  %v1023 = vadd.f32 %v942, %v1015
  %v1024 = vadd.f32 %v943, %v1020
  %v1025 = vadd.f32 %v1023, %v402
  %v1026 = vadd.f32 %v1024, %v402
  %v1027 = vmul.f32 %v1025, %v310
  %v1028 = vmul.f32 %v1026, %v310
  %v1029 = vxor.u32 %v1027, 2147483648
  %v1030 = vxor.u32 %v1028, 2147483648
  %v1031 = vmul.f32 %v1029, 1.442695
  %v1032 = vpow.pop %v1031
  %v1033 = vmul.f32 %v1030, 1.442695
  %v1034 = vpow.pop %v1033
  %v1035 = vadd.f32 %v1032, 1.0
  %v1036 = vadd.f32 %v1034, 1.0
  %v1037 = vrcp.pop %v1035
  %v1038 = vmul.f32 1.0, %v1037
  %v1039 = vrcp.pop %v1036
  %v1040 = vmul.f32 1.0, %v1039
  %v1041 = vmul.f32 %v1038, 2.0
  %v1042 = vmul.f32 %v1040, 2.0
  %v1043 = vsub.f32 %v1041, 1.0
  %v1044 = vsub.f32 %v1042, 1.0
  %v1045 = vsel %vm309, %v1043, %v1038
  %v1046 = vsel %vm309, %v1044, %v1040
  %v1047 = vmul.f32 %v1045, %v912
  %v1048 = vmul.f32 %v1046, %v913
  %1051 = vrot.lane.b32.xlu0 %v1045, 64
  %v1052 = vpop.permute.xlu0 %1051
  %1053 = vrot.lane.b32.xlu0 %v1046, 64
  %v1054 = vpop.permute.xlu0 %1053
  %v1057 = vmul.f32 %v1045, %v1052
  %v1058 = vmul.f32 %v1046, %v1054
  %1061 = vrot.lane.b32.xlu0 %v1057, 32
  %v1062 = vpop.permute.xlu0 %1061
  %1063 = vrot.lane.b32.xlu0 %v1058, 32
  %v1064 = vpop.permute.xlu0 %1063
  %v1067 = vadd.f32 %v1047, %v1062
  %v1068 = vadd.f32 %v1048, %v1064
  %v1069 = vtanh.pop %v1067
  %v1070 = vtanh.pop %v1068
  %1073 = vrot.lane.b32.xlu0 %v1069, 64
  %v1074 = vpop.permute.xlu0 %1073
  %1075 = vrot.lane.b32.xlu0 %v1070, 64
  %v1076 = vpop.permute.xlu0 %1075
  %v1079 = vmul.f32 %v1045, %v1074
  %v1080 = vmul.f32 %v1046, %v1076
  %1083 = vrot.lane.b32.xlu0 %v1079, 32
  %v1084 = vpop.permute.xlu0 %1083
  %1085 = vrot.lane.b32.xlu0 %v1080, 32
  %v1086 = vpop.permute.xlu0 %1085
  %1089 = vst.msk [vmem:[#allocation3 + $0x40] sm:$0xff] %vm58, %v1084
  %1090 = vst.msk [vmem:[#allocation3 + $0x48] sm:$0xff] %vm58, %v1086
  %1091 = vst.msk [vmem:[#allocation3 + $0x30] sm:$0xff] %vm470, %v1084
  %1092 = vst.msk [vmem:[#allocation3 + $0x38] sm:$0xff] %vm470, %v1086
  %v1093 = vld [vmem:[#allocation2 + $0xa0] sm:$0xff]
  %v1094 = vld [vmem:[#allocation2 + $0xb0] sm:$0xff]
  %v1095 = vld [vmem:[#allocation2 + $0x48] sm:$0xff]
  %v1096 = vld [vmem:[#allocation2 + $0x58] sm:$0xff]
  %v1097 = vadd.f32 %v1093, %v1095
  %v1098 = vadd.f32 %v1094, %v1096
  %v1099 = vsel %vm317, %v1084, 0
  %v1101 = vsel %vm317, %v1086, 0
  %1103 = vmatprep.subr.mxu0 0.0
  %1104 = vmatpush1.msra.mxu0 0.0
  %1105 = vmatprep.subr.mxu0 0.0
  %1106 = vmatpush1.msra.mxu0 0.0
  %1107 = vmatprep.subr.mxu0 0.0
  %1108 = vmatpush1.msra.mxu0 0.0
  %1109 = vmatprep.subr.mxu0 0.0
  %1110 = vmatpush1.msra.mxu0 0.0
  %1111 = vmatprep.subr.mxu0 0.0
  %1112 = vmatpush1.msra.mxu0 0.0
  %1113 = vmatprep.subr.mxu0 0.0
  %1114 = vmatpush1.msra.mxu0 0.0
  %1115 = vmatprep.subr.mxu0 0.0
  %1116 = vmatpush1.msra.mxu0 0.0
  %1117 = vmatprep.subr.mxu0 0.0
  %1118 = vmatpush1.msra.mxu0 0.0
  %1119 = vmatprep.subr.mxu0 0.0
  %1120 = vmatpush1.msra.mxu0 0.0
  %1121 = vmatprep.subr.mxu0 0.0
  %1122 = vmatpush1.msra.mxu0 0.0
  %1123 = vmatprep.subr.mxu0 0.0
  %1124 = vmatpush1.msra.mxu0 0.0
  %1125 = vmatprep.subr.mxu0 0.0
  %1126 = vmatpush1.msra.mxu0 0.0
  %1127 = vmatprep.subr.mxu0 0.0
  %1128 = vmatpush1.msra.mxu0 %v304
  %1129 = vmatprep.subr.mxu0 0.0
  %1130 = vmatpush1.msra.mxu0 %v303
  %1131 = vmatprep.subr.mxu0 0.0
  %1132 = vmatpush1.msra.mxu0 %v302
  %1133 = vmatprep.subr.mxu0 0.0
  %1134 = vmatpush1.msra.mxu0 %v301
  %1135 = vmatprep.subr.mxu0 0.0
  %1136 = vmatpush2.msra.mxu0 0.0
  %1137 = vmatprep.subr.mxu0 0.0
  %1138 = vmatpush2.msra.mxu0 0.0
  %1139 = vmatprep.subr.mxu0 0.0
  %1140 = vmatpush2.msra.mxu0 0.0
  %1141 = vmatprep.subr.mxu0 0.0
  %1142 = vmatpush2.msra.mxu0 0.0
  %1143 = vmatprep.subr.mxu0 0.0
  %1144 = vmatpush2.msra.mxu0 0.0
  %1145 = vmatprep.subr.mxu0 0.0
  %1146 = vmatpush2.msra.mxu0 0.0
  %1147 = vmatprep.subr.mxu0 0.0
  %1148 = vmatpush2.msra.mxu0 0.0
  %1149 = vmatprep.subr.mxu0 0.0
  %1150 = vmatpush2.msra.mxu0 0.0
  %1151 = vmatprep.subr.mxu0 0.0
  %1152 = vmatpush2.msra.mxu0 0.0
  %1153 = vmatprep.subr.mxu0 0.0
  %1154 = vmatpush2.msra.mxu0 0.0
  %1155 = vmatprep.subr.mxu0 0.0
  %1156 = vmatpush2.msra.mxu0 0.0
  %1157 = vmatprep.subr.mxu0 0.0
  %1158 = vmatpush2.msra.mxu0 0.0
  %1159 = vmatprep.subr.mxu0 0.0
  %1160 = vmatpush2.msra.mxu0 0.0
  %1161 = vmatprep.subr.mxu0 0.0
  %1162 = vmatpush2.msra.mxu0 0.0
  %1163 = vmatprep.subr.mxu0 0.0
  %1164 = vmatpush2.msra.mxu0 0.0
  %1165 = vmatprep.subr.mxu0 0.0
  %1166 = vmatpush2.msra.mxu0 0.0
  %1167 = vmatprep.mubr.f32.mxu0 0.0
  %1168 = vmatmul.mubr.f32.gmra.mxu0 %v1099
  %v1169 = vpop.f32.mrf.mxu0
  %v1170 = vadd.f32 0.0, %v1169
  %v1171 = vpop.f32.mrf.mxu0
  %1172 = vmatprep.mubr.f32.mxu0 0.0
  %1173 = vmatmul.mubr.f32.gmra.mxu0 %v1101
  %v1174 = vpop.f32.mrf.mxu0
  %v1175 = vadd.f32 0.0, %v1174
  %v1176 = vpop.f32.mrf.mxu0
  %1177 = vdwg.mxu0
  %v1178 = vadd.f32 %v1097, %v1170
  %v1179 = vadd.f32 %v1098, %v1175
  %v1180 = vadd.f32 %v1178, %v402
  %v1181 = vadd.f32 %v1179, %v402
  %v1182 = vmul.f32 %v1180, %v310
  %v1183 = vmul.f32 %v1181, %v310
  %v1184 = vxor.u32 %v1182, 2147483648
  %v1185 = vxor.u32 %v1183, 2147483648
  %v1186 = vmul.f32 %v1184, 1.442695
  %v1187 = vpow.pop %v1186
  %v1188 = vmul.f32 %v1185, 1.442695
  %v1189 = vpow.pop %v1188
  %v1190 = vadd.f32 %v1187, 1.0
  %v1191 = vadd.f32 %v1189, 1.0
  %v1192 = vrcp.pop %v1190
  %v1193 = vmul.f32 1.0, %v1192
  %v1194 = vrcp.pop %v1191
  %v1195 = vmul.f32 1.0, %v1194
  %v1196 = vmul.f32 %v1193, 2.0
  %v1197 = vmul.f32 %v1195, 2.0
  %v1198 = vsub.f32 %v1196, 1.0
  %v1199 = vsub.f32 %v1197, 1.0
  %v1200 = vsel %vm309, %v1198, %v1193
  %v1201 = vsel %vm309, %v1199, %v1195
  %v1202 = vmul.f32 %v1200, %v1067
  %v1203 = vmul.f32 %v1201, %v1068
  %1206 = vrot.lane.b32.xlu0 %v1200, 64
  %v1207 = vpop.permute.xlu0 %1206
  %1208 = vrot.lane.b32.xlu0 %v1201, 64
  %v1209 = vpop.permute.xlu0 %1208
  %v1212 = vmul.f32 %v1200, %v1207
  %v1213 = vmul.f32 %v1201, %v1209
  %1216 = vrot.lane.b32.xlu0 %v1212, 32
  %v1217 = vpop.permute.xlu0 %1216
  %1218 = vrot.lane.b32.xlu0 %v1213, 32
  %v1219 = vpop.permute.xlu0 %1218
  %v1222 = vadd.f32 %v1202, %v1217
  %v1223 = vadd.f32 %v1203, %v1219
  %v1224 = vtanh.pop %v1222
  %v1225 = vtanh.pop %v1223
  %1228 = vrot.lane.b32.xlu0 %v1224, 64
  %v1229 = vpop.permute.xlu0 %1228
  %1230 = vrot.lane.b32.xlu0 %v1225, 64
  %v1231 = vpop.permute.xlu0 %1230
  %v1234 = vmul.f32 %v1200, %v1229
  %v1235 = vmul.f32 %v1201, %v1231
  %1238 = vrot.lane.b32.xlu0 %v1234, 32
  %v1239 = vpop.permute.xlu0 %1238
  %1240 = vrot.lane.b32.xlu0 %v1235, 32
  %v1241 = vpop.permute.xlu0 %1240
  %1244 = vst.msk [vmem:[#allocation3 + $0x50] sm:$0xff] %vm58, %v1239
  %1245 = vst.msk [vmem:[#allocation3 + $0x58] sm:$0xff] %vm58, %v1241
  %1246 = vst.msk [vmem:[#allocation3 + $0x20] sm:$0xff] %vm470, %v1239
  %1247 = vst.msk [vmem:[#allocation3 + $0x28] sm:$0xff] %vm470, %v1241
  %v1248 = vld [vmem:[#allocation2 + $0xc0] sm:$0xff]
  %v1249 = vld [vmem:[#allocation2 + $0xd0] sm:$0xff]
  %v1250 = vld [vmem:[#allocation2 + $0x28] sm:$0xff]
  %v1251 = vld [vmem:[#allocation2 + $0x38] sm:$0xff]
  %v1252 = vadd.f32 %v1248, %v1250
  %v1253 = vadd.f32 %v1249, %v1251
  %v1254 = vsel %vm317, %v1239, 0
  %v1256 = vsel %vm317, %v1241, 0
  %1258 = vmatprep.subr.mxu0 0.0
  %1259 = vmatpush1.msra.mxu0 0.0
  %1260 = vmatprep.subr.mxu0 0.0
  %1261 = vmatpush1.msra.mxu0 0.0
  %1262 = vmatprep.subr.mxu0 0.0
  %1263 = vmatpush1.msra.mxu0 0.0
  %1264 = vmatprep.subr.mxu0 0.0
  %1265 = vmatpush1.msra.mxu0 0.0
  %1266 = vmatprep.subr.mxu0 0.0
  %1267 = vmatpush1.msra.mxu0 0.0
  %1268 = vmatprep.subr.mxu0 0.0
  %1269 = vmatpush1.msra.mxu0 0.0
  %1270 = vmatprep.subr.mxu0 0.0
  %1271 = vmatpush1.msra.mxu0 0.0
  %1272 = vmatprep.subr.mxu0 0.0
  %1273 = vmatpush1.msra.mxu0 0.0
  %1274 = vmatprep.subr.mxu0 0.0
  %1275 = vmatpush1.msra.mxu0 0.0
  %1276 = vmatprep.subr.mxu0 0.0
  %1277 = vmatpush1.msra.mxu0 0.0
  %1278 = vmatprep.subr.mxu0 0.0
  %1279 = vmatpush1.msra.mxu0 0.0
  %1280 = vmatprep.subr.mxu0 0.0
  %1281 = vmatpush1.msra.mxu0 0.0
  %1282 = vmatprep.subr.mxu0 0.0
  %1283 = vmatpush1.msra.mxu0 %v304
  %1284 = vmatprep.subr.mxu0 0.0
  %1285 = vmatpush1.msra.mxu0 %v303
  %1286 = vmatprep.subr.mxu0 0.0
  %1287 = vmatpush1.msra.mxu0 %v302
  %1288 = vmatprep.subr.mxu0 0.0
  %1289 = vmatpush1.msra.mxu0 %v301
  %1290 = vmatprep.subr.mxu0 0.0
  %1291 = vmatpush2.msra.mxu0 0.0
  %1292 = vmatprep.subr.mxu0 0.0
  %1293 = vmatpush2.msra.mxu0 0.0
  %1294 = vmatprep.subr.mxu0 0.0
  %1295 = vmatpush2.msra.mxu0 0.0
  %1296 = vmatprep.subr.mxu0 0.0
  %1297 = vmatpush2.msra.mxu0 0.0
  %1298 = vmatprep.subr.mxu0 0.0
  %1299 = vmatpush2.msra.mxu0 0.0
  %1300 = vmatprep.subr.mxu0 0.0
  %1301 = vmatpush2.msra.mxu0 0.0
  %1302 = vmatprep.subr.mxu0 0.0
  %1303 = vmatpush2.msra.mxu0 0.0
  %1304 = vmatprep.subr.mxu0 0.0
  %1305 = vmatpush2.msra.mxu0 0.0
  %1306 = vmatprep.subr.mxu0 0.0
  %1307 = vmatpush2.msra.mxu0 0.0
  %1308 = vmatprep.subr.mxu0 0.0
  %1309 = vmatpush2.msra.mxu0 0.0
  %1310 = vmatprep.subr.mxu0 0.0
  %1311 = vmatpush2.msra.mxu0 0.0
  %1312 = vmatprep.subr.mxu0 0.0
  %1313 = vmatpush2.msra.mxu0 0.0
  %1314 = vmatprep.subr.mxu0 0.0
  %1315 = vmatpush2.msra.mxu0 0.0
  %1316 = vmatprep.subr.mxu0 0.0
  %1317 = vmatpush2.msra.mxu0 0.0
  %1318 = vmatprep.subr.mxu0 0.0
  %1319 = vmatpush2.msra.mxu0 0.0
  %1320 = vmatprep.subr.mxu0 0.0
  %1321 = vmatpush2.msra.mxu0 0.0
  %1322 = vmatprep.mubr.f32.mxu0 0.0
  %1323 = vmatmul.mubr.f32.gmra.mxu0 %v1254
  %v1324 = vpop.f32.mrf.mxu0
  %v1325 = vadd.f32 0.0, %v1324
  %v1326 = vpop.f32.mrf.mxu0
  %1327 = vmatprep.mubr.f32.mxu0 0.0
  %1328 = vmatmul.mubr.f32.gmra.mxu0 %v1256
  %v1329 = vpop.f32.mrf.mxu0
  %v1330 = vadd.f32 0.0, %v1329
  %v1331 = vpop.f32.mrf.mxu0
  %1332 = vdwg.mxu0
  %v1333 = vadd.f32 %v1252, %v1325
  %v1334 = vadd.f32 %v1253, %v1330
  %v1335 = vadd.f32 %v1333, %v402
  %v1336 = vadd.f32 %v1334, %v402
  %v1337 = vmul.f32 %v1335, %v310
  %v1338 = vmul.f32 %v1336, %v310
  %v1339 = vxor.u32 %v1337, 2147483648
  %v1340 = vxor.u32 %v1338, 2147483648
  %v1341 = vmul.f32 %v1339, 1.442695
  %v1342 = vpow.pop %v1341
  %v1343 = vmul.f32 %v1340, 1.442695
  %v1344 = vpow.pop %v1343
  %v1345 = vadd.f32 %v1342, 1.0
  %v1346 = vadd.f32 %v1344, 1.0
  %v1347 = vrcp.pop %v1345
  %v1348 = vmul.f32 1.0, %v1347
  %v1349 = vrcp.pop %v1346
  %v1350 = vmul.f32 1.0, %v1349
  %v1351 = vmul.f32 %v1348, 2.0
  %v1352 = vmul.f32 %v1350, 2.0
  %v1353 = vsub.f32 %v1351, 1.0
  %v1354 = vsub.f32 %v1352, 1.0
  %v1355 = vsel %vm309, %v1353, %v1348
  %v1356 = vsel %vm309, %v1354, %v1350
  %v1357 = vmul.f32 %v1355, %v1222
  %v1358 = vmul.f32 %v1356, %v1223
  %1361 = vrot.lane.b32.xlu0 %v1355, 64
  %v1362 = vpop.permute.xlu0 %1361
  %1363 = vrot.lane.b32.xlu0 %v1356, 64
  %v1364 = vpop.permute.xlu0 %1363
  %v1367 = vmul.f32 %v1355, %v1362
  %v1368 = vmul.f32 %v1356, %v1364
  %1371 = vrot.lane.b32.xlu0 %v1367, 32
  %v1372 = vpop.permute.xlu0 %1371
  %1373 = vrot.lane.b32.xlu0 %v1368, 32
  %v1374 = vpop.permute.xlu0 %1373
  %v1377 = vadd.f32 %v1357, %v1372
  %v1378 = vadd.f32 %v1358, %v1374
  %v1379 = vtanh.pop %v1377
  %v1380 = vtanh.pop %v1378
  %1383 = vrot.lane.b32.xlu0 %v1379, 64
  %v1384 = vpop.permute.xlu0 %1383
  %1385 = vrot.lane.b32.xlu0 %v1380, 64
  %v1386 = vpop.permute.xlu0 %1385
  %v1389 = vmul.f32 %v1355, %v1384
  %v1390 = vmul.f32 %v1356, %v1386
  %1393 = vrot.lane.b32.xlu0 %v1389, 32
  %v1394 = vpop.permute.xlu0 %1393
  %1395 = vrot.lane.b32.xlu0 %v1390, 32
  %v1396 = vpop.permute.xlu0 %1395
  %1399 = vst.msk [vmem:[#allocation3 + $0x60] sm:$0xff] %vm58, %v1394
  %1400 = vst.msk [vmem:[#allocation3 + $0x68] sm:$0xff] %vm58, %v1396
  %1401 = vst.msk [vmem:[#allocation3 + $0x10] sm:$0xff] %vm470, %v1394
  %1402 = vst.msk [vmem:[#allocation3 + $0x18] sm:$0xff] %vm470, %v1396
  %v1403 = vld [vmem:[#allocation2 + $0xe0] sm:$0xff]
  %v1404 = vld [vmem:[#allocation2 + $0xf0] sm:$0xff]
  %v1405 = vld [vmem:[#allocation2 + $0x8] sm:$0xff]
  %v1406 = vld [vmem:[#allocation2 + $0x18] sm:$0xff]
  %v1407 = vadd.f32 %v1403, %v1405
  %v1408 = vadd.f32 %v1404, %v1406
  %v1409 = vsel %vm317, %v1394, 0
  %v1411 = vsel %vm317, %v1396, 0
  %1413 = vmatprep.subr.mxu0 0.0
  %1414 = vmatpush1.msra.mxu0 0.0
  %1415 = vmatprep.subr.mxu0 0.0
  %1416 = vmatpush1.msra.mxu0 0.0
  %1417 = vmatprep.subr.mxu0 0.0
  %1418 = vmatpush1.msra.mxu0 0.0
  %1419 = vmatprep.subr.mxu0 0.0
  %1420 = vmatpush1.msra.mxu0 0.0
  %1421 = vmatprep.subr.mxu0 0.0
  %1422 = vmatpush1.msra.mxu0 0.0
  %1423 = vmatprep.subr.mxu0 0.0
  %1424 = vmatpush1.msra.mxu0 0.0
  %1425 = vmatprep.subr.mxu0 0.0
  %1426 = vmatpush1.msra.mxu0 0.0
  %1427 = vmatprep.subr.mxu0 0.0
  %1428 = vmatpush1.msra.mxu0 0.0
  %1429 = vmatprep.subr.mxu0 0.0
  %1430 = vmatpush1.msra.mxu0 0.0
  %1431 = vmatprep.subr.mxu0 0.0
  %1432 = vmatpush1.msra.mxu0 0.0
  %1433 = vmatprep.subr.mxu0 0.0
  %1434 = vmatpush1.msra.mxu0 0.0
  %1435 = vmatprep.subr.mxu0 0.0
  %1436 = vmatpush1.msra.mxu0 0.0
  %1437 = vmatprep.subr.mxu0 0.0
  %1438 = vmatpush1.msra.mxu0 %v304
  %1439 = vmatprep.subr.mxu0 0.0
  %1440 = vmatpush1.msra.mxu0 %v303
  %1441 = vmatprep.subr.mxu0 0.0
  %1442 = vmatpush1.msra.mxu0 %v302
  %1443 = vmatprep.subr.mxu0 0.0
  %1444 = vmatpush1.msra.mxu0 %v301
  %1445 = vmatprep.subr.mxu0 0.0
  %1446 = vmatpush2.msra.mxu0 0.0
  %1447 = vmatprep.subr.mxu0 0.0
  %1448 = vmatpush2.msra.mxu0 0.0
  %1449 = vmatprep.subr.mxu0 0.0
  %1450 = vmatpush2.msra.mxu0 0.0
  %1451 = vmatprep.subr.mxu0 0.0
  %1452 = vmatpush2.msra.mxu0 0.0
  %1453 = vmatprep.subr.mxu0 0.0
  %1454 = vmatpush2.msra.mxu0 0.0
  %1455 = vmatprep.subr.mxu0 0.0
  %1456 = vmatpush2.msra.mxu0 0.0
  %1457 = vmatprep.subr.mxu0 0.0
  %1458 = vmatpush2.msra.mxu0 0.0
  %1459 = vmatprep.subr.mxu0 0.0
  %1460 = vmatpush2.msra.mxu0 0.0
  %1461 = vmatprep.subr.mxu0 0.0
  %1462 = vmatpush2.msra.mxu0 0.0
  %1463 = vmatprep.subr.mxu0 0.0
  %1464 = vmatpush2.msra.mxu0 0.0
  %1465 = vmatprep.subr.mxu0 0.0
  %1466 = vmatpush2.msra.mxu0 0.0
  %1467 = vmatprep.subr.mxu0 0.0
  %1468 = vmatpush2.msra.mxu0 0.0
  %1469 = vmatprep.subr.mxu0 0.0
  %1470 = vmatpush2.msra.mxu0 0.0
  %1471 = vmatprep.subr.mxu0 0.0
  %1472 = vmatpush2.msra.mxu0 0.0
  %1473 = vmatprep.subr.mxu0 0.0
  %1474 = vmatpush2.msra.mxu0 0.0
  %1475 = vmatprep.subr.mxu0 0.0
  %1476 = vmatpush2.msra.mxu0 0.0
  %1477 = vmatprep.mubr.f32.mxu0 0.0
  %1478 = vmatmul.mubr.f32.gmra.mxu0 %v1409
  %v1479 = vpop.f32.mrf.mxu0
  %v1480 = vadd.f32 0.0, %v1479
  %v1481 = vpop.f32.mrf.mxu0
  %1482 = vmatprep.mubr.f32.mxu0 0.0
  %1483 = vmatmul.mubr.f32.gmra.mxu0 %v1411
  %v1484 = vpop.f32.mrf.mxu0
  %v1485 = vadd.f32 0.0, %v1484
  %v1486 = vpop.f32.mrf.mxu0
  %1487 = vdwg.mxu0
  %v1488 = vadd.f32 %v1407, %v1480
  %v1489 = vadd.f32 %v1408, %v1485
  %v1490 = vadd.f32 %v1488, %v402
  %v1491 = vadd.f32 %v1489, %v402
  %v1492 = vmul.f32 %v1490, %v310
  %v1493 = vmul.f32 %v1491, %v310
  %v1494 = vxor.u32 %v1492, 2147483648
  %v1495 = vxor.u32 %v1493, 2147483648
  %v1496 = vmul.f32 %v1494, 1.442695
  %v1497 = vpow.pop %v1496
  %v1498 = vmul.f32 %v1495, 1.442695
  %v1499 = vpow.pop %v1498
  %v1500 = vadd.f32 %v1497, 1.0
  %v1501 = vadd.f32 %v1499, 1.0
  %v1502 = vrcp.pop %v1500
  %v1503 = vmul.f32 1.0, %v1502
  %v1504 = vrcp.pop %v1501
  %v1505 = vmul.f32 1.0, %v1504
  %v1506 = vmul.f32 %v1503, 2.0
  %v1507 = vmul.f32 %v1505, 2.0
  %v1508 = vsub.f32 %v1506, 1.0
  %v1509 = vsub.f32 %v1507, 1.0
  %v1510 = vsel %vm309, %v1508, %v1503
  %v1511 = vsel %vm309, %v1509, %v1505
  %v1512 = vmul.f32 %v1510, %v1377
  %v1513 = vmul.f32 %v1511, %v1378
  %1516 = vrot.lane.b32.xlu0 %v1510, 64
  %v1517 = vpop.permute.xlu0 %1516
  %1518 = vrot.lane.b32.xlu0 %v1511, 64
  %v1519 = vpop.permute.xlu0 %1518
  %v1522 = vmul.f32 %v1510, %v1517
  %v1523 = vmul.f32 %v1511, %v1519
  %1526 = vrot.lane.b32.xlu0 %v1522, 32
  %v1527 = vpop.permute.xlu0 %1526
  %1528 = vrot.lane.b32.xlu0 %v1523, 32
  %v1529 = vpop.permute.xlu0 %1528
  %v1532 = vadd.f32 %v1512, %v1527
  %v1533 = vadd.f32 %v1513, %v1529
  %v1534 = vtanh.pop %v1532
  %v1535 = vtanh.pop %v1533
  %1538 = vrot.lane.b32.xlu0 %v1534, 64
  %v1539 = vpop.permute.xlu0 %1538
  %1540 = vrot.lane.b32.xlu0 %v1535, 64
  %v1541 = vpop.permute.xlu0 %1540
  %v1544 = vmul.f32 %v1510, %v1539
  %v1545 = vmul.f32 %v1511, %v1541
  %1548 = vrot.lane.b32.xlu0 %v1544, 32
  %v1549 = vpop.permute.xlu0 %1548
  %1550 = vrot.lane.b32.xlu0 %v1545, 32
  %v1551 = vpop.permute.xlu0 %1550
  %1554 = vst.msk [vmem:[#allocation3 + $0x70] sm:$0xff] %vm58, %v1549
  %1555 = vst.msk [vmem:[#allocation3 + $0x78] sm:$0xff] %vm58, %v1551
  %1556 = vst.msk [vmem:[#allocation3] sm:$0xff] %vm470, %v1549
  %1557 = vst.msk [vmem:[#allocation3 + $0x8] sm:$0xff] %vm470, %v1551
  %v1558 = vld [vmem:[#allocation3] sm:$0xff]
  %v1559 = vld [vmem:[#allocation3 + $0x8] sm:$0xff]
  %v1560 = vld [vmem:[#allocation3 + $0x10] sm:$0xff]
  %v1561 = vld [vmem:[#allocation3 + $0x18] sm:$0xff]
  %v1562 = vld [vmem:[#allocation3 + $0x20] sm:$0xff]
  %v1563 = vld [vmem:[#allocation3 + $0x28] sm:$0xff]
  %v1564 = vld [vmem:[#allocation3 + $0x30] sm:$0xff]
  %v1565 = vld [vmem:[#allocation3 + $0x38] sm:$0xff]
  %v1566 = vld [vmem:[#allocation3 + $0x40] sm:$0xff]
  %v1567 = vld [vmem:[#allocation3 + $0x48] sm:$0xff]
  %v1568 = vld [vmem:[#allocation3 + $0x50] sm:$0xff]
  %v1569 = vld [vmem:[#allocation3 + $0x58] sm:$0xff]
  %v1570 = vld [vmem:[#allocation3 + $0x60] sm:$0xff]
  %v1571 = vld [vmem:[#allocation3 + $0x68] sm:$0xff]
  %v1572 = vld [vmem:[#allocation3 + $0x70] sm:$0xff]
  %v1573 = vld [vmem:[#allocation3 + $0x78] sm:$0xff]
  %v1574 = vld [vmem:[%s5] sm:$0xff]
  %v1575 = vld [vmem:[%s5 + $0x8] sm:$0xff]
  %v1576 = vld [vmem:[%s5 + $0x10] sm:$0xff]
  %v1577 = vld [vmem:[%s5 + $0x18] sm:$0xff]
  %v1578 = vld [vmem:[%s6] sm:$0x1]
  %v1580 = vlaneseq
  %v1581 = vshrl.u32 %v1580, 7
  %v1582 = vsub.s32 0, %v1581
  %v1583 = vrot.slane %v1578, %v1582
  %v1586 = vsel %vm317, %v1558, 0
  %v1589 = vsel %vm317, %v1559, 0
  %v1592 = vsel %vm317, %v1560, 0
  %v1595 = vsel %vm317, %v1561, 0
  %v1598 = vsel %vm317, %v1562, 0
  %v1601 = vsel %vm317, %v1563, 0
  %v1604 = vsel %vm317, %v1564, 0
  %v1607 = vsel %vm317, %v1565, 0
  %v1610 = vsel %vm317, %v1566, 0
  %v1613 = vsel %vm317, %v1567, 0
  %v1616 = vsel %vm317, %v1568, 0
  %v1619 = vsel %vm317, %v1569, 0
  %v1622 = vsel %vm317, %v1570, 0
  %v1625 = vsel %vm317, %v1571, 0
  %v1628 = vsel %vm317, %v1572, 0
  %v1631 = vsel %vm317, %v1573, 0
  %1633 = vmatprep.subr.mxu0 0.0
  %1634 = vmatpush1.msra.mxu0 0.0
  %1635 = vmatprep.subr.mxu0 0.0
  %1636 = vmatpush1.msra.mxu0 0.0
  %1637 = vmatprep.subr.mxu0 0.0
  %1638 = vmatpush1.msra.mxu0 0.0
  %1639 = vmatprep.subr.mxu0 0.0
  %1640 = vmatpush1.msra.mxu0 0.0
  %1641 = vmatprep.subr.mxu0 0.0
  %1642 = vmatpush1.msra.mxu0 0.0
  %1643 = vmatprep.subr.mxu0 0.0
  %1644 = vmatpush1.msra.mxu0 0.0
  %1645 = vmatprep.subr.mxu0 0.0
  %1646 = vmatpush1.msra.mxu0 0.0
  %1647 = vmatprep.subr.mxu0 0.0
  %1648 = vmatpush1.msra.mxu0 0.0
  %1649 = vmatprep.subr.mxu0 0.0
  %1650 = vmatpush1.msra.mxu0 0.0
  %1651 = vmatprep.subr.mxu0 0.0
  %1652 = vmatpush1.msra.mxu0 0.0
  %1653 = vmatprep.subr.mxu0 0.0
  %1654 = vmatpush1.msra.mxu0 0.0
  %1655 = vmatprep.subr.mxu0 0.0
  %1656 = vmatpush1.msra.mxu0 0.0
  %1657 = vmatprep.subr.mxu0 0.0
  %1658 = vmatpush1.msra.mxu0 %v1577
  %1659 = vmatprep.subr.mxu0 0.0
  %1660 = vmatpush1.msra.mxu0 %v1576
  %1661 = vmatprep.subr.mxu0 0.0
  %1662 = vmatpush1.msra.mxu0 %v1575
  %1663 = vmatprep.subr.mxu0 0.0
  %1664 = vmatpush1.msra.mxu0 %v1574
  %1665 = vmatprep.subr.mxu0 0.0
  %1666 = vmatpush2.msra.mxu0 0.0
  %1667 = vmatprep.subr.mxu0 0.0
  %1668 = vmatpush2.msra.mxu0 0.0
  %1669 = vmatprep.subr.mxu0 0.0
  %1670 = vmatpush2.msra.mxu0 0.0
  %1671 = vmatprep.subr.mxu0 0.0
  %1672 = vmatpush2.msra.mxu0 0.0
  %1673 = vmatprep.subr.mxu0 0.0
  %1674 = vmatpush2.msra.mxu0 0.0
  %1675 = vmatprep.subr.mxu0 0.0
  %1676 = vmatpush2.msra.mxu0 0.0
  %1677 = vmatprep.subr.mxu0 0.0
  %1678 = vmatpush2.msra.mxu0 0.0
  %1679 = vmatprep.subr.mxu0 0.0
  %1680 = vmatpush2.msra.mxu0 0.0
  %1681 = vmatprep.subr.mxu0 0.0
  %1682 = vmatpush2.msra.mxu0 0.0
  %1683 = vmatprep.subr.mxu0 0.0
  %1684 = vmatpush2.msra.mxu0 0.0
  %1685 = vmatprep.subr.mxu0 0.0
  %1686 = vmatpush2.msra.mxu0 0.0
  %1687 = vmatprep.subr.mxu0 0.0
  %1688 = vmatpush2.msra.mxu0 0.0
  %1689 = vmatprep.subr.mxu0 0.0
  %1690 = vmatpush2.msra.mxu0 0.0
  %1691 = vmatprep.subr.mxu0 0.0
  %1692 = vmatpush2.msra.mxu0 0.0
  %1693 = vmatprep.subr.mxu0 0.0
  %1694 = vmatpush2.msra.mxu0 0.0
  %1695 = vmatprep.subr.mxu0 0.0
  %1696 = vmatpush2.msra.mxu0 0.0
  %1697 = vmatprep.mubr.f32.mxu0 0.0
  %1698 = vmatmul.mubr.f32.gmra.mxu0 %v1586
  %v1699 = vpop.f32.mrf.mxu0
  %v1700 = vadd.f32 %v1583, %v1699
  %v1701 = vpop.f32.mrf.mxu0
  %1702 = vmatprep.mubr.f32.mxu0 0.0
  %1703 = vmatmul.mubr.f32.gmra.mxu0 %v1589
  %v1704 = vpop.f32.mrf.mxu0
  %v1705 = vadd.f32 %v1583, %v1704
  %v1706 = vpop.f32.mrf.mxu0
  %1707 = vmatprep.mubr.f32.mxu0 0.0
  %1708 = vmatmul.mubr.f32.gmra.mxu0 %v1592
  %v1709 = vpop.f32.mrf.mxu0
  %v1710 = vadd.f32 %v1583, %v1709
  %v1711 = vpop.f32.mrf.mxu0
  %1712 = vmatprep.mubr.f32.mxu0 0.0
  %1713 = vmatmul.mubr.f32.gmra.mxu0 %v1595
  %v1714 = vpop.f32.mrf.mxu0
  %v1715 = vadd.f32 %v1583, %v1714
  %v1716 = vpop.f32.mrf.mxu0
  %1717 = vmatprep.mubr.f32.mxu0 0.0
  %1718 = vmatmul.mubr.f32.gmra.mxu0 %v1598
  %v1719 = vpop.f32.mrf.mxu0
  %v1720 = vadd.f32 %v1583, %v1719
  %v1721 = vpop.f32.mrf.mxu0
  %1722 = vmatprep.mubr.f32.mxu0 0.0
  %1723 = vmatmul.mubr.f32.gmra.mxu0 %v1601
  %v1724 = vpop.f32.mrf.mxu0
  %v1725 = vadd.f32 %v1583, %v1724
  %v1726 = vpop.f32.mrf.mxu0
  %1727 = vmatprep.mubr.f32.mxu0 0.0
  %1728 = vmatmul.mubr.f32.gmra.mxu0 %v1604
  %v1729 = vpop.f32.mrf.mxu0
  %v1730 = vadd.f32 %v1583, %v1729
  %v1731 = vpop.f32.mrf.mxu0
  %1732 = vmatprep.mubr.f32.mxu0 0.0
  %1733 = vmatmul.mubr.f32.gmra.mxu0 %v1607
  %v1734 = vpop.f32.mrf.mxu0
  %v1735 = vadd.f32 %v1583, %v1734
  %v1736 = vpop.f32.mrf.mxu0
  %1737 = vmatprep.mubr.f32.mxu0 0.0
  %1738 = vmatmul.mubr.f32.gmra.mxu0 %v1610
  %v1739 = vpop.f32.mrf.mxu0
  %v1740 = vadd.f32 %v1583, %v1739
  %v1741 = vpop.f32.mrf.mxu0
  %1742 = vmatprep.mubr.f32.mxu0 0.0
  %1743 = vmatmul.mubr.f32.gmra.mxu0 %v1613
  %v1744 = vpop.f32.mrf.mxu0
  %v1745 = vadd.f32 %v1583, %v1744
  %v1746 = vpop.f32.mrf.mxu0
  %1747 = vmatprep.mubr.f32.mxu0 0.0
  %1748 = vmatmul.mubr.f32.gmra.mxu0 %v1616
  %v1749 = vpop.f32.mrf.mxu0
  %v1750 = vadd.f32 %v1583, %v1749
  %v1751 = vpop.f32.mrf.mxu0
  %1752 = vmatprep.mubr.f32.mxu0 0.0
  %1753 = vmatmul.mubr.f32.gmra.mxu0 %v1619
  %v1754 = vpop.f32.mrf.mxu0
  %v1755 = vadd.f32 %v1583, %v1754
  %v1756 = vpop.f32.mrf.mxu0
  %1757 = vmatprep.mubr.f32.mxu0 0.0
  %1758 = vmatmul.mubr.f32.gmra.mxu0 %v1622
  %v1759 = vpop.f32.mrf.mxu0
  %v1760 = vadd.f32 %v1583, %v1759
  %v1761 = vpop.f32.mrf.mxu0
  %1762 = vmatprep.mubr.f32.mxu0 0.0
  %1763 = vmatmul.mubr.f32.gmra.mxu0 %v1625
  %v1764 = vpop.f32.mrf.mxu0
  %v1765 = vadd.f32 %v1583, %v1764
  %v1766 = vpop.f32.mrf.mxu0
  %1767 = vmatprep.mubr.f32.mxu0 0.0
  %1768 = vmatmul.mubr.f32.gmra.mxu0 %v1628
  %v1769 = vpop.f32.mrf.mxu0
  %v1770 = vadd.f32 %v1583, %v1769
  %v1771 = vpop.f32.mrf.mxu0
  %1772 = vmatprep.mubr.f32.mxu0 0.0
  %1773 = vmatmul.mubr.f32.gmra.mxu0 %v1631
  %v1774 = vpop.f32.mrf.mxu0
  %v1775 = vadd.f32 %v1583, %v1774
  %v1776 = vpop.f32.mrf.mxu0
  %1777 = vdwg.mxu0
  %v1778 = vld [vmem:[%s1] sm:$0xff]
  %v1779 = vld [vmem:[%s1 + $0x8] sm:$0xff]
  %v1780 = vld [vmem:[%s1 + $0x10] sm:$0xff]
  %v1781 = vld [vmem:[%s1 + $0x18] sm:$0xff]
  %v1782 = vld [vmem:[%s1 + $0x20] sm:$0xff]
  %v1783 = vld [vmem:[%s1 + $0x28] sm:$0xff]
  %v1784 = vld [vmem:[%s1 + $0x30] sm:$0xff]
  %v1785 = vld [vmem:[%s1 + $0x38] sm:$0xff]
  %v1786 = vld [vmem:[%s1 + $0x40] sm:$0xff]
  %v1787 = vld [vmem:[%s1 + $0x48] sm:$0xff]
  %v1788 = vld [vmem:[%s1 + $0x50] sm:$0xff]
  %v1789 = vld [vmem:[%s1 + $0x58] sm:$0xff]
  %v1790 = vld [vmem:[%s1 + $0x60] sm:$0xff]
  %v1791 = vld [vmem:[%s1 + $0x68] sm:$0xff]
  %v1792 = vld [vmem:[%s1 + $0x70] sm:$0xff]
  %v1793 = vld [vmem:[%s1 + $0x78] sm:$0xff]
  %vm1794 = vcmp.eq.s32.totalorder %v1778, 0
  %vm1795 = vcmp.eq.s32.totalorder %v1779, 0
  %vm1796 = vcmp.eq.s32.totalorder %v1780, 0
  %vm1797 = vcmp.eq.s32.totalorder %v1781, 0
  %vm1798 = vcmp.eq.s32.totalorder %v1782, 0
  %vm1799 = vcmp.eq.s32.totalorder %v1783, 0
  %vm1800 = vcmp.eq.s32.totalorder %v1784, 0
  %vm1801 = vcmp.eq.s32.totalorder %v1785, 0
  %vm1802 = vcmp.eq.s32.totalorder %v1786, 0
  %vm1803 = vcmp.eq.s32.totalorder %v1787, 0
  %vm1804 = vcmp.eq.s32.totalorder %v1788, 0
  %vm1805 = vcmp.eq.s32.totalorder %v1789, 0
  %vm1806 = vcmp.eq.s32.totalorder %v1790, 0
  %vm1807 = vcmp.eq.s32.totalorder %v1791, 0
  %vm1808 = vcmp.eq.s32.totalorder %v1792, 0
  %vm1809 = vcmp.eq.s32.totalorder %v1793, 0
  %v1810 = vsel %vm1794, 1, 0
  %v1811 = vsel %vm1795, 1, 0
  %v1812 = vsel %vm1796, 1, 0
  %v1813 = vsel %vm1797, 1, 0
  %v1814 = vsel %vm1798, 1, 0
  %v1815 = vsel %vm1799, 1, 0
  %v1816 = vsel %vm1800, 1, 0
  %v1817 = vsel %vm1801, 1, 0
  %v1818 = vsel %vm1802, 1, 0
  %v1819 = vsel %vm1803, 1, 0
  %v1820 = vsel %vm1804, 1, 0
  %v1821 = vsel %vm1805, 1, 0
  %v1822 = vsel %vm1806, 1, 0
  %v1823 = vsel %vm1807, 1, 0
  %v1824 = vsel %vm1808, 1, 0
  %v1825 = vsel %vm1809, 1, 0
  %v1826 = vcvt.s32.f32 %v1810
  %v1827 = vcvt.s32.f32 %v1811
  %v1828 = vcvt.s32.f32 %v1812
  %v1829 = vcvt.s32.f32 %v1813
  %v1830 = vcvt.s32.f32 %v1814
  %v1831 = vcvt.s32.f32 %v1815
  %v1832 = vcvt.s32.f32 %v1816
  %v1833 = vcvt.s32.f32 %v1817
  %v1834 = vcvt.s32.f32 %v1818
  %v1835 = vcvt.s32.f32 %v1819
  %v1836 = vcvt.s32.f32 %v1820
  %v1837 = vcvt.s32.f32 %v1821
  %v1838 = vcvt.s32.f32 %v1822
  %v1839 = vcvt.s32.f32 %v1823
  %v1840 = vcvt.s32.f32 %v1824
  %v1841 = vcvt.s32.f32 %v1825
  %1843 = vset.pattern.permute.xlu0 0
  %1844 = vperm.xlu0 %1843, %v1826
  %v1845 = vpop.permute.xlu0 %1844
  %1848 = vset.pattern.permute.xlu0 0
  %1849 = vperm.xlu0 %1848, %v1827
  %v1850 = vpop.permute.xlu0 %1849
  %1853 = vset.pattern.permute.xlu0 0
  %1854 = vperm.xlu0 %1853, %v1828
  %v1855 = vpop.permute.xlu0 %1854
  %1858 = vset.pattern.permute.xlu0 0
  %1859 = vperm.xlu0 %1858, %v1829
  %v1860 = vpop.permute.xlu0 %1859
  %1863 = vset.pattern.permute.xlu0 0
  %1864 = vperm.xlu0 %1863, %v1830
  %v1865 = vpop.permute.xlu0 %1864
  %1868 = vset.pattern.permute.xlu0 0
  %1869 = vperm.xlu0 %1868, %v1831
  %v1870 = vpop.permute.xlu0 %1869
  %1873 = vset.pattern.permute.xlu0 0
  %1874 = vperm.xlu0 %1873, %v1832
  %v1875 = vpop.permute.xlu0 %1874
  %1878 = vset.pattern.permute.xlu0 0
  %1879 = vperm.xlu0 %1878, %v1833
  %v1880 = vpop.permute.xlu0 %1879
  %1883 = vset.pattern.permute.xlu0 0
  %1884 = vperm.xlu0 %1883, %v1834
  %v1885 = vpop.permute.xlu0 %1884
  %1888 = vset.pattern.permute.xlu0 0
  %1889 = vperm.xlu0 %1888, %v1835
  %v1890 = vpop.permute.xlu0 %1889
  %1893 = vset.pattern.permute.xlu0 0
  %1894 = vperm.xlu0 %1893, %v1836
  %v1895 = vpop.permute.xlu0 %1894
  %1898 = vset.pattern.permute.xlu0 0
  %1899 = vperm.xlu0 %1898, %v1837
  %v1900 = vpop.permute.xlu0 %1899
  %1903 = vset.pattern.permute.xlu0 0
  %1904 = vperm.xlu0 %1903, %v1838
  %v1905 = vpop.permute.xlu0 %1904
  %1908 = vset.pattern.permute.xlu0 0
  %1909 = vperm.xlu0 %1908, %v1839
  %v1910 = vpop.permute.xlu0 %1909
  %1913 = vset.pattern.permute.xlu0 0
  %1914 = vperm.xlu0 %1913, %v1840
  %v1915 = vpop.permute.xlu0 %1914
  %1918 = vset.pattern.permute.xlu0 0
  %1919 = vperm.xlu0 %1918, %v1841
  %v1920 = vpop.permute.xlu0 %1919
  %v1922 = vmul.f32 %v1700, %v1845
  %v1923 = vmul.f32 %v1705, %v1850
  %v1924 = vmul.f32 %v1710, %v1855
  %v1925 = vmul.f32 %v1715, %v1860
  %v1926 = vmul.f32 %v1720, %v1865
  %v1927 = vmul.f32 %v1725, %v1870
  %v1928 = vmul.f32 %v1730, %v1875
  %v1929 = vmul.f32 %v1735, %v1880
  %v1930 = vmul.f32 %v1740, %v1885
  %v1931 = vmul.f32 %v1745, %v1890
  %v1932 = vmul.f32 %v1750, %v1895
  %v1933 = vmul.f32 %v1755, %v1900
  %v1934 = vmul.f32 %v1760, %v1905
  %v1935 = vmul.f32 %v1765, %v1910
  %v1936 = vmul.f32 %v1770, %v1915
  %v1937 = vmul.f32 %v1775, %v1920
  %v1938 = vsel %vm58, %v1922, 0.0
  %v1939 = vsel %vm58, %v1923, 0.0
  %v1940 = vadd.f32 %v1938, %v1939
  %v1941 = vsel %vm58, %v1924, 0.0
  %v1942 = vadd.f32 %v1940, %v1941
  %v1943 = vsel %vm58, %v1925, 0.0
  %v1944 = vadd.f32 %v1942, %v1943
  %v1945 = vsel %vm58, %v1926, 0.0
  %v1946 = vadd.f32 %v1944, %v1945
  %v1947 = vsel %vm58, %v1927, 0.0
  %v1948 = vadd.f32 %v1946, %v1947
  %v1949 = vsel %vm58, %v1928, 0.0
  %v1950 = vadd.f32 %v1948, %v1949
  %v1951 = vsel %vm58, %v1929, 0.0
  %v1952 = vadd.f32 %v1950, %v1951
  %v1953 = vsel %vm58, %v1930, 0.0
  %v1954 = vadd.f32 %v1952, %v1953
  %v1955 = vsel %vm58, %v1931, 0.0
  %v1956 = vadd.f32 %v1954, %v1955
  %v1957 = vsel %vm58, %v1932, 0.0
  %v1958 = vadd.f32 %v1956, %v1957
  %v1959 = vsel %vm58, %v1933, 0.0
  %v1960 = vadd.f32 %v1958, %v1959
  %v1961 = vsel %vm58, %v1934, 0.0
  %v1962 = vadd.f32 %v1960, %v1961
  %v1963 = vsel %vm58, %v1935, 0.0
  %v1964 = vadd.f32 %v1962, %v1963
  %v1965 = vsel %vm58, %v1936, 0.0
  %v1966 = vadd.f32 %v1964, %v1965
  %v1967 = vsel %vm58, %v1937, 0.0
  %v1968 = vadd.f32 %v1966, %v1967
  %1969 = vadd.xlane.f32.xlu0 %v1968
  %v1970 = vpop.xlane.xlu0 %1969
  %v1971 = vrot.slane %v1970, 4
  %v1972 = vadd.f32 %v1970, %v1971
  %v1973 = vrot.slane %v1972, 2
  %v1974 = vadd.f32 %v1972, %v1973
  %v1975 = vrot.slane %v1974, 1
  %v1976 = vadd.f32 %v1974, %v1975
  %s1977 = vtos %v1976
  %v1978 = vrcp.pop 1024.0
  %s1979 = vtos %v1978
  %s1980 = smul.f32 %s1977, %s1979
  %v1981 = vstv %s1980
  %v1982 = vsub.f32 %v1700, %v1981
  %v1983 = vsub.f32 %v1705, %v1981
  %v1984 = vsub.f32 %v1710, %v1981
  %v1985 = vsub.f32 %v1715, %v1981
  %v1986 = vsub.f32 %v1720, %v1981
  %v1987 = vsub.f32 %v1725, %v1981
  %v1988 = vsub.f32 %v1730, %v1981
  %v1989 = vsub.f32 %v1735, %v1981
  %v1990 = vsub.f32 %v1740, %v1981
  %v1991 = vsub.f32 %v1745, %v1981
  %v1992 = vsub.f32 %v1750, %v1981
  %v1993 = vsub.f32 %v1755, %v1981
  %v1994 = vsub.f32 %v1760, %v1981
  %v1995 = vsub.f32 %v1765, %v1981
  %v1996 = vsub.f32 %v1770, %v1981
  %v1997 = vsub.f32 %v1775, %v1981
  %v1998 = vmul.f32 %v1982, %v1982
  %v1999 = vmul.f32 %v1983, %v1983
  %v2000 = vmul.f32 %v1984, %v1984
  %v2001 = vmul.f32 %v1985, %v1985
  %v2002 = vmul.f32 %v1986, %v1986
  %v2003 = vmul.f32 %v1987, %v1987
  %v2004 = vmul.f32 %v1988, %v1988
  %v2005 = vmul.f32 %v1989, %v1989
  %v2006 = vmul.f32 %v1990, %v1990
  %v2007 = vmul.f32 %v1991, %v1991
  %v2008 = vmul.f32 %v1992, %v1992
  %v2009 = vmul.f32 %v1993, %v1993
  %v2010 = vmul.f32 %v1994, %v1994
  %v2011 = vmul.f32 %v1995, %v1995
  %v2012 = vmul.f32 %v1996, %v1996
  %v2013 = vmul.f32 %v1997, %v1997
  %v2014 = vmul.f32 %v1998, %v1845
  %v2015 = vmul.f32 %v1999, %v1850
  %v2016 = vmul.f32 %v2000, %v1855
  %v2017 = vmul.f32 %v2001, %v1860
  %v2018 = vmul.f32 %v2002, %v1865
  %v2019 = vmul.f32 %v2003, %v1870
  %v2020 = vmul.f32 %v2004, %v1875
  %v2021 = vmul.f32 %v2005, %v1880
  %v2022 = vmul.f32 %v2006, %v1885
  %v2023 = vmul.f32 %v2007, %v1890
  %v2024 = vmul.f32 %v2008, %v1895
  %v2025 = vmul.f32 %v2009, %v1900
  %v2026 = vmul.f32 %v2010, %v1905
  %v2027 = vmul.f32 %v2011, %v1910
  %v2028 = vmul.f32 %v2012, %v1915
  %v2029 = vmul.f32 %v2013, %v1920
  %v2030 = vsel %vm58, %v2014, 0.0
  %v2031 = vsel %vm58, %v2015, 0.0
  %v2032 = vadd.f32 %v2030, %v2031
  %v2033 = vsel %vm58, %v2016, 0.0
  %v2034 = vadd.f32 %v2032, %v2033
  %v2035 = vsel %vm58, %v2017, 0.0
  %v2036 = vadd.f32 %v2034, %v2035
  %v2037 = vsel %vm58, %v2018, 0.0
  %v2038 = vadd.f32 %v2036, %v2037
  %v2039 = vsel %vm58, %v2019, 0.0
  %v2040 = vadd.f32 %v2038, %v2039
  %v2041 = vsel %vm58, %v2020, 0.0
  %v2042 = vadd.f32 %v2040, %v2041
  %v2043 = vsel %vm58, %v2021, 0.0
  %v2044 = vadd.f32 %v2042, %v2043
  %v2045 = vsel %vm58, %v2022, 0.0
  %v2046 = vadd.f32 %v2044, %v2045
  %v2047 = vsel %vm58, %v2023, 0.0
  %v2048 = vadd.f32 %v2046, %v2047
  %v2049 = vsel %vm58, %v2024, 0.0
  %v2050 = vadd.f32 %v2048, %v2049
  %v2051 = vsel %vm58, %v2025, 0.0
  %v2052 = vadd.f32 %v2050, %v2051
  %v2053 = vsel %vm58, %v2026, 0.0
  %v2054 = vadd.f32 %v2052, %v2053
  %v2055 = vsel %vm58, %v2027, 0.0
  %v2056 = vadd.f32 %v2054, %v2055
  %v2057 = vsel %vm58, %v2028, 0.0
  %v2058 = vadd.f32 %v2056, %v2057
  %v2059 = vsel %vm58, %v2029, 0.0
  %v2060 = vadd.f32 %v2058, %v2059
  %2061 = vadd.xlane.f32.xlu0 %v2060
  %v2062 = vpop.xlane.xlu0 %2061
  %v2063 = vrot.slane %v2062, 4
  %v2064 = vadd.f32 %v2062, %v2063
  %v2065 = vrot.slane %v2064, 2
  %v2066 = vadd.f32 %v2064, %v2065
  %v2067 = vrot.slane %v2066, 1
  %v2068 = vadd.f32 %v2066, %v2067
  %s2069 = vtos %v2068
  %v2070 = vrcp.pop 1024.0
  %s2071 = vtos %v2070
  %s2072 = smul.f32 %s2069, %s2071
  %v2073 = vsel %vm1794, %v1981, 0.0
  %v2074 = vsel %vm1795, %v1981, 0.0
  %v2075 = vsel %vm1796, %v1981, 0.0
  %v2076 = vsel %vm1797, %v1981, 0.0
  %v2077 = vsel %vm1798, %v1981, 0.0
  %v2078 = vsel %vm1799, %v1981, 0.0
  %v2079 = vsel %vm1800, %v1981, 0.0
  %v2080 = vsel %vm1801, %v1981, 0.0
  %v2081 = vsel %vm1802, %v1981, 0.0
  %v2082 = vsel %vm1803, %v1981, 0.0
  %v2083 = vsel %vm1804, %v1981, 0.0
  %v2084 = vsel %vm1805, %v1981, 0.0
  %v2085 = vsel %vm1806, %v1981, 0.0
  %v2086 = vsel %vm1807, %v1981, 0.0
  %v2087 = vsel %vm1808, %v1981, 0.0
  %v2088 = vsel %vm1809, %v1981, 0.0
  %s2089 = sadd.f32 %s2072, 1e-08
  %v2090 = vstv %s2089
  %v2091 = vrsqrt.pop %v2090
  %s2092 = vtos %v2091
  %v2093 = vstv %s2092
  %v2094 = vsel %vm1794, %v2093, 0.0
  %v2095 = vsel %vm1795, %v2093, 0.0
  %v2096 = vsel %vm1796, %v2093, 0.0
  %v2097 = vsel %vm1797, %v2093, 0.0
  %v2098 = vsel %vm1798, %v2093, 0.0
  %v2099 = vsel %vm1799, %v2093, 0.0
  %v2100 = vsel %vm1800, %v2093, 0.0
  %v2101 = vsel %vm1801, %v2093, 0.0
  %v2102 = vsel %vm1802, %v2093, 0.0
  %v2103 = vsel %vm1803, %v2093, 0.0
  %v2104 = vsel %vm1804, %v2093, 0.0
  %v2105 = vsel %vm1805, %v2093, 0.0
  %v2106 = vsel %vm1806, %v2093, 0.0
  %v2107 = vsel %vm1807, %v2093, 0.0
  %v2108 = vsel %vm1808, %v2093, 0.0
  %v2109 = vsel %vm1809, %v2093, 0.0
  %vm2110 = vcmp.eq.s32.totalorder %v1778, 1
  %vm2111 = vcmp.eq.s32.totalorder %v1779, 1
  %vm2112 = vcmp.eq.s32.totalorder %v1780, 1
  %vm2113 = vcmp.eq.s32.totalorder %v1781, 1
  %vm2114 = vcmp.eq.s32.totalorder %v1782, 1
  %vm2115 = vcmp.eq.s32.totalorder %v1783, 1
  %vm2116 = vcmp.eq.s32.totalorder %v1784, 1
  %vm2117 = vcmp.eq.s32.totalorder %v1785, 1
  %vm2118 = vcmp.eq.s32.totalorder %v1786, 1
  %vm2119 = vcmp.eq.s32.totalorder %v1787, 1
  %vm2120 = vcmp.eq.s32.totalorder %v1788, 1
  %vm2121 = vcmp.eq.s32.totalorder %v1789, 1
  %vm2122 = vcmp.eq.s32.totalorder %v1790, 1
  %vm2123 = vcmp.eq.s32.totalorder %v1791, 1
  %vm2124 = vcmp.eq.s32.totalorder %v1792, 1
  %vm2125 = vcmp.eq.s32.totalorder %v1793, 1
  %v2126 = vsel %vm2110, 1, 0
  %v2127 = vsel %vm2111, 1, 0
  %v2128 = vsel %vm2112, 1, 0
  %v2129 = vsel %vm2113, 1, 0
  %v2130 = vsel %vm2114, 1, 0
  %v2131 = vsel %vm2115, 1, 0
  %v2132 = vsel %vm2116, 1, 0
  %v2133 = vsel %vm2117, 1, 0
  %v2134 = vsel %vm2118, 1, 0
  %v2135 = vsel %vm2119, 1, 0
  %v2136 = vsel %vm2120, 1, 0
  %v2137 = vsel %vm2121, 1, 0
  %v2138 = vsel %vm2122, 1, 0
  %v2139 = vsel %vm2123, 1, 0
  %v2140 = vsel %vm2124, 1, 0
  %v2141 = vsel %vm2125, 1, 0
  %v2142 = vcvt.s32.f32 %v2126
  %v2143 = vcvt.s32.f32 %v2127
  %v2144 = vcvt.s32.f32 %v2128
  %v2145 = vcvt.s32.f32 %v2129
  %v2146 = vcvt.s32.f32 %v2130
  %v2147 = vcvt.s32.f32 %v2131
  %v2148 = vcvt.s32.f32 %v2132
  %v2149 = vcvt.s32.f32 %v2133
  %v2150 = vcvt.s32.f32 %v2134
  %v2151 = vcvt.s32.f32 %v2135
  %v2152 = vcvt.s32.f32 %v2136
  %v2153 = vcvt.s32.f32 %v2137
  %v2154 = vcvt.s32.f32 %v2138
  %v2155 = vcvt.s32.f32 %v2139
  %v2156 = vcvt.s32.f32 %v2140
  %v2157 = vcvt.s32.f32 %v2141
  %2159 = vset.pattern.permute.xlu0 0
  %2160 = vperm.xlu0 %2159, %v2142
  %v2161 = vpop.permute.xlu0 %2160
  %2164 = vset.pattern.permute.xlu0 0
  %2165 = vperm.xlu0 %2164, %v2143
  %v2166 = vpop.permute.xlu0 %2165
  %2169 = vset.pattern.permute.xlu0 0
  %2170 = vperm.xlu0 %2169, %v2144
  %v2171 = vpop.permute.xlu0 %2170
  %2174 = vset.pattern.permute.xlu0 0
  %2175 = vperm.xlu0 %2174, %v2145
  %v2176 = vpop.permute.xlu0 %2175
  %2179 = vset.pattern.permute.xlu0 0
  %2180 = vperm.xlu0 %2179, %v2146
  %v2181 = vpop.permute.xlu0 %2180
  %2184 = vset.pattern.permute.xlu0 0
  %2185 = vperm.xlu0 %2184, %v2147
  %v2186 = vpop.permute.xlu0 %2185
  %2189 = vset.pattern.permute.xlu0 0
  %2190 = vperm.xlu0 %2189, %v2148
  %v2191 = vpop.permute.xlu0 %2190
  %2194 = vset.pattern.permute.xlu0 0
  %2195 = vperm.xlu0 %2194, %v2149
  %v2196 = vpop.permute.xlu0 %2195
  %2199 = vset.pattern.permute.xlu0 0
  %2200 = vperm.xlu0 %2199, %v2150
  %v2201 = vpop.permute.xlu0 %2200
  %2204 = vset.pattern.permute.xlu0 0
  %2205 = vperm.xlu0 %2204, %v2151
  %v2206 = vpop.permute.xlu0 %2205
  %2209 = vset.pattern.permute.xlu0 0
  %2210 = vperm.xlu0 %2209, %v2152
  %v2211 = vpop.permute.xlu0 %2210
  %2214 = vset.pattern.permute.xlu0 0
  %2215 = vperm.xlu0 %2214, %v2153
  %v2216 = vpop.permute.xlu0 %2215
  %2219 = vset.pattern.permute.xlu0 0
  %2220 = vperm.xlu0 %2219, %v2154
  %v2221 = vpop.permute.xlu0 %2220
  %2224 = vset.pattern.permute.xlu0 0
  %2225 = vperm.xlu0 %2224, %v2155
  %v2226 = vpop.permute.xlu0 %2225
  %2229 = vset.pattern.permute.xlu0 0
  %2230 = vperm.xlu0 %2229, %v2156
  %v2231 = vpop.permute.xlu0 %2230
  %2234 = vset.pattern.permute.xlu0 0
  %2235 = vperm.xlu0 %2234, %v2157
  %v2236 = vpop.permute.xlu0 %2235
  %v2238 = vmul.f32 %v1700, %v2161
  %v2239 = vmul.f32 %v1705, %v2166
  %v2240 = vmul.f32 %v1710, %v2171
  %v2241 = vmul.f32 %v1715, %v2176
  %v2242 = vmul.f32 %v1720, %v2181
  %v2243 = vmul.f32 %v1725, %v2186
  %v2244 = vmul.f32 %v1730, %v2191
  %v2245 = vmul.f32 %v1735, %v2196
  %v2246 = vmul.f32 %v1740, %v2201
  %v2247 = vmul.f32 %v1745, %v2206
  %v2248 = vmul.f32 %v1750, %v2211
  %v2249 = vmul.f32 %v1755, %v2216
  %v2250 = vmul.f32 %v1760, %v2221
  %v2251 = vmul.f32 %v1765, %v2226
  %v2252 = vmul.f32 %v1770, %v2231
  %v2253 = vmul.f32 %v1775, %v2236
  %v2254 = vsel %vm58, %v2238, 0.0
  %v2255 = vsel %vm58, %v2239, 0.0
  %v2256 = vadd.f32 %v2254, %v2255
  %v2257 = vsel %vm58, %v2240, 0.0
  %v2258 = vadd.f32 %v2256, %v2257
  %v2259 = vsel %vm58, %v2241, 0.0
  %v2260 = vadd.f32 %v2258, %v2259
  %v2261 = vsel %vm58, %v2242, 0.0
  %v2262 = vadd.f32 %v2260, %v2261
  %v2263 = vsel %vm58, %v2243, 0.0
  %v2264 = vadd.f32 %v2262, %v2263
  %v2265 = vsel %vm58, %v2244, 0.0
  %v2266 = vadd.f32 %v2264, %v2265
  %v2267 = vsel %vm58, %v2245, 0.0
  %v2268 = vadd.f32 %v2266, %v2267
  %v2269 = vsel %vm58, %v2246, 0.0
  %v2270 = vadd.f32 %v2268, %v2269
  %v2271 = vsel %vm58, %v2247, 0.0
  %v2272 = vadd.f32 %v2270, %v2271
  %v2273 = vsel %vm58, %v2248, 0.0
  %v2274 = vadd.f32 %v2272, %v2273
  %v2275 = vsel %vm58, %v2249, 0.0
  %v2276 = vadd.f32 %v2274, %v2275
  %v2277 = vsel %vm58, %v2250, 0.0
  %v2278 = vadd.f32 %v2276, %v2277
  %v2279 = vsel %vm58, %v2251, 0.0
  %v2280 = vadd.f32 %v2278, %v2279
  %v2281 = vsel %vm58, %v2252, 0.0
  %v2282 = vadd.f32 %v2280, %v2281
  %v2283 = vsel %vm58, %v2253, 0.0
  %v2284 = vadd.f32 %v2282, %v2283
  %2285 = vadd.xlane.f32.xlu0 %v2284
  %v2286 = vpop.xlane.xlu0 %2285
  %v2287 = vrot.slane %v2286, 4
  %v2288 = vadd.f32 %v2286, %v2287
  %v2289 = vrot.slane %v2288, 2
  %v2290 = vadd.f32 %v2288, %v2289
  %v2291 = vrot.slane %v2290, 1
  %v2292 = vadd.f32 %v2290, %v2291
  %s2293 = vtos %v2292
  %v2294 = vrcp.pop 1024.0
  %s2295 = vtos %v2294
  %s2296 = smul.f32 %s2293, %s2295
  %v2297 = vstv %s2296
  %v2298 = vsub.f32 %v1700, %v2297
  %v2299 = vsub.f32 %v1705, %v2297
  %v2300 = vsub.f32 %v1710, %v2297
  %v2301 = vsub.f32 %v1715, %v2297
  %v2302 = vsub.f32 %v1720, %v2297
  %v2303 = vsub.f32 %v1725, %v2297
  %v2304 = vsub.f32 %v1730, %v2297
  %v2305 = vsub.f32 %v1735, %v2297
  %v2306 = vsub.f32 %v1740, %v2297
  %v2307 = vsub.f32 %v1745, %v2297
  %v2308 = vsub.f32 %v1750, %v2297
  %v2309 = vsub.f32 %v1755, %v2297
  %v2310 = vsub.f32 %v1760, %v2297
  %v2311 = vsub.f32 %v1765, %v2297
  %v2312 = vsub.f32 %v1770, %v2297
  %v2313 = vsub.f32 %v1775, %v2297
  %v2314 = vmul.f32 %v2298, %v2298
  %v2315 = vmul.f32 %v2299, %v2299
  %v2316 = vmul.f32 %v2300, %v2300
  %v2317 = vmul.f32 %v2301, %v2301
  %v2318 = vmul.f32 %v2302, %v2302
  %v2319 = vmul.f32 %v2303, %v2303
  %v2320 = vmul.f32 %v2304, %v2304
  %v2321 = vmul.f32 %v2305, %v2305
  %v2322 = vmul.f32 %v2306, %v2306
  %v2323 = vmul.f32 %v2307, %v2307
  %v2324 = vmul.f32 %v2308, %v2308
  %v2325 = vmul.f32 %v2309, %v2309
  %v2326 = vmul.f32 %v2310, %v2310
  %v2327 = vmul.f32 %v2311, %v2311
  %v2328 = vmul.f32 %v2312, %v2312
  %v2329 = vmul.f32 %v2313, %v2313
  %v2330 = vmul.f32 %v2314, %v2161
  %v2331 = vmul.f32 %v2315, %v2166
  %v2332 = vmul.f32 %v2316, %v2171
  %v2333 = vmul.f32 %v2317, %v2176
  %v2334 = vmul.f32 %v2318, %v2181
  %v2335 = vmul.f32 %v2319, %v2186
  %v2336 = vmul.f32 %v2320, %v2191
  %v2337 = vmul.f32 %v2321, %v2196
  %v2338 = vmul.f32 %v2322, %v2201
  %v2339 = vmul.f32 %v2323, %v2206
  %v2340 = vmul.f32 %v2324, %v2211
  %v2341 = vmul.f32 %v2325, %v2216
  %v2342 = vmul.f32 %v2326, %v2221
  %v2343 = vmul.f32 %v2327, %v2226
  %v2344 = vmul.f32 %v2328, %v2231
  %v2345 = vmul.f32 %v2329, %v2236
  %v2346 = vsel %vm58, %v2330, 0.0
  %v2347 = vsel %vm58, %v2331, 0.0
  %v2348 = vadd.f32 %v2346, %v2347
  %v2349 = vsel %vm58, %v2332, 0.0
  %v2350 = vadd.f32 %v2348, %v2349
  %v2351 = vsel %vm58, %v2333, 0.0
  %v2352 = vadd.f32 %v2350, %v2351
  %v2353 = vsel %vm58, %v2334, 0.0
  %v2354 = vadd.f32 %v2352, %v2353
  %v2355 = vsel %vm58, %v2335, 0.0
  %v2356 = vadd.f32 %v2354, %v2355
  %v2357 = vsel %vm58, %v2336, 0.0
  %v2358 = vadd.f32 %v2356, %v2357
  %v2359 = vsel %vm58, %v2337, 0.0
  %v2360 = vadd.f32 %v2358, %v2359
  %v2361 = vsel %vm58, %v2338, 0.0
  %v2362 = vadd.f32 %v2360, %v2361
  %v2363 = vsel %vm58, %v2339, 0.0
  %v2364 = vadd.f32 %v2362, %v2363
  %v2365 = vsel %vm58, %v2340, 0.0
  %v2366 = vadd.f32 %v2364, %v2365
  %v2367 = vsel %vm58, %v2341, 0.0
  %v2368 = vadd.f32 %v2366, %v2367
  %v2369 = vsel %vm58, %v2342, 0.0
  %v2370 = vadd.f32 %v2368, %v2369
  %v2371 = vsel %vm58, %v2343, 0.0
  %v2372 = vadd.f32 %v2370, %v2371
  %v2373 = vsel %vm58, %v2344, 0.0
  %v2374 = vadd.f32 %v2372, %v2373
  %v2375 = vsel %vm58, %v2345, 0.0
  %v2376 = vadd.f32 %v2374, %v2375
  %2377 = vadd.xlane.f32.xlu0 %v2376
  %v2378 = vpop.xlane.xlu0 %2377
  %v2379 = vrot.slane %v2378, 4
  %v2380 = vadd.f32 %v2378, %v2379
  %v2381 = vrot.slane %v2380, 2
  %v2382 = vadd.f32 %v2380, %v2381
  %v2383 = vrot.slane %v2382, 1
  %v2384 = vadd.f32 %v2382, %v2383
  %s2385 = vtos %v2384
  %v2386 = vrcp.pop 1024.0
  %s2387 = vtos %v2386
  %s2388 = smul.f32 %s2385, %s2387
  %v2389 = vsel %vm2110, %v2297, %v2073
  %v2390 = vsel %vm2111, %v2297, %v2074
  %v2391 = vsel %vm2112, %v2297, %v2075
  %v2392 = vsel %vm2113, %v2297, %v2076
  %v2393 = vsel %vm2114, %v2297, %v2077
  %v2394 = vsel %vm2115, %v2297, %v2078
  %v2395 = vsel %vm2116, %v2297, %v2079
  %v2396 = vsel %vm2117, %v2297, %v2080
  %v2397 = vsel %vm2118, %v2297, %v2081
  %v2398 = vsel %vm2119, %v2297, %v2082
  %v2399 = vsel %vm2120, %v2297, %v2083
  %v2400 = vsel %vm2121, %v2297, %v2084
  %v2401 = vsel %vm2122, %v2297, %v2085
  %v2402 = vsel %vm2123, %v2297, %v2086
  %v2403 = vsel %vm2124, %v2297, %v2087
  %v2404 = vsel %vm2125, %v2297, %v2088
  %s2405 = sadd.f32 %s2388, 1e-08
  %v2406 = vstv %s2405
  %v2407 = vrsqrt.pop %v2406
  %s2408 = vtos %v2407
  %v2409 = vstv %s2408
  %v2410 = vsel %vm2110, %v2409, %v2094
  %v2411 = vsel %vm2111, %v2409, %v2095
  %v2412 = vsel %vm2112, %v2409, %v2096
  %v2413 = vsel %vm2113, %v2409, %v2097
  %v2414 = vsel %vm2114, %v2409, %v2098
  %v2415 = vsel %vm2115, %v2409, %v2099
  %v2416 = vsel %vm2116, %v2409, %v2100
  %v2417 = vsel %vm2117, %v2409, %v2101
  %v2418 = vsel %vm2118, %v2409, %v2102
  %v2419 = vsel %vm2119, %v2409, %v2103
  %v2420 = vsel %vm2120, %v2409, %v2104
  %v2421 = vsel %vm2121, %v2409, %v2105
  %v2422 = vsel %vm2122, %v2409, %v2106
  %v2423 = vsel %vm2123, %v2409, %v2107
  %v2424 = vsel %vm2124, %v2409, %v2108
  %v2425 = vsel %vm2125, %v2409, %v2109
  %2427 = vset.pattern.permute.xlu0 0
  %2428 = vperm.xlu0 %2427, %v2389
  %v2429 = vpop.permute.xlu0 %2428
  %2432 = vset.pattern.permute.xlu0 0
  %2433 = vperm.xlu0 %2432, %v2390
  %v2434 = vpop.permute.xlu0 %2433
  %2437 = vset.pattern.permute.xlu0 0
  %2438 = vperm.xlu0 %2437, %v2391
  %v2439 = vpop.permute.xlu0 %2438
  %2442 = vset.pattern.permute.xlu0 0
  %2443 = vperm.xlu0 %2442, %v2392
  %v2444 = vpop.permute.xlu0 %2443
  %2447 = vset.pattern.permute.xlu0 0
  %2448 = vperm.xlu0 %2447, %v2393
  %v2449 = vpop.permute.xlu0 %2448
  %2452 = vset.pattern.permute.xlu0 0
  %2453 = vperm.xlu0 %2452, %v2394
  %v2454 = vpop.permute.xlu0 %2453
  %2457 = vset.pattern.permute.xlu0 0
  %2458 = vperm.xlu0 %2457, %v2395
  %v2459 = vpop.permute.xlu0 %2458
  %2462 = vset.pattern.permute.xlu0 0
  %2463 = vperm.xlu0 %2462, %v2396
  %v2464 = vpop.permute.xlu0 %2463
  %2467 = vset.pattern.permute.xlu0 0
  %2468 = vperm.xlu0 %2467, %v2397
  %v2469 = vpop.permute.xlu0 %2468
  %2472 = vset.pattern.permute.xlu0 0
  %2473 = vperm.xlu0 %2472, %v2398
  %v2474 = vpop.permute.xlu0 %2473
  %2477 = vset.pattern.permute.xlu0 0
  %2478 = vperm.xlu0 %2477, %v2399
  %v2479 = vpop.permute.xlu0 %2478
  %2482 = vset.pattern.permute.xlu0 0
  %2483 = vperm.xlu0 %2482, %v2400
  %v2484 = vpop.permute.xlu0 %2483
  %2487 = vset.pattern.permute.xlu0 0
  %2488 = vperm.xlu0 %2487, %v2401
  %v2489 = vpop.permute.xlu0 %2488
  %2492 = vset.pattern.permute.xlu0 0
  %2493 = vperm.xlu0 %2492, %v2402
  %v2494 = vpop.permute.xlu0 %2493
  %2497 = vset.pattern.permute.xlu0 0
  %2498 = vperm.xlu0 %2497, %v2403
  %v2499 = vpop.permute.xlu0 %2498
  %2502 = vset.pattern.permute.xlu0 0
  %2503 = vperm.xlu0 %2502, %v2404
  %v2504 = vpop.permute.xlu0 %2503
  %v2506 = vsub.f32 %v1700, %v2429
  %v2507 = vsub.f32 %v1705, %v2434
  %v2508 = vsub.f32 %v1710, %v2439
  %v2509 = vsub.f32 %v1715, %v2444
  %v2510 = vsub.f32 %v1720, %v2449
  %v2511 = vsub.f32 %v1725, %v2454
  %v2512 = vsub.f32 %v1730, %v2459
  %v2513 = vsub.f32 %v1735, %v2464
  %v2514 = vsub.f32 %v1740, %v2469
  %v2515 = vsub.f32 %v1745, %v2474
  %v2516 = vsub.f32 %v1750, %v2479
  %v2517 = vsub.f32 %v1755, %v2484
  %v2518 = vsub.f32 %v1760, %v2489
  %v2519 = vsub.f32 %v1765, %v2494
  %v2520 = vsub.f32 %v1770, %v2499
  %v2521 = vsub.f32 %v1775, %v2504
  %2523 = vset.pattern.permute.xlu0 0
  %2524 = vperm.xlu0 %2523, %v2410
  %v2525 = vpop.permute.xlu0 %2524
  %2528 = vset.pattern.permute.xlu0 0
  %2529 = vperm.xlu0 %2528, %v2411
  %v2530 = vpop.permute.xlu0 %2529
  %2533 = vset.pattern.permute.xlu0 0
  %2534 = vperm.xlu0 %2533, %v2412
  %v2535 = vpop.permute.xlu0 %2534
  %2538 = vset.pattern.permute.xlu0 0
  %2539 = vperm.xlu0 %2538, %v2413
  %v2540 = vpop.permute.xlu0 %2539
  %2543 = vset.pattern.permute.xlu0 0
  %2544 = vperm.xlu0 %2543, %v2414
  %v2545 = vpop.permute.xlu0 %2544
  %2548 = vset.pattern.permute.xlu0 0
  %2549 = vperm.xlu0 %2548, %v2415
  %v2550 = vpop.permute.xlu0 %2549
  %2553 = vset.pattern.permute.xlu0 0
  %2554 = vperm.xlu0 %2553, %v2416
  %v2555 = vpop.permute.xlu0 %2554
  %2558 = vset.pattern.permute.xlu0 0
  %2559 = vperm.xlu0 %2558, %v2417
  %v2560 = vpop.permute.xlu0 %2559
  %2563 = vset.pattern.permute.xlu0 0
  %2564 = vperm.xlu0 %2563, %v2418
  %v2565 = vpop.permute.xlu0 %2564
  %2568 = vset.pattern.permute.xlu0 0
  %2569 = vperm.xlu0 %2568, %v2419
  %v2570 = vpop.permute.xlu0 %2569
  %2573 = vset.pattern.permute.xlu0 0
  %2574 = vperm.xlu0 %2573, %v2420
  %v2575 = vpop.permute.xlu0 %2574
  %2578 = vset.pattern.permute.xlu0 0
  %2579 = vperm.xlu0 %2578, %v2421
  %v2580 = vpop.permute.xlu0 %2579
  %2583 = vset.pattern.permute.xlu0 0
  %2584 = vperm.xlu0 %2583, %v2422
  %v2585 = vpop.permute.xlu0 %2584
  %2588 = vset.pattern.permute.xlu0 0
  %2589 = vperm.xlu0 %2588, %v2423
  %v2590 = vpop.permute.xlu0 %2589
  %2593 = vset.pattern.permute.xlu0 0
  %2594 = vperm.xlu0 %2593, %v2424
  %v2595 = vpop.permute.xlu0 %2594
  %2598 = vset.pattern.permute.xlu0 0
  %2599 = vperm.xlu0 %2598, %v2425
  %v2600 = vpop.permute.xlu0 %2599
  %v2602 = vmul.f32 %v2506, %v2525
  %v2603 = vmul.f32 %v2507, %v2530
  %v2604 = vmul.f32 %v2508, %v2535
  %v2605 = vmul.f32 %v2509, %v2540
  %v2606 = vmul.f32 %v2510, %v2545
  %v2607 = vmul.f32 %v2511, %v2550
  %v2608 = vmul.f32 %v2512, %v2555
  %v2609 = vmul.f32 %v2513, %v2560
  %v2610 = vmul.f32 %v2514, %v2565
  %v2611 = vmul.f32 %v2515, %v2570
  %v2612 = vmul.f32 %v2516, %v2575
  %v2613 = vmul.f32 %v2517, %v2580
  %v2614 = vmul.f32 %v2518, %v2585
  %v2615 = vmul.f32 %v2519, %v2590
  %v2616 = vmul.f32 %v2520, %v2595
  %v2617 = vmul.f32 %v2521, %v2600
  %v2618 = vld [vmem:[%s7] sm:$0x1]
  %v2620 = vlaneseq
  %v2621 = vshrl.u32 %v2620, 7
  %v2622 = vsub.s32 0, %v2621
  %v2623 = vrot.slane %v2618, %v2622
  %v2625 = vmul.f32 %v2602, %v2623
  %v2626 = vmul.f32 %v2603, %v2623
  %v2627 = vmul.f32 %v2604, %v2623
  %v2628 = vmul.f32 %v2605, %v2623
  %v2629 = vmul.f32 %v2606, %v2623
  %v2630 = vmul.f32 %v2607, %v2623
  %v2631 = vmul.f32 %v2608, %v2623
  %v2632 = vmul.f32 %v2609, %v2623
  %v2633 = vmul.f32 %v2610, %v2623
  %v2634 = vmul.f32 %v2611, %v2623
  %v2635 = vmul.f32 %v2612, %v2623
  %v2636 = vmul.f32 %v2613, %v2623
  %v2637 = vmul.f32 %v2614, %v2623
  %v2638 = vmul.f32 %v2615, %v2623
  %v2639 = vmul.f32 %v2616, %v2623
  %v2640 = vmul.f32 %v2617, %v2623
  %v2641 = vadd.f32 %v38, %v2625
  %v2642 = vadd.f32 %v39, %v2626
  %v2643 = vadd.f32 %v40, %v2627
  %v2644 = vadd.f32 %v41, %v2628
  %v2645 = vadd.f32 %v42, %v2629
  %v2646 = vadd.f32 %v43, %v2630
  %v2647 = vadd.f32 %v44, %v2631
  %v2648 = vadd.f32 %v45, %v2632
  %v2649 = vadd.f32 %v46, %v2633
  %v2650 = vadd.f32 %v47, %v2634
  %v2651 = vadd.f32 %v48, %v2635
  %v2652 = vadd.f32 %v49, %v2636
  %v2653 = vadd.f32 %v50, %v2637
  %v2654 = vadd.f32 %v51, %v2638
  %v2655 = vadd.f32 %v52, %v2639
  %v2656 = vadd.f32 %v53, %v2640
  %v2657 = vld [vmem:[%s8] sm:$0x1]
  %v2659 = vlaneseq
  %v2660 = vshrl.u32 %v2659, 7
  %v2661 = vsub.s32 0, %v2660
  %v2662 = vrot.slane %v2657, %v2661
  %v2664 = vadd.f32 %v2641, %v2662
  %v2665 = vadd.f32 %v2642, %v2662
  %v2666 = vadd.f32 %v2643, %v2662
  %v2667 = vadd.f32 %v2644, %v2662
  %v2668 = vadd.f32 %v2645, %v2662
  %v2669 = vadd.f32 %v2646, %v2662
  %v2670 = vadd.f32 %v2647, %v2662
  %v2671 = vadd.f32 %v2648, %v2662
  %v2672 = vadd.f32 %v2649, %v2662
  %v2673 = vadd.f32 %v2650, %v2662
  %v2674 = vadd.f32 %v2651, %v2662
  %v2675 = vadd.f32 %v2652, %v2662
  %v2676 = vadd.f32 %v2653, %v2662
  %v2677 = vadd.f32 %v2654, %v2662
  %v2678 = vadd.f32 %v2655, %v2662
  %v2679 = vadd.f32 %v2656, %v2662
  %v2680 = vmax.f32 %v2664, 0.0
  %v2681 = vmax.f32 %v2665, 0.0
  %v2682 = vmax.f32 %v2666, 0.0
  %v2683 = vmax.f32 %v2667, 0.0
  %v2684 = vmax.f32 %v2668, 0.0
  %v2685 = vmax.f32 %v2669, 0.0
  %v2686 = vmax.f32 %v2670, 0.0
  %v2687 = vmax.f32 %v2671, 0.0
  %v2688 = vmax.f32 %v2672, 0.0
  %v2689 = vmax.f32 %v2673, 0.0
  %v2690 = vmax.f32 %v2674, 0.0
  %v2691 = vmax.f32 %v2675, 0.0
  %v2692 = vmax.f32 %v2676, 0.0
  %v2693 = vmax.f32 %v2677, 0.0
  %v2694 = vmax.f32 %v2678, 0.0
  %v2695 = vmax.f32 %v2679, 0.0
  %v2696 = vmin.f32 %v2664, 0.0
  %v2697 = vmin.f32 %v2665, 0.0
  %v2698 = vmin.f32 %v2666, 0.0
  %v2699 = vmin.f32 %v2667, 0.0
  %v2700 = vmin.f32 %v2668, 0.0
  %v2701 = vmin.f32 %v2669, 0.0
  %v2702 = vmin.f32 %v2670, 0.0
  %v2703 = vmin.f32 %v2671, 0.0
  %v2704 = vmin.f32 %v2672, 0.0
  %v2705 = vmin.f32 %v2673, 0.0
  %v2706 = vmin.f32 %v2674, 0.0
  %v2707 = vmin.f32 %v2675, 0.0
  %v2708 = vmin.f32 %v2676, 0.0
  %v2709 = vmin.f32 %v2677, 0.0
  %v2710 = vmin.f32 %v2678, 0.0
  %v2711 = vmin.f32 %v2679, 0.0
  %v2712 = vmul.f32 %v2696, 0.25
  %v2713 = vmul.f32 %v2697, 0.25
  %v2714 = vmul.f32 %v2698, 0.25
  %v2715 = vmul.f32 %v2699, 0.25
  %v2716 = vmul.f32 %v2700, 0.25
  %v2717 = vmul.f32 %v2701, 0.25
  %v2718 = vmul.f32 %v2702, 0.25
  %v2719 = vmul.f32 %v2703, 0.25
  %v2720 = vmul.f32 %v2704, 0.25
  %v2721 = vmul.f32 %v2705, 0.25
  %v2722 = vmul.f32 %v2706, 0.25
  %v2723 = vmul.f32 %v2707, 0.25
  %v2724 = vmul.f32 %v2708, 0.25
  %v2725 = vmul.f32 %v2709, 0.25
  %v2726 = vmul.f32 %v2710, 0.25
  %v2727 = vmul.f32 %v2711, 0.25
  %v2728 = vadd.f32 %v2680, %v2712
  %v2729 = vadd.f32 %v2681, %v2713
  %v2730 = vadd.f32 %v2682, %v2714
  %v2731 = vadd.f32 %v2683, %v2715
  %v2732 = vadd.f32 %v2684, %v2716
  %v2733 = vadd.f32 %v2685, %v2717
  %v2734 = vadd.f32 %v2686, %v2718
  %v2735 = vadd.f32 %v2687, %v2719
  %v2736 = vadd.f32 %v2688, %v2720
  %v2737 = vadd.f32 %v2689, %v2721
  %v2738 = vadd.f32 %v2690, %v2722
  %v2739 = vadd.f32 %v2691, %v2723
  %v2740 = vadd.f32 %v2692, %v2724
  %v2741 = vadd.f32 %v2693, %v2725
  %v2742 = vadd.f32 %v2694, %v2726
  %v2743 = vadd.f32 %v2695, %v2727
  %v2744 = vld [vmem:[%s9] sm:$0xff]
  %v2745 = vld [vmem:[%s9 + $0x8] sm:$0xff]
  %v2746 = vld [vmem:[%s10] sm:$0x1]
  %v2748 = vlaneseq
  %v2749 = vshrl.u32 %v2748, 7
  %v2750 = vsub.s32 0, %v2749
  %v2751 = vrot.slane %v2746, %v2750
  %v2754 = vsel %vm58, %v2728, 0
  %v2757 = vsel %vm58, %v2729, 0
  %v2760 = vsel %vm58, %v2730, 0
  %v2763 = vsel %vm58, %v2731, 0
  %v2766 = vsel %vm58, %v2732, 0
  %v2769 = vsel %vm58, %v2733, 0
  %v2772 = vsel %vm58, %v2734, 0
  %v2775 = vsel %vm58, %v2735, 0
  %v2778 = vsel %vm58, %v2736, 0
  %v2781 = vsel %vm58, %v2737, 0
  %v2784 = vsel %vm58, %v2738, 0
  %v2787 = vsel %vm58, %v2739, 0
  %v2790 = vsel %vm58, %v2740, 0
  %v2793 = vsel %vm58, %v2741, 0
  %v2796 = vsel %vm58, %v2742, 0
  %v2799 = vsel %vm58, %v2743, 0
  %2801 = vmatprep.subr.mxu0 0.0
  %2802 = vmatpush1.msra.mxu0 0.0
  %2803 = vmatprep.subr.mxu0 0.0
  %2804 = vmatpush1.msra.mxu0 0.0
  %2805 = vmatprep.subr.mxu0 0.0
  %2806 = vmatpush1.msra.mxu0 0.0
  %2807 = vmatprep.subr.mxu0 0.0
  %2808 = vmatpush1.msra.mxu0 0.0
  %2809 = vmatprep.subr.mxu0 0.0
  %2810 = vmatpush1.msra.mxu0 0.0
  %2811 = vmatprep.subr.mxu0 0.0
  %2812 = vmatpush1.msra.mxu0 0.0
  %2813 = vmatprep.subr.mxu0 0.0
  %2814 = vmatpush1.msra.mxu0 0.0
  %2815 = vmatprep.subr.mxu0 0.0
  %2816 = vmatpush1.msra.mxu0 0.0
  %2817 = vmatprep.subr.mxu0 0.0
  %2818 = vmatpush1.msra.mxu0 0.0
  %2819 = vmatprep.subr.mxu0 0.0
  %2820 = vmatpush1.msra.mxu0 0.0
  %2821 = vmatprep.subr.mxu0 0.0
  %2822 = vmatpush1.msra.mxu0 0.0
  %2823 = vmatprep.subr.mxu0 0.0
  %2824 = vmatpush1.msra.mxu0 0.0
  %2825 = vmatprep.subr.mxu0 0.0
  %2826 = vmatpush1.msra.mxu0 0.0
  %2827 = vmatprep.subr.mxu0 0.0
  %2828 = vmatpush1.msra.mxu0 0.0
  %2829 = vmatprep.subr.mxu0 0.0
  %2830 = vmatpush1.msra.mxu0 %v2745
  %2831 = vmatprep.subr.mxu0 0.0
  %2832 = vmatpush1.msra.mxu0 %v2744
  %2833 = vmatprep.subr.mxu0 0.0
  %2834 = vmatpush2.msra.mxu0 0.0
  %2835 = vmatprep.subr.mxu0 0.0
  %2836 = vmatpush2.msra.mxu0 0.0
  %2837 = vmatprep.subr.mxu0 0.0
  %2838 = vmatpush2.msra.mxu0 0.0
  %2839 = vmatprep.subr.mxu0 0.0
  %2840 = vmatpush2.msra.mxu0 0.0
  %2841 = vmatprep.subr.mxu0 0.0
  %2842 = vmatpush2.msra.mxu0 0.0
  %2843 = vmatprep.subr.mxu0 0.0
  %2844 = vmatpush2.msra.mxu0 0.0
  %2845 = vmatprep.subr.mxu0 0.0
  %2846 = vmatpush2.msra.mxu0 0.0
  %2847 = vmatprep.subr.mxu0 0.0
  %2848 = vmatpush2.msra.mxu0 0.0
  %2849 = vmatprep.subr.mxu0 0.0
  %2850 = vmatpush2.msra.mxu0 0.0
  %2851 = vmatprep.subr.mxu0 0.0
  %2852 = vmatpush2.msra.mxu0 0.0
  %2853 = vmatprep.subr.mxu0 0.0
  %2854 = vmatpush2.msra.mxu0 0.0
  %2855 = vmatprep.subr.mxu0 0.0
  %2856 = vmatpush2.msra.mxu0 0.0
  %2857 = vmatprep.subr.mxu0 0.0
  %2858 = vmatpush2.msra.mxu0 0.0
  %2859 = vmatprep.subr.mxu0 0.0
  %2860 = vmatpush2.msra.mxu0 0.0
  %2861 = vmatprep.subr.mxu0 0.0
  %2862 = vmatpush2.msra.mxu0 0.0
  %2863 = vmatprep.subr.mxu0 0.0
  %2864 = vmatpush2.msra.mxu0 0.0
  %2865 = vmatprep.mubr.f32.mxu0 0.0
  %2866 = vmatmul.mubr.f32.gmra.mxu0 %v2754
  %v2867 = vpop.f32.mrf.mxu0
  %v2868 = vadd.f32 %v2751, %v2867
  %v2869 = vpop.f32.mrf.mxu0
  %2870 = vmatprep.mubr.f32.mxu0 0.0
  %2871 = vmatmul.mubr.f32.gmra.mxu0 %v2757
  %v2872 = vpop.f32.mrf.mxu0
  %v2873 = vadd.f32 %v2751, %v2872
  %v2874 = vpop.f32.mrf.mxu0
  %2875 = vmatprep.mubr.f32.mxu0 0.0
  %2876 = vmatmul.mubr.f32.gmra.mxu0 %v2760
  %v2877 = vpop.f32.mrf.mxu0
  %v2878 = vadd.f32 %v2751, %v2877
  %v2879 = vpop.f32.mrf.mxu0
  %2880 = vmatprep.mubr.f32.mxu0 0.0
  %2881 = vmatmul.mubr.f32.gmra.mxu0 %v2763
  %v2882 = vpop.f32.mrf.mxu0
  %v2883 = vadd.f32 %v2751, %v2882
  %v2884 = vpop.f32.mrf.mxu0
  %2885 = vmatprep.mubr.f32.mxu0 0.0
  %2886 = vmatmul.mubr.f32.gmra.mxu0 %v2766
  %v2887 = vpop.f32.mrf.mxu0
  %v2888 = vadd.f32 %v2751, %v2887
  %v2889 = vpop.f32.mrf.mxu0
  %2890 = vmatprep.mubr.f32.mxu0 0.0
  %2891 = vmatmul.mubr.f32.gmra.mxu0 %v2769
  %v2892 = vpop.f32.mrf.mxu0
  %v2893 = vadd.f32 %v2751, %v2892
  %v2894 = vpop.f32.mrf.mxu0
  %2895 = vmatprep.mubr.f32.mxu0 0.0
  %2896 = vmatmul.mubr.f32.gmra.mxu0 %v2772
  %v2897 = vpop.f32.mrf.mxu0
  %v2898 = vadd.f32 %v2751, %v2897
  %v2899 = vpop.f32.mrf.mxu0
  %2900 = vmatprep.mubr.f32.mxu0 0.0
  %2901 = vmatmul.mubr.f32.gmra.mxu0 %v2775
  %v2902 = vpop.f32.mrf.mxu0
  %v2903 = vadd.f32 %v2751, %v2902
  %v2904 = vpop.f32.mrf.mxu0
  %2905 = vmatprep.mubr.f32.mxu0 0.0
  %2906 = vmatmul.mubr.f32.gmra.mxu0 %v2778
  %v2907 = vpop.f32.mrf.mxu0
  %v2908 = vadd.f32 %v2751, %v2907
  %v2909 = vpop.f32.mrf.mxu0
  %2910 = vmatprep.mubr.f32.mxu0 0.0
  %2911 = vmatmul.mubr.f32.gmra.mxu0 %v2781
  %v2912 = vpop.f32.mrf.mxu0
  %v2913 = vadd.f32 %v2751, %v2912
  %v2914 = vpop.f32.mrf.mxu0
  %2915 = vmatprep.mubr.f32.mxu0 0.0
  %2916 = vmatmul.mubr.f32.gmra.mxu0 %v2784
  %v2917 = vpop.f32.mrf.mxu0
  %v2918 = vadd.f32 %v2751, %v2917
  %v2919 = vpop.f32.mrf.mxu0
  %2920 = vmatprep.mubr.f32.mxu0 0.0
  %2921 = vmatmul.mubr.f32.gmra.mxu0 %v2787
  %v2922 = vpop.f32.mrf.mxu0
  %v2923 = vadd.f32 %v2751, %v2922
  %v2924 = vpop.f32.mrf.mxu0
  %2925 = vmatprep.mubr.f32.mxu0 0.0
  %2926 = vmatmul.mubr.f32.gmra.mxu0 %v2790
  %v2927 = vpop.f32.mrf.mxu0
  %v2928 = vadd.f32 %v2751, %v2927
  %v2929 = vpop.f32.mrf.mxu0
  %2930 = vmatprep.mubr.f32.mxu0 0.0
  %2931 = vmatmul.mubr.f32.gmra.mxu0 %v2793
  %v2932 = vpop.f32.mrf.mxu0
  %v2933 = vadd.f32 %v2751, %v2932
  %v2934 = vpop.f32.mrf.mxu0
  %2935 = vmatprep.mubr.f32.mxu0 0.0
  %2936 = vmatmul.mubr.f32.gmra.mxu0 %v2796
  %v2937 = vpop.f32.mrf.mxu0
  %v2938 = vadd.f32 %v2751, %v2937
  %v2939 = vpop.f32.mrf.mxu0
  %2940 = vmatprep.mubr.f32.mxu0 0.0
  %2941 = vmatmul.mubr.f32.gmra.mxu0 %v2799
  %v2942 = vpop.f32.mrf.mxu0
  %v2943 = vadd.f32 %v2751, %v2942
  %v2944 = vpop.f32.mrf.mxu0
  %2945 = vdwg.mxu0
  %2946 = vst.msk [vmem:[%s11] sm:$0xff] %vm317, %v2868
  %2947 = vst.msk [vmem:[%s11 + $0x8] sm:$0xff] %vm317, %v2873
  %2948 = vst.msk [vmem:[%s11 + $0x10] sm:$0xff] %vm317, %v2878
  %2949 = vst.msk [vmem:[%s11 + $0x18] sm:$0xff] %vm317, %v2883
  %2950 = vst.msk [vmem:[%s11 + $0x20] sm:$0xff] %vm317, %v2888
  %2951 = vst.msk [vmem:[%s11 + $0x28] sm:$0xff] %vm317, %v2893
  %2952 = vst.msk [vmem:[%s11 + $0x30] sm:$0xff] %vm317, %v2898
  %2953 = vst.msk [vmem:[%s11 + $0x38] sm:$0xff] %vm317, %v2903
  %2954 = vst.msk [vmem:[%s11 + $0x40] sm:$0xff] %vm317, %v2908
  %2955 = vst.msk [vmem:[%s11 + $0x48] sm:$0xff] %vm317, %v2913
  %2956 = vst.msk [vmem:[%s11 + $0x50] sm:$0xff] %vm317, %v2918
  %2957 = vst.msk [vmem:[%s11 + $0x58] sm:$0xff] %vm317, %v2923
  %2958 = vst.msk [vmem:[%s11 + $0x60] sm:$0xff] %vm317, %v2928
  %2959 = vst.msk [vmem:[%s11 + $0x68] sm:$0xff] %vm317, %v2933
  %2960 = vst.msk [vmem:[%s11 + $0x70] sm:$0xff] %vm317, %v2938
  %2961 = vst.msk [vmem:[%s11 + $0x78] sm:$0xff] %vm317, %v2943
  // Predicated region
  $region46: #{fasnet_forward.10} parent=0 // pred_check
    _
  $region47: #{fasnet_forward.10} parent=0 // pred_check_branch
    %2963 = sbr.rel (0) target = $region49
  $region48: #{fasnet_forward.10} parent=0 // pred_region
    _
  $region49: #{fasnet_forward.10} parent=0 // pred_fallthru
    _
  // Predicated region
  $region50: #{fasnet_forward.10} parent=0 // pred_check
    _
  $region51: #{fasnet_forward.10} parent=0 // pred_check_branch
    %2965 = sbr.rel (0) target = $region53
  $region52: #{fasnet_forward.10} parent=0 // pred_region
    _
  $region53: #{fasnet_forward.10} parent=0 // pred_fallthru
    _

</llo_original>
